<compile_context>
chip_gen: v7x
topology: tpu7x:2x2x1
jax: 0.10.0
libtpu: 0.0.40
codegen_flags: <defaults>
</compile_context>

<pallas_src>
import jax
import jax.numpy as jnp
from jax.experimental import pallas as pl
from jax.experimental.pallas import tpu as pltpu


# ----------------------------- Pallas kernels ------------------------------


def _conv_stack_kernel(x_ref, w1_ref, b1_ref, w2_ref, b2_ref, w3_ref, b3_ref,
                       o_ref,
                       pad1, pbuf1, pad2, pbuf2, pad3, pbuf3):
    """All three (conv3x3 + folded-BN + ReLU) layers for one batch element.

    x_ref : (1, H, W, C0)        NHWC input tile
    wK    : (9*Cin_K, Cout_K)    im2col weights, tap-major rows, BN scale folded
    bK    : (1, Cout_K)          folded BN bias
    o_ref : (1, H*W, C3)         layer-3 activations, row index = h*W + w
    padK  : (H+2, W+2, Cin_K)    VMEM zero-padded input scratch for layer K
    pbufK : (H*W, 9*Cin_K)       VMEM im2col patch scratch for layer K
    """
    H, W = x_ref.shape[1], x_ref.shape[2]

    def conv3x3(pad_ref, pbuf_ref, w_ref, b_ref):
        cin = pad_ref.shape[-1]
        # Build the im2col patch matrix in VMEM: one column block per tap.
        for kh in range(3):
            for kw in range(3):
                t = kh * 3 + kw
                pbuf_ref[:, t * cin:(t + 1) * cin] = (
                    pad_ref[kh:kh + H, kw:kw + W, :].reshape(H * W, cin))
        # One deep matmul per layer (K = 9*cin) + bias + ReLU.
        y = jnp.dot(pbuf_ref[...], w_ref[...],
                    preferred_element_type=jnp.float32) + b_ref[...]
        return jnp.maximum(y, 0.0)                      # (H*W, cout)

    # ---- layer 1 ----
    pad1[...] = jnp.zeros_like(pad1)
    pad1[1:H + 1, 1:W + 1, :] = x_ref[0]
    h1 = conv3x3(pad1, pbuf1, w1_ref, b1_ref)           # (H*W, C1)

    # ---- layer 2 ----
    pad2[...] = jnp.zeros_like(pad2)
    pad2[1:H + 1, 1:W + 1, :] = h1.reshape(H, W, h1.shape[-1])
    h2 = conv3x3(pad2, pbuf2, w2_ref, b2_ref)           # (H*W, C2)

    # ---- layer 3 ----
    pad3[...] = jnp.zeros_like(pad3)
    pad3[1:H + 1, 1:W + 1, :] = h2.reshape(H, W, h2.shape[-1])
    o_ref[0] = conv3x3(pad3, pbuf3, w3_ref, b3_ref)     # (H*W, C3)


def _fc_stack_kernel(x_ref, w1_ref, b1_ref, w2_ref, b2_ref, w3_ref, b3_ref,
                     o_ref):
    """fc1(ReLU) -> fc2 -> fc3 fully resident in VMEM."""
    h = jnp.dot(x_ref[...], w1_ref[...], preferred_element_type=jnp.float32)
    h = jnp.maximum(h + b1_ref[...], 0.0)
    h = jnp.dot(h, w2_ref[...], preferred_element_type=jnp.float32) + b2_ref[...]
    o_ref[...] = (jnp.dot(h, w3_ref[...], preferred_element_type=jnp.float32)
                  + b3_ref[...])


# ------------------------------ Wrappers ------------------------------------


def conv_stack(x_nhwc, cp):
    N, H, W, C0 = x_nhwc.shape
    C1 = cp["w1"].shape[1]
    C2 = cp["w2"].shape[1]
    C3 = cp["w3"].shape[1]
    return pl.pallas_call(
        _conv_stack_kernel,
        out_shape=jax.ShapeDtypeStruct((N, H * W, C3), jnp.float32),
        grid=(N,),
        in_specs=[
            pl.BlockSpec((1, H, W, C0), lambda n: (n, 0, 0, 0)),
            pl.BlockSpec(cp["w1"].shape, lambda n: (0, 0)),
            pl.BlockSpec(cp["b1"].shape, lambda n: (0, 0)),
            pl.BlockSpec(cp["w2"].shape, lambda n: (0, 0)),
            pl.BlockSpec(cp["b2"].shape, lambda n: (0, 0)),
            pl.BlockSpec(cp["w3"].shape, lambda n: (0, 0)),
            pl.BlockSpec(cp["b3"].shape, lambda n: (0, 0)),
        ],
        out_specs=pl.BlockSpec((1, H * W, C3), lambda n: (n, 0, 0)),
        scratch_shapes=[
            pltpu.VMEM((H + 2, W + 2, C0), jnp.float32),
            pltpu.VMEM((H * W, 9 * C0), jnp.float32),
            pltpu.VMEM((H + 2, W + 2, C1), jnp.float32),
            pltpu.VMEM((H * W, 9 * C1), jnp.float32),
            pltpu.VMEM((H + 2, W + 2, C2), jnp.float32),
            pltpu.VMEM((H * W, 9 * C2), jnp.float32),
        ],
        compiler_params=pltpu.CompilerParams(
            dimension_semantics=("parallel",)),
    )(x_nhwc, cp["w1"], cp["b1"], cp["w2"], cp["b2"], cp["w3"], cp["b3"])


def fc_stack(x_flat, fp):
    N, Din = x_flat.shape
    A = fp["w3"].shape[1]
    return pl.pallas_call(
        _fc_stack_kernel,
        out_shape=jax.ShapeDtypeStruct((N, A), jnp.float32),
        grid=(1,),
        in_specs=[
            pl.BlockSpec((N, Din), lambda i: (0, 0)),
            pl.BlockSpec(fp["w1"].shape, lambda i: (0, 0)),
            pl.BlockSpec(fp["b1"].shape, lambda i: (0, 0)),
            pl.BlockSpec(fp["w2"].shape, lambda i: (0, 0)),
            pl.BlockSpec(fp["b2"].shape, lambda i: (0, 0)),
            pl.BlockSpec(fp["w3"].shape, lambda i: (0, 0)),
            pl.BlockSpec(fp["b3"].shape, lambda i: (0, 0)),
        ],
        out_specs=pl.BlockSpec((N, A), lambda i: (0, 0)),
    )(x_flat, fp["w1"], fp["b1"], fp["w2"], fp["b2"], fp["w3"], fp["b3"])


def qnetwork_forward(x_nchw, kparams):
    """Pallas forward. Input is NCHW float32 (like the PyTorch module)."""
    x_nhwc = jnp.transpose(x_nchw, (0, 2, 3, 1))       # tiny, raw input only
    feats = conv_stack(x_nhwc, kparams["conv"])        # (N, H*W, C3)
    flat = feats.reshape(feats.shape[0], -1)           # contiguous -> free
    return fc_stack(flat, kparams["fc"])


# --------------------------- Parameter construction --------------------------


def init_params(key, in_ch, num_filters, fc_layers, action_size, curr_dim):
    """Deterministic synthetic params (PyTorch layouts) + kernel-ready copies."""
    eps = 1e-5
    H = W = curr_dim
    kparams = {"conv": {}, "fc": {}}
    ref_params = {"convs": [], "fcs": []}

    cins = [in_ch, num_filters[0], num_filters[1]]
    couts = list(num_filters)
    for idx, (cin, cout) in enumerate(zip(cins, couts), start=1):
        key, k1, k2, k3, k4, k5 = jax.random.split(key, 6)
        w_oihw = jax.random.normal(k1, (cout, cin, 3, 3), jnp.float32) * (
            1.0 / jnp.sqrt(9.0 * cin))
        gamma = 1.0 + 0.1 * jax.random.normal(k2, (cout,), jnp.float32)
        beta = 0.1 * jax.random.normal(k3, (cout,), jnp.float32)
        rmean = 0.1 * jax.random.normal(k4, (cout,), jnp.float32)
        rvar = 1.0 + 0.1 * jnp.abs(jax.random.normal(k5, (cout,), jnp.float32))
        scale = gamma / jnp.sqrt(rvar + eps)
        bias = beta - rmean * scale
        ref_params["convs"].append((w_oihw, scale, bias))
        # Fold BN scale into the conv weight; tap-major (kh,kw,cin) row order
        # to match the kernel's im2col column order.
        w_folded = w_oihw * scale[:, None, None, None]
        w_k = jnp.transpose(w_folded, (2, 3, 1, 0)).reshape(9 * cin, cout)
        kparams["conv"][f"w{idx}"] = w_k
        kparams["conv"][f"b{idx}"] = bias.reshape(1, cout)

    C3 = num_filters[2]
    flat_dim = C3 * H * W
    dims = [(flat_dim, fc_layers[0]), (fc_layers[0], fc_layers[1]),
            (fc_layers[1], action_size)]
    for idx, (din, dout) in enumerate(dims, start=1):
        key, kw_, kb = jax.random.split(key, 3)
        w_pt = jax.random.normal(kw_, (dout, din), jnp.float32) * (
            1.0 / jnp.sqrt(float(din)))
        b = 0.01 * jax.random.normal(kb, (dout,), jnp.float32)
        ref_params["fcs"].append((w_pt, b))
        if idx == 1:
            # Permute rows from PyTorch's (C,H,W) flatten order to the kernel's
            # (H,W,C) flatten order -> no activation transpose at runtime.
            w_k = (w_pt.reshape(dout, C3, H, W)
                   .transpose(0, 2, 3, 1)
                   .reshape(dout, din).T)
        else:
            w_k = w_pt.T
        kparams["fc"][f"w{idx}"] = w_k
        kparams["fc"][f"b{idx}"] = b.reshape(1, dout)
    return kparams, ref_params


def reference_forward(x_nchw, ref_params):
    """Pure-JAX reference mirroring the PyTorch module (eval-mode BN)."""
    x = x_nchw
    for (w_oihw, scale, bias) in ref_params["convs"]:
        y = jax.lax.conv_general_dilated(
            x, w_oihw, window_strides=(1, 1), padding=((1, 1), (1, 1)),
            dimension_numbers=("NCHW", "OIHW", "NCHW"))
        y = y * scale[None, :, None, None] + bias[None, :, None, None]
        x = jnp.maximum(y, 0.0)
    x = x.reshape(x.shape[0], -1)                      # PyTorch C,H,W flatten
    (w1, b1), (w2, b2), (w3, b3) = ref_params["fcs"]
    x = jnp.maximum(x @ w1.T + b1, 0.0)
    x = x @ w2.T + b2
    x = x @ w3.T + b3
    return x


# --------------------------------- Driver -----------------------------------

if __name__ == "__main__":
    # Small config consistent with the module (the PyTorch module hard-codes
    # in_ch=3 and curr_dim=84; here we use spatial=16 as curr_dim).
    batch = 2
    in_ch = 3
    spatial = 16          # curr_dim
    num_filters = [8, 16, 32]
    fc_layers = [64, 64]
    action_size = 4

    key = jax.random.PRNGKey(0)
    key, kx = jax.random.split(key)
    x = jax.random.normal(kx, (batch, in_ch, spatial, spatial), jnp.float32)

    kparams, ref_params = init_params(key, in_ch, num_filters, fc_layers,
                                      action_size, spatial)

    fwd = jax.jit(qnetwork_forward)
    out = jax.block_until_ready(fwd(x, kparams))

    ref = jax.block_until_ready(reference_forward(x, ref_params))
    assert out.shape == (batch, action_size), out.shape
    assert jnp.allclose(out, ref, rtol=2e-3, atol=2e-3), (
        f"max abs err {jnp.max(jnp.abs(out - ref))}")

    print("KERNEL_OK")
</pallas_src>

<mosaic_0001>
module attributes {stable_mosaic.version = 11 : i64} {
  func.func @_conv_stack_kernel(%arg0: i32, %arg1: memref<1x16x16x3xf32, #tpu.memory_space<vmem>>, %arg2: memref<27x8xf32, #tpu.memory_space<vmem>>, %arg3: memref<1x8xf32, #tpu.memory_space<vmem>>, %arg4: memref<72x16xf32, #tpu.memory_space<vmem>>, %arg5: memref<1x16xf32, #tpu.memory_space<vmem>>, %arg6: memref<144x32xf32, #tpu.memory_space<vmem>>, %arg7: memref<1x32xf32, #tpu.memory_space<vmem>>, %arg8: memref<1x256x32xf32, #tpu.memory_space<vmem>>, %arg9: memref<18x18x3xf32, #tpu.memory_space<vmem>>, %arg10: memref<256x27xf32, #tpu.memory_space<vmem>>, %arg11: memref<18x18x8xf32, #tpu.memory_space<vmem>>, %arg12: memref<256x72xf32, #tpu.memory_space<vmem>>, %arg13: memref<18x18x16xf32, #tpu.memory_space<vmem>>, %arg14: memref<256x144xf32, #tpu.memory_space<vmem>>) attributes {dimension_semantics = [#tpu.dimension_semantics<parallel>], iteration_bounds = array<i64: 2>, scalar_prefetch = 0 : i64, scratch_operands = 6 : i64, tpu.core_type = #tpu.core_type<tc>, window_params = [{transform_indices = @transform_0, window_bounds = array<i64: 1, 16, 16, 3>}, {pipeline_mode = #tpu.pipeline_mode<synchronous>, transform_indices = @transform_1, window_bounds = array<i64: 27, 8>}, {pipeline_mode = #tpu.pipeline_mode<synchronous>, transform_indices = @transform_2, window_bounds = array<i64: 1, 8>}, {pipeline_mode = #tpu.pipeline_mode<synchronous>, transform_indices = @transform_3, window_bounds = array<i64: 72, 16>}, {pipeline_mode = #tpu.pipeline_mode<synchronous>, transform_indices = @transform_4, window_bounds = array<i64: 1, 16>}, {pipeline_mode = #tpu.pipeline_mode<synchronous>, transform_indices = @transform_5, window_bounds = array<i64: 144, 32>}, {pipeline_mode = #tpu.pipeline_mode<synchronous>, transform_indices = @transform_6, window_bounds = array<i64: 1, 32>}, {transform_indices = @transform_7, window_bounds = array<i64: 1, 256, 32>}]} {
    %cst = arith.constant 0.000000e+00 : f32
    %0 = vector.broadcast %cst : f32 to vector<18x18x3xf32>
    %c0 = arith.constant 0 : index
    %c0_0 = arith.constant 0 : index
    %c0_1 = arith.constant 0 : index
    %1 = vector.load %arg9[%c0, %c0_0, %c0_1] : memref<18x18x3xf32, #tpu.memory_space<vmem>>, vector<18x18x3xf32>
    tpu.vector_store %arg9[%c0, %c0_0, %c0_1], %0 {strides = array<i32>} : memref<18x18x3xf32, #tpu.memory_space<vmem>>, vector<18x18x3xf32>,
    %c0_2 = arith.constant 0 : index
    %c0_3 = arith.constant 0 : index
    %c0_4 = arith.constant 0 : index
    %c0_5 = arith.constant 0 : index
    %2 = vector.load %arg1[%c0_2, %c0_3, %c0_4, %c0_5] : memref<1x16x16x3xf32, #tpu.memory_space<vmem>>, vector<1x16x16x3xf32>
    %3 = vector.shape_cast %2 : vector<1x16x16x3xf32> to vector<16x16x3xf32>
    %c1 = arith.constant 1 : index
    %c1_6 = arith.constant 1 : index
    %c0_7 = arith.constant 0 : index
    %4 = vector.load %arg9[%c1, %c1_6, %c0_7] : memref<18x18x3xf32, #tpu.memory_space<vmem>>, vector<16x16x3xf32>
    tpu.vector_store %arg9[%c1, %c1_6, %c0_7], %3 {strides = array<i32>} : memref<18x18x3xf32, #tpu.memory_space<vmem>>, vector<16x16x3xf32>,
    %c0_8 = arith.constant 0 : index
    %c0_9 = arith.constant 0 : index
    %c0_10 = arith.constant 0 : index
    %5 = vector.load %arg9[%c0_8, %c0_9, %c0_10] : memref<18x18x3xf32, #tpu.memory_space<vmem>>, vector<16x16x3xf32>
    %6 = vector.shape_cast %5 : vector<16x16x3xf32> to vector<256x3xf32>
    %c0_11 = arith.constant 0 : index
    %c0_12 = arith.constant 0 : index
    %7 = vector.load %arg10[%c0_11, %c0_12] : memref<256x27xf32, #tpu.memory_space<vmem>>, vector<256x3xf32>
    tpu.vector_store %arg10[%c0_11, %c0_12], %6 {strides = array<i32>} : memref<256x27xf32, #tpu.memory_space<vmem>>, vector<256x3xf32>,
    %c0_13 = arith.constant 0 : index
    %c1_14 = arith.constant 1 : index
    %c0_15 = arith.constant 0 : index
    %8 = vector.load %arg9[%c0_13, %c1_14, %c0_15] : memref<18x18x3xf32, #tpu.memory_space<vmem>>, vector<16x16x3xf32>
    %9 = vector.shape_cast %8 : vector<16x16x3xf32> to vector<256x3xf32>
    %c0_16 = arith.constant 0 : index
    %c3 = arith.constant 3 : index
    %10 = vector.load %arg10[%c0_16, %c3] : memref<256x27xf32, #tpu.memory_space<vmem>>, vector<256x3xf32>
    tpu.vector_store %arg10[%c0_16, %c3], %9 {strides = array<i32>} : memref<256x27xf32, #tpu.memory_space<vmem>>, vector<256x3xf32>,
    %c0_17 = arith.constant 0 : index
    %c2 = arith.constant 2 : index
    %c0_18 = arith.constant 0 : index
    %11 = vector.load %arg9[%c0_17, %c2, %c0_18] : memref<18x18x3xf32, #tpu.memory_space<vmem>>, vector<16x16x3xf32>
    %12 = vector.shape_cast %11 : vector<16x16x3xf32> to vector<256x3xf32>
    %c0_19 = arith.constant 0 : index
    %c6 = arith.constant 6 : index
    %13 = vector.load %arg10[%c0_19, %c6] : memref<256x27xf32, #tpu.memory_space<vmem>>, vector<256x3xf32>
    tpu.vector_store %arg10[%c0_19, %c6], %12 {strides = array<i32>} : memref<256x27xf32, #tpu.memory_space<vmem>>, vector<256x3xf32>,
    %c1_20 = arith.constant 1 : index
    %c0_21 = arith.constant 0 : index
    %c0_22 = arith.constant 0 : index
    %14 = vector.load %arg9[%c1_20, %c0_21, %c0_22] : memref<18x18x3xf32, #tpu.memory_space<vmem>>, vector<16x16x3xf32>
    %15 = vector.shape_cast %14 : vector<16x16x3xf32> to vector<256x3xf32>
    %c0_23 = arith.constant 0 : index
    %c9 = arith.constant 9 : index
    %16 = vector.load %arg10[%c0_23, %c9] : memref<256x27xf32, #tpu.memory_space<vmem>>, vector<256x3xf32>
    tpu.vector_store %arg10[%c0_23, %c9], %15 {strides = array<i32>} : memref<256x27xf32, #tpu.memory_space<vmem>>, vector<256x3xf32>,
    %c1_24 = arith.constant 1 : index
    %c1_25 = arith.constant 1 : index
    %c0_26 = arith.constant 0 : index
    %17 = vector.load %arg9[%c1_24, %c1_25, %c0_26] : memref<18x18x3xf32, #tpu.memory_space<vmem>>, vector<16x16x3xf32>
    %18 = vector.shape_cast %17 : vector<16x16x3xf32> to vector<256x3xf32>
    %c0_27 = arith.constant 0 : index
    %c12 = arith.constant 12 : index
    %19 = vector.load %arg10[%c0_27, %c12] : memref<256x27xf32, #tpu.memory_space<vmem>>, vector<256x3xf32>
    tpu.vector_store %arg10[%c0_27, %c12], %18 {strides = array<i32>} : memref<256x27xf32, #tpu.memory_space<vmem>>, vector<256x3xf32>,
    %c1_28 = arith.constant 1 : index
    %c2_29 = arith.constant 2 : index
    %c0_30 = arith.constant 0 : index
    %20 = vector.load %arg9[%c1_28, %c2_29, %c0_30] : memref<18x18x3xf32, #tpu.memory_space<vmem>>, vector<16x16x3xf32>
    %21 = vector.shape_cast %20 : vector<16x16x3xf32> to vector<256x3xf32>
    %c0_31 = arith.constant 0 : index
    %c15 = arith.constant 15 : index
    %22 = vector.load %arg10[%c0_31, %c15] : memref<256x27xf32, #tpu.memory_space<vmem>>, vector<256x3xf32>
    tpu.vector_store %arg10[%c0_31, %c15], %21 {strides = array<i32>} : memref<256x27xf32, #tpu.memory_space<vmem>>, vector<256x3xf32>,
    %c2_32 = arith.constant 2 : index
    %c0_33 = arith.constant 0 : index
    %c0_34 = arith.constant 0 : index
    %23 = vector.load %arg9[%c2_32, %c0_33, %c0_34] : memref<18x18x3xf32, #tpu.memory_space<vmem>>, vector<16x16x3xf32>
    %24 = vector.shape_cast %23 : vector<16x16x3xf32> to vector<256x3xf32>
    %c0_35 = arith.constant 0 : index
    %c18 = arith.constant 18 : index
    %25 = vector.load %arg10[%c0_35, %c18] : memref<256x27xf32, #tpu.memory_space<vmem>>, vector<256x3xf32>
    tpu.vector_store %arg10[%c0_35, %c18], %24 {strides = array<i32>} : memref<256x27xf32, #tpu.memory_space<vmem>>, vector<256x3xf32>,
    %c2_36 = arith.constant 2 : index
    %c1_37 = arith.constant 1 : index
    %c0_38 = arith.constant 0 : index
    %26 = vector.load %arg9[%c2_36, %c1_37, %c0_38] : memref<18x18x3xf32, #tpu.memory_space<vmem>>, vector<16x16x3xf32>
    %27 = vector.shape_cast %26 : vector<16x16x3xf32> to vector<256x3xf32>
    %c0_39 = arith.constant 0 : index
    %c21 = arith.constant 21 : index
    %28 = vector.load %arg10[%c0_39, %c21] : memref<256x27xf32, #tpu.memory_space<vmem>>, vector<256x3xf32>
    tpu.vector_store %arg10[%c0_39, %c21], %27 {strides = array<i32>} : memref<256x27xf32, #tpu.memory_space<vmem>>, vector<256x3xf32>,
    %c2_40 = arith.constant 2 : index
    %c2_41 = arith.constant 2 : index
    %c0_42 = arith.constant 0 : index
    %29 = vector.load %arg9[%c2_40, %c2_41, %c0_42] : memref<18x18x3xf32, #tpu.memory_space<vmem>>, vector<16x16x3xf32>
    %30 = vector.shape_cast %29 : vector<16x16x3xf32> to vector<256x3xf32>
    %c0_43 = arith.constant 0 : index
    %c24 = arith.constant 24 : index
    %31 = vector.load %arg10[%c0_43, %c24] : memref<256x27xf32, #tpu.memory_space<vmem>>, vector<256x3xf32>
    tpu.vector_store %arg10[%c0_43, %c24], %30 {strides = array<i32>} : memref<256x27xf32, #tpu.memory_space<vmem>>, vector<256x3xf32>,
    %c0_44 = arith.constant 0 : index
    %c0_45 = arith.constant 0 : index
    %32 = vector.load %arg10[%c0_44, %c0_45] : memref<256x27xf32, #tpu.memory_space<vmem>>, vector<256x27xf32>
    %c0_46 = arith.constant 0 : index
    %c0_47 = arith.constant 0 : index
    %33 = vector.load %arg2[%c0_46, %c0_47] : memref<27x8xf32, #tpu.memory_space<vmem>>, vector<27x8xf32>
    %cst_48 = arith.constant dense<0.000000e+00> : vector<256x8xf32>
    %34 = tpu.matmul %32, %33, %cst_48 {dimension_numbers = #tpu.dot_dimension_numbers<[1], [0], [0], [1], [0, 0, 1, 1], [], []>} : vector<256x27xf32>, vector<27x8xf32>, vector<256x8xf32> -> vector<256x8xf32>
    %c0_49 = arith.constant 0 : index
    %c0_50 = arith.constant 0 : index
    %35 = vector.load %arg3[%c0_49, %c0_50] : memref<1x8xf32, #tpu.memory_space<vmem>>, vector<1x8xf32>
    %36 = vector.broadcast %35 : vector<1x8xf32> to vector<256x8xf32>
    %37 = arith.addf %34, %36 : vector<256x8xf32>
    %cst_51 = arith.constant 0.000000e+00 : f32
    %38 = vector.broadcast %cst_51 : f32 to vector<256x8xf32>
    %39 = arith.maximumf %37, %38 : vector<256x8xf32>
    %cst_52 = arith.constant 0.000000e+00 : f32
    %40 = vector.broadcast %cst_52 : f32 to vector<18x18x8xf32>
    %c0_53 = arith.constant 0 : index
    %c0_54 = arith.constant 0 : index
    %c0_55 = arith.constant 0 : index
    %41 = vector.load %arg11[%c0_53, %c0_54, %c0_55] : memref<18x18x8xf32, #tpu.memory_space<vmem>>, vector<18x18x8xf32>
    tpu.vector_store %arg11[%c0_53, %c0_54, %c0_55], %40 {strides = array<i32>} : memref<18x18x8xf32, #tpu.memory_space<vmem>>, vector<18x18x8xf32>,
    %42 = vector.shape_cast %39 : vector<256x8xf32> to vector<16x16x8xf32>
    %c1_56 = arith.constant 1 : index
    %c1_57 = arith.constant 1 : index
    %c0_58 = arith.constant 0 : index
    %43 = vector.load %arg11[%c1_56, %c1_57, %c0_58] : memref<18x18x8xf32, #tpu.memory_space<vmem>>, vector<16x16x8xf32>
    tpu.vector_store %arg11[%c1_56, %c1_57, %c0_58], %42 {strides = array<i32>} : memref<18x18x8xf32, #tpu.memory_space<vmem>>, vector<16x16x8xf32>,
    %c0_59 = arith.constant 0 : index
    %c0_60 = arith.constant 0 : index
    %c0_61 = arith.constant 0 : index
    %44 = vector.load %arg11[%c0_59, %c0_60, %c0_61] : memref<18x18x8xf32, #tpu.memory_space<vmem>>, vector<16x16x8xf32>
    %45 = vector.shape_cast %44 : vector<16x16x8xf32> to vector<256x8xf32>
    %c0_62 = arith.constant 0 : index
    %c0_63 = arith.constant 0 : index
    %46 = vector.load %arg12[%c0_62, %c0_63] : memref<256x72xf32, #tpu.memory_space<vmem>>, vector<256x8xf32>
    tpu.vector_store %arg12[%c0_62, %c0_63], %45 {strides = array<i32>} : memref<256x72xf32, #tpu.memory_space<vmem>>, vector<256x8xf32>,
    %c0_64 = arith.constant 0 : index
    %c1_65 = arith.constant 1 : index
    %c0_66 = arith.constant 0 : index
    %47 = vector.load %arg11[%c0_64, %c1_65, %c0_66] : memref<18x18x8xf32, #tpu.memory_space<vmem>>, vector<16x16x8xf32>
    %48 = vector.shape_cast %47 : vector<16x16x8xf32> to vector<256x8xf32>
    %c0_67 = arith.constant 0 : index
    %c8 = arith.constant 8 : index
    %49 = vector.load %arg12[%c0_67, %c8] : memref<256x72xf32, #tpu.memory_space<vmem>>, vector<256x8xf32>
    tpu.vector_store %arg12[%c0_67, %c8], %48 {strides = array<i32>} : memref<256x72xf32, #tpu.memory_space<vmem>>, vector<256x8xf32>,
    %c0_68 = arith.constant 0 : index
    %c2_69 = arith.constant 2 : index
    %c0_70 = arith.constant 0 : index
    %50 = vector.load %arg11[%c0_68, %c2_69, %c0_70] : memref<18x18x8xf32, #tpu.memory_space<vmem>>, vector<16x16x8xf32>
    %51 = vector.shape_cast %50 : vector<16x16x8xf32> to vector<256x8xf32>
    %c0_71 = arith.constant 0 : index
    %c16 = arith.constant 16 : index
    %52 = vector.load %arg12[%c0_71, %c16] : memref<256x72xf32, #tpu.memory_space<vmem>>, vector<256x8xf32>
    tpu.vector_store %arg12[%c0_71, %c16], %51 {strides = array<i32>} : memref<256x72xf32, #tpu.memory_space<vmem>>, vector<256x8xf32>,
    %c1_72 = arith.constant 1 : index
    %c0_73 = arith.constant 0 : index
    %c0_74 = arith.constant 0 : index
    %53 = vector.load %arg11[%c1_72, %c0_73, %c0_74] : memref<18x18x8xf32, #tpu.memory_space<vmem>>, vector<16x16x8xf32>
    %54 = vector.shape_cast %53 : vector<16x16x8xf32> to vector<256x8xf32>
    %c0_75 = arith.constant 0 : index
    %c24_76 = arith.constant 24 : index
    %55 = vector.load %arg12[%c0_75, %c24_76] : memref<256x72xf32, #tpu.memory_space<vmem>>, vector<256x8xf32>
    tpu.vector_store %arg12[%c0_75, %c24_76], %54 {strides = array<i32>} : memref<256x72xf32, #tpu.memory_space<vmem>>, vector<256x8xf32>,
    %c1_77 = arith.constant 1 : index
    %c1_78 = arith.constant 1 : index
    %c0_79 = arith.constant 0 : index
    %56 = vector.load %arg11[%c1_77, %c1_78, %c0_79] : memref<18x18x8xf32, #tpu.memory_space<vmem>>, vector<16x16x8xf32>
    %57 = vector.shape_cast %56 : vector<16x16x8xf32> to vector<256x8xf32>
    %c0_80 = arith.constant 0 : index
    %c32 = arith.constant 32 : index
    %58 = vector.load %arg12[%c0_80, %c32] : memref<256x72xf32, #tpu.memory_space<vmem>>, vector<256x8xf32>
    tpu.vector_store %arg12[%c0_80, %c32], %57 {strides = array<i32>} : memref<256x72xf32, #tpu.memory_space<vmem>>, vector<256x8xf32>,
    %c1_81 = arith.constant 1 : index
    %c2_82 = arith.constant 2 : index
    %c0_83 = arith.constant 0 : index
    %59 = vector.load %arg11[%c1_81, %c2_82, %c0_83] : memref<18x18x8xf32, #tpu.memory_space<vmem>>, vector<16x16x8xf32>
    %60 = vector.shape_cast %59 : vector<16x16x8xf32> to vector<256x8xf32>
    %c0_84 = arith.constant 0 : index
    %c40 = arith.constant 40 : index
    %61 = vector.load %arg12[%c0_84, %c40] : memref<256x72xf32, #tpu.memory_space<vmem>>, vector<256x8xf32>
    tpu.vector_store %arg12[%c0_84, %c40], %60 {strides = array<i32>} : memref<256x72xf32, #tpu.memory_space<vmem>>, vector<256x8xf32>,
    %c2_85 = arith.constant 2 : index
    %c0_86 = arith.constant 0 : index
    %c0_87 = arith.constant 0 : index
    %62 = vector.load %arg11[%c2_85, %c0_86, %c0_87] : memref<18x18x8xf32, #tpu.memory_space<vmem>>, vector<16x16x8xf32>
    %63 = vector.shape_cast %62 : vector<16x16x8xf32> to vector<256x8xf32>
    %c0_88 = arith.constant 0 : index
    %c48 = arith.constant 48 : index
    %64 = vector.load %arg12[%c0_88, %c48] : memref<256x72xf32, #tpu.memory_space<vmem>>, vector<256x8xf32>
    tpu.vector_store %arg12[%c0_88, %c48], %63 {strides = array<i32>} : memref<256x72xf32, #tpu.memory_space<vmem>>, vector<256x8xf32>,
    %c2_89 = arith.constant 2 : index
    %c1_90 = arith.constant 1 : index
    %c0_91 = arith.constant 0 : index
    %65 = vector.load %arg11[%c2_89, %c1_90, %c0_91] : memref<18x18x8xf32, #tpu.memory_space<vmem>>, vector<16x16x8xf32>
    %66 = vector.shape_cast %65 : vector<16x16x8xf32> to vector<256x8xf32>
    %c0_92 = arith.constant 0 : index
    %c56 = arith.constant 56 : index
    %67 = vector.load %arg12[%c0_92, %c56] : memref<256x72xf32, #tpu.memory_space<vmem>>, vector<256x8xf32>
    tpu.vector_store %arg12[%c0_92, %c56], %66 {strides = array<i32>} : memref<256x72xf32, #tpu.memory_space<vmem>>, vector<256x8xf32>,
    %c2_93 = arith.constant 2 : index
    %c2_94 = arith.constant 2 : index
    %c0_95 = arith.constant 0 : index
    %68 = vector.load %arg11[%c2_93, %c2_94, %c0_95] : memref<18x18x8xf32, #tpu.memory_space<vmem>>, vector<16x16x8xf32>
    %69 = vector.shape_cast %68 : vector<16x16x8xf32> to vector<256x8xf32>
    %c0_96 = arith.constant 0 : index
    %c64 = arith.constant 64 : index
    %70 = vector.load %arg12[%c0_96, %c64] : memref<256x72xf32, #tpu.memory_space<vmem>>, vector<256x8xf32>
    tpu.vector_store %arg12[%c0_96, %c64], %69 {strides = array<i32>} : memref<256x72xf32, #tpu.memory_space<vmem>>, vector<256x8xf32>,
    %c0_97 = arith.constant 0 : index
    %c0_98 = arith.constant 0 : index
    %71 = vector.load %arg12[%c0_97, %c0_98] : memref<256x72xf32, #tpu.memory_space<vmem>>, vector<256x72xf32>
    %c0_99 = arith.constant 0 : index
    %c0_100 = arith.constant 0 : index
    %72 = vector.load %arg4[%c0_99, %c0_100] : memref<72x16xf32, #tpu.memory_space<vmem>>, vector<72x16xf32>
    %cst_101 = arith.constant dense<0.000000e+00> : vector<256x16xf32>
    %73 = tpu.matmul %71, %72, %cst_101 {dimension_numbers = #tpu.dot_dimension_numbers<[1], [0], [0], [1], [0, 0, 1, 1], [], []>} : vector<256x72xf32>, vector<72x16xf32>, vector<256x16xf32> -> vector<256x16xf32>
    %c0_102 = arith.constant 0 : index
    %c0_103 = arith.constant 0 : index
    %74 = vector.load %arg5[%c0_102, %c0_103] : memref<1x16xf32, #tpu.memory_space<vmem>>, vector<1x16xf32>
    %75 = vector.broadcast %74 : vector<1x16xf32> to vector<256x16xf32>
    %76 = arith.addf %73, %75 : vector<256x16xf32>
    %cst_104 = arith.constant 0.000000e+00 : f32
    %77 = vector.broadcast %cst_104 : f32 to vector<256x16xf32>
    %78 = arith.maximumf %76, %77 : vector<256x16xf32>
    %cst_105 = arith.constant 0.000000e+00 : f32
    %79 = vector.broadcast %cst_105 : f32 to vector<18x18x16xf32>
    %c0_106 = arith.constant 0 : index
    %c0_107 = arith.constant 0 : index
    %c0_108 = arith.constant 0 : index
    %80 = vector.load %arg13[%c0_106, %c0_107, %c0_108] : memref<18x18x16xf32, #tpu.memory_space<vmem>>, vector<18x18x16xf32>
    tpu.vector_store %arg13[%c0_106, %c0_107, %c0_108], %79 {strides = array<i32>} : memref<18x18x16xf32, #tpu.memory_space<vmem>>, vector<18x18x16xf32>,
    %81 = vector.shape_cast %78 : vector<256x16xf32> to vector<16x16x16xf32>
    %c1_109 = arith.constant 1 : index
    %c1_110 = arith.constant 1 : index
    %c0_111 = arith.constant 0 : index
    %82 = vector.load %arg13[%c1_109, %c1_110, %c0_111] : memref<18x18x16xf32, #tpu.memory_space<vmem>>, vector<16x16x16xf32>
    tpu.vector_store %arg13[%c1_109, %c1_110, %c0_111], %81 {strides = array<i32>} : memref<18x18x16xf32, #tpu.memory_space<vmem>>, vector<16x16x16xf32>,
    %c0_112 = arith.constant 0 : index
    %c0_113 = arith.constant 0 : index
    %c0_114 = arith.constant 0 : index
    %83 = vector.load %arg13[%c0_112, %c0_113, %c0_114] : memref<18x18x16xf32, #tpu.memory_space<vmem>>, vector<16x16x16xf32>
    %84 = vector.shape_cast %83 : vector<16x16x16xf32> to vector<256x16xf32>
    %c0_115 = arith.constant 0 : index
    %c0_116 = arith.constant 0 : index
    %85 = vector.load %arg14[%c0_115, %c0_116] : memref<256x144xf32, #tpu.memory_space<vmem>>, vector<256x16xf32>
    tpu.vector_store %arg14[%c0_115, %c0_116], %84 {strides = array<i32>} : memref<256x144xf32, #tpu.memory_space<vmem>>, vector<256x16xf32>,
    %c0_117 = arith.constant 0 : index
    %c1_118 = arith.constant 1 : index
    %c0_119 = arith.constant 0 : index
    %86 = vector.load %arg13[%c0_117, %c1_118, %c0_119] : memref<18x18x16xf32, #tpu.memory_space<vmem>>, vector<16x16x16xf32>
    %87 = vector.shape_cast %86 : vector<16x16x16xf32> to vector<256x16xf32>
    %c0_120 = arith.constant 0 : index
    %c16_121 = arith.constant 16 : index
    %88 = vector.load %arg14[%c0_120, %c16_121] : memref<256x144xf32, #tpu.memory_space<vmem>>, vector<256x16xf32>
    tpu.vector_store %arg14[%c0_120, %c16_121], %87 {strides = array<i32>} : memref<256x144xf32, #tpu.memory_space<vmem>>, vector<256x16xf32>,
    %c0_122 = arith.constant 0 : index
    %c2_123 = arith.constant 2 : index
    %c0_124 = arith.constant 0 : index
    %89 = vector.load %arg13[%c0_122, %c2_123, %c0_124] : memref<18x18x16xf32, #tpu.memory_space<vmem>>, vector<16x16x16xf32>
    %90 = vector.shape_cast %89 : vector<16x16x16xf32> to vector<256x16xf32>
    %c0_125 = arith.constant 0 : index
    %c32_126 = arith.constant 32 : index
    %91 = vector.load %arg14[%c0_125, %c32_126] : memref<256x144xf32, #tpu.memory_space<vmem>>, vector<256x16xf32>
    tpu.vector_store %arg14[%c0_125, %c32_126], %90 {strides = array<i32>} : memref<256x144xf32, #tpu.memory_space<vmem>>, vector<256x16xf32>,
    %c1_127 = arith.constant 1 : index
    %c0_128 = arith.constant 0 : index
    %c0_129 = arith.constant 0 : index
    %92 = vector.load %arg13[%c1_127, %c0_128, %c0_129] : memref<18x18x16xf32, #tpu.memory_space<vmem>>, vector<16x16x16xf32>
    %93 = vector.shape_cast %92 : vector<16x16x16xf32> to vector<256x16xf32>
    %c0_130 = arith.constant 0 : index
    %c48_131 = arith.constant 48 : index
    %94 = vector.load %arg14[%c0_130, %c48_131] : memref<256x144xf32, #tpu.memory_space<vmem>>, vector<256x16xf32>
    tpu.vector_store %arg14[%c0_130, %c48_131], %93 {strides = array<i32>} : memref<256x144xf32, #tpu.memory_space<vmem>>, vector<256x16xf32>,
    %c1_132 = arith.constant 1 : index
    %c1_133 = arith.constant 1 : index
    %c0_134 = arith.constant 0 : index
    %95 = vector.load %arg13[%c1_132, %c1_133, %c0_134] : memref<18x18x16xf32, #tpu.memory_space<vmem>>, vector<16x16x16xf32>
    %96 = vector.shape_cast %95 : vector<16x16x16xf32> to vector<256x16xf32>
    %c0_135 = arith.constant 0 : index
    %c64_136 = arith.constant 64 : index
    %97 = vector.load %arg14[%c0_135, %c64_136] : memref<256x144xf32, #tpu.memory_space<vmem>>, vector<256x16xf32>
    tpu.vector_store %arg14[%c0_135, %c64_136], %96 {strides = array<i32>} : memref<256x144xf32, #tpu.memory_space<vmem>>, vector<256x16xf32>,
    %c1_137 = arith.constant 1 : index
    %c2_138 = arith.constant 2 : index
    %c0_139 = arith.constant 0 : index
    %98 = vector.load %arg13[%c1_137, %c2_138, %c0_139] : memref<18x18x16xf32, #tpu.memory_space<vmem>>, vector<16x16x16xf32>
    %99 = vector.shape_cast %98 : vector<16x16x16xf32> to vector<256x16xf32>
    %c0_140 = arith.constant 0 : index
    %c80 = arith.constant 80 : index
    %100 = vector.load %arg14[%c0_140, %c80] : memref<256x144xf32, #tpu.memory_space<vmem>>, vector<256x16xf32>
    tpu.vector_store %arg14[%c0_140, %c80], %99 {strides = array<i32>} : memref<256x144xf32, #tpu.memory_space<vmem>>, vector<256x16xf32>,
    %c2_141 = arith.constant 2 : index
    %c0_142 = arith.constant 0 : index
    %c0_143 = arith.constant 0 : index
    %101 = vector.load %arg13[%c2_141, %c0_142, %c0_143] : memref<18x18x16xf32, #tpu.memory_space<vmem>>, vector<16x16x16xf32>
    %102 = vector.shape_cast %101 : vector<16x16x16xf32> to vector<256x16xf32>
    %c0_144 = arith.constant 0 : index
    %c96 = arith.constant 96 : index
    %103 = vector.load %arg14[%c0_144, %c96] : memref<256x144xf32, #tpu.memory_space<vmem>>, vector<256x16xf32>
    tpu.vector_store %arg14[%c0_144, %c96], %102 {strides = array<i32>} : memref<256x144xf32, #tpu.memory_space<vmem>>, vector<256x16xf32>,
    %c2_145 = arith.constant 2 : index
    %c1_146 = arith.constant 1 : index
    %c0_147 = arith.constant 0 : index
    %104 = vector.load %arg13[%c2_145, %c1_146, %c0_147] : memref<18x18x16xf32, #tpu.memory_space<vmem>>, vector<16x16x16xf32>
    %105 = vector.shape_cast %104 : vector<16x16x16xf32> to vector<256x16xf32>
    %c0_148 = arith.constant 0 : index
    %c112 = arith.constant 112 : index
    %106 = vector.load %arg14[%c0_148, %c112] : memref<256x144xf32, #tpu.memory_space<vmem>>, vector<256x16xf32>
    tpu.vector_store %arg14[%c0_148, %c112], %105 {strides = array<i32>} : memref<256x144xf32, #tpu.memory_space<vmem>>, vector<256x16xf32>,
    %c2_149 = arith.constant 2 : index
    %c2_150 = arith.constant 2 : index
    %c0_151 = arith.constant 0 : index
    %107 = vector.load %arg13[%c2_149, %c2_150, %c0_151] : memref<18x18x16xf32, #tpu.memory_space<vmem>>, vector<16x16x16xf32>
    %108 = vector.shape_cast %107 : vector<16x16x16xf32> to vector<256x16xf32>
    %c0_152 = arith.constant 0 : index
    %c128 = arith.constant 128 : index
    %109 = vector.load %arg14[%c0_152, %c128] : memref<256x144xf32, #tpu.memory_space<vmem>>, vector<256x16xf32>
    tpu.vector_store %arg14[%c0_152, %c128], %108 {strides = array<i32>} : memref<256x144xf32, #tpu.memory_space<vmem>>, vector<256x16xf32>,
    %c0_153 = arith.constant 0 : index
    %c0_154 = arith.constant 0 : index
    %110 = vector.load %arg14[%c0_153, %c0_154] : memref<256x144xf32, #tpu.memory_space<vmem>>, vector<256x144xf32>
    %c0_155 = arith.constant 0 : index
    %c0_156 = arith.constant 0 : index
    %111 = vector.load %arg6[%c0_155, %c0_156] : memref<144x32xf32, #tpu.memory_space<vmem>>, vector<144x32xf32>
    %cst_157 = arith.constant dense<0.000000e+00> : vector<256x32xf32>
    %112 = tpu.matmul %110, %111, %cst_157 {dimension_numbers = #tpu.dot_dimension_numbers<[1], [0], [0], [1], [0, 0, 1, 1], [], []>} : vector<256x144xf32>, vector<144x32xf32>, vector<256x32xf32> -> vector<256x32xf32>
    %c0_158 = arith.constant 0 : index
    %c0_159 = arith.constant 0 : index
    %113 = vector.load %arg7[%c0_158, %c0_159] : memref<1x32xf32, #tpu.memory_space<vmem>>, vector<1x32xf32>
    %114 = vector.broadcast %113 : vector<1x32xf32> to vector<256x32xf32>
    %115 = arith.addf %112, %114 : vector<256x32xf32>
    %cst_160 = arith.constant 0.000000e+00 : f32
    %116 = vector.broadcast %cst_160 : f32 to vector<256x32xf32>
    %117 = arith.maximumf %115, %116 : vector<256x32xf32>
    %c0_161 = arith.constant 0 : index
    %c0_162 = arith.constant 0 : index
    %c0_163 = arith.constant 0 : index
    %118 = vector.load %arg8[%c0_161, %c0_162, %c0_163] : memref<1x256x32xf32, #tpu.memory_space<vmem>>, vector<1x256x32xf32>
    %119 = vector.shape_cast %118 : vector<1x256x32xf32> to vector<256x32xf32>
    %120 = vector.shape_cast %117 : vector<256x32xf32> to vector<1x256x32xf32>
    tpu.vector_store %arg8[%c0_161, %c0_162, %c0_163], %120 {strides = array<i32>} : memref<1x256x32xf32, #tpu.memory_space<vmem>>, vector<1x256x32xf32>,
    return
  }
  func.func @transform_0(%arg0: i32) -> (i32, i32, i32, i32) {
    %c0_i32 = arith.constant 0 : i32
    %c0_i32_0 = arith.constant 0 : i32
    %c0_i32_1 = arith.constant 0 : i32
    %c0_i32_2 = arith.constant 0 : i32
    return %arg0, %c0_i32, %c0_i32_0, %c0_i32_1 : i32, i32, i32, i32
  }
  func.func @transform_1(%arg0: i32) -> (i32, i32) {
    %c0_i32 = arith.constant 0 : i32
    %c0_i32_0 = arith.constant 0 : i32
    %c0_i32_1 = arith.constant 0 : i32
    return %c0_i32, %c0_i32_0 : i32, i32
  }
  func.func @transform_2(%arg0: i32) -> (i32, i32) {
    %c0_i32 = arith.constant 0 : i32
    %c0_i32_0 = arith.constant 0 : i32
    %c0_i32_1 = arith.constant 0 : i32
    return %c0_i32, %c0_i32_0 : i32, i32
  }
  func.func @transform_3(%arg0: i32) -> (i32, i32) {
    %c0_i32 = arith.constant 0 : i32
    %c0_i32_0 = arith.constant 0 : i32
    %c0_i32_1 = arith.constant 0 : i32
    return %c0_i32, %c0_i32_0 : i32, i32
  }
  func.func @transform_4(%arg0: i32) -> (i32, i32) {
    %c0_i32 = arith.constant 0 : i32
    %c0_i32_0 = arith.constant 0 : i32
    %c0_i32_1 = arith.constant 0 : i32
    return %c0_i32, %c0_i32_0 : i32, i32
  }
  func.func @transform_5(%arg0: i32) -> (i32, i32) {
    %c0_i32 = arith.constant 0 : i32
    %c0_i32_0 = arith.constant 0 : i32
    %c0_i32_1 = arith.constant 0 : i32
    return %c0_i32, %c0_i32_0 : i32, i32
  }
  func.func @transform_6(%arg0: i32) -> (i32, i32) {
    %c0_i32 = arith.constant 0 : i32
    %c0_i32_0 = arith.constant 0 : i32
    %c0_i32_1 = arith.constant 0 : i32
    return %c0_i32, %c0_i32_0 : i32, i32
  }
  func.func @transform_7(%arg0: i32) -> (i32, i32, i32) {
    %c0_i32 = arith.constant 0 : i32
    %c0_i32_0 = arith.constant 0 : i32
    %c0_i32_1 = arith.constant 0 : i32
    return %arg0, %c0_i32, %c0_i32_0 : i32, i32, i32
  }
}

module attributes {stable_mosaic.version = 11 : i64} {
  func.func @_fc_stack_kernel(%arg0: i32, %arg1: memref<2x8192xf32, #tpu.memory_space<vmem>>, %arg2: memref<8192x64xf32, #tpu.memory_space<vmem>>, %arg3: memref<1x64xf32, #tpu.memory_space<vmem>>, %arg4: memref<64x64xf32, #tpu.memory_space<vmem>>, %arg5: memref<1x64xf32, #tpu.memory_space<vmem>>, %arg6: memref<64x4xf32, #tpu.memory_space<vmem>>, %arg7: memref<1x4xf32, #tpu.memory_space<vmem>>, %arg8: memref<2x4xf32, #tpu.memory_space<vmem>>) attributes {dimension_semantics = [#tpu.dimension_semantics<arbitrary>], iteration_bounds = array<i64: 1>, scalar_prefetch = 0 : i64, scratch_operands = 0 : i64, tpu.core_type = #tpu.core_type<tc>, window_params = [{pipeline_mode = #tpu.pipeline_mode<synchronous>, transform_indices = @transform_0, window_bounds = array<i64: 2, 8192>}, {pipeline_mode = #tpu.pipeline_mode<synchronous>, transform_indices = @transform_1, window_bounds = array<i64: 8192, 64>}, {pipeline_mode = #tpu.pipeline_mode<synchronous>, transform_indices = @transform_2, window_bounds = array<i64: 1, 64>}, {pipeline_mode = #tpu.pipeline_mode<synchronous>, transform_indices = @transform_3, window_bounds = array<i64: 64, 64>}, {pipeline_mode = #tpu.pipeline_mode<synchronous>, transform_indices = @transform_4, window_bounds = array<i64: 1, 64>}, {pipeline_mode = #tpu.pipeline_mode<synchronous>, transform_indices = @transform_5, window_bounds = array<i64: 64, 4>}, {pipeline_mode = #tpu.pipeline_mode<synchronous>, transform_indices = @transform_6, window_bounds = array<i64: 1, 4>}, {pipeline_mode = #tpu.pipeline_mode<synchronous>, transform_indices = @transform_7, window_bounds = array<i64: 2, 4>}]} {
    %c0 = arith.constant 0 : index
    %c0_0 = arith.constant 0 : index
    %0 = vector.load %arg1[%c0, %c0_0] : memref<2x8192xf32, #tpu.memory_space<vmem>>, vector<2x8192xf32>
    %c0_1 = arith.constant 0 : index
    %c0_2 = arith.constant 0 : index
    %1 = vector.load %arg2[%c0_1, %c0_2] : memref<8192x64xf32, #tpu.memory_space<vmem>>, vector<8192x64xf32>
    %cst = arith.constant dense<0.000000e+00> : vector<2x64xf32>
    %2 = tpu.matmul %0, %1, %cst {dimension_numbers = #tpu.dot_dimension_numbers<[1], [0], [0], [1], [0, 0, 1, 1], [], []>} : vector<2x8192xf32>, vector<8192x64xf32>, vector<2x64xf32> -> vector<2x64xf32>
    %c0_3 = arith.constant 0 : index
    %c0_4 = arith.constant 0 : index
    %3 = vector.load %arg3[%c0_3, %c0_4] : memref<1x64xf32, #tpu.memory_space<vmem>>, vector<1x64xf32>
    %4 = vector.broadcast %3 : vector<1x64xf32> to vector<2x64xf32>
    %5 = arith.addf %2, %4 : vector<2x64xf32>
    %cst_5 = arith.constant 0.000000e+00 : f32
    %6 = vector.broadcast %cst_5 : f32 to vector<2x64xf32>
    %7 = arith.maximumf %5, %6 : vector<2x64xf32>
    %c0_6 = arith.constant 0 : index
    %c0_7 = arith.constant 0 : index
    %8 = vector.load %arg4[%c0_6, %c0_7] : memref<64x64xf32, #tpu.memory_space<vmem>>, vector<64x64xf32>
    %cst_8 = arith.constant dense<0.000000e+00> : vector<2x64xf32>
    %9 = tpu.matmul %7, %8, %cst_8 {dimension_numbers = #tpu.dot_dimension_numbers<[1], [0], [0], [1], [0, 0, 1, 1], [], []>} : vector<2x64xf32>, vector<64x64xf32>, vector<2x64xf32> -> vector<2x64xf32>
    %c0_9 = arith.constant 0 : index
    %c0_10 = arith.constant 0 : index
    %10 = vector.load %arg5[%c0_9, %c0_10] : memref<1x64xf32, #tpu.memory_space<vmem>>, vector<1x64xf32>
    %11 = vector.broadcast %10 : vector<1x64xf32> to vector<2x64xf32>
    %12 = arith.addf %9, %11 : vector<2x64xf32>
    %c0_11 = arith.constant 0 : index
    %c0_12 = arith.constant 0 : index
    %13 = vector.load %arg6[%c0_11, %c0_12] : memref<64x4xf32, #tpu.memory_space<vmem>>, vector<64x4xf32>
    %cst_13 = arith.constant dense<0.000000e+00> : vector<2x4xf32>
    %14 = tpu.matmul %12, %13, %cst_13 {dimension_numbers = #tpu.dot_dimension_numbers<[1], [0], [0], [1], [0, 0, 1, 1], [], []>} : vector<2x64xf32>, vector<64x4xf32>, vector<2x4xf32> -> vector<2x4xf32>
    %c0_14 = arith.constant 0 : index
    %c0_15 = arith.constant 0 : index
    %15 = vector.load %arg7[%c0_14, %c0_15] : memref<1x4xf32, #tpu.memory_space<vmem>>, vector<1x4xf32>
    %16 = vector.broadcast %15 : vector<1x4xf32> to vector<2x4xf32>
    %17 = arith.addf %14, %16 : vector<2x4xf32>
    %c0_16 = arith.constant 0 : index
    %c0_17 = arith.constant 0 : index
    %18 = vector.load %arg8[%c0_16, %c0_17] : memref<2x4xf32, #tpu.memory_space<vmem>>, vector<2x4xf32>
    tpu.vector_store %arg8[%c0_16, %c0_17], %17 {strides = array<i32>} : memref<2x4xf32, #tpu.memory_space<vmem>>, vector<2x4xf32>,
    return
  }
  func.func @transform_0(%arg0: i32) -> (i32, i32) {
    %c0_i32 = arith.constant 0 : i32
    %c0_i32_0 = arith.constant 0 : i32
    %c0_i32_1 = arith.constant 0 : i32
    return %c0_i32, %c0_i32_0 : i32, i32
  }
  func.func @transform_1(%arg0: i32) -> (i32, i32) {
    %c0_i32 = arith.constant 0 : i32
    %c0_i32_0 = arith.constant 0 : i32
    %c0_i32_1 = arith.constant 0 : i32
    return %c0_i32, %c0_i32_0 : i32, i32
  }
  func.func @transform_2(%arg0: i32) -> (i32, i32) {
    %c0_i32 = arith.constant 0 : i32
    %c0_i32_0 = arith.constant 0 : i32
    %c0_i32_1 = arith.constant 0 : i32
    return %c0_i32, %c0_i32_0 : i32, i32
  }
  func.func @transform_3(%arg0: i32) -> (i32, i32) {
    %c0_i32 = arith.constant 0 : i32
    %c0_i32_0 = arith.constant 0 : i32
    %c0_i32_1 = arith.constant 0 : i32
    return %c0_i32, %c0_i32_0 : i32, i32
  }
  func.func @transform_4(%arg0: i32) -> (i32, i32) {
    %c0_i32 = arith.constant 0 : i32
    %c0_i32_0 = arith.constant 0 : i32
    %c0_i32_1 = arith.constant 0 : i32
    return %c0_i32, %c0_i32_0 : i32, i32
  }
  func.func @transform_5(%arg0: i32) -> (i32, i32) {
    %c0_i32 = arith.constant 0 : i32
    %c0_i32_0 = arith.constant 0 : i32
    %c0_i32_1 = arith.constant 0 : i32
    return %c0_i32, %c0_i32_0 : i32, i32
  }
  func.func @transform_6(%arg0: i32) -> (i32, i32) {
    %c0_i32 = arith.constant 0 : i32
    %c0_i32_0 = arith.constant 0 : i32
    %c0_i32_1 = arith.constant 0 : i32
    return %c0_i32, %c0_i32_0 : i32, i32
  }
  func.func @transform_7(%arg0: i32) -> (i32, i32) {
    %c0_i32 = arith.constant 0 : i32
    %c0_i32_0 = arith.constant 0 : i32
    %c0_i32_1 = arith.constant 0 : i32
    return %c0_i32, %c0_i32_0 : i32, i32
  }
}

</mosaic_0001>

<llo_original>
// kernel: qnetwork_forward.3
$region0: #{qnetwork_forward.3}
  #allocation0 [shape = 'u32[]', space=smem, size = 0x4, offset = 0x4, fixed_abs, tag = 'smem constant byte address 0x4 - core index']
  #allocation1 [shape = 'u32[144,128]{1,0:T(1,128)}', space=vmem, size = 0x12000, scoped, tag = 'internal scratch']
  %s0 = inlined_call_operand.vmem [shape: f32[2,8192], index: 0, kind: input, shape index: {}]
  %s1 = inlined_call_operand.vmem [shape: f32[8192,64], index: 1, kind: input, shape index: {}]
  %s2 = inlined_call_operand.vmem [shape: f32[1,64], index: 2, kind: input, shape index: {}]
  %s3 = inlined_call_operand.vmem [shape: f32[64,64], index: 3, kind: input, shape index: {}]
  %s4 = inlined_call_operand.vmem [shape: f32[1,64], index: 4, kind: input, shape index: {}]
  %s5 = inlined_call_operand.vmem [shape: f32[64,4], index: 5, kind: input, shape index: {}]
  %s6 = inlined_call_operand.vmem [shape: f32[1,4], index: 6, kind: input, shape index: {}]
  %s7 = inlined_call_operand.hbm [shape: f32[2,4], index: 7, kind: output, shape index: {}]
  %s8 = sld [smem:[#allocation0]]
  $region38: #{qnetwork_forward.3} parent=0
    _
  %s10 = ssub.s32 1, %s8
  %s11 = scalar_select 0, %s10, %s8
  $region1: #{qnetwork_forward.3} parent=0
    #allocation2 [shape = 'u8[1024]{0}', space=vmem, size = 0x400, scoped, tag = 'output window, operand 0, single buffered']
    #allocation3 [shape = 's32[1]{0}', space=sflag, size = 0x4, scoped, tag = 'scoped memory for qnetwork_forward.3']
    %12 = vsyncpa [#allocation3], 0
    // Predicated region
    $region2: #{qnetwork_forward.3} parent=1 // pred_check
      _
    $region3: #{qnetwork_forward.3} parent=1 // pred_check_branch
      %14 = sbr.rel (0) target = $region5
    $region4: #{qnetwork_forward.3} parent=1 // pred_region
      _
    $region5: #{qnetwork_forward.3} parent=1 // pred_fallthru
      _
    // Predicated region
    $region6: #{qnetwork_forward.3} parent=1 // pred_check
      _
    $region7: #{qnetwork_forward.3} parent=1 // pred_check_branch
      %16 = sbr.rel (0) target = $region9
    $region8: #{qnetwork_forward.3} parent=1 // pred_region
      _
    $region9: #{qnetwork_forward.3} parent=1 // pred_fallthru
      _
    // Predicated region
    $region10: #{qnetwork_forward.3} parent=1 // pred_check
      _
    $region11: #{qnetwork_forward.3} parent=1 // pred_check_branch
      %18 = sbr.rel (0) target = $region13
    $region12: #{qnetwork_forward.3} parent=1 // pred_region
      _
    $region13: #{qnetwork_forward.3} parent=1 // pred_fallthru
      _
    // Predicated region
    $region14: #{qnetwork_forward.3} parent=1 // pred_check
      _
    $region15: #{qnetwork_forward.3} parent=1 // pred_check_branch
      %20 = sbr.rel (0) target = $region17
    $region16: #{qnetwork_forward.3} parent=1 // pred_region
      _
    $region17: #{qnetwork_forward.3} parent=1 // pred_fallthru
      _
    // Predicated region
    $region18: #{qnetwork_forward.3} parent=1 // pred_check
      _
    $region19: #{qnetwork_forward.3} parent=1 // pred_check_branch
      %22 = sbr.rel (0) target = $region21
    $region20: #{qnetwork_forward.3} parent=1 // pred_region
      _
    $region21: #{qnetwork_forward.3} parent=1 // pred_fallthru
      _
    // Predicated region
    $region22: #{qnetwork_forward.3} parent=1 // pred_check
      _
    $region23: #{qnetwork_forward.3} parent=1 // pred_check_branch
      %24 = sbr.rel (0) target = $region25
    $region24: #{qnetwork_forward.3} parent=1 // pred_region
      _
    $region25: #{qnetwork_forward.3} parent=1 // pred_fallthru
      _
    // Predicated region
    $region26: #{qnetwork_forward.3} parent=1 // pred_check
      _
    $region27: #{qnetwork_forward.3} parent=1 // pred_check_branch
      %26 = sbr.rel (0) target = $region29
    $region28: #{qnetwork_forward.3} parent=1 // pred_region
      _
    $region29: #{qnetwork_forward.3} parent=1 // pred_fallthru
      _
    %v27 = vld [vmem:[%s0] sm:$0xff]
    %v28 = vld [vmem:[%s0 + $0x8] sm:$0xff]
    %v29 = vld [vmem:[%s0 + $0x10] sm:$0xff]
    %v30 = vld [vmem:[%s0 + $0x18] sm:$0xff]
    %v31 = vld [vmem:[%s0 + $0x20] sm:$0xff]
    %v32 = vld [vmem:[%s0 + $0x28] sm:$0xff]
    %v33 = vld [vmem:[%s0 + $0x30] sm:$0xff]
    %v34 = vld [vmem:[%s0 + $0x38] sm:$0xff]
    %v35 = vld [vmem:[%s0 + $0x40] sm:$0xff]
    %v36 = vld [vmem:[%s0 + $0x48] sm:$0xff]
    %v37 = vld [vmem:[%s0 + $0x50] sm:$0xff]
    %v38 = vld [vmem:[%s0 + $0x58] sm:$0xff]
    %v39 = vld [vmem:[%s0 + $0x60] sm:$0xff]
    %v40 = vld [vmem:[%s0 + $0x68] sm:$0xff]
    %v41 = vld [vmem:[%s0 + $0x70] sm:$0xff]
    %v42 = vld [vmem:[%s0 + $0x78] sm:$0xff]
    %v43 = vld [vmem:[%s1] sm:$0xff]
    %v44 = vld [vmem:[%s1 + $0x8] sm:$0xff]
    %v45 = vld [vmem:[%s1 + $0x10] sm:$0xff]
    %v46 = vld [vmem:[%s1 + $0x18] sm:$0xff]
    %v47 = vld [vmem:[%s1 + $0x20] sm:$0xff]
    %v48 = vld [vmem:[%s1 + $0x28] sm:$0xff]
    %v49 = vld [vmem:[%s1 + $0x30] sm:$0xff]
    %v50 = vld [vmem:[%s1 + $0x38] sm:$0xff]
    %v51 = vld [vmem:[%s1 + $0x40] sm:$0xff]
    %v52 = vld [vmem:[%s1 + $0x48] sm:$0xff]
    %v53 = vld [vmem:[%s1 + $0x50] sm:$0xff]
    %v54 = vld [vmem:[%s1 + $0x58] sm:$0xff]
    %v55 = vld [vmem:[%s1 + $0x60] sm:$0xff]
    %v56 = vld [vmem:[%s1 + $0x68] sm:$0xff]
    %v57 = vld [vmem:[%s1 + $0x70] sm:$0xff]
    %v58 = vld [vmem:[%s1 + $0x78] sm:$0xff]
    %v59 = vld [vmem:[%s1 + $0x80] sm:$0xff]
    %v60 = vld [vmem:[%s1 + $0x88] sm:$0xff]
    %v61 = vld [vmem:[%s1 + $0x90] sm:$0xff]
    %v62 = vld [vmem:[%s1 + $0x98] sm:$0xff]
    %v63 = vld [vmem:[%s1 + $0xa0] sm:$0xff]
    %v64 = vld [vmem:[%s1 + $0xa8] sm:$0xff]
    %v65 = vld [vmem:[%s1 + $0xb0] sm:$0xff]
    %v66 = vld [vmem:[%s1 + $0xb8] sm:$0xff]
    %v67 = vld [vmem:[%s1 + $0xc0] sm:$0xff]
    %v68 = vld [vmem:[%s1 + $0xc8] sm:$0xff]
    %v69 = vld [vmem:[%s1 + $0xd0] sm:$0xff]
    %v70 = vld [vmem:[%s1 + $0xd8] sm:$0xff]
    %v71 = vld [vmem:[%s1 + $0xe0] sm:$0xff]
    %v72 = vld [vmem:[%s1 + $0xe8] sm:$0xff]
    %v73 = vld [vmem:[%s1 + $0xf0] sm:$0xff]
    %v74 = vld [vmem:[%s1 + $0xf8] sm:$0xff]
    %v75 = vld [vmem:[%s1 + $0x100] sm:$0xff]
    %v76 = vld [vmem:[%s1 + $0x108] sm:$0xff]
    %v77 = vld [vmem:[%s1 + $0x110] sm:$0xff]
    %v78 = vld [vmem:[%s1 + $0x118] sm:$0xff]
    %v79 = vld [vmem:[%s1 + $0x120] sm:$0xff]
    %v80 = vld [vmem:[%s1 + $0x128] sm:$0xff]
    %v81 = vld [vmem:[%s1 + $0x130] sm:$0xff]
    %v82 = vld [vmem:[%s1 + $0x138] sm:$0xff]
    %v83 = vld [vmem:[%s1 + $0x140] sm:$0xff]
    %v84 = vld [vmem:[%s1 + $0x148] sm:$0xff]
    %v85 = vld [vmem:[%s1 + $0x150] sm:$0xff]
    %v86 = vld [vmem:[%s1 + $0x158] sm:$0xff]
    %v87 = vld [vmem:[%s1 + $0x160] sm:$0xff]
    %v88 = vld [vmem:[%s1 + $0x168] sm:$0xff]
    %v89 = vld [vmem:[%s1 + $0x170] sm:$0xff]
    %v90 = vld [vmem:[%s1 + $0x178] sm:$0xff]
    %v91 = vld [vmem:[%s1 + $0x180] sm:$0xff]
    %v92 = vld [vmem:[%s1 + $0x188] sm:$0xff]
    %v93 = vld [vmem:[%s1 + $0x190] sm:$0xff]
    %v94 = vld [vmem:[%s1 + $0x198] sm:$0xff]
    %v95 = vld [vmem:[%s1 + $0x1a0] sm:$0xff]
    %v96 = vld [vmem:[%s1 + $0x1a8] sm:$0xff]
    %v97 = vld [vmem:[%s1 + $0x1b0] sm:$0xff]
    %v98 = vld [vmem:[%s1 + $0x1b8] sm:$0xff]
    %v99 = vld [vmem:[%s1 + $0x1c0] sm:$0xff]
    %v100 = vld [vmem:[%s1 + $0x1c8] sm:$0xff]
    %v101 = vld [vmem:[%s1 + $0x1d0] sm:$0xff]
    %v102 = vld [vmem:[%s1 + $0x1d8] sm:$0xff]
    %v103 = vld [vmem:[%s1 + $0x1e0] sm:$0xff]
    %v104 = vld [vmem:[%s1 + $0x1e8] sm:$0xff]
    %v105 = vld [vmem:[%s1 + $0x1f0] sm:$0xff]
    %v106 = vld [vmem:[%s1 + $0x1f8] sm:$0xff]
    %v107 = vld [vmem:[%s1 + $0x200] sm:$0xff]
    %v108 = vld [vmem:[%s1 + $0x208] sm:$0xff]
    %v109 = vld [vmem:[%s1 + $0x210] sm:$0xff]
    %v110 = vld [vmem:[%s1 + $0x218] sm:$0xff]
    %v111 = vld [vmem:[%s1 + $0x220] sm:$0xff]
    %v112 = vld [vmem:[%s1 + $0x228] sm:$0xff]
    %v113 = vld [vmem:[%s1 + $0x230] sm:$0xff]
    %v114 = vld [vmem:[%s1 + $0x238] sm:$0xff]
    %v115 = vld [vmem:[%s1 + $0x240] sm:$0xff]
    %v116 = vld [vmem:[%s1 + $0x248] sm:$0xff]
    %v117 = vld [vmem:[%s1 + $0x250] sm:$0xff]
    %v118 = vld [vmem:[%s1 + $0x258] sm:$0xff]
    %v119 = vld [vmem:[%s1 + $0x260] sm:$0xff]
    %v120 = vld [vmem:[%s1 + $0x268] sm:$0xff]
    %v121 = vld [vmem:[%s1 + $0x270] sm:$0xff]
    %v122 = vld [vmem:[%s1 + $0x278] sm:$0xff]
    %v123 = vld [vmem:[%s1 + $0x280] sm:$0xff]
    %v124 = vld [vmem:[%s1 + $0x288] sm:$0xff]
    %v125 = vld [vmem:[%s1 + $0x290] sm:$0xff]
    %v126 = vld [vmem:[%s1 + $0x298] sm:$0xff]
    %v127 = vld [vmem:[%s1 + $0x2a0] sm:$0xff]
    %v128 = vld [vmem:[%s1 + $0x2a8] sm:$0xff]
    %v129 = vld [vmem:[%s1 + $0x2b0] sm:$0xff]
    %v130 = vld [vmem:[%s1 + $0x2b8] sm:$0xff]
    %v131 = vld [vmem:[%s1 + $0x2c0] sm:$0xff]
    %v132 = vld [vmem:[%s1 + $0x2c8] sm:$0xff]
    %v133 = vld [vmem:[%s1 + $0x2d0] sm:$0xff]
    %v134 = vld [vmem:[%s1 + $0x2d8] sm:$0xff]
    %v135 = vld [vmem:[%s1 + $0x2e0] sm:$0xff]
    %v136 = vld [vmem:[%s1 + $0x2e8] sm:$0xff]
    %v137 = vld [vmem:[%s1 + $0x2f0] sm:$0xff]
    %v138 = vld [vmem:[%s1 + $0x2f8] sm:$0xff]
    %v139 = vld [vmem:[%s1 + $0x300] sm:$0xff]
    %v140 = vld [vmem:[%s1 + $0x308] sm:$0xff]
    %v141 = vld [vmem:[%s1 + $0x310] sm:$0xff]
    %v142 = vld [vmem:[%s1 + $0x318] sm:$0xff]
    %v143 = vld [vmem:[%s1 + $0x320] sm:$0xff]
    %v144 = vld [vmem:[%s1 + $0x328] sm:$0xff]
    %v145 = vld [vmem:[%s1 + $0x330] sm:$0xff]
    %v146 = vld [vmem:[%s1 + $0x338] sm:$0xff]
    %v147 = vld [vmem:[%s1 + $0x340] sm:$0xff]
    %v148 = vld [vmem:[%s1 + $0x348] sm:$0xff]
    %v149 = vld [vmem:[%s1 + $0x350] sm:$0xff]
    %v150 = vld [vmem:[%s1 + $0x358] sm:$0xff]
    %v151 = vld [vmem:[%s1 + $0x360] sm:$0xff]
    %v152 = vld [vmem:[%s1 + $0x368] sm:$0xff]
    %v153 = vld [vmem:[%s1 + $0x370] sm:$0xff]
    %v154 = vld [vmem:[%s1 + $0x378] sm:$0xff]
    %v155 = vld [vmem:[%s1 + $0x380] sm:$0xff]
    %v156 = vld [vmem:[%s1 + $0x388] sm:$0xff]
    %v157 = vld [vmem:[%s1 + $0x390] sm:$0xff]
    %v158 = vld [vmem:[%s1 + $0x398] sm:$0xff]
    %v159 = vld [vmem:[%s1 + $0x3a0] sm:$0xff]
    %v160 = vld [vmem:[%s1 + $0x3a8] sm:$0xff]
    %v161 = vld [vmem:[%s1 + $0x3b0] sm:$0xff]
    %v162 = vld [vmem:[%s1 + $0x3b8] sm:$0xff]
    %v163 = vld [vmem:[%s1 + $0x3c0] sm:$0xff]
    %v164 = vld [vmem:[%s1 + $0x3c8] sm:$0xff]
    %v165 = vld [vmem:[%s1 + $0x3d0] sm:$0xff]
    %v166 = vld [vmem:[%s1 + $0x3d8] sm:$0xff]
    %v167 = vld [vmem:[%s1 + $0x3e0] sm:$0xff]
    %v168 = vld [vmem:[%s1 + $0x3e8] sm:$0xff]
    %v169 = vld [vmem:[%s1 + $0x3f0] sm:$0xff]
    %v170 = vld [vmem:[%s1 + $0x3f8] sm:$0xff]
    %v171 = vld [vmem:[%s1 + $0x400] sm:$0xff]
    %v172 = vld [vmem:[%s1 + $0x408] sm:$0xff]
    %v173 = vld [vmem:[%s1 + $0x410] sm:$0xff]
    %v174 = vld [vmem:[%s1 + $0x418] sm:$0xff]
    %v175 = vld [vmem:[%s1 + $0x420] sm:$0xff]
    %v176 = vld [vmem:[%s1 + $0x428] sm:$0xff]
    %v177 = vld [vmem:[%s1 + $0x430] sm:$0xff]
    %v178 = vld [vmem:[%s1 + $0x438] sm:$0xff]
    %v179 = vld [vmem:[%s1 + $0x440] sm:$0xff]
    %v180 = vld [vmem:[%s1 + $0x448] sm:$0xff]
    %v181 = vld [vmem:[%s1 + $0x450] sm:$0xff]
    %v182 = vld [vmem:[%s1 + $0x458] sm:$0xff]
    %v183 = vld [vmem:[%s1 + $0x460] sm:$0xff]
    %v184 = vld [vmem:[%s1 + $0x468] sm:$0xff]
    %v185 = vld [vmem:[%s1 + $0x470] sm:$0xff]
    %v186 = vld [vmem:[%s1 + $0x478] sm:$0xff]
    %v187 = vld [vmem:[%s1 + $0x480] sm:$0xff]
    %v188 = vld [vmem:[%s1 + $0x488] sm:$0xff]
    %v189 = vld [vmem:[%s1 + $0x490] sm:$0xff]
    %v190 = vld [vmem:[%s1 + $0x498] sm:$0xff]
    %v191 = vld [vmem:[%s1 + $0x4a0] sm:$0xff]
    %v192 = vld [vmem:[%s1 + $0x4a8] sm:$0xff]
    %v193 = vld [vmem:[%s1 + $0x4b0] sm:$0xff]
    %v194 = vld [vmem:[%s1 + $0x4b8] sm:$0xff]
    %v195 = vld [vmem:[%s1 + $0x4c0] sm:$0xff]
    %v196 = vld [vmem:[%s1 + $0x4c8] sm:$0xff]
    %v197 = vld [vmem:[%s1 + $0x4d0] sm:$0xff]
    %v198 = vld [vmem:[%s1 + $0x4d8] sm:$0xff]
    %v199 = vld [vmem:[%s1 + $0x4e0] sm:$0xff]
    %v200 = vld [vmem:[%s1 + $0x4e8] sm:$0xff]
    %v201 = vld [vmem:[%s1 + $0x4f0] sm:$0xff]
    %v202 = vld [vmem:[%s1 + $0x4f8] sm:$0xff]
    %v203 = vld [vmem:[%s1 + $0x500] sm:$0xff]
    %v204 = vld [vmem:[%s1 + $0x508] sm:$0xff]
    %v205 = vld [vmem:[%s1 + $0x510] sm:$0xff]
    %v206 = vld [vmem:[%s1 + $0x518] sm:$0xff]
    %v207 = vld [vmem:[%s1 + $0x520] sm:$0xff]
    %v208 = vld [vmem:[%s1 + $0x528] sm:$0xff]
    %v209 = vld [vmem:[%s1 + $0x530] sm:$0xff]
    %v210 = vld [vmem:[%s1 + $0x538] sm:$0xff]
    %v211 = vld [vmem:[%s1 + $0x540] sm:$0xff]
    %v212 = vld [vmem:[%s1 + $0x548] sm:$0xff]
    %v213 = vld [vmem:[%s1 + $0x550] sm:$0xff]
    %v214 = vld [vmem:[%s1 + $0x558] sm:$0xff]
    %v215 = vld [vmem:[%s1 + $0x560] sm:$0xff]
    %v216 = vld [vmem:[%s1 + $0x568] sm:$0xff]
    %v217 = vld [vmem:[%s1 + $0x570] sm:$0xff]
    %v218 = vld [vmem:[%s1 + $0x578] sm:$0xff]
    %v219 = vld [vmem:[%s1 + $0x580] sm:$0xff]
    %v220 = vld [vmem:[%s1 + $0x588] sm:$0xff]
    %v221 = vld [vmem:[%s1 + $0x590] sm:$0xff]
    %v222 = vld [vmem:[%s1 + $0x598] sm:$0xff]
    %v223 = vld [vmem:[%s1 + $0x5a0] sm:$0xff]
    %v224 = vld [vmem:[%s1 + $0x5a8] sm:$0xff]
    %v225 = vld [vmem:[%s1 + $0x5b0] sm:$0xff]
    %v226 = vld [vmem:[%s1 + $0x5b8] sm:$0xff]
    %v227 = vld [vmem:[%s1 + $0x5c0] sm:$0xff]
    %v228 = vld [vmem:[%s1 + $0x5c8] sm:$0xff]
    %v229 = vld [vmem:[%s1 + $0x5d0] sm:$0xff]
    %v230 = vld [vmem:[%s1 + $0x5d8] sm:$0xff]
    %v231 = vld [vmem:[%s1 + $0x5e0] sm:$0xff]
    %v232 = vld [vmem:[%s1 + $0x5e8] sm:$0xff]
    %v233 = vld [vmem:[%s1 + $0x5f0] sm:$0xff]
    %v234 = vld [vmem:[%s1 + $0x5f8] sm:$0xff]
    %v235 = vld [vmem:[%s1 + $0x600] sm:$0xff]
    %v236 = vld [vmem:[%s1 + $0x608] sm:$0xff]
    %v237 = vld [vmem:[%s1 + $0x610] sm:$0xff]
    %v238 = vld [vmem:[%s1 + $0x618] sm:$0xff]
    %v239 = vld [vmem:[%s1 + $0x620] sm:$0xff]
    %v240 = vld [vmem:[%s1 + $0x628] sm:$0xff]
    %v241 = vld [vmem:[%s1 + $0x630] sm:$0xff]
    %v242 = vld [vmem:[%s1 + $0x638] sm:$0xff]
    %v243 = vld [vmem:[%s1 + $0x640] sm:$0xff]
    %v244 = vld [vmem:[%s1 + $0x648] sm:$0xff]
    %v245 = vld [vmem:[%s1 + $0x650] sm:$0xff]
    %v246 = vld [vmem:[%s1 + $0x658] sm:$0xff]
    %v247 = vld [vmem:[%s1 + $0x660] sm:$0xff]
    %v248 = vld [vmem:[%s1 + $0x668] sm:$0xff]
    %v249 = vld [vmem:[%s1 + $0x670] sm:$0xff]
    %v250 = vld [vmem:[%s1 + $0x678] sm:$0xff]
    %v251 = vld [vmem:[%s1 + $0x680] sm:$0xff]
    %v252 = vld [vmem:[%s1 + $0x688] sm:$0xff]
    %v253 = vld [vmem:[%s1 + $0x690] sm:$0xff]
    %v254 = vld [vmem:[%s1 + $0x698] sm:$0xff]
    %v255 = vld [vmem:[%s1 + $0x6a0] sm:$0xff]
    %v256 = vld [vmem:[%s1 + $0x6a8] sm:$0xff]
    %v257 = vld [vmem:[%s1 + $0x6b0] sm:$0xff]
    %v258 = vld [vmem:[%s1 + $0x6b8] sm:$0xff]
    %v259 = vld [vmem:[%s1 + $0x6c0] sm:$0xff]
    %v260 = vld [vmem:[%s1 + $0x6c8] sm:$0xff]
    %v261 = vld [vmem:[%s1 + $0x6d0] sm:$0xff]
    %v262 = vld [vmem:[%s1 + $0x6d8] sm:$0xff]
    %v263 = vld [vmem:[%s1 + $0x6e0] sm:$0xff]
    %v264 = vld [vmem:[%s1 + $0x6e8] sm:$0xff]
    %v265 = vld [vmem:[%s1 + $0x6f0] sm:$0xff]
    %v266 = vld [vmem:[%s1 + $0x6f8] sm:$0xff]
    %v267 = vld [vmem:[%s1 + $0x700] sm:$0xff]
    %v268 = vld [vmem:[%s1 + $0x708] sm:$0xff]
    %v269 = vld [vmem:[%s1 + $0x710] sm:$0xff]
    %v270 = vld [vmem:[%s1 + $0x718] sm:$0xff]
    %v271 = vld [vmem:[%s1 + $0x720] sm:$0xff]
    %v272 = vld [vmem:[%s1 + $0x728] sm:$0xff]
    %v273 = vld [vmem:[%s1 + $0x730] sm:$0xff]
    %v274 = vld [vmem:[%s1 + $0x738] sm:$0xff]
    %v275 = vld [vmem:[%s1 + $0x740] sm:$0xff]
    %v276 = vld [vmem:[%s1 + $0x748] sm:$0xff]
    %v277 = vld [vmem:[%s1 + $0x750] sm:$0xff]
    %v278 = vld [vmem:[%s1 + $0x758] sm:$0xff]
    %v279 = vld [vmem:[%s1 + $0x760] sm:$0xff]
    %v280 = vld [vmem:[%s1 + $0x768] sm:$0xff]
    %v281 = vld [vmem:[%s1 + $0x770] sm:$0xff]
    %v282 = vld [vmem:[%s1 + $0x778] sm:$0xff]
    %v283 = vld [vmem:[%s1 + $0x780] sm:$0xff]
    %v284 = vld [vmem:[%s1 + $0x788] sm:$0xff]
    %v285 = vld [vmem:[%s1 + $0x790] sm:$0xff]
    %v286 = vld [vmem:[%s1 + $0x798] sm:$0xff]
    %v287 = vld [vmem:[%s1 + $0x7a0] sm:$0xff]
    %v288 = vld [vmem:[%s1 + $0x7a8] sm:$0xff]
    %v289 = vld [vmem:[%s1 + $0x7b0] sm:$0xff]
    %v290 = vld [vmem:[%s1 + $0x7b8] sm:$0xff]
    %v291 = vld [vmem:[%s1 + $0x7c0] sm:$0xff]
    %v292 = vld [vmem:[%s1 + $0x7c8] sm:$0xff]
    %v293 = vld [vmem:[%s1 + $0x7d0] sm:$0xff]
    %v294 = vld [vmem:[%s1 + $0x7d8] sm:$0xff]
    %v295 = vld [vmem:[%s1 + $0x7e0] sm:$0xff]
    %v296 = vld [vmem:[%s1 + $0x7e8] sm:$0xff]
    %v297 = vld [vmem:[%s1 + $0x7f0] sm:$0xff]
    %v298 = vld [vmem:[%s1 + $0x7f8] sm:$0xff]
    %v299 = vld [vmem:[%s1 + $0x800] sm:$0xff]
    %v300 = vld [vmem:[%s1 + $0x808] sm:$0xff]
    %v301 = vld [vmem:[%s1 + $0x810] sm:$0xff]
    %v302 = vld [vmem:[%s1 + $0x818] sm:$0xff]
    %v303 = vld [vmem:[%s1 + $0x820] sm:$0xff]
    %v304 = vld [vmem:[%s1 + $0x828] sm:$0xff]
    %v305 = vld [vmem:[%s1 + $0x830] sm:$0xff]
    %v306 = vld [vmem:[%s1 + $0x838] sm:$0xff]
    %v307 = vld [vmem:[%s1 + $0x840] sm:$0xff]
    %v308 = vld [vmem:[%s1 + $0x848] sm:$0xff]
    %v309 = vld [vmem:[%s1 + $0x850] sm:$0xff]
    %v310 = vld [vmem:[%s1 + $0x858] sm:$0xff]
    %v311 = vld [vmem:[%s1 + $0x860] sm:$0xff]
    %v312 = vld [vmem:[%s1 + $0x868] sm:$0xff]
    %v313 = vld [vmem:[%s1 + $0x870] sm:$0xff]
    %v314 = vld [vmem:[%s1 + $0x878] sm:$0xff]
    %v315 = vld [vmem:[%s1 + $0x880] sm:$0xff]
    %v316 = vld [vmem:[%s1 + $0x888] sm:$0xff]
    %v317 = vld [vmem:[%s1 + $0x890] sm:$0xff]
    %v318 = vld [vmem:[%s1 + $0x898] sm:$0xff]
    %v319 = vld [vmem:[%s1 + $0x8a0] sm:$0xff]
    %v320 = vld [vmem:[%s1 + $0x8a8] sm:$0xff]
    %v321 = vld [vmem:[%s1 + $0x8b0] sm:$0xff]
    %v322 = vld [vmem:[%s1 + $0x8b8] sm:$0xff]
    %v323 = vld [vmem:[%s1 + $0x8c0] sm:$0xff]
    %v324 = vld [vmem:[%s1 + $0x8c8] sm:$0xff]
    %v325 = vld [vmem:[%s1 + $0x8d0] sm:$0xff]
    %v326 = vld [vmem:[%s1 + $0x8d8] sm:$0xff]
    %v327 = vld [vmem:[%s1 + $0x8e0] sm:$0xff]
    %v328 = vld [vmem:[%s1 + $0x8e8] sm:$0xff]
    %v329 = vld [vmem:[%s1 + $0x8f0] sm:$0xff]
    %v330 = vld [vmem:[%s1 + $0x8f8] sm:$0xff]
    %v331 = vld [vmem:[%s1 + $0x900] sm:$0xff]
    %v332 = vld [vmem:[%s1 + $0x908] sm:$0xff]
    %v333 = vld [vmem:[%s1 + $0x910] sm:$0xff]
    %v334 = vld [vmem:[%s1 + $0x918] sm:$0xff]
    %v335 = vld [vmem:[%s1 + $0x920] sm:$0xff]
    %v336 = vld [vmem:[%s1 + $0x928] sm:$0xff]
    %v337 = vld [vmem:[%s1 + $0x930] sm:$0xff]
    %v338 = vld [vmem:[%s1 + $0x938] sm:$0xff]
    %v339 = vld [vmem:[%s1 + $0x940] sm:$0xff]
    %v340 = vld [vmem:[%s1 + $0x948] sm:$0xff]
    %v341 = vld [vmem:[%s1 + $0x950] sm:$0xff]
    %v342 = vld [vmem:[%s1 + $0x958] sm:$0xff]
    %v343 = vld [vmem:[%s1 + $0x960] sm:$0xff]
    %v344 = vld [vmem:[%s1 + $0x968] sm:$0xff]
    %v345 = vld [vmem:[%s1 + $0x970] sm:$0xff]
    %v346 = vld [vmem:[%s1 + $0x978] sm:$0xff]
    %v347 = vld [vmem:[%s1 + $0x980] sm:$0xff]
    %v348 = vld [vmem:[%s1 + $0x988] sm:$0xff]
    %v349 = vld [vmem:[%s1 + $0x990] sm:$0xff]
    %v350 = vld [vmem:[%s1 + $0x998] sm:$0xff]
    %v351 = vld [vmem:[%s1 + $0x9a0] sm:$0xff]
    %v352 = vld [vmem:[%s1 + $0x9a8] sm:$0xff]
    %v353 = vld [vmem:[%s1 + $0x9b0] sm:$0xff]
    %v354 = vld [vmem:[%s1 + $0x9b8] sm:$0xff]
    %v355 = vld [vmem:[%s1 + $0x9c0] sm:$0xff]
    %v356 = vld [vmem:[%s1 + $0x9c8] sm:$0xff]
    %v357 = vld [vmem:[%s1 + $0x9d0] sm:$0xff]
    %v358 = vld [vmem:[%s1 + $0x9d8] sm:$0xff]
    %v359 = vld [vmem:[%s1 + $0x9e0] sm:$0xff]
    %v360 = vld [vmem:[%s1 + $0x9e8] sm:$0xff]
    %v361 = vld [vmem:[%s1 + $0x9f0] sm:$0xff]
    %v362 = vld [vmem:[%s1 + $0x9f8] sm:$0xff]
    %v363 = vld [vmem:[%s1 + $0xa00] sm:$0xff]
    %v364 = vld [vmem:[%s1 + $0xa08] sm:$0xff]
    %v365 = vld [vmem:[%s1 + $0xa10] sm:$0xff]
    %v366 = vld [vmem:[%s1 + $0xa18] sm:$0xff]
    %v367 = vld [vmem:[%s1 + $0xa20] sm:$0xff]
    %v368 = vld [vmem:[%s1 + $0xa28] sm:$0xff]
    %v369 = vld [vmem:[%s1 + $0xa30] sm:$0xff]
    %v370 = vld [vmem:[%s1 + $0xa38] sm:$0xff]
    %v371 = vld [vmem:[%s1 + $0xa40] sm:$0xff]
    %v372 = vld [vmem:[%s1 + $0xa48] sm:$0xff]
    %v373 = vld [vmem:[%s1 + $0xa50] sm:$0xff]
    %v374 = vld [vmem:[%s1 + $0xa58] sm:$0xff]
    %v375 = vld [vmem:[%s1 + $0xa60] sm:$0xff]
    %v376 = vld [vmem:[%s1 + $0xa68] sm:$0xff]
    %v377 = vld [vmem:[%s1 + $0xa70] sm:$0xff]
    %v378 = vld [vmem:[%s1 + $0xa78] sm:$0xff]
    %v379 = vld [vmem:[%s1 + $0xa80] sm:$0xff]
    %v380 = vld [vmem:[%s1 + $0xa88] sm:$0xff]
    %v381 = vld [vmem:[%s1 + $0xa90] sm:$0xff]
    %v382 = vld [vmem:[%s1 + $0xa98] sm:$0xff]
    %v383 = vld [vmem:[%s1 + $0xaa0] sm:$0xff]
    %v384 = vld [vmem:[%s1 + $0xaa8] sm:$0xff]
    %v385 = vld [vmem:[%s1 + $0xab0] sm:$0xff]
    %v386 = vld [vmem:[%s1 + $0xab8] sm:$0xff]
    %v387 = vld [vmem:[%s1 + $0xac0] sm:$0xff]
    %v388 = vld [vmem:[%s1 + $0xac8] sm:$0xff]
    %v389 = vld [vmem:[%s1 + $0xad0] sm:$0xff]
    %v390 = vld [vmem:[%s1 + $0xad8] sm:$0xff]
    %v391 = vld [vmem:[%s1 + $0xae0] sm:$0xff]
    %v392 = vld [vmem:[%s1 + $0xae8] sm:$0xff]
    %v393 = vld [vmem:[%s1 + $0xaf0] sm:$0xff]
    %v394 = vld [vmem:[%s1 + $0xaf8] sm:$0xff]
    %v395 = vld [vmem:[%s1 + $0xb00] sm:$0xff]
    %v396 = vld [vmem:[%s1 + $0xb08] sm:$0xff]
    %v397 = vld [vmem:[%s1 + $0xb10] sm:$0xff]
    %v398 = vld [vmem:[%s1 + $0xb18] sm:$0xff]
    %v399 = vld [vmem:[%s1 + $0xb20] sm:$0xff]
    %v400 = vld [vmem:[%s1 + $0xb28] sm:$0xff]
    %v401 = vld [vmem:[%s1 + $0xb30] sm:$0xff]
    %v402 = vld [vmem:[%s1 + $0xb38] sm:$0xff]
    %v403 = vld [vmem:[%s1 + $0xb40] sm:$0xff]
    %v404 = vld [vmem:[%s1 + $0xb48] sm:$0xff]
    %v405 = vld [vmem:[%s1 + $0xb50] sm:$0xff]
    %v406 = vld [vmem:[%s1 + $0xb58] sm:$0xff]
    %v407 = vld [vmem:[%s1 + $0xb60] sm:$0xff]
    %v408 = vld [vmem:[%s1 + $0xb68] sm:$0xff]
    %v409 = vld [vmem:[%s1 + $0xb70] sm:$0xff]
    %v410 = vld [vmem:[%s1 + $0xb78] sm:$0xff]
    %v411 = vld [vmem:[%s1 + $0xb80] sm:$0xff]
    %v412 = vld [vmem:[%s1 + $0xb88] sm:$0xff]
    %v413 = vld [vmem:[%s1 + $0xb90] sm:$0xff]
    %v414 = vld [vmem:[%s1 + $0xb98] sm:$0xff]
    %v415 = vld [vmem:[%s1 + $0xba0] sm:$0xff]
    %v416 = vld [vmem:[%s1 + $0xba8] sm:$0xff]
    %v417 = vld [vmem:[%s1 + $0xbb0] sm:$0xff]
    %v418 = vld [vmem:[%s1 + $0xbb8] sm:$0xff]
    %v419 = vld [vmem:[%s1 + $0xbc0] sm:$0xff]
    %v420 = vld [vmem:[%s1 + $0xbc8] sm:$0xff]
    %v421 = vld [vmem:[%s1 + $0xbd0] sm:$0xff]
    %v422 = vld [vmem:[%s1 + $0xbd8] sm:$0xff]
    %v423 = vld [vmem:[%s1 + $0xbe0] sm:$0xff]
    %v424 = vld [vmem:[%s1 + $0xbe8] sm:$0xff]
    %v425 = vld [vmem:[%s1 + $0xbf0] sm:$0xff]
    %v426 = vld [vmem:[%s1 + $0xbf8] sm:$0xff]
    %v427 = vld [vmem:[%s1 + $0xc00] sm:$0xff]
    %v428 = vld [vmem:[%s1 + $0xc08] sm:$0xff]
    %v429 = vld [vmem:[%s1 + $0xc10] sm:$0xff]
    %v430 = vld [vmem:[%s1 + $0xc18] sm:$0xff]
    %v431 = vld [vmem:[%s1 + $0xc20] sm:$0xff]
    %v432 = vld [vmem:[%s1 + $0xc28] sm:$0xff]
    %v433 = vld [vmem:[%s1 + $0xc30] sm:$0xff]
    %v434 = vld [vmem:[%s1 + $0xc38] sm:$0xff]
    %v435 = vld [vmem:[%s1 + $0xc40] sm:$0xff]
    %v436 = vld [vmem:[%s1 + $0xc48] sm:$0xff]
    %v437 = vld [vmem:[%s1 + $0xc50] sm:$0xff]
    %v438 = vld [vmem:[%s1 + $0xc58] sm:$0xff]
    %v439 = vld [vmem:[%s1 + $0xc60] sm:$0xff]
    %v440 = vld [vmem:[%s1 + $0xc68] sm:$0xff]
    %v441 = vld [vmem:[%s1 + $0xc70] sm:$0xff]
    %v442 = vld [vmem:[%s1 + $0xc78] sm:$0xff]
    %v443 = vld [vmem:[%s1 + $0xc80] sm:$0xff]
    %v444 = vld [vmem:[%s1 + $0xc88] sm:$0xff]
    %v445 = vld [vmem:[%s1 + $0xc90] sm:$0xff]
    %v446 = vld [vmem:[%s1 + $0xc98] sm:$0xff]
    %v447 = vld [vmem:[%s1 + $0xca0] sm:$0xff]
    %v448 = vld [vmem:[%s1 + $0xca8] sm:$0xff]
    %v449 = vld [vmem:[%s1 + $0xcb0] sm:$0xff]
    %v450 = vld [vmem:[%s1 + $0xcb8] sm:$0xff]
    %v451 = vld [vmem:[%s1 + $0xcc0] sm:$0xff]
    %v452 = vld [vmem:[%s1 + $0xcc8] sm:$0xff]
    %v453 = vld [vmem:[%s1 + $0xcd0] sm:$0xff]
    %v454 = vld [vmem:[%s1 + $0xcd8] sm:$0xff]
    %v455 = vld [vmem:[%s1 + $0xce0] sm:$0xff]
    %v456 = vld [vmem:[%s1 + $0xce8] sm:$0xff]
    %v457 = vld [vmem:[%s1 + $0xcf0] sm:$0xff]
    %v458 = vld [vmem:[%s1 + $0xcf8] sm:$0xff]
    %v459 = vld [vmem:[%s1 + $0xd00] sm:$0xff]
    %v460 = vld [vmem:[%s1 + $0xd08] sm:$0xff]
    %v461 = vld [vmem:[%s1 + $0xd10] sm:$0xff]
    %v462 = vld [vmem:[%s1 + $0xd18] sm:$0xff]
    %v463 = vld [vmem:[%s1 + $0xd20] sm:$0xff]
    %v464 = vld [vmem:[%s1 + $0xd28] sm:$0xff]
    %v465 = vld [vmem:[%s1 + $0xd30] sm:$0xff]
    %v466 = vld [vmem:[%s1 + $0xd38] sm:$0xff]
    %v467 = vld [vmem:[%s1 + $0xd40] sm:$0xff]
    %v468 = vld [vmem:[%s1 + $0xd48] sm:$0xff]
    %v469 = vld [vmem:[%s1 + $0xd50] sm:$0xff]
    %v470 = vld [vmem:[%s1 + $0xd58] sm:$0xff]
    %v471 = vld [vmem:[%s1 + $0xd60] sm:$0xff]
    %v472 = vld [vmem:[%s1 + $0xd68] sm:$0xff]
    %v473 = vld [vmem:[%s1 + $0xd70] sm:$0xff]
    %v474 = vld [vmem:[%s1 + $0xd78] sm:$0xff]
    %v475 = vld [vmem:[%s1 + $0xd80] sm:$0xff]
    %v476 = vld [vmem:[%s1 + $0xd88] sm:$0xff]
    %v477 = vld [vmem:[%s1 + $0xd90] sm:$0xff]
    %v478 = vld [vmem:[%s1 + $0xd98] sm:$0xff]
    %v479 = vld [vmem:[%s1 + $0xda0] sm:$0xff]
    %v480 = vld [vmem:[%s1 + $0xda8] sm:$0xff]
    %v481 = vld [vmem:[%s1 + $0xdb0] sm:$0xff]
    %v482 = vld [vmem:[%s1 + $0xdb8] sm:$0xff]
    %v483 = vld [vmem:[%s1 + $0xdc0] sm:$0xff]
    %v484 = vld [vmem:[%s1 + $0xdc8] sm:$0xff]
    %v485 = vld [vmem:[%s1 + $0xdd0] sm:$0xff]
    %v486 = vld [vmem:[%s1 + $0xdd8] sm:$0xff]
    %v487 = vld [vmem:[%s1 + $0xde0] sm:$0xff]
    %v488 = vld [vmem:[%s1 + $0xde8] sm:$0xff]
    %v489 = vld [vmem:[%s1 + $0xdf0] sm:$0xff]
    %v490 = vld [vmem:[%s1 + $0xdf8] sm:$0xff]
    %v491 = vld [vmem:[%s1 + $0xe00] sm:$0xff]
    %v492 = vld [vmem:[%s1 + $0xe08] sm:$0xff]
    %v493 = vld [vmem:[%s1 + $0xe10] sm:$0xff]
    %v494 = vld [vmem:[%s1 + $0xe18] sm:$0xff]
    %v495 = vld [vmem:[%s1 + $0xe20] sm:$0xff]
    %v496 = vld [vmem:[%s1 + $0xe28] sm:$0xff]
    %v497 = vld [vmem:[%s1 + $0xe30] sm:$0xff]
    %v498 = vld [vmem:[%s1 + $0xe38] sm:$0xff]
    %v499 = vld [vmem:[%s1 + $0xe40] sm:$0xff]
    %v500 = vld [vmem:[%s1 + $0xe48] sm:$0xff]
    %v501 = vld [vmem:[%s1 + $0xe50] sm:$0xff]
    %v502 = vld [vmem:[%s1 + $0xe58] sm:$0xff]
    %v503 = vld [vmem:[%s1 + $0xe60] sm:$0xff]
    %v504 = vld [vmem:[%s1 + $0xe68] sm:$0xff]
    %v505 = vld [vmem:[%s1 + $0xe70] sm:$0xff]
    %v506 = vld [vmem:[%s1 + $0xe78] sm:$0xff]
    %v507 = vld [vmem:[%s1 + $0xe80] sm:$0xff]
    %v508 = vld [vmem:[%s1 + $0xe88] sm:$0xff]
    %v509 = vld [vmem:[%s1 + $0xe90] sm:$0xff]
    %v510 = vld [vmem:[%s1 + $0xe98] sm:$0xff]
    %v511 = vld [vmem:[%s1 + $0xea0] sm:$0xff]
    %v512 = vld [vmem:[%s1 + $0xea8] sm:$0xff]
    %v513 = vld [vmem:[%s1 + $0xeb0] sm:$0xff]
    %v514 = vld [vmem:[%s1 + $0xeb8] sm:$0xff]
    %v515 = vld [vmem:[%s1 + $0xec0] sm:$0xff]
    %v516 = vld [vmem:[%s1 + $0xec8] sm:$0xff]
    %v517 = vld [vmem:[%s1 + $0xed0] sm:$0xff]
    %v518 = vld [vmem:[%s1 + $0xed8] sm:$0xff]
    %v519 = vld [vmem:[%s1 + $0xee0] sm:$0xff]
    %v520 = vld [vmem:[%s1 + $0xee8] sm:$0xff]
    %v521 = vld [vmem:[%s1 + $0xef0] sm:$0xff]
    %v522 = vld [vmem:[%s1 + $0xef8] sm:$0xff]
    %v523 = vld [vmem:[%s1 + $0xf00] sm:$0xff]
    %v524 = vld [vmem:[%s1 + $0xf08] sm:$0xff]
    %v525 = vld [vmem:[%s1 + $0xf10] sm:$0xff]
    %v526 = vld [vmem:[%s1 + $0xf18] sm:$0xff]
    %v527 = vld [vmem:[%s1 + $0xf20] sm:$0xff]
    %v528 = vld [vmem:[%s1 + $0xf28] sm:$0xff]
    %v529 = vld [vmem:[%s1 + $0xf30] sm:$0xff]
    %v530 = vld [vmem:[%s1 + $0xf38] sm:$0xff]
    %v531 = vld [vmem:[%s1 + $0xf40] sm:$0xff]
    %v532 = vld [vmem:[%s1 + $0xf48] sm:$0xff]
    %v533 = vld [vmem:[%s1 + $0xf50] sm:$0xff]
    %v534 = vld [vmem:[%s1 + $0xf58] sm:$0xff]
    %v535 = vld [vmem:[%s1 + $0xf60] sm:$0xff]
    %v536 = vld [vmem:[%s1 + $0xf68] sm:$0xff]
    %v537 = vld [vmem:[%s1 + $0xf70] sm:$0xff]
    %v538 = vld [vmem:[%s1 + $0xf78] sm:$0xff]
    %v539 = vld [vmem:[%s1 + $0xf80] sm:$0xff]
    %v540 = vld [vmem:[%s1 + $0xf88] sm:$0xff]
    %v541 = vld [vmem:[%s1 + $0xf90] sm:$0xff]
    %v542 = vld [vmem:[%s1 + $0xf98] sm:$0xff]
    %v543 = vld [vmem:[%s1 + $0xfa0] sm:$0xff]
    %v544 = vld [vmem:[%s1 + $0xfa8] sm:$0xff]
    %v545 = vld [vmem:[%s1 + $0xfb0] sm:$0xff]
    %v546 = vld [vmem:[%s1 + $0xfb8] sm:$0xff]
    %v547 = vld [vmem:[%s1 + $0xfc0] sm:$0xff]
    %v548 = vld [vmem:[%s1 + $0xfc8] sm:$0xff]
    %v549 = vld [vmem:[%s1 + $0xfd0] sm:$0xff]
    %v550 = vld [vmem:[%s1 + $0xfd8] sm:$0xff]
    %v551 = vld [vmem:[%s1 + $0xfe0] sm:$0xff]
    %v552 = vld [vmem:[%s1 + $0xfe8] sm:$0xff]
    %v553 = vld [vmem:[%s1 + $0xff0] sm:$0xff]
    %v554 = vld [vmem:[%s1 + $0xff8] sm:$0xff]
    %v555 = vld [vmem:[%s1 + $0x1000] sm:$0xff]
    %v556 = vld [vmem:[%s1 + $0x1008] sm:$0xff]
    %v557 = vld [vmem:[%s1 + $0x1010] sm:$0xff]
    %v558 = vld [vmem:[%s1 + $0x1018] sm:$0xff]
    %v559 = vld [vmem:[%s1 + $0x1020] sm:$0xff]
    %v560 = vld [vmem:[%s1 + $0x1028] sm:$0xff]
    %v561 = vld [vmem:[%s1 + $0x1030] sm:$0xff]
    %v562 = vld [vmem:[%s1 + $0x1038] sm:$0xff]
    %v563 = vld [vmem:[%s1 + $0x1040] sm:$0xff]
    %v564 = vld [vmem:[%s1 + $0x1048] sm:$0xff]
    %v565 = vld [vmem:[%s1 + $0x1050] sm:$0xff]
    %v566 = vld [vmem:[%s1 + $0x1058] sm:$0xff]
    %v567 = vld [vmem:[%s1 + $0x1060] sm:$0xff]
    %v568 = vld [vmem:[%s1 + $0x1068] sm:$0xff]
    %v569 = vld [vmem:[%s1 + $0x1070] sm:$0xff]
    %v570 = vld [vmem:[%s1 + $0x1078] sm:$0xff]
    %v571 = vld [vmem:[%s1 + $0x1080] sm:$0xff]
    %v572 = vld [vmem:[%s1 + $0x1088] sm:$0xff]
    %v573 = vld [vmem:[%s1 + $0x1090] sm:$0xff]
    %v574 = vld [vmem:[%s1 + $0x1098] sm:$0xff]
    %v575 = vld [vmem:[%s1 + $0x10a0] sm:$0xff]
    %v576 = vld [vmem:[%s1 + $0x10a8] sm:$0xff]
    %v577 = vld [vmem:[%s1 + $0x10b0] sm:$0xff]
    %v578 = vld [vmem:[%s1 + $0x10b8] sm:$0xff]
    %v579 = vld [vmem:[%s1 + $0x10c0] sm:$0xff]
    %v580 = vld [vmem:[%s1 + $0x10c8] sm:$0xff]
    %v581 = vld [vmem:[%s1 + $0x10d0] sm:$0xff]
    %v582 = vld [vmem:[%s1 + $0x10d8] sm:$0xff]
    %v583 = vld [vmem:[%s1 + $0x10e0] sm:$0xff]
    %v584 = vld [vmem:[%s1 + $0x10e8] sm:$0xff]
    %v585 = vld [vmem:[%s1 + $0x10f0] sm:$0xff]
    %v586 = vld [vmem:[%s1 + $0x10f8] sm:$0xff]
    %v587 = vld [vmem:[%s1 + $0x1100] sm:$0xff]
    %v588 = vld [vmem:[%s1 + $0x1108] sm:$0xff]
    %v589 = vld [vmem:[%s1 + $0x1110] sm:$0xff]
    %v590 = vld [vmem:[%s1 + $0x1118] sm:$0xff]
    %v591 = vld [vmem:[%s1 + $0x1120] sm:$0xff]
    %v592 = vld [vmem:[%s1 + $0x1128] sm:$0xff]
    %v593 = vld [vmem:[%s1 + $0x1130] sm:$0xff]
    %v594 = vld [vmem:[%s1 + $0x1138] sm:$0xff]
    %v595 = vld [vmem:[%s1 + $0x1140] sm:$0xff]
    %v596 = vld [vmem:[%s1 + $0x1148] sm:$0xff]
    %v597 = vld [vmem:[%s1 + $0x1150] sm:$0xff]
    %v598 = vld [vmem:[%s1 + $0x1158] sm:$0xff]
    %v599 = vld [vmem:[%s1 + $0x1160] sm:$0xff]
    %v600 = vld [vmem:[%s1 + $0x1168] sm:$0xff]
    %v601 = vld [vmem:[%s1 + $0x1170] sm:$0xff]
    %v602 = vld [vmem:[%s1 + $0x1178] sm:$0xff]
    %v603 = vld [vmem:[%s1 + $0x1180] sm:$0xff]
    %v604 = vld [vmem:[%s1 + $0x1188] sm:$0xff]
    %v605 = vld [vmem:[%s1 + $0x1190] sm:$0xff]
    %v606 = vld [vmem:[%s1 + $0x1198] sm:$0xff]
    %v607 = vld [vmem:[%s1 + $0x11a0] sm:$0xff]
    %v608 = vld [vmem:[%s1 + $0x11a8] sm:$0xff]
    %v609 = vld [vmem:[%s1 + $0x11b0] sm:$0xff]
    %v610 = vld [vmem:[%s1 + $0x11b8] sm:$0xff]
    %v611 = vld [vmem:[%s1 + $0x11c0] sm:$0xff]
    %v612 = vld [vmem:[%s1 + $0x11c8] sm:$0xff]
    %v613 = vld [vmem:[%s1 + $0x11d0] sm:$0xff]
    %v614 = vld [vmem:[%s1 + $0x11d8] sm:$0xff]
    %v615 = vld [vmem:[%s1 + $0x11e0] sm:$0xff]
    %v616 = vld [vmem:[%s1 + $0x11e8] sm:$0xff]
    %v617 = vld [vmem:[%s1 + $0x11f0] sm:$0xff]
    %v618 = vld [vmem:[%s1 + $0x11f8] sm:$0xff]
    %v619 = vld [vmem:[%s1 + $0x1200] sm:$0xff]
    %v620 = vld [vmem:[%s1 + $0x1208] sm:$0xff]
    %v621 = vld [vmem:[%s1 + $0x1210] sm:$0xff]
    %v622 = vld [vmem:[%s1 + $0x1218] sm:$0xff]
    %v623 = vld [vmem:[%s1 + $0x1220] sm:$0xff]
    %v624 = vld [vmem:[%s1 + $0x1228] sm:$0xff]
    %v625 = vld [vmem:[%s1 + $0x1230] sm:$0xff]
    %v626 = vld [vmem:[%s1 + $0x1238] sm:$0xff]
    %v627 = vld [vmem:[%s1 + $0x1240] sm:$0xff]
    %v628 = vld [vmem:[%s1 + $0x1248] sm:$0xff]
    %v629 = vld [vmem:[%s1 + $0x1250] sm:$0xff]
    %v630 = vld [vmem:[%s1 + $0x1258] sm:$0xff]
    %v631 = vld [vmem:[%s1 + $0x1260] sm:$0xff]
    %v632 = vld [vmem:[%s1 + $0x1268] sm:$0xff]
    %v633 = vld [vmem:[%s1 + $0x1270] sm:$0xff]
    %v634 = vld [vmem:[%s1 + $0x1278] sm:$0xff]
    %v635 = vld [vmem:[%s1 + $0x1280] sm:$0xff]
    %v636 = vld [vmem:[%s1 + $0x1288] sm:$0xff]
    %v637 = vld [vmem:[%s1 + $0x1290] sm:$0xff]
    %v638 = vld [vmem:[%s1 + $0x1298] sm:$0xff]
    %v639 = vld [vmem:[%s1 + $0x12a0] sm:$0xff]
    %v640 = vld [vmem:[%s1 + $0x12a8] sm:$0xff]
    %v641 = vld [vmem:[%s1 + $0x12b0] sm:$0xff]
    %v642 = vld [vmem:[%s1 + $0x12b8] sm:$0xff]
    %v643 = vld [vmem:[%s1 + $0x12c0] sm:$0xff]
    %v644 = vld [vmem:[%s1 + $0x12c8] sm:$0xff]
    %v645 = vld [vmem:[%s1 + $0x12d0] sm:$0xff]
    %v646 = vld [vmem:[%s1 + $0x12d8] sm:$0xff]
    %v647 = vld [vmem:[%s1 + $0x12e0] sm:$0xff]
    %v648 = vld [vmem:[%s1 + $0x12e8] sm:$0xff]
    %v649 = vld [vmem:[%s1 + $0x12f0] sm:$0xff]
    %v650 = vld [vmem:[%s1 + $0x12f8] sm:$0xff]
    %v651 = vld [vmem:[%s1 + $0x1300] sm:$0xff]
    %v652 = vld [vmem:[%s1 + $0x1308] sm:$0xff]
    %v653 = vld [vmem:[%s1 + $0x1310] sm:$0xff]
    %v654 = vld [vmem:[%s1 + $0x1318] sm:$0xff]
    %v655 = vld [vmem:[%s1 + $0x1320] sm:$0xff]
    %v656 = vld [vmem:[%s1 + $0x1328] sm:$0xff]
    %v657 = vld [vmem:[%s1 + $0x1330] sm:$0xff]
    %v658 = vld [vmem:[%s1 + $0x1338] sm:$0xff]
    %v659 = vld [vmem:[%s1 + $0x1340] sm:$0xff]
    %v660 = vld [vmem:[%s1 + $0x1348] sm:$0xff]
    %v661 = vld [vmem:[%s1 + $0x1350] sm:$0xff]
    %v662 = vld [vmem:[%s1 + $0x1358] sm:$0xff]
    %v663 = vld [vmem:[%s1 + $0x1360] sm:$0xff]
    %v664 = vld [vmem:[%s1 + $0x1368] sm:$0xff]
    %v665 = vld [vmem:[%s1 + $0x1370] sm:$0xff]
    %v666 = vld [vmem:[%s1 + $0x1378] sm:$0xff]
    %v667 = vld [vmem:[%s1 + $0x1380] sm:$0xff]
    %v668 = vld [vmem:[%s1 + $0x1388] sm:$0xff]
    %v669 = vld [vmem:[%s1 + $0x1390] sm:$0xff]
    %v670 = vld [vmem:[%s1 + $0x1398] sm:$0xff]
    %v671 = vld [vmem:[%s1 + $0x13a0] sm:$0xff]
    %v672 = vld [vmem:[%s1 + $0x13a8] sm:$0xff]
    %v673 = vld [vmem:[%s1 + $0x13b0] sm:$0xff]
    %v674 = vld [vmem:[%s1 + $0x13b8] sm:$0xff]
    %v675 = vld [vmem:[%s1 + $0x13c0] sm:$0xff]
    %v676 = vld [vmem:[%s1 + $0x13c8] sm:$0xff]
    %v677 = vld [vmem:[%s1 + $0x13d0] sm:$0xff]
    %v678 = vld [vmem:[%s1 + $0x13d8] sm:$0xff]
    %v679 = vld [vmem:[%s1 + $0x13e0] sm:$0xff]
    %v680 = vld [vmem:[%s1 + $0x13e8] sm:$0xff]
    %v681 = vld [vmem:[%s1 + $0x13f0] sm:$0xff]
    %v682 = vld [vmem:[%s1 + $0x13f8] sm:$0xff]
    %v683 = vld [vmem:[%s1 + $0x1400] sm:$0xff]
    %v684 = vld [vmem:[%s1 + $0x1408] sm:$0xff]
    %v685 = vld [vmem:[%s1 + $0x1410] sm:$0xff]
    %v686 = vld [vmem:[%s1 + $0x1418] sm:$0xff]
    %v687 = vld [vmem:[%s1 + $0x1420] sm:$0xff]
    %v688 = vld [vmem:[%s1 + $0x1428] sm:$0xff]
    %v689 = vld [vmem:[%s1 + $0x1430] sm:$0xff]
    %v690 = vld [vmem:[%s1 + $0x1438] sm:$0xff]
    %v691 = vld [vmem:[%s1 + $0x1440] sm:$0xff]
    %v692 = vld [vmem:[%s1 + $0x1448] sm:$0xff]
    %v693 = vld [vmem:[%s1 + $0x1450] sm:$0xff]
    %v694 = vld [vmem:[%s1 + $0x1458] sm:$0xff]
    %v695 = vld [vmem:[%s1 + $0x1460] sm:$0xff]
    %v696 = vld [vmem:[%s1 + $0x1468] sm:$0xff]
    %v697 = vld [vmem:[%s1 + $0x1470] sm:$0xff]
    %v698 = vld [vmem:[%s1 + $0x1478] sm:$0xff]
    %v699 = vld [vmem:[%s1 + $0x1480] sm:$0xff]
    %v700 = vld [vmem:[%s1 + $0x1488] sm:$0xff]
    %v701 = vld [vmem:[%s1 + $0x1490] sm:$0xff]
    %v702 = vld [vmem:[%s1 + $0x1498] sm:$0xff]
    %v703 = vld [vmem:[%s1 + $0x14a0] sm:$0xff]
    %v704 = vld [vmem:[%s1 + $0x14a8] sm:$0xff]
    %v705 = vld [vmem:[%s1 + $0x14b0] sm:$0xff]
    %v706 = vld [vmem:[%s1 + $0x14b8] sm:$0xff]
    %v707 = vld [vmem:[%s1 + $0x14c0] sm:$0xff]
    %v708 = vld [vmem:[%s1 + $0x14c8] sm:$0xff]
    %v709 = vld [vmem:[%s1 + $0x14d0] sm:$0xff]
    %v710 = vld [vmem:[%s1 + $0x14d8] sm:$0xff]
    %v711 = vld [vmem:[%s1 + $0x14e0] sm:$0xff]
    %v712 = vld [vmem:[%s1 + $0x14e8] sm:$0xff]
    %v713 = vld [vmem:[%s1 + $0x14f0] sm:$0xff]
    %v714 = vld [vmem:[%s1 + $0x14f8] sm:$0xff]
    %v715 = vld [vmem:[%s1 + $0x1500] sm:$0xff]
    %v716 = vld [vmem:[%s1 + $0x1508] sm:$0xff]
    %v717 = vld [vmem:[%s1 + $0x1510] sm:$0xff]
    %v718 = vld [vmem:[%s1 + $0x1518] sm:$0xff]
    %v719 = vld [vmem:[%s1 + $0x1520] sm:$0xff]
    %v720 = vld [vmem:[%s1 + $0x1528] sm:$0xff]
    %v721 = vld [vmem:[%s1 + $0x1530] sm:$0xff]
    %v722 = vld [vmem:[%s1 + $0x1538] sm:$0xff]
    %v723 = vld [vmem:[%s1 + $0x1540] sm:$0xff]
    %v724 = vld [vmem:[%s1 + $0x1548] sm:$0xff]
    %v725 = vld [vmem:[%s1 + $0x1550] sm:$0xff]
    %v726 = vld [vmem:[%s1 + $0x1558] sm:$0xff]
    %v727 = vld [vmem:[%s1 + $0x1560] sm:$0xff]
    %v728 = vld [vmem:[%s1 + $0x1568] sm:$0xff]
    %v729 = vld [vmem:[%s1 + $0x1570] sm:$0xff]
    %v730 = vld [vmem:[%s1 + $0x1578] sm:$0xff]
    %v731 = vld [vmem:[%s1 + $0x1580] sm:$0xff]
    %v732 = vld [vmem:[%s1 + $0x1588] sm:$0xff]
    %v733 = vld [vmem:[%s1 + $0x1590] sm:$0xff]
    %v734 = vld [vmem:[%s1 + $0x1598] sm:$0xff]
    %v735 = vld [vmem:[%s1 + $0x15a0] sm:$0xff]
    %v736 = vld [vmem:[%s1 + $0x15a8] sm:$0xff]
    %v737 = vld [vmem:[%s1 + $0x15b0] sm:$0xff]
    %v738 = vld [vmem:[%s1 + $0x15b8] sm:$0xff]
    %v739 = vld [vmem:[%s1 + $0x15c0] sm:$0xff]
    %v740 = vld [vmem:[%s1 + $0x15c8] sm:$0xff]
    %v741 = vld [vmem:[%s1 + $0x15d0] sm:$0xff]
    %v742 = vld [vmem:[%s1 + $0x15d8] sm:$0xff]
    %v743 = vld [vmem:[%s1 + $0x15e0] sm:$0xff]
    %v744 = vld [vmem:[%s1 + $0x15e8] sm:$0xff]
    %v745 = vld [vmem:[%s1 + $0x15f0] sm:$0xff]
    %v746 = vld [vmem:[%s1 + $0x15f8] sm:$0xff]
    %v747 = vld [vmem:[%s1 + $0x1600] sm:$0xff]
    %v748 = vld [vmem:[%s1 + $0x1608] sm:$0xff]
    %v749 = vld [vmem:[%s1 + $0x1610] sm:$0xff]
    %v750 = vld [vmem:[%s1 + $0x1618] sm:$0xff]
    %v751 = vld [vmem:[%s1 + $0x1620] sm:$0xff]
    %v752 = vld [vmem:[%s1 + $0x1628] sm:$0xff]
    %v753 = vld [vmem:[%s1 + $0x1630] sm:$0xff]
    %v754 = vld [vmem:[%s1 + $0x1638] sm:$0xff]
    %v755 = vld [vmem:[%s1 + $0x1640] sm:$0xff]
    %v756 = vld [vmem:[%s1 + $0x1648] sm:$0xff]
    %v757 = vld [vmem:[%s1 + $0x1650] sm:$0xff]
    %v758 = vld [vmem:[%s1 + $0x1658] sm:$0xff]
    %v759 = vld [vmem:[%s1 + $0x1660] sm:$0xff]
    %v760 = vld [vmem:[%s1 + $0x1668] sm:$0xff]
    %v761 = vld [vmem:[%s1 + $0x1670] sm:$0xff]
    %v762 = vld [vmem:[%s1 + $0x1678] sm:$0xff]
    %v763 = vld [vmem:[%s1 + $0x1680] sm:$0xff]
    %v764 = vld [vmem:[%s1 + $0x1688] sm:$0xff]
    %v765 = vld [vmem:[%s1 + $0x1690] sm:$0xff]
    %v766 = vld [vmem:[%s1 + $0x1698] sm:$0xff]
    %v767 = vld [vmem:[%s1 + $0x16a0] sm:$0xff]
    %v768 = vld [vmem:[%s1 + $0x16a8] sm:$0xff]
    %v769 = vld [vmem:[%s1 + $0x16b0] sm:$0xff]
    %v770 = vld [vmem:[%s1 + $0x16b8] sm:$0xff]
    %v771 = vld [vmem:[%s1 + $0x16c0] sm:$0xff]
    %v772 = vld [vmem:[%s1 + $0x16c8] sm:$0xff]
    %v773 = vld [vmem:[%s1 + $0x16d0] sm:$0xff]
    %v774 = vld [vmem:[%s1 + $0x16d8] sm:$0xff]
    %v775 = vld [vmem:[%s1 + $0x16e0] sm:$0xff]
    %v776 = vld [vmem:[%s1 + $0x16e8] sm:$0xff]
    %v777 = vld [vmem:[%s1 + $0x16f0] sm:$0xff]
    %v778 = vld [vmem:[%s1 + $0x16f8] sm:$0xff]
    %v779 = vld [vmem:[%s1 + $0x1700] sm:$0xff]
    %v780 = vld [vmem:[%s1 + $0x1708] sm:$0xff]
    %v781 = vld [vmem:[%s1 + $0x1710] sm:$0xff]
    %v782 = vld [vmem:[%s1 + $0x1718] sm:$0xff]
    %v783 = vld [vmem:[%s1 + $0x1720] sm:$0xff]
    %v784 = vld [vmem:[%s1 + $0x1728] sm:$0xff]
    %v785 = vld [vmem:[%s1 + $0x1730] sm:$0xff]
    %v786 = vld [vmem:[%s1 + $0x1738] sm:$0xff]
    %v787 = vld [vmem:[%s1 + $0x1740] sm:$0xff]
    %v788 = vld [vmem:[%s1 + $0x1748] sm:$0xff]
    %v789 = vld [vmem:[%s1 + $0x1750] sm:$0xff]
    %v790 = vld [vmem:[%s1 + $0x1758] sm:$0xff]
    %v791 = vld [vmem:[%s1 + $0x1760] sm:$0xff]
    %v792 = vld [vmem:[%s1 + $0x1768] sm:$0xff]
    %v793 = vld [vmem:[%s1 + $0x1770] sm:$0xff]
    %v794 = vld [vmem:[%s1 + $0x1778] sm:$0xff]
    %v795 = vld [vmem:[%s1 + $0x1780] sm:$0xff]
    %v796 = vld [vmem:[%s1 + $0x1788] sm:$0xff]
    %v797 = vld [vmem:[%s1 + $0x1790] sm:$0xff]
    %v798 = vld [vmem:[%s1 + $0x1798] sm:$0xff]
    %v799 = vld [vmem:[%s1 + $0x17a0] sm:$0xff]
    %v800 = vld [vmem:[%s1 + $0x17a8] sm:$0xff]
    %v801 = vld [vmem:[%s1 + $0x17b0] sm:$0xff]
    %v802 = vld [vmem:[%s1 + $0x17b8] sm:$0xff]
    %v803 = vld [vmem:[%s1 + $0x17c0] sm:$0xff]
    %v804 = vld [vmem:[%s1 + $0x17c8] sm:$0xff]
    %v805 = vld [vmem:[%s1 + $0x17d0] sm:$0xff]
    %v806 = vld [vmem:[%s1 + $0x17d8] sm:$0xff]
    %v807 = vld [vmem:[%s1 + $0x17e0] sm:$0xff]
    %v808 = vld [vmem:[%s1 + $0x17e8] sm:$0xff]
    %v809 = vld [vmem:[%s1 + $0x17f0] sm:$0xff]
    %v810 = vld [vmem:[%s1 + $0x17f8] sm:$0xff]
    %v811 = vld [vmem:[%s1 + $0x1800] sm:$0xff]
    %v812 = vld [vmem:[%s1 + $0x1808] sm:$0xff]
    %v813 = vld [vmem:[%s1 + $0x1810] sm:$0xff]
    %v814 = vld [vmem:[%s1 + $0x1818] sm:$0xff]
    %v815 = vld [vmem:[%s1 + $0x1820] sm:$0xff]
    %v816 = vld [vmem:[%s1 + $0x1828] sm:$0xff]
    %v817 = vld [vmem:[%s1 + $0x1830] sm:$0xff]
    %v818 = vld [vmem:[%s1 + $0x1838] sm:$0xff]
    %v819 = vld [vmem:[%s1 + $0x1840] sm:$0xff]
    %v820 = vld [vmem:[%s1 + $0x1848] sm:$0xff]
    %v821 = vld [vmem:[%s1 + $0x1850] sm:$0xff]
    %v822 = vld [vmem:[%s1 + $0x1858] sm:$0xff]
    %v823 = vld [vmem:[%s1 + $0x1860] sm:$0xff]
    %v824 = vld [vmem:[%s1 + $0x1868] sm:$0xff]
    %v825 = vld [vmem:[%s1 + $0x1870] sm:$0xff]
    %v826 = vld [vmem:[%s1 + $0x1878] sm:$0xff]
    %v827 = vld [vmem:[%s1 + $0x1880] sm:$0xff]
    %v828 = vld [vmem:[%s1 + $0x1888] sm:$0xff]
    %v829 = vld [vmem:[%s1 + $0x1890] sm:$0xff]
    %v830 = vld [vmem:[%s1 + $0x1898] sm:$0xff]
    %v831 = vld [vmem:[%s1 + $0x18a0] sm:$0xff]
    %v832 = vld [vmem:[%s1 + $0x18a8] sm:$0xff]
    %v833 = vld [vmem:[%s1 + $0x18b0] sm:$0xff]
    %v834 = vld [vmem:[%s1 + $0x18b8] sm:$0xff]
    %v835 = vld [vmem:[%s1 + $0x18c0] sm:$0xff]
    %v836 = vld [vmem:[%s1 + $0x18c8] sm:$0xff]
    %v837 = vld [vmem:[%s1 + $0x18d0] sm:$0xff]
    %v838 = vld [vmem:[%s1 + $0x18d8] sm:$0xff]
    %v839 = vld [vmem:[%s1 + $0x18e0] sm:$0xff]
    %v840 = vld [vmem:[%s1 + $0x18e8] sm:$0xff]
    %v841 = vld [vmem:[%s1 + $0x18f0] sm:$0xff]
    %v842 = vld [vmem:[%s1 + $0x18f8] sm:$0xff]
    %v843 = vld [vmem:[%s1 + $0x1900] sm:$0xff]
    %v844 = vld [vmem:[%s1 + $0x1908] sm:$0xff]
    %v845 = vld [vmem:[%s1 + $0x1910] sm:$0xff]
    %v846 = vld [vmem:[%s1 + $0x1918] sm:$0xff]
    %v847 = vld [vmem:[%s1 + $0x1920] sm:$0xff]
    %v848 = vld [vmem:[%s1 + $0x1928] sm:$0xff]
    %v849 = vld [vmem:[%s1 + $0x1930] sm:$0xff]
    %v850 = vld [vmem:[%s1 + $0x1938] sm:$0xff]
    %v851 = vld [vmem:[%s1 + $0x1940] sm:$0xff]
    %v852 = vld [vmem:[%s1 + $0x1948] sm:$0xff]
    %v853 = vld [vmem:[%s1 + $0x1950] sm:$0xff]
    %v854 = vld [vmem:[%s1 + $0x1958] sm:$0xff]
    %v855 = vld [vmem:[%s1 + $0x1960] sm:$0xff]
    %v856 = vld [vmem:[%s1 + $0x1968] sm:$0xff]
    %v857 = vld [vmem:[%s1 + $0x1970] sm:$0xff]
    %v858 = vld [vmem:[%s1 + $0x1978] sm:$0xff]
    %v859 = vld [vmem:[%s1 + $0x1980] sm:$0xff]
    %v860 = vld [vmem:[%s1 + $0x1988] sm:$0xff]
    %v861 = vld [vmem:[%s1 + $0x1990] sm:$0xff]
    %v862 = vld [vmem:[%s1 + $0x1998] sm:$0xff]
    %v863 = vld [vmem:[%s1 + $0x19a0] sm:$0xff]
    %v864 = vld [vmem:[%s1 + $0x19a8] sm:$0xff]
    %v865 = vld [vmem:[%s1 + $0x19b0] sm:$0xff]
    %v866 = vld [vmem:[%s1 + $0x19b8] sm:$0xff]
    %v867 = vld [vmem:[%s1 + $0x19c0] sm:$0xff]
    %v868 = vld [vmem:[%s1 + $0x19c8] sm:$0xff]
    %v869 = vld [vmem:[%s1 + $0x19d0] sm:$0xff]
    %v870 = vld [vmem:[%s1 + $0x19d8] sm:$0xff]
    %v871 = vld [vmem:[%s1 + $0x19e0] sm:$0xff]
    %v872 = vld [vmem:[%s1 + $0x19e8] sm:$0xff]
    %v873 = vld [vmem:[%s1 + $0x19f0] sm:$0xff]
    %v874 = vld [vmem:[%s1 + $0x19f8] sm:$0xff]
    %v875 = vld [vmem:[%s1 + $0x1a00] sm:$0xff]
    %v876 = vld [vmem:[%s1 + $0x1a08] sm:$0xff]
    %v877 = vld [vmem:[%s1 + $0x1a10] sm:$0xff]
    %v878 = vld [vmem:[%s1 + $0x1a18] sm:$0xff]
    %v879 = vld [vmem:[%s1 + $0x1a20] sm:$0xff]
    %v880 = vld [vmem:[%s1 + $0x1a28] sm:$0xff]
    %v881 = vld [vmem:[%s1 + $0x1a30] sm:$0xff]
    %v882 = vld [vmem:[%s1 + $0x1a38] sm:$0xff]
    %v883 = vld [vmem:[%s1 + $0x1a40] sm:$0xff]
    %v884 = vld [vmem:[%s1 + $0x1a48] sm:$0xff]
    %v885 = vld [vmem:[%s1 + $0x1a50] sm:$0xff]
    %v886 = vld [vmem:[%s1 + $0x1a58] sm:$0xff]
    %v887 = vld [vmem:[%s1 + $0x1a60] sm:$0xff]
    %v888 = vld [vmem:[%s1 + $0x1a68] sm:$0xff]
    %v889 = vld [vmem:[%s1 + $0x1a70] sm:$0xff]
    %v890 = vld [vmem:[%s1 + $0x1a78] sm:$0xff]
    %v891 = vld [vmem:[%s1 + $0x1a80] sm:$0xff]
    %v892 = vld [vmem:[%s1 + $0x1a88] sm:$0xff]
    %v893 = vld [vmem:[%s1 + $0x1a90] sm:$0xff]
    %v894 = vld [vmem:[%s1 + $0x1a98] sm:$0xff]
    %v895 = vld [vmem:[%s1 + $0x1aa0] sm:$0xff]
    %v896 = vld [vmem:[%s1 + $0x1aa8] sm:$0xff]
    %v897 = vld [vmem:[%s1 + $0x1ab0] sm:$0xff]
    %v898 = vld [vmem:[%s1 + $0x1ab8] sm:$0xff]
    %v899 = vld [vmem:[%s1 + $0x1ac0] sm:$0xff]
    %v900 = vld [vmem:[%s1 + $0x1ac8] sm:$0xff]
    %v901 = vld [vmem:[%s1 + $0x1ad0] sm:$0xff]
    %v902 = vld [vmem:[%s1 + $0x1ad8] sm:$0xff]
    %v903 = vld [vmem:[%s1 + $0x1ae0] sm:$0xff]
    %v904 = vld [vmem:[%s1 + $0x1ae8] sm:$0xff]
    %v905 = vld [vmem:[%s1 + $0x1af0] sm:$0xff]
    %v906 = vld [vmem:[%s1 + $0x1af8] sm:$0xff]
    %v907 = vld [vmem:[%s1 + $0x1b00] sm:$0xff]
    %v908 = vld [vmem:[%s1 + $0x1b08] sm:$0xff]
    %v909 = vld [vmem:[%s1 + $0x1b10] sm:$0xff]
    %v910 = vld [vmem:[%s1 + $0x1b18] sm:$0xff]
    %v911 = vld [vmem:[%s1 + $0x1b20] sm:$0xff]
    %v912 = vld [vmem:[%s1 + $0x1b28] sm:$0xff]
    %v913 = vld [vmem:[%s1 + $0x1b30] sm:$0xff]
    %v914 = vld [vmem:[%s1 + $0x1b38] sm:$0xff]
    %v915 = vld [vmem:[%s1 + $0x1b40] sm:$0xff]
    %v916 = vld [vmem:[%s1 + $0x1b48] sm:$0xff]
    %v917 = vld [vmem:[%s1 + $0x1b50] sm:$0xff]
    %v918 = vld [vmem:[%s1 + $0x1b58] sm:$0xff]
    %v919 = vld [vmem:[%s1 + $0x1b60] sm:$0xff]
    %v920 = vld [vmem:[%s1 + $0x1b68] sm:$0xff]
    %v921 = vld [vmem:[%s1 + $0x1b70] sm:$0xff]
    %v922 = vld [vmem:[%s1 + $0x1b78] sm:$0xff]
    %v923 = vld [vmem:[%s1 + $0x1b80] sm:$0xff]
    %v924 = vld [vmem:[%s1 + $0x1b88] sm:$0xff]
    %v925 = vld [vmem:[%s1 + $0x1b90] sm:$0xff]
    %v926 = vld [vmem:[%s1 + $0x1b98] sm:$0xff]
    %v927 = vld [vmem:[%s1 + $0x1ba0] sm:$0xff]
    %v928 = vld [vmem:[%s1 + $0x1ba8] sm:$0xff]
    %v929 = vld [vmem:[%s1 + $0x1bb0] sm:$0xff]
    %v930 = vld [vmem:[%s1 + $0x1bb8] sm:$0xff]
    %v931 = vld [vmem:[%s1 + $0x1bc0] sm:$0xff]
    %v932 = vld [vmem:[%s1 + $0x1bc8] sm:$0xff]
    %v933 = vld [vmem:[%s1 + $0x1bd0] sm:$0xff]
    %v934 = vld [vmem:[%s1 + $0x1bd8] sm:$0xff]
    %v935 = vld [vmem:[%s1 + $0x1be0] sm:$0xff]
    %v936 = vld [vmem:[%s1 + $0x1be8] sm:$0xff]
    %v937 = vld [vmem:[%s1 + $0x1bf0] sm:$0xff]
    %v938 = vld [vmem:[%s1 + $0x1bf8] sm:$0xff]
    %v939 = vld [vmem:[%s1 + $0x1c00] sm:$0xff]
    %v940 = vld [vmem:[%s1 + $0x1c08] sm:$0xff]
    %v941 = vld [vmem:[%s1 + $0x1c10] sm:$0xff]
    %v942 = vld [vmem:[%s1 + $0x1c18] sm:$0xff]
    %v943 = vld [vmem:[%s1 + $0x1c20] sm:$0xff]
    %v944 = vld [vmem:[%s1 + $0x1c28] sm:$0xff]
    %v945 = vld [vmem:[%s1 + $0x1c30] sm:$0xff]
    %v946 = vld [vmem:[%s1 + $0x1c38] sm:$0xff]
    %v947 = vld [vmem:[%s1 + $0x1c40] sm:$0xff]
    %v948 = vld [vmem:[%s1 + $0x1c48] sm:$0xff]
    %v949 = vld [vmem:[%s1 + $0x1c50] sm:$0xff]
    %v950 = vld [vmem:[%s1 + $0x1c58] sm:$0xff]
    %v951 = vld [vmem:[%s1 + $0x1c60] sm:$0xff]
    %v952 = vld [vmem:[%s1 + $0x1c68] sm:$0xff]
    %v953 = vld [vmem:[%s1 + $0x1c70] sm:$0xff]
    %v954 = vld [vmem:[%s1 + $0x1c78] sm:$0xff]
    %v955 = vld [vmem:[%s1 + $0x1c80] sm:$0xff]
    %v956 = vld [vmem:[%s1 + $0x1c88] sm:$0xff]
    %v957 = vld [vmem:[%s1 + $0x1c90] sm:$0xff]
    %v958 = vld [vmem:[%s1 + $0x1c98] sm:$0xff]
    %v959 = vld [vmem:[%s1 + $0x1ca0] sm:$0xff]
    %v960 = vld [vmem:[%s1 + $0x1ca8] sm:$0xff]
    %v961 = vld [vmem:[%s1 + $0x1cb0] sm:$0xff]
    %v962 = vld [vmem:[%s1 + $0x1cb8] sm:$0xff]
    %v963 = vld [vmem:[%s1 + $0x1cc0] sm:$0xff]
    %v964 = vld [vmem:[%s1 + $0x1cc8] sm:$0xff]
    %v965 = vld [vmem:[%s1 + $0x1cd0] sm:$0xff]
    %v966 = vld [vmem:[%s1 + $0x1cd8] sm:$0xff]
    %v967 = vld [vmem:[%s1 + $0x1ce0] sm:$0xff]
    %v968 = vld [vmem:[%s1 + $0x1ce8] sm:$0xff]
    %v969 = vld [vmem:[%s1 + $0x1cf0] sm:$0xff]
    %v970 = vld [vmem:[%s1 + $0x1cf8] sm:$0xff]
    %v971 = vld [vmem:[%s1 + $0x1d00] sm:$0xff]
    %v972 = vld [vmem:[%s1 + $0x1d08] sm:$0xff]
    %v973 = vld [vmem:[%s1 + $0x1d10] sm:$0xff]
    %v974 = vld [vmem:[%s1 + $0x1d18] sm:$0xff]
    %v975 = vld [vmem:[%s1 + $0x1d20] sm:$0xff]
    %v976 = vld [vmem:[%s1 + $0x1d28] sm:$0xff]
    %v977 = vld [vmem:[%s1 + $0x1d30] sm:$0xff]
    %v978 = vld [vmem:[%s1 + $0x1d38] sm:$0xff]
    %v979 = vld [vmem:[%s1 + $0x1d40] sm:$0xff]
    %v980 = vld [vmem:[%s1 + $0x1d48] sm:$0xff]
    %v981 = vld [vmem:[%s1 + $0x1d50] sm:$0xff]
    %v982 = vld [vmem:[%s1 + $0x1d58] sm:$0xff]
    %v983 = vld [vmem:[%s1 + $0x1d60] sm:$0xff]
    %v984 = vld [vmem:[%s1 + $0x1d68] sm:$0xff]
    %v985 = vld [vmem:[%s1 + $0x1d70] sm:$0xff]
    %v986 = vld [vmem:[%s1 + $0x1d78] sm:$0xff]
    %v987 = vld [vmem:[%s1 + $0x1d80] sm:$0xff]
    %v988 = vld [vmem:[%s1 + $0x1d88] sm:$0xff]
    %v989 = vld [vmem:[%s1 + $0x1d90] sm:$0xff]
    %v990 = vld [vmem:[%s1 + $0x1d98] sm:$0xff]
    %v991 = vld [vmem:[%s1 + $0x1da0] sm:$0xff]
    %v992 = vld [vmem:[%s1 + $0x1da8] sm:$0xff]
    %v993 = vld [vmem:[%s1 + $0x1db0] sm:$0xff]
    %v994 = vld [vmem:[%s1 + $0x1db8] sm:$0xff]
    %v995 = vld [vmem:[%s1 + $0x1dc0] sm:$0xff]
    %v996 = vld [vmem:[%s1 + $0x1dc8] sm:$0xff]
    %v997 = vld [vmem:[%s1 + $0x1dd0] sm:$0xff]
    %v998 = vld [vmem:[%s1 + $0x1dd8] sm:$0xff]
    %v999 = vld [vmem:[%s1 + $0x1de0] sm:$0xff]
    %v1000 = vld [vmem:[%s1 + $0x1de8] sm:$0xff]
    %v1001 = vld [vmem:[%s1 + $0x1df0] sm:$0xff]
    %v1002 = vld [vmem:[%s1 + $0x1df8] sm:$0xff]
    %v1003 = vld [vmem:[%s1 + $0x1e00] sm:$0xff]
    %v1004 = vld [vmem:[%s1 + $0x1e08] sm:$0xff]
    %v1005 = vld [vmem:[%s1 + $0x1e10] sm:$0xff]
    %v1006 = vld [vmem:[%s1 + $0x1e18] sm:$0xff]
    %v1007 = vld [vmem:[%s1 + $0x1e20] sm:$0xff]
    %v1008 = vld [vmem:[%s1 + $0x1e28] sm:$0xff]
    %v1009 = vld [vmem:[%s1 + $0x1e30] sm:$0xff]
    %v1010 = vld [vmem:[%s1 + $0x1e38] sm:$0xff]
    %v1011 = vld [vmem:[%s1 + $0x1e40] sm:$0xff]
    %v1012 = vld [vmem:[%s1 + $0x1e48] sm:$0xff]
    %v1013 = vld [vmem:[%s1 + $0x1e50] sm:$0xff]
    %v1014 = vld [vmem:[%s1 + $0x1e58] sm:$0xff]
    %v1015 = vld [vmem:[%s1 + $0x1e60] sm:$0xff]
    %v1016 = vld [vmem:[%s1 + $0x1e68] sm:$0xff]
    %v1017 = vld [vmem:[%s1 + $0x1e70] sm:$0xff]
    %v1018 = vld [vmem:[%s1 + $0x1e78] sm:$0xff]
    %v1019 = vld [vmem:[%s1 + $0x1e80] sm:$0xff]
    %v1020 = vld [vmem:[%s1 + $0x1e88] sm:$0xff]
    %v1021 = vld [vmem:[%s1 + $0x1e90] sm:$0xff]
    %v1022 = vld [vmem:[%s1 + $0x1e98] sm:$0xff]
    %v1023 = vld [vmem:[%s1 + $0x1ea0] sm:$0xff]
    %v1024 = vld [vmem:[%s1 + $0x1ea8] sm:$0xff]
    %v1025 = vld [vmem:[%s1 + $0x1eb0] sm:$0xff]
    %v1026 = vld [vmem:[%s1 + $0x1eb8] sm:$0xff]
    %v1027 = vld [vmem:[%s1 + $0x1ec0] sm:$0xff]
    %v1028 = vld [vmem:[%s1 + $0x1ec8] sm:$0xff]
    %v1029 = vld [vmem:[%s1 + $0x1ed0] sm:$0xff]
    %v1030 = vld [vmem:[%s1 + $0x1ed8] sm:$0xff]
    %v1031 = vld [vmem:[%s1 + $0x1ee0] sm:$0xff]
    %v1032 = vld [vmem:[%s1 + $0x1ee8] sm:$0xff]
    %v1033 = vld [vmem:[%s1 + $0x1ef0] sm:$0xff]
    %v1034 = vld [vmem:[%s1 + $0x1ef8] sm:$0xff]
    %v1035 = vld [vmem:[%s1 + $0x1f00] sm:$0xff]
    %v1036 = vld [vmem:[%s1 + $0x1f08] sm:$0xff]
    %v1037 = vld [vmem:[%s1 + $0x1f10] sm:$0xff]
    %v1038 = vld [vmem:[%s1 + $0x1f18] sm:$0xff]
    %v1039 = vld [vmem:[%s1 + $0x1f20] sm:$0xff]
    %v1040 = vld [vmem:[%s1 + $0x1f28] sm:$0xff]
    %v1041 = vld [vmem:[%s1 + $0x1f30] sm:$0xff]
    %v1042 = vld [vmem:[%s1 + $0x1f38] sm:$0xff]
    %v1043 = vld [vmem:[%s1 + $0x1f40] sm:$0xff]
    %v1044 = vld [vmem:[%s1 + $0x1f48] sm:$0xff]
    %v1045 = vld [vmem:[%s1 + $0x1f50] sm:$0xff]
    %v1046 = vld [vmem:[%s1 + $0x1f58] sm:$0xff]
    %v1047 = vld [vmem:[%s1 + $0x1f60] sm:$0xff]
    %v1048 = vld [vmem:[%s1 + $0x1f68] sm:$0xff]
    %v1049 = vld [vmem:[%s1 + $0x1f70] sm:$0xff]
    %v1050 = vld [vmem:[%s1 + $0x1f78] sm:$0xff]
    %v1051 = vld [vmem:[%s1 + $0x1f80] sm:$0xff]
    %v1052 = vld [vmem:[%s1 + $0x1f88] sm:$0xff]
    %v1053 = vld [vmem:[%s1 + $0x1f90] sm:$0xff]
    %v1054 = vld [vmem:[%s1 + $0x1f98] sm:$0xff]
    %v1055 = vld [vmem:[%s1 + $0x1fa0] sm:$0xff]
    %v1056 = vld [vmem:[%s1 + $0x1fa8] sm:$0xff]
    %v1057 = vld [vmem:[%s1 + $0x1fb0] sm:$0xff]
    %v1058 = vld [vmem:[%s1 + $0x1fb8] sm:$0xff]
    %v1059 = vld [vmem:[%s1 + $0x1fc0] sm:$0xff]
    %v1060 = vld [vmem:[%s1 + $0x1fc8] sm:$0xff]
    %v1061 = vld [vmem:[%s1 + $0x1fd0] sm:$0xff]
    %v1062 = vld [vmem:[%s1 + $0x1fd8] sm:$0xff]
    %v1063 = vld [vmem:[%s1 + $0x1fe0] sm:$0xff]
    %v1064 = vld [vmem:[%s1 + $0x1fe8] sm:$0xff]
    %v1065 = vld [vmem:[%s1 + $0x1ff0] sm:$0xff]
    %v1066 = vld [vmem:[%s1 + $0x1ff8] sm:$0xff]
    %v1067 = vld [vmem:[%s2] sm:$0x1]
    %v1069 = vlaneseq
    %v1070 = vshrl.u32 %v1069, 7
    %v1071 = vsub.s32 0, %v1070
    %v1072 = vrot.slane %v1067, %v1071
    %v1090 = vcombine.high %v27, %v27
    %v1092 = vunpack.c.l.s4 1983009808
    %v1093 = vunpack.c.0.s8 %v1092
    %v1094 = vlaneseq
    %v1095 = vshrl.u32 %v1094, 7
    %v1096 = vsub.s32 %v1093, %v1095
    %v1097 = vrot.slane %v27, %v1096
    %v1099 = vunpack.c.l.s4 1983009808
    %v1100 = vunpack.c.0.s8 %v1099
    %v1101 = vlaneseq
    %v1102 = vshrl.u32 %v1101, 7
    %v1103 = vsub.s32 %v1100, %v1102
    %v1104 = vrot.slane %v1090, %v1103
    %v1105 = vcombine.high %v1097, %v1097
    %v1106 = vcombine.high %v1104, %v1104
    %v1107 = vcombine.high %v28, %v28
    %v1109 = vunpack.c.l.s4 1983009808
    %v1110 = vunpack.c.0.s8 %v1109
    %v1111 = vlaneseq
    %v1112 = vshrl.u32 %v1111, 7
    %v1113 = vsub.s32 %v1110, %v1112
    %v1114 = vrot.slane %v28, %v1113
    %v1116 = vunpack.c.l.s4 1983009808
    %v1117 = vunpack.c.0.s8 %v1116
    %v1118 = vlaneseq
    %v1119 = vshrl.u32 %v1118, 7
    %v1120 = vsub.s32 %v1117, %v1119
    %v1121 = vrot.slane %v1107, %v1120
    %v1122 = vcombine.high %v1114, %v1114
    %v1123 = vcombine.high %v1121, %v1121
    %v1124 = vcombine.high %v29, %v29
    %v1126 = vunpack.c.l.s4 1983009808
    %v1127 = vunpack.c.0.s8 %v1126
    %v1128 = vlaneseq
    %v1129 = vshrl.u32 %v1128, 7
    %v1130 = vsub.s32 %v1127, %v1129
    %v1131 = vrot.slane %v29, %v1130
    %v1133 = vunpack.c.l.s4 1983009808
    %v1134 = vunpack.c.0.s8 %v1133
    %v1135 = vlaneseq
    %v1136 = vshrl.u32 %v1135, 7
    %v1137 = vsub.s32 %v1134, %v1136
    %v1138 = vrot.slane %v1124, %v1137
    %v1139 = vcombine.high %v1131, %v1131
    %v1140 = vcombine.high %v1138, %v1138
    %v1141 = vcombine.high %v30, %v30
    %v1143 = vunpack.c.l.s4 1983009808
    %v1144 = vunpack.c.0.s8 %v1143
    %v1145 = vlaneseq
    %v1146 = vshrl.u32 %v1145, 7
    %v1147 = vsub.s32 %v1144, %v1146
    %v1148 = vrot.slane %v30, %v1147
    %v1150 = vunpack.c.l.s4 1983009808
    %v1151 = vunpack.c.0.s8 %v1150
    %v1152 = vlaneseq
    %v1153 = vshrl.u32 %v1152, 7
    %v1154 = vsub.s32 %v1151, %v1153
    %v1155 = vrot.slane %v1141, %v1154
    %v1156 = vcombine.high %v1148, %v1148
    %v1157 = vcombine.high %v1155, %v1155
    %v1158 = vcombine.high %v31, %v31
    %v1160 = vunpack.c.l.s4 1983009808
    %v1161 = vunpack.c.0.s8 %v1160
    %v1162 = vlaneseq
    %v1163 = vshrl.u32 %v1162, 7
    %v1164 = vsub.s32 %v1161, %v1163
    %v1165 = vrot.slane %v31, %v1164
    %v1167 = vunpack.c.l.s4 1983009808
    %v1168 = vunpack.c.0.s8 %v1167
    %v1169 = vlaneseq
    %v1170 = vshrl.u32 %v1169, 7
    %v1171 = vsub.s32 %v1168, %v1170
    %v1172 = vrot.slane %v1158, %v1171
    %v1173 = vcombine.high %v1165, %v1165
    %v1174 = vcombine.high %v1172, %v1172
    %v1175 = vcombine.high %v32, %v32
    %v1177 = vunpack.c.l.s4 1983009808
    %v1178 = vunpack.c.0.s8 %v1177
    %v1179 = vlaneseq
    %v1180 = vshrl.u32 %v1179, 7
    %v1181 = vsub.s32 %v1178, %v1180
    %v1182 = vrot.slane %v32, %v1181
    %v1184 = vunpack.c.l.s4 1983009808
    %v1185 = vunpack.c.0.s8 %v1184
    %v1186 = vlaneseq
    %v1187 = vshrl.u32 %v1186, 7
    %v1188 = vsub.s32 %v1185, %v1187
    %v1189 = vrot.slane %v1175, %v1188
    %v1190 = vcombine.high %v1182, %v1182
    %v1191 = vcombine.high %v1189, %v1189
    %v1192 = vcombine.high %v33, %v33
    %v1194 = vunpack.c.l.s4 1983009808
    %v1195 = vunpack.c.0.s8 %v1194
    %v1196 = vlaneseq
    %v1197 = vshrl.u32 %v1196, 7
    %v1198 = vsub.s32 %v1195, %v1197
    %v1199 = vrot.slane %v33, %v1198
    %v1201 = vunpack.c.l.s4 1983009808
    %v1202 = vunpack.c.0.s8 %v1201
    %v1203 = vlaneseq
    %v1204 = vshrl.u32 %v1203, 7
    %v1205 = vsub.s32 %v1202, %v1204
    %v1206 = vrot.slane %v1192, %v1205
    %v1207 = vcombine.high %v1199, %v1199
    %v1208 = vcombine.high %v1206, %v1206
    %v1209 = vcombine.high %v34, %v34
    %v1211 = vunpack.c.l.s4 1983009808
    %v1212 = vunpack.c.0.s8 %v1211
    %v1213 = vlaneseq
    %v1214 = vshrl.u32 %v1213, 7
    %v1215 = vsub.s32 %v1212, %v1214
    %v1216 = vrot.slane %v34, %v1215
    %v1218 = vunpack.c.l.s4 1983009808
    %v1219 = vunpack.c.0.s8 %v1218
    %v1220 = vlaneseq
    %v1221 = vshrl.u32 %v1220, 7
    %v1222 = vsub.s32 %v1219, %v1221
    %v1223 = vrot.slane %v1209, %v1222
    %v1224 = vcombine.high %v1216, %v1216
    %v1225 = vcombine.high %v1223, %v1223
    %v1226 = vcombine.high %v35, %v35
    %v1228 = vunpack.c.l.s4 1983009808
    %v1229 = vunpack.c.0.s8 %v1228
    %v1230 = vlaneseq
    %v1231 = vshrl.u32 %v1230, 7
    %v1232 = vsub.s32 %v1229, %v1231
    %v1233 = vrot.slane %v35, %v1232
    %v1235 = vunpack.c.l.s4 1983009808
    %v1236 = vunpack.c.0.s8 %v1235
    %v1237 = vlaneseq
    %v1238 = vshrl.u32 %v1237, 7
    %v1239 = vsub.s32 %v1236, %v1238
    %v1240 = vrot.slane %v1226, %v1239
    %v1241 = vcombine.high %v1233, %v1233
    %v1242 = vcombine.high %v1240, %v1240
    %v1243 = vcombine.high %v36, %v36
    %v1245 = vunpack.c.l.s4 1983009808
    %v1246 = vunpack.c.0.s8 %v1245
    %v1247 = vlaneseq
    %v1248 = vshrl.u32 %v1247, 7
    %v1249 = vsub.s32 %v1246, %v1248
    %v1250 = vrot.slane %v36, %v1249
    %v1252 = vunpack.c.l.s4 1983009808
    %v1253 = vunpack.c.0.s8 %v1252
    %v1254 = vlaneseq
    %v1255 = vshrl.u32 %v1254, 7
    %v1256 = vsub.s32 %v1253, %v1255
    %v1257 = vrot.slane %v1243, %v1256
    %v1258 = vcombine.high %v1250, %v1250
    %v1259 = vcombine.high %v1257, %v1257
    %v1260 = vcombine.high %v37, %v37
    %v1262 = vunpack.c.l.s4 1983009808
    %v1263 = vunpack.c.0.s8 %v1262
    %v1264 = vlaneseq
    %v1265 = vshrl.u32 %v1264, 7
    %v1266 = vsub.s32 %v1263, %v1265
    %v1267 = vrot.slane %v37, %v1266
    %v1269 = vunpack.c.l.s4 1983009808
    %v1270 = vunpack.c.0.s8 %v1269
    %v1271 = vlaneseq
    %v1272 = vshrl.u32 %v1271, 7
    %v1273 = vsub.s32 %v1270, %v1272
    %v1274 = vrot.slane %v1260, %v1273
    %v1275 = vcombine.high %v1267, %v1267
    %v1276 = vcombine.high %v1274, %v1274
    %v1277 = vcombine.high %v38, %v38
    %v1279 = vunpack.c.l.s4 1983009808
    %v1280 = vunpack.c.0.s8 %v1279
    %v1281 = vlaneseq
    %v1282 = vshrl.u32 %v1281, 7
    %v1283 = vsub.s32 %v1280, %v1282
    %v1284 = vrot.slane %v38, %v1283
    %v1286 = vunpack.c.l.s4 1983009808
    %v1287 = vunpack.c.0.s8 %v1286
    %v1288 = vlaneseq
    %v1289 = vshrl.u32 %v1288, 7
    %v1290 = vsub.s32 %v1287, %v1289
    %v1291 = vrot.slane %v1277, %v1290
    %v1292 = vcombine.high %v1284, %v1284
    %v1293 = vcombine.high %v1291, %v1291
    %v1294 = vcombine.high %v39, %v39
    %v1296 = vunpack.c.l.s4 1983009808
    %v1297 = vunpack.c.0.s8 %v1296
    %v1298 = vlaneseq
    %v1299 = vshrl.u32 %v1298, 7
    %v1300 = vsub.s32 %v1297, %v1299
    %v1301 = vrot.slane %v39, %v1300
    %v1303 = vunpack.c.l.s4 1983009808
    %v1304 = vunpack.c.0.s8 %v1303
    %v1305 = vlaneseq
    %v1306 = vshrl.u32 %v1305, 7
    %v1307 = vsub.s32 %v1304, %v1306
    %v1308 = vrot.slane %v1294, %v1307
    %v1309 = vcombine.high %v1301, %v1301
    %v1310 = vcombine.high %v1308, %v1308
    %v1311 = vcombine.high %v40, %v40
    %v1313 = vunpack.c.l.s4 1983009808
    %v1314 = vunpack.c.0.s8 %v1313
    %v1315 = vlaneseq
    %v1316 = vshrl.u32 %v1315, 7
    %v1317 = vsub.s32 %v1314, %v1316
    %v1318 = vrot.slane %v40, %v1317
    %v1320 = vunpack.c.l.s4 1983009808
    %v1321 = vunpack.c.0.s8 %v1320
    %v1322 = vlaneseq
    %v1323 = vshrl.u32 %v1322, 7
    %v1324 = vsub.s32 %v1321, %v1323
    %v1325 = vrot.slane %v1311, %v1324
    %v1326 = vcombine.high %v1318, %v1318
    %v1327 = vcombine.high %v1325, %v1325
    %v1328 = vcombine.high %v41, %v41
    %v1330 = vunpack.c.l.s4 1983009808
    %v1331 = vunpack.c.0.s8 %v1330
    %v1332 = vlaneseq
    %v1333 = vshrl.u32 %v1332, 7
    %v1334 = vsub.s32 %v1331, %v1333
    %v1335 = vrot.slane %v41, %v1334
    %v1337 = vunpack.c.l.s4 1983009808
    %v1338 = vunpack.c.0.s8 %v1337
    %v1339 = vlaneseq
    %v1340 = vshrl.u32 %v1339, 7
    %v1341 = vsub.s32 %v1338, %v1340
    %v1342 = vrot.slane %v1328, %v1341
    %v1343 = vcombine.high %v1335, %v1335
    %v1344 = vcombine.high %v1342, %v1342
    %v1345 = vcombine.high %v42, %v42
    %v1347 = vunpack.c.l.s4 1983009808
    %v1348 = vunpack.c.0.s8 %v1347
    %v1349 = vlaneseq
    %v1350 = vshrl.u32 %v1349, 7
    %v1351 = vsub.s32 %v1348, %v1350
    %v1352 = vrot.slane %v42, %v1351
    %v1354 = vunpack.c.l.s4 1983009808
    %v1355 = vunpack.c.0.s8 %v1354
    %v1356 = vlaneseq
    %v1357 = vshrl.u32 %v1356, 7
    %v1358 = vsub.s32 %v1355, %v1357
    %v1359 = vrot.slane %v1345, %v1358
    %v1360 = vcombine.high %v1352, %v1352
    %v1361 = vcombine.high %v1359, %v1359
    %1426 = vmatprep.subr.mxu0 0.0
    %1427 = vmatpush1.msra.mxu0 %v43
    %1428 = vmatprep.subr.mxu0 0.0
    %1429 = vmatpush1.msra.mxu0 %v44
    %1430 = vmatprep.subr.mxu0 0.0
    %1431 = vmatpush1.msra.mxu0 %v45
    %1432 = vmatprep.subr.mxu0 0.0
    %1433 = vmatpush1.msra.mxu0 %v46
    %1434 = vmatprep.subr.mxu0 0.0
    %1435 = vmatpush1.msra.mxu0 %v47
    %1436 = vmatprep.subr.mxu0 0.0
    %1437 = vmatpush1.msra.mxu0 %v48
    %1438 = vmatprep.subr.mxu0 0.0
    %1439 = vmatpush1.msra.mxu0 %v49
    %1440 = vmatprep.subr.mxu0 0.0
    %1441 = vmatpush1.msra.mxu0 %v50
    %1442 = vmatprep.subr.mxu0 0.0
    %1443 = vmatpush1.msra.mxu0 %v51
    %1444 = vmatprep.subr.mxu0 0.0
    %1445 = vmatpush1.msra.mxu0 %v52
    %1446 = vmatprep.subr.mxu0 0.0
    %1447 = vmatpush1.msra.mxu0 %v53
    %1448 = vmatprep.subr.mxu0 0.0
    %1449 = vmatpush1.msra.mxu0 %v54
    %1450 = vmatprep.subr.mxu0 0.0
    %1451 = vmatpush1.msra.mxu0 %v55
    %1452 = vmatprep.subr.mxu0 0.0
    %1453 = vmatpush1.msra.mxu0 %v56
    %1454 = vmatprep.subr.mxu0 0.0
    %1455 = vmatpush1.msra.mxu0 %v57
    %1456 = vmatprep.subr.mxu0 0.0
    %1457 = vmatpush1.msra.mxu0 %v58
    %1458 = vmatprep.subr.mxu0 0.0
    %1459 = vmatpush1.msra.mxu0 %v59
    %1460 = vmatprep.subr.mxu0 0.0
    %1461 = vmatpush1.msra.mxu0 %v60
    %1462 = vmatprep.subr.mxu0 0.0
    %1463 = vmatpush1.msra.mxu0 %v61
    %1464 = vmatprep.subr.mxu0 0.0
    %1465 = vmatpush1.msra.mxu0 %v62
    %1466 = vmatprep.subr.mxu0 0.0
    %1467 = vmatpush1.msra.mxu0 %v63
    %1468 = vmatprep.subr.mxu0 0.0
    %1469 = vmatpush1.msra.mxu0 %v64
    %1470 = vmatprep.subr.mxu0 0.0
    %1471 = vmatpush1.msra.mxu0 %v65
    %1472 = vmatprep.subr.mxu0 0.0
    %1473 = vmatpush1.msra.mxu0 %v66
    %1474 = vmatprep.subr.mxu0 0.0
    %1475 = vmatpush1.msra.mxu0 %v67
    %1476 = vmatprep.subr.mxu0 0.0
    %1477 = vmatpush1.msra.mxu0 %v68
    %1478 = vmatprep.subr.mxu0 0.0
    %1479 = vmatpush1.msra.mxu0 %v69
    %1480 = vmatprep.subr.mxu0 0.0
    %1481 = vmatpush1.msra.mxu0 %v70
    %1482 = vmatprep.subr.mxu0 0.0
    %1483 = vmatpush1.msra.mxu0 %v71
    %1484 = vmatprep.subr.mxu0 0.0
    %1485 = vmatpush1.msra.mxu0 %v72
    %1486 = vmatprep.subr.mxu0 0.0
    %1487 = vmatpush1.msra.mxu0 %v73
    %1488 = vmatprep.subr.mxu0 0.0
    %1489 = vmatpush1.msra.mxu0 %v74
    %1490 = vmatprep.mubr.f32.mxu0 %v1105
    %1491 = vmatmul.mubr.f32.gmra.mrb[0].mxu0 %v1097
    %v1492 = vpop.f32.mrb[0].mxu0
    %v1493 = vadd.f32 %v1072, %v1492
    %v1494 = vpop.f32.mrb[0].mxu0
    %1495 = vdwg.mxu0
    %1496 = vmatprep.subr.mxu0 0.0
    %1497 = vmatpush1.msra.mxu0 %v75
    %1498 = vmatprep.subr.mxu0 0.0
    %1499 = vmatpush1.msra.mxu0 %v76
    %1500 = vmatprep.subr.mxu0 0.0
    %1501 = vmatpush1.msra.mxu0 %v77
    %1502 = vmatprep.subr.mxu0 0.0
    %1503 = vmatpush1.msra.mxu0 %v78
    %1504 = vmatprep.subr.mxu0 0.0
    %1505 = vmatpush1.msra.mxu0 %v79
    %1506 = vmatprep.subr.mxu0 0.0
    %1507 = vmatpush1.msra.mxu0 %v80
    %1508 = vmatprep.subr.mxu0 0.0
    %1509 = vmatpush1.msra.mxu0 %v81
    %1510 = vmatprep.subr.mxu0 0.0
    %1511 = vmatpush1.msra.mxu0 %v82
    %1512 = vmatprep.subr.mxu0 0.0
    %1513 = vmatpush1.msra.mxu0 %v83
    %1514 = vmatprep.subr.mxu0 0.0
    %1515 = vmatpush1.msra.mxu0 %v84
    %1516 = vmatprep.subr.mxu0 0.0
    %1517 = vmatpush1.msra.mxu0 %v85
    %1518 = vmatprep.subr.mxu0 0.0
    %1519 = vmatpush1.msra.mxu0 %v86
    %1520 = vmatprep.subr.mxu0 0.0
    %1521 = vmatpush1.msra.mxu0 %v87
    %1522 = vmatprep.subr.mxu0 0.0
    %1523 = vmatpush1.msra.mxu0 %v88
    %1524 = vmatprep.subr.mxu0 0.0
    %1525 = vmatpush1.msra.mxu0 %v89
    %1526 = vmatprep.subr.mxu0 0.0
    %1527 = vmatpush1.msra.mxu0 %v90
    %1528 = vmatprep.subr.mxu0 0.0
    %1529 = vmatpush1.msra.mxu0 %v91
    %1530 = vmatprep.subr.mxu0 0.0
    %1531 = vmatpush1.msra.mxu0 %v92
    %1532 = vmatprep.subr.mxu0 0.0
    %1533 = vmatpush1.msra.mxu0 %v93
    %1534 = vmatprep.subr.mxu0 0.0
    %1535 = vmatpush1.msra.mxu0 %v94
    %1536 = vmatprep.subr.mxu0 0.0
    %1537 = vmatpush1.msra.mxu0 %v95
    %1538 = vmatprep.subr.mxu0 0.0
    %1539 = vmatpush1.msra.mxu0 %v96
    %1540 = vmatprep.subr.mxu0 0.0
    %1541 = vmatpush1.msra.mxu0 %v97
    %1542 = vmatprep.subr.mxu0 0.0
    %1543 = vmatpush1.msra.mxu0 %v98
    %1544 = vmatprep.subr.mxu0 0.0
    %1545 = vmatpush1.msra.mxu0 %v99
    %1546 = vmatprep.subr.mxu0 0.0
    %1547 = vmatpush1.msra.mxu0 %v100
    %1548 = vmatprep.subr.mxu0 0.0
    %1549 = vmatpush1.msra.mxu0 %v101
    %1550 = vmatprep.subr.mxu0 0.0
    %1551 = vmatpush1.msra.mxu0 %v102
    %1552 = vmatprep.subr.mxu0 0.0
    %1553 = vmatpush1.msra.mxu0 %v103
    %1554 = vmatprep.subr.mxu0 0.0
    %1555 = vmatpush1.msra.mxu0 %v104
    %1556 = vmatprep.subr.mxu0 0.0
    %1557 = vmatpush1.msra.mxu0 %v105
    %1558 = vmatprep.subr.mxu0 0.0
    %1559 = vmatpush1.msra.mxu0 %v106
    %1560 = vmatprep.mubr.f32.mxu0 %v1106
    %1561 = vmatmul.mubr.f32.gmra.mrb[0].mxu0 %v1104
    %v1562 = vpop.f32.mrb[0].mxu0
    %v1563 = vadd.f32 %v1493, %v1562
    %v1564 = vpop.f32.mrb[0].mxu0
    %1565 = vdwg.mxu0
    %1566 = vmatprep.subr.mxu0 0.0
    %1567 = vmatpush1.msra.mxu0 %v107
    %1568 = vmatprep.subr.mxu0 0.0
    %1569 = vmatpush1.msra.mxu0 %v108
    %1570 = vmatprep.subr.mxu0 0.0
    %1571 = vmatpush1.msra.mxu0 %v109
    %1572 = vmatprep.subr.mxu0 0.0
    %1573 = vmatpush1.msra.mxu0 %v110
    %1574 = vmatprep.subr.mxu0 0.0
    %1575 = vmatpush1.msra.mxu0 %v111
    %1576 = vmatprep.subr.mxu0 0.0
    %1577 = vmatpush1.msra.mxu0 %v112
    %1578 = vmatprep.subr.mxu0 0.0
    %1579 = vmatpush1.msra.mxu0 %v113
    %1580 = vmatprep.subr.mxu0 0.0
    %1581 = vmatpush1.msra.mxu0 %v114
    %1582 = vmatprep.subr.mxu0 0.0
    %1583 = vmatpush1.msra.mxu0 %v115
    %1584 = vmatprep.subr.mxu0 0.0
    %1585 = vmatpush1.msra.mxu0 %v116
    %1586 = vmatprep.subr.mxu0 0.0
    %1587 = vmatpush1.msra.mxu0 %v117
    %1588 = vmatprep.subr.mxu0 0.0
    %1589 = vmatpush1.msra.mxu0 %v118
    %1590 = vmatprep.subr.mxu0 0.0
    %1591 = vmatpush1.msra.mxu0 %v119
    %1592 = vmatprep.subr.mxu0 0.0
    %1593 = vmatpush1.msra.mxu0 %v120
    %1594 = vmatprep.subr.mxu0 0.0
    %1595 = vmatpush1.msra.mxu0 %v121
    %1596 = vmatprep.subr.mxu0 0.0
    %1597 = vmatpush1.msra.mxu0 %v122
    %1598 = vmatprep.subr.mxu0 0.0
    %1599 = vmatpush1.msra.mxu0 %v123
    %1600 = vmatprep.subr.mxu0 0.0
    %1601 = vmatpush1.msra.mxu0 %v124
    %1602 = vmatprep.subr.mxu0 0.0
    %1603 = vmatpush1.msra.mxu0 %v125
    %1604 = vmatprep.subr.mxu0 0.0
    %1605 = vmatpush1.msra.mxu0 %v126
    %1606 = vmatprep.subr.mxu0 0.0
    %1607 = vmatpush1.msra.mxu0 %v127
    %1608 = vmatprep.subr.mxu0 0.0
    %1609 = vmatpush1.msra.mxu0 %v128
    %1610 = vmatprep.subr.mxu0 0.0
    %1611 = vmatpush1.msra.mxu0 %v129
    %1612 = vmatprep.subr.mxu0 0.0
    %1613 = vmatpush1.msra.mxu0 %v130
    %1614 = vmatprep.subr.mxu0 0.0
    %1615 = vmatpush1.msra.mxu0 %v131
    %1616 = vmatprep.subr.mxu0 0.0
    %1617 = vmatpush1.msra.mxu0 %v132
    %1618 = vmatprep.subr.mxu0 0.0
    %1619 = vmatpush1.msra.mxu0 %v133
    %1620 = vmatprep.subr.mxu0 0.0
    %1621 = vmatpush1.msra.mxu0 %v134
    %1622 = vmatprep.subr.mxu0 0.0
    %1623 = vmatpush1.msra.mxu0 %v135
    %1624 = vmatprep.subr.mxu0 0.0
    %1625 = vmatpush1.msra.mxu0 %v136
    %1626 = vmatprep.subr.mxu0 0.0
    %1627 = vmatpush1.msra.mxu0 %v137
    %1628 = vmatprep.subr.mxu0 0.0
    %1629 = vmatpush1.msra.mxu0 %v138
    %1630 = vmatprep.mubr.f32.mxu0 %v1122
    %1631 = vmatmul.mubr.f32.gmra.mrb[0].mxu0 %v1114
    %v1632 = vpop.f32.mrb[0].mxu0
    %v1633 = vadd.f32 %v1563, %v1632
    %v1634 = vpop.f32.mrb[0].mxu0
    %1635 = vdwg.mxu0
    %1636 = vmatprep.subr.mxu0 0.0
    %1637 = vmatpush1.msra.mxu0 %v139
    %1638 = vmatprep.subr.mxu0 0.0
    %1639 = vmatpush1.msra.mxu0 %v140
    %1640 = vmatprep.subr.mxu0 0.0
    %1641 = vmatpush1.msra.mxu0 %v141
    %1642 = vmatprep.subr.mxu0 0.0
    %1643 = vmatpush1.msra.mxu0 %v142
    %1644 = vmatprep.subr.mxu0 0.0
    %1645 = vmatpush1.msra.mxu0 %v143
    %1646 = vmatprep.subr.mxu0 0.0
    %1647 = vmatpush1.msra.mxu0 %v144
    %1648 = vmatprep.subr.mxu0 0.0
    %1649 = vmatpush1.msra.mxu0 %v145
    %1650 = vmatprep.subr.mxu0 0.0
    %1651 = vmatpush1.msra.mxu0 %v146
    %1652 = vmatprep.subr.mxu0 0.0
    %1653 = vmatpush1.msra.mxu0 %v147
    %1654 = vmatprep.subr.mxu0 0.0
    %1655 = vmatpush1.msra.mxu0 %v148
    %1656 = vmatprep.subr.mxu0 0.0
    %1657 = vmatpush1.msra.mxu0 %v149
    %1658 = vmatprep.subr.mxu0 0.0
    %1659 = vmatpush1.msra.mxu0 %v150
    %1660 = vmatprep.subr.mxu0 0.0
    %1661 = vmatpush1.msra.mxu0 %v151
    %1662 = vmatprep.subr.mxu0 0.0
    %1663 = vmatpush1.msra.mxu0 %v152
    %1664 = vmatprep.subr.mxu0 0.0
    %1665 = vmatpush1.msra.mxu0 %v153
    %1666 = vmatprep.subr.mxu0 0.0
    %1667 = vmatpush1.msra.mxu0 %v154
    %1668 = vmatprep.subr.mxu0 0.0
    %1669 = vmatpush1.msra.mxu0 %v155
    %1670 = vmatprep.subr.mxu0 0.0
    %1671 = vmatpush1.msra.mxu0 %v156
    %1672 = vmatprep.subr.mxu0 0.0
    %1673 = vmatpush1.msra.mxu0 %v157
    %1674 = vmatprep.subr.mxu0 0.0
    %1675 = vmatpush1.msra.mxu0 %v158
    %1676 = vmatprep.subr.mxu0 0.0
    %1677 = vmatpush1.msra.mxu0 %v159
    %1678 = vmatprep.subr.mxu0 0.0
    %1679 = vmatpush1.msra.mxu0 %v160
    %1680 = vmatprep.subr.mxu0 0.0
    %1681 = vmatpush1.msra.mxu0 %v161
    %1682 = vmatprep.subr.mxu0 0.0
    %1683 = vmatpush1.msra.mxu0 %v162
    %1684 = vmatprep.subr.mxu0 0.0
    %1685 = vmatpush1.msra.mxu0 %v163
    %1686 = vmatprep.subr.mxu0 0.0
    %1687 = vmatpush1.msra.mxu0 %v164
    %1688 = vmatprep.subr.mxu0 0.0
    %1689 = vmatpush1.msra.mxu0 %v165
    %1690 = vmatprep.subr.mxu0 0.0
    %1691 = vmatpush1.msra.mxu0 %v166
    %1692 = vmatprep.subr.mxu0 0.0
    %1693 = vmatpush1.msra.mxu0 %v167
    %1694 = vmatprep.subr.mxu0 0.0
    %1695 = vmatpush1.msra.mxu0 %v168
    %1696 = vmatprep.subr.mxu0 0.0
    %1697 = vmatpush1.msra.mxu0 %v169
    %1698 = vmatprep.subr.mxu0 0.0
    %1699 = vmatpush1.msra.mxu0 %v170
    %1700 = vmatprep.mubr.f32.mxu0 %v1123
    %1701 = vmatmul.mubr.f32.gmra.mrb[0].mxu0 %v1121
    %v1702 = vpop.f32.mrb[0].mxu0
    %v1703 = vadd.f32 %v1633, %v1702
    %v1704 = vpop.f32.mrb[0].mxu0
    %1705 = vdwg.mxu0
    %1706 = vmatprep.subr.mxu0 0.0
    %1707 = vmatpush1.msra.mxu0 %v171
    %1708 = vmatprep.subr.mxu0 0.0
    %1709 = vmatpush1.msra.mxu0 %v172
    %1710 = vmatprep.subr.mxu0 0.0
    %1711 = vmatpush1.msra.mxu0 %v173
    %1712 = vmatprep.subr.mxu0 0.0
    %1713 = vmatpush1.msra.mxu0 %v174
    %1714 = vmatprep.subr.mxu0 0.0
    %1715 = vmatpush1.msra.mxu0 %v175
    %1716 = vmatprep.subr.mxu0 0.0
    %1717 = vmatpush1.msra.mxu0 %v176
    %1718 = vmatprep.subr.mxu0 0.0
    %1719 = vmatpush1.msra.mxu0 %v177
    %1720 = vmatprep.subr.mxu0 0.0
    %1721 = vmatpush1.msra.mxu0 %v178
    %1722 = vmatprep.subr.mxu0 0.0
    %1723 = vmatpush1.msra.mxu0 %v179
    %1724 = vmatprep.subr.mxu0 0.0
    %1725 = vmatpush1.msra.mxu0 %v180
    %1726 = vmatprep.subr.mxu0 0.0
    %1727 = vmatpush1.msra.mxu0 %v181
    %1728 = vmatprep.subr.mxu0 0.0
    %1729 = vmatpush1.msra.mxu0 %v182
    %1730 = vmatprep.subr.mxu0 0.0
    %1731 = vmatpush1.msra.mxu0 %v183
    %1732 = vmatprep.subr.mxu0 0.0
    %1733 = vmatpush1.msra.mxu0 %v184
    %1734 = vmatprep.subr.mxu0 0.0
    %1735 = vmatpush1.msra.mxu0 %v185
    %1736 = vmatprep.subr.mxu0 0.0
    %1737 = vmatpush1.msra.mxu0 %v186
    %1738 = vmatprep.subr.mxu0 0.0
    %1739 = vmatpush1.msra.mxu0 %v187
    %1740 = vmatprep.subr.mxu0 0.0
    %1741 = vmatpush1.msra.mxu0 %v188
    %1742 = vmatprep.subr.mxu0 0.0
    %1743 = vmatpush1.msra.mxu0 %v189
    %1744 = vmatprep.subr.mxu0 0.0
    %1745 = vmatpush1.msra.mxu0 %v190
    %1746 = vmatprep.subr.mxu0 0.0
    %1747 = vmatpush1.msra.mxu0 %v191
    %1748 = vmatprep.subr.mxu0 0.0
    %1749 = vmatpush1.msra.mxu0 %v192
    %1750 = vmatprep.subr.mxu0 0.0
    %1751 = vmatpush1.msra.mxu0 %v193
    %1752 = vmatprep.subr.mxu0 0.0
    %1753 = vmatpush1.msra.mxu0 %v194
    %1754 = vmatprep.subr.mxu0 0.0
    %1755 = vmatpush1.msra.mxu0 %v195
    %1756 = vmatprep.subr.mxu0 0.0
    %1757 = vmatpush1.msra.mxu0 %v196
    %1758 = vmatprep.subr.mxu0 0.0
    %1759 = vmatpush1.msra.mxu0 %v197
    %1760 = vmatprep.subr.mxu0 0.0
    %1761 = vmatpush1.msra.mxu0 %v198
    %1762 = vmatprep.subr.mxu0 0.0
    %1763 = vmatpush1.msra.mxu0 %v199
    %1764 = vmatprep.subr.mxu0 0.0
    %1765 = vmatpush1.msra.mxu0 %v200
    %1766 = vmatprep.subr.mxu0 0.0
    %1767 = vmatpush1.msra.mxu0 %v201
    %1768 = vmatprep.subr.mxu0 0.0
    %1769 = vmatpush1.msra.mxu0 %v202
    %1770 = vmatprep.mubr.f32.mxu0 %v1139
    %1771 = vmatmul.mubr.f32.gmra.mrb[0].mxu0 %v1131
    %v1772 = vpop.f32.mrb[0].mxu0
    %v1773 = vadd.f32 %v1703, %v1772
    %v1774 = vpop.f32.mrb[0].mxu0
    %1775 = vdwg.mxu0
    %1776 = vmatprep.subr.mxu0 0.0
    %1777 = vmatpush1.msra.mxu0 %v203
    %1778 = vmatprep.subr.mxu0 0.0
    %1779 = vmatpush1.msra.mxu0 %v204
    %1780 = vmatprep.subr.mxu0 0.0
    %1781 = vmatpush1.msra.mxu0 %v205
    %1782 = vmatprep.subr.mxu0 0.0
    %1783 = vmatpush1.msra.mxu0 %v206
    %1784 = vmatprep.subr.mxu0 0.0
    %1785 = vmatpush1.msra.mxu0 %v207
    %1786 = vmatprep.subr.mxu0 0.0
    %1787 = vmatpush1.msra.mxu0 %v208
    %1788 = vmatprep.subr.mxu0 0.0
    %1789 = vmatpush1.msra.mxu0 %v209
    %1790 = vmatprep.subr.mxu0 0.0
    %1791 = vmatpush1.msra.mxu0 %v210
    %1792 = vmatprep.subr.mxu0 0.0
    %1793 = vmatpush1.msra.mxu0 %v211
    %1794 = vmatprep.subr.mxu0 0.0
    %1795 = vmatpush1.msra.mxu0 %v212
    %1796 = vmatprep.subr.mxu0 0.0
    %1797 = vmatpush1.msra.mxu0 %v213
    %1798 = vmatprep.subr.mxu0 0.0
    %1799 = vmatpush1.msra.mxu0 %v214
    %1800 = vmatprep.subr.mxu0 0.0
    %1801 = vmatpush1.msra.mxu0 %v215
    %1802 = vmatprep.subr.mxu0 0.0
    %1803 = vmatpush1.msra.mxu0 %v216
    %1804 = vmatprep.subr.mxu0 0.0
    %1805 = vmatpush1.msra.mxu0 %v217
    %1806 = vmatprep.subr.mxu0 0.0
    %1807 = vmatpush1.msra.mxu0 %v218
    %1808 = vmatprep.subr.mxu0 0.0
    %1809 = vmatpush1.msra.mxu0 %v219
    %1810 = vmatprep.subr.mxu0 0.0
    %1811 = vmatpush1.msra.mxu0 %v220
    %1812 = vmatprep.subr.mxu0 0.0
    %1813 = vmatpush1.msra.mxu0 %v221
    %1814 = vmatprep.subr.mxu0 0.0
    %1815 = vmatpush1.msra.mxu0 %v222
    %1816 = vmatprep.subr.mxu0 0.0
    %1817 = vmatpush1.msra.mxu0 %v223
    %1818 = vmatprep.subr.mxu0 0.0
    %1819 = vmatpush1.msra.mxu0 %v224
    %1820 = vmatprep.subr.mxu0 0.0
    %1821 = vmatpush1.msra.mxu0 %v225
    %1822 = vmatprep.subr.mxu0 0.0
    %1823 = vmatpush1.msra.mxu0 %v226
    %1824 = vmatprep.subr.mxu0 0.0
    %1825 = vmatpush1.msra.mxu0 %v227
    %1826 = vmatprep.subr.mxu0 0.0
    %1827 = vmatpush1.msra.mxu0 %v228
    %1828 = vmatprep.subr.mxu0 0.0
    %1829 = vmatpush1.msra.mxu0 %v229
    %1830 = vmatprep.subr.mxu0 0.0
    %1831 = vmatpush1.msra.mxu0 %v230
    %1832 = vmatprep.subr.mxu0 0.0
    %1833 = vmatpush1.msra.mxu0 %v231
    %1834 = vmatprep.subr.mxu0 0.0
    %1835 = vmatpush1.msra.mxu0 %v232
    %1836 = vmatprep.subr.mxu0 0.0
    %1837 = vmatpush1.msra.mxu0 %v233
    %1838 = vmatprep.subr.mxu0 0.0
    %1839 = vmatpush1.msra.mxu0 %v234
    %1840 = vmatprep.mubr.f32.mxu0 %v1140
    %1841 = vmatmul.mubr.f32.gmra.mrb[0].mxu0 %v1138
    %v1842 = vpop.f32.mrb[0].mxu0
    %v1843 = vadd.f32 %v1773, %v1842
    %v1844 = vpop.f32.mrb[0].mxu0
    %1845 = vdwg.mxu0
    %1846 = vmatprep.subr.mxu0 0.0
    %1847 = vmatpush1.msra.mxu0 %v235
    %1848 = vmatprep.subr.mxu0 0.0
    %1849 = vmatpush1.msra.mxu0 %v236
    %1850 = vmatprep.subr.mxu0 0.0
    %1851 = vmatpush1.msra.mxu0 %v237
    %1852 = vmatprep.subr.mxu0 0.0
    %1853 = vmatpush1.msra.mxu0 %v238
    %1854 = vmatprep.subr.mxu0 0.0
    %1855 = vmatpush1.msra.mxu0 %v239
    %1856 = vmatprep.subr.mxu0 0.0
    %1857 = vmatpush1.msra.mxu0 %v240
    %1858 = vmatprep.subr.mxu0 0.0
    %1859 = vmatpush1.msra.mxu0 %v241
    %1860 = vmatprep.subr.mxu0 0.0
    %1861 = vmatpush1.msra.mxu0 %v242
    %1862 = vmatprep.subr.mxu0 0.0
    %1863 = vmatpush1.msra.mxu0 %v243
    %1864 = vmatprep.subr.mxu0 0.0
    %1865 = vmatpush1.msra.mxu0 %v244
    %1866 = vmatprep.subr.mxu0 0.0
    %1867 = vmatpush1.msra.mxu0 %v245
    %1868 = vmatprep.subr.mxu0 0.0
    %1869 = vmatpush1.msra.mxu0 %v246
    %1870 = vmatprep.subr.mxu0 0.0
    %1871 = vmatpush1.msra.mxu0 %v247
    %1872 = vmatprep.subr.mxu0 0.0
    %1873 = vmatpush1.msra.mxu0 %v248
    %1874 = vmatprep.subr.mxu0 0.0
    %1875 = vmatpush1.msra.mxu0 %v249
    %1876 = vmatprep.subr.mxu0 0.0
    %1877 = vmatpush1.msra.mxu0 %v250
    %1878 = vmatprep.subr.mxu0 0.0
    %1879 = vmatpush1.msra.mxu0 %v251
    %1880 = vmatprep.subr.mxu0 0.0
    %1881 = vmatpush1.msra.mxu0 %v252
    %1882 = vmatprep.subr.mxu0 0.0
    %1883 = vmatpush1.msra.mxu0 %v253
    %1884 = vmatprep.subr.mxu0 0.0
    %1885 = vmatpush1.msra.mxu0 %v254
    %1886 = vmatprep.subr.mxu0 0.0
    %1887 = vmatpush1.msra.mxu0 %v255
    %1888 = vmatprep.subr.mxu0 0.0
    %1889 = vmatpush1.msra.mxu0 %v256
    %1890 = vmatprep.subr.mxu0 0.0
    %1891 = vmatpush1.msra.mxu0 %v257
    %1892 = vmatprep.subr.mxu0 0.0
    %1893 = vmatpush1.msra.mxu0 %v258
    %1894 = vmatprep.subr.mxu0 0.0
    %1895 = vmatpush1.msra.mxu0 %v259
    %1896 = vmatprep.subr.mxu0 0.0
    %1897 = vmatpush1.msra.mxu0 %v260
    %1898 = vmatprep.subr.mxu0 0.0
    %1899 = vmatpush1.msra.mxu0 %v261
    %1900 = vmatprep.subr.mxu0 0.0
    %1901 = vmatpush1.msra.mxu0 %v262
    %1902 = vmatprep.subr.mxu0 0.0
    %1903 = vmatpush1.msra.mxu0 %v263
    %1904 = vmatprep.subr.mxu0 0.0
    %1905 = vmatpush1.msra.mxu0 %v264
    %1906 = vmatprep.subr.mxu0 0.0
    %1907 = vmatpush1.msra.mxu0 %v265
    %1908 = vmatprep.subr.mxu0 0.0
    %1909 = vmatpush1.msra.mxu0 %v266
    %1910 = vmatprep.mubr.f32.mxu0 %v1156
    %1911 = vmatmul.mubr.f32.gmra.mrb[0].mxu0 %v1148
    %v1912 = vpop.f32.mrb[0].mxu0
    %v1913 = vadd.f32 %v1843, %v1912
    %v1914 = vpop.f32.mrb[0].mxu0
    %1915 = vdwg.mxu0
    %1916 = vmatprep.subr.mxu0 0.0
    %1917 = vmatpush1.msra.mxu0 %v267
    %1918 = vmatprep.subr.mxu0 0.0
    %1919 = vmatpush1.msra.mxu0 %v268
    %1920 = vmatprep.subr.mxu0 0.0
    %1921 = vmatpush1.msra.mxu0 %v269
    %1922 = vmatprep.subr.mxu0 0.0
    %1923 = vmatpush1.msra.mxu0 %v270
    %1924 = vmatprep.subr.mxu0 0.0
    %1925 = vmatpush1.msra.mxu0 %v271
    %1926 = vmatprep.subr.mxu0 0.0
    %1927 = vmatpush1.msra.mxu0 %v272
    %1928 = vmatprep.subr.mxu0 0.0
    %1929 = vmatpush1.msra.mxu0 %v273
    %1930 = vmatprep.subr.mxu0 0.0
    %1931 = vmatpush1.msra.mxu0 %v274
    %1932 = vmatprep.subr.mxu0 0.0
    %1933 = vmatpush1.msra.mxu0 %v275
    %1934 = vmatprep.subr.mxu0 0.0
    %1935 = vmatpush1.msra.mxu0 %v276
    %1936 = vmatprep.subr.mxu0 0.0
    %1937 = vmatpush1.msra.mxu0 %v277
    %1938 = vmatprep.subr.mxu0 0.0
    %1939 = vmatpush1.msra.mxu0 %v278
    %1940 = vmatprep.subr.mxu0 0.0
    %1941 = vmatpush1.msra.mxu0 %v279
    %1942 = vmatprep.subr.mxu0 0.0
    %1943 = vmatpush1.msra.mxu0 %v280
    %1944 = vmatprep.subr.mxu0 0.0
    %1945 = vmatpush1.msra.mxu0 %v281
    %1946 = vmatprep.subr.mxu0 0.0
    %1947 = vmatpush1.msra.mxu0 %v282
    %1948 = vmatprep.subr.mxu0 0.0
    %1949 = vmatpush1.msra.mxu0 %v283
    %1950 = vmatprep.subr.mxu0 0.0
    %1951 = vmatpush1.msra.mxu0 %v284
    %1952 = vmatprep.subr.mxu0 0.0
    %1953 = vmatpush1.msra.mxu0 %v285
    %1954 = vmatprep.subr.mxu0 0.0
    %1955 = vmatpush1.msra.mxu0 %v286
    %1956 = vmatprep.subr.mxu0 0.0
    %1957 = vmatpush1.msra.mxu0 %v287
    %1958 = vmatprep.subr.mxu0 0.0
    %1959 = vmatpush1.msra.mxu0 %v288
    %1960 = vmatprep.subr.mxu0 0.0
    %1961 = vmatpush1.msra.mxu0 %v289
    %1962 = vmatprep.subr.mxu0 0.0
    %1963 = vmatpush1.msra.mxu0 %v290
    %1964 = vmatprep.subr.mxu0 0.0
    %1965 = vmatpush1.msra.mxu0 %v291
    %1966 = vmatprep.subr.mxu0 0.0
    %1967 = vmatpush1.msra.mxu0 %v292
    %1968 = vmatprep.subr.mxu0 0.0
    %1969 = vmatpush1.msra.mxu0 %v293
    %1970 = vmatprep.subr.mxu0 0.0
    %1971 = vmatpush1.msra.mxu0 %v294
    %1972 = vmatprep.subr.mxu0 0.0
    %1973 = vmatpush1.msra.mxu0 %v295
    %1974 = vmatprep.subr.mxu0 0.0
    %1975 = vmatpush1.msra.mxu0 %v296
    %1976 = vmatprep.subr.mxu0 0.0
    %1977 = vmatpush1.msra.mxu0 %v297
    %1978 = vmatprep.subr.mxu0 0.0
    %1979 = vmatpush1.msra.mxu0 %v298
    %1980 = vmatprep.mubr.f32.mxu0 %v1157
    %1981 = vmatmul.mubr.f32.gmra.mrb[0].mxu0 %v1155
    %v1982 = vpop.f32.mrb[0].mxu0
    %v1983 = vadd.f32 %v1913, %v1982
    %v1984 = vpop.f32.mrb[0].mxu0
    %1985 = vdwg.mxu0
    %1986 = vmatprep.subr.mxu0 0.0
    %1987 = vmatpush1.msra.mxu0 %v299
    %1988 = vmatprep.subr.mxu0 0.0
    %1989 = vmatpush1.msra.mxu0 %v300
    %1990 = vmatprep.subr.mxu0 0.0
    %1991 = vmatpush1.msra.mxu0 %v301
    %1992 = vmatprep.subr.mxu0 0.0
    %1993 = vmatpush1.msra.mxu0 %v302
    %1994 = vmatprep.subr.mxu0 0.0
    %1995 = vmatpush1.msra.mxu0 %v303
    %1996 = vmatprep.subr.mxu0 0.0
    %1997 = vmatpush1.msra.mxu0 %v304
    %1998 = vmatprep.subr.mxu0 0.0
    %1999 = vmatpush1.msra.mxu0 %v305
    %2000 = vmatprep.subr.mxu0 0.0
    %2001 = vmatpush1.msra.mxu0 %v306
    %2002 = vmatprep.subr.mxu0 0.0
    %2003 = vmatpush1.msra.mxu0 %v307
    %2004 = vmatprep.subr.mxu0 0.0
    %2005 = vmatpush1.msra.mxu0 %v308
    %2006 = vmatprep.subr.mxu0 0.0
    %2007 = vmatpush1.msra.mxu0 %v309
    %2008 = vmatprep.subr.mxu0 0.0
    %2009 = vmatpush1.msra.mxu0 %v310
    %2010 = vmatprep.subr.mxu0 0.0
    %2011 = vmatpush1.msra.mxu0 %v311
    %2012 = vmatprep.subr.mxu0 0.0
    %2013 = vmatpush1.msra.mxu0 %v312
    %2014 = vmatprep.subr.mxu0 0.0
    %2015 = vmatpush1.msra.mxu0 %v313
    %2016 = vmatprep.subr.mxu0 0.0
    %2017 = vmatpush1.msra.mxu0 %v314
    %2018 = vmatprep.subr.mxu0 0.0
    %2019 = vmatpush1.msra.mxu0 %v315
    %2020 = vmatprep.subr.mxu0 0.0
    %2021 = vmatpush1.msra.mxu0 %v316
    %2022 = vmatprep.subr.mxu0 0.0
    %2023 = vmatpush1.msra.mxu0 %v317
    %2024 = vmatprep.subr.mxu0 0.0
    %2025 = vmatpush1.msra.mxu0 %v318
    %2026 = vmatprep.subr.mxu0 0.0
    %2027 = vmatpush1.msra.mxu0 %v319
    %2028 = vmatprep.subr.mxu0 0.0
    %2029 = vmatpush1.msra.mxu0 %v320
    %2030 = vmatprep.subr.mxu0 0.0
    %2031 = vmatpush1.msra.mxu0 %v321
    %2032 = vmatprep.subr.mxu0 0.0
    %2033 = vmatpush1.msra.mxu0 %v322
    %2034 = vmatprep.subr.mxu0 0.0
    %2035 = vmatpush1.msra.mxu0 %v323
    %2036 = vmatprep.subr.mxu0 0.0
    %2037 = vmatpush1.msra.mxu0 %v324
    %2038 = vmatprep.subr.mxu0 0.0
    %2039 = vmatpush1.msra.mxu0 %v325
    %2040 = vmatprep.subr.mxu0 0.0
    %2041 = vmatpush1.msra.mxu0 %v326
    %2042 = vmatprep.subr.mxu0 0.0
    %2043 = vmatpush1.msra.mxu0 %v327
    %2044 = vmatprep.subr.mxu0 0.0
    %2045 = vmatpush1.msra.mxu0 %v328
    %2046 = vmatprep.subr.mxu0 0.0
    %2047 = vmatpush1.msra.mxu0 %v329
    %2048 = vmatprep.subr.mxu0 0.0
    %2049 = vmatpush1.msra.mxu0 %v330
    %2050 = vmatprep.mubr.f32.mxu0 %v1173
    %2051 = vmatmul.mubr.f32.gmra.mrb[0].mxu0 %v1165
    %v2052 = vpop.f32.mrb[0].mxu0
    %v2053 = vadd.f32 %v1983, %v2052
    %v2054 = vpop.f32.mrb[0].mxu0
    %2055 = vdwg.mxu0
    %2056 = vmatprep.subr.mxu0 0.0
    %2057 = vmatpush1.msra.mxu0 %v331
    %2058 = vmatprep.subr.mxu0 0.0
    %2059 = vmatpush1.msra.mxu0 %v332
    %2060 = vmatprep.subr.mxu0 0.0
    %2061 = vmatpush1.msra.mxu0 %v333
    %2062 = vmatprep.subr.mxu0 0.0
    %2063 = vmatpush1.msra.mxu0 %v334
    %2064 = vmatprep.subr.mxu0 0.0
    %2065 = vmatpush1.msra.mxu0 %v335
    %2066 = vmatprep.subr.mxu0 0.0
    %2067 = vmatpush1.msra.mxu0 %v336
    %2068 = vmatprep.subr.mxu0 0.0
    %2069 = vmatpush1.msra.mxu0 %v337
    %2070 = vmatprep.subr.mxu0 0.0
    %2071 = vmatpush1.msra.mxu0 %v338
    %2072 = vmatprep.subr.mxu0 0.0
    %2073 = vmatpush1.msra.mxu0 %v339
    %2074 = vmatprep.subr.mxu0 0.0
    %2075 = vmatpush1.msra.mxu0 %v340
    %2076 = vmatprep.subr.mxu0 0.0
    %2077 = vmatpush1.msra.mxu0 %v341
    %2078 = vmatprep.subr.mxu0 0.0
    %2079 = vmatpush1.msra.mxu0 %v342
    %2080 = vmatprep.subr.mxu0 0.0
    %2081 = vmatpush1.msra.mxu0 %v343
    %2082 = vmatprep.subr.mxu0 0.0
    %2083 = vmatpush1.msra.mxu0 %v344
    %2084 = vmatprep.subr.mxu0 0.0
    %2085 = vmatpush1.msra.mxu0 %v345
    %2086 = vmatprep.subr.mxu0 0.0
    %2087 = vmatpush1.msra.mxu0 %v346
    %2088 = vmatprep.subr.mxu0 0.0
    %2089 = vmatpush1.msra.mxu0 %v347
    %2090 = vmatprep.subr.mxu0 0.0
    %2091 = vmatpush1.msra.mxu0 %v348
    %2092 = vmatprep.subr.mxu0 0.0
    %2093 = vmatpush1.msra.mxu0 %v349
    %2094 = vmatprep.subr.mxu0 0.0
    %2095 = vmatpush1.msra.mxu0 %v350
    %2096 = vmatprep.subr.mxu0 0.0
    %2097 = vmatpush1.msra.mxu0 %v351
    %2098 = vmatprep.subr.mxu0 0.0
    %2099 = vmatpush1.msra.mxu0 %v352
    %2100 = vmatprep.subr.mxu0 0.0
    %2101 = vmatpush1.msra.mxu0 %v353
    %2102 = vmatprep.subr.mxu0 0.0
    %2103 = vmatpush1.msra.mxu0 %v354
    %2104 = vmatprep.subr.mxu0 0.0
    %2105 = vmatpush1.msra.mxu0 %v355
    %2106 = vmatprep.subr.mxu0 0.0
    %2107 = vmatpush1.msra.mxu0 %v356
    %2108 = vmatprep.subr.mxu0 0.0
    %2109 = vmatpush1.msra.mxu0 %v357
    %2110 = vmatprep.subr.mxu0 0.0
    %2111 = vmatpush1.msra.mxu0 %v358
    %2112 = vmatprep.subr.mxu0 0.0
    %2113 = vmatpush1.msra.mxu0 %v359
    %2114 = vmatprep.subr.mxu0 0.0
    %2115 = vmatpush1.msra.mxu0 %v360
    %2116 = vmatprep.subr.mxu0 0.0
    %2117 = vmatpush1.msra.mxu0 %v361
    %2118 = vmatprep.subr.mxu0 0.0
    %2119 = vmatpush1.msra.mxu0 %v362
    %2120 = vmatprep.mubr.f32.mxu0 %v1174
    %2121 = vmatmul.mubr.f32.gmra.mrb[0].mxu0 %v1172
    %v2122 = vpop.f32.mrb[0].mxu0
    %v2123 = vadd.f32 %v2053, %v2122
    %v2124 = vpop.f32.mrb[0].mxu0
    %2125 = vdwg.mxu0
    %2126 = vmatprep.subr.mxu0 0.0
    %2127 = vmatpush1.msra.mxu0 %v363
    %2128 = vmatprep.subr.mxu0 0.0
    %2129 = vmatpush1.msra.mxu0 %v364
    %2130 = vmatprep.subr.mxu0 0.0
    %2131 = vmatpush1.msra.mxu0 %v365
    %2132 = vmatprep.subr.mxu0 0.0
    %2133 = vmatpush1.msra.mxu0 %v366
    %2134 = vmatprep.subr.mxu0 0.0
    %2135 = vmatpush1.msra.mxu0 %v367
    %2136 = vmatprep.subr.mxu0 0.0
    %2137 = vmatpush1.msra.mxu0 %v368
    %2138 = vmatprep.subr.mxu0 0.0
    %2139 = vmatpush1.msra.mxu0 %v369
    %2140 = vmatprep.subr.mxu0 0.0
    %2141 = vmatpush1.msra.mxu0 %v370
    %2142 = vmatprep.subr.mxu0 0.0
    %2143 = vmatpush1.msra.mxu0 %v371
    %2144 = vmatprep.subr.mxu0 0.0
    %2145 = vmatpush1.msra.mxu0 %v372
    %2146 = vmatprep.subr.mxu0 0.0
    %2147 = vmatpush1.msra.mxu0 %v373
    %2148 = vmatprep.subr.mxu0 0.0
    %2149 = vmatpush1.msra.mxu0 %v374
    %2150 = vmatprep.subr.mxu0 0.0
    %2151 = vmatpush1.msra.mxu0 %v375
    %2152 = vmatprep.subr.mxu0 0.0
    %2153 = vmatpush1.msra.mxu0 %v376
    %2154 = vmatprep.subr.mxu0 0.0
    %2155 = vmatpush1.msra.mxu0 %v377
    %2156 = vmatprep.subr.mxu0 0.0
    %2157 = vmatpush1.msra.mxu0 %v378
    %2158 = vmatprep.subr.mxu0 0.0
    %2159 = vmatpush1.msra.mxu0 %v379
    %2160 = vmatprep.subr.mxu0 0.0
    %2161 = vmatpush1.msra.mxu0 %v380
    %2162 = vmatprep.subr.mxu0 0.0
    %2163 = vmatpush1.msra.mxu0 %v381
    %2164 = vmatprep.subr.mxu0 0.0
    %2165 = vmatpush1.msra.mxu0 %v382
    %2166 = vmatprep.subr.mxu0 0.0
    %2167 = vmatpush1.msra.mxu0 %v383
    %2168 = vmatprep.subr.mxu0 0.0
    %2169 = vmatpush1.msra.mxu0 %v384
    %2170 = vmatprep.subr.mxu0 0.0
    %2171 = vmatpush1.msra.mxu0 %v385
    %2172 = vmatprep.subr.mxu0 0.0
    %2173 = vmatpush1.msra.mxu0 %v386
    %2174 = vmatprep.subr.mxu0 0.0
    %2175 = vmatpush1.msra.mxu0 %v387
    %2176 = vmatprep.subr.mxu0 0.0
    %2177 = vmatpush1.msra.mxu0 %v388
    %2178 = vmatprep.subr.mxu0 0.0
    %2179 = vmatpush1.msra.mxu0 %v389
    %2180 = vmatprep.subr.mxu0 0.0
    %2181 = vmatpush1.msra.mxu0 %v390
    %2182 = vmatprep.subr.mxu0 0.0
    %2183 = vmatpush1.msra.mxu0 %v391
    %2184 = vmatprep.subr.mxu0 0.0
    %2185 = vmatpush1.msra.mxu0 %v392
    %2186 = vmatprep.subr.mxu0 0.0
    %2187 = vmatpush1.msra.mxu0 %v393
    %2188 = vmatprep.subr.mxu0 0.0
    %2189 = vmatpush1.msra.mxu0 %v394
    %2190 = vmatprep.mubr.f32.mxu0 %v1190
    %2191 = vmatmul.mubr.f32.gmra.mrb[0].mxu0 %v1182
    %v2192 = vpop.f32.mrb[0].mxu0
    %v2193 = vadd.f32 %v2123, %v2192
    %v2194 = vpop.f32.mrb[0].mxu0
    %2195 = vdwg.mxu0
    %2196 = vmatprep.subr.mxu0 0.0
    %2197 = vmatpush1.msra.mxu0 %v395
    %2198 = vmatprep.subr.mxu0 0.0
    %2199 = vmatpush1.msra.mxu0 %v396
    %2200 = vmatprep.subr.mxu0 0.0
    %2201 = vmatpush1.msra.mxu0 %v397
    %2202 = vmatprep.subr.mxu0 0.0
    %2203 = vmatpush1.msra.mxu0 %v398
    %2204 = vmatprep.subr.mxu0 0.0
    %2205 = vmatpush1.msra.mxu0 %v399
    %2206 = vmatprep.subr.mxu0 0.0
    %2207 = vmatpush1.msra.mxu0 %v400
    %2208 = vmatprep.subr.mxu0 0.0
    %2209 = vmatpush1.msra.mxu0 %v401
    %2210 = vmatprep.subr.mxu0 0.0
    %2211 = vmatpush1.msra.mxu0 %v402
    %2212 = vmatprep.subr.mxu0 0.0
    %2213 = vmatpush1.msra.mxu0 %v403
    %2214 = vmatprep.subr.mxu0 0.0
    %2215 = vmatpush1.msra.mxu0 %v404
    %2216 = vmatprep.subr.mxu0 0.0
    %2217 = vmatpush1.msra.mxu0 %v405
    %2218 = vmatprep.subr.mxu0 0.0
    %2219 = vmatpush1.msra.mxu0 %v406
    %2220 = vmatprep.subr.mxu0 0.0
    %2221 = vmatpush1.msra.mxu0 %v407
    %2222 = vmatprep.subr.mxu0 0.0
    %2223 = vmatpush1.msra.mxu0 %v408
    %2224 = vmatprep.subr.mxu0 0.0
    %2225 = vmatpush1.msra.mxu0 %v409
    %2226 = vmatprep.subr.mxu0 0.0
    %2227 = vmatpush1.msra.mxu0 %v410
    %2228 = vmatprep.subr.mxu0 0.0
    %2229 = vmatpush1.msra.mxu0 %v411
    %2230 = vmatprep.subr.mxu0 0.0
    %2231 = vmatpush1.msra.mxu0 %v412
    %2232 = vmatprep.subr.mxu0 0.0
    %2233 = vmatpush1.msra.mxu0 %v413
    %2234 = vmatprep.subr.mxu0 0.0
    %2235 = vmatpush1.msra.mxu0 %v414
    %2236 = vmatprep.subr.mxu0 0.0
    %2237 = vmatpush1.msra.mxu0 %v415
    %2238 = vmatprep.subr.mxu0 0.0
    %2239 = vmatpush1.msra.mxu0 %v416
    %2240 = vmatprep.subr.mxu0 0.0
    %2241 = vmatpush1.msra.mxu0 %v417
    %2242 = vmatprep.subr.mxu0 0.0
    %2243 = vmatpush1.msra.mxu0 %v418
    %2244 = vmatprep.subr.mxu0 0.0
    %2245 = vmatpush1.msra.mxu0 %v419
    %2246 = vmatprep.subr.mxu0 0.0
    %2247 = vmatpush1.msra.mxu0 %v420
    %2248 = vmatprep.subr.mxu0 0.0
    %2249 = vmatpush1.msra.mxu0 %v421
    %2250 = vmatprep.subr.mxu0 0.0
    %2251 = vmatpush1.msra.mxu0 %v422
    %2252 = vmatprep.subr.mxu0 0.0
    %2253 = vmatpush1.msra.mxu0 %v423
    %2254 = vmatprep.subr.mxu0 0.0
    %2255 = vmatpush1.msra.mxu0 %v424
    %2256 = vmatprep.subr.mxu0 0.0
    %2257 = vmatpush1.msra.mxu0 %v425
    %2258 = vmatprep.subr.mxu0 0.0
    %2259 = vmatpush1.msra.mxu0 %v426
    %2260 = vmatprep.mubr.f32.mxu0 %v1191
    %2261 = vmatmul.mubr.f32.gmra.mrb[0].mxu0 %v1189
    %v2262 = vpop.f32.mrb[0].mxu0
    %v2263 = vadd.f32 %v2193, %v2262
    %v2264 = vpop.f32.mrb[0].mxu0
    %2265 = vdwg.mxu0
    %2266 = vmatprep.subr.mxu0 0.0
    %2267 = vmatpush1.msra.mxu0 %v427
    %2268 = vmatprep.subr.mxu0 0.0
    %2269 = vmatpush1.msra.mxu0 %v428
    %2270 = vmatprep.subr.mxu0 0.0
    %2271 = vmatpush1.msra.mxu0 %v429
    %2272 = vmatprep.subr.mxu0 0.0
    %2273 = vmatpush1.msra.mxu0 %v430
    %2274 = vmatprep.subr.mxu0 0.0
    %2275 = vmatpush1.msra.mxu0 %v431
    %2276 = vmatprep.subr.mxu0 0.0
    %2277 = vmatpush1.msra.mxu0 %v432
    %2278 = vmatprep.subr.mxu0 0.0
    %2279 = vmatpush1.msra.mxu0 %v433
    %2280 = vmatprep.subr.mxu0 0.0
    %2281 = vmatpush1.msra.mxu0 %v434
    %2282 = vmatprep.subr.mxu0 0.0
    %2283 = vmatpush1.msra.mxu0 %v435
    %2284 = vmatprep.subr.mxu0 0.0
    %2285 = vmatpush1.msra.mxu0 %v436
    %2286 = vmatprep.subr.mxu0 0.0
    %2287 = vmatpush1.msra.mxu0 %v437
    %2288 = vmatprep.subr.mxu0 0.0
    %2289 = vmatpush1.msra.mxu0 %v438
    %2290 = vmatprep.subr.mxu0 0.0
    %2291 = vmatpush1.msra.mxu0 %v439
    %2292 = vmatprep.subr.mxu0 0.0
    %2293 = vmatpush1.msra.mxu0 %v440
    %2294 = vmatprep.subr.mxu0 0.0
    %2295 = vmatpush1.msra.mxu0 %v441
    %2296 = vmatprep.subr.mxu0 0.0
    %2297 = vmatpush1.msra.mxu0 %v442
    %2298 = vmatprep.subr.mxu0 0.0
    %2299 = vmatpush1.msra.mxu0 %v443
    %2300 = vmatprep.subr.mxu0 0.0
    %2301 = vmatpush1.msra.mxu0 %v444
    %2302 = vmatprep.subr.mxu0 0.0
    %2303 = vmatpush1.msra.mxu0 %v445
    %2304 = vmatprep.subr.mxu0 0.0
    %2305 = vmatpush1.msra.mxu0 %v446
    %2306 = vmatprep.subr.mxu0 0.0
    %2307 = vmatpush1.msra.mxu0 %v447
    %2308 = vmatprep.subr.mxu0 0.0
    %2309 = vmatpush1.msra.mxu0 %v448
    %2310 = vmatprep.subr.mxu0 0.0
    %2311 = vmatpush1.msra.mxu0 %v449
    %2312 = vmatprep.subr.mxu0 0.0
    %2313 = vmatpush1.msra.mxu0 %v450
    %2314 = vmatprep.subr.mxu0 0.0
    %2315 = vmatpush1.msra.mxu0 %v451
    %2316 = vmatprep.subr.mxu0 0.0
    %2317 = vmatpush1.msra.mxu0 %v452
    %2318 = vmatprep.subr.mxu0 0.0
    %2319 = vmatpush1.msra.mxu0 %v453
    %2320 = vmatprep.subr.mxu0 0.0
    %2321 = vmatpush1.msra.mxu0 %v454
    %2322 = vmatprep.subr.mxu0 0.0
    %2323 = vmatpush1.msra.mxu0 %v455
    %2324 = vmatprep.subr.mxu0 0.0
    %2325 = vmatpush1.msra.mxu0 %v456
    %2326 = vmatprep.subr.mxu0 0.0
    %2327 = vmatpush1.msra.mxu0 %v457
    %2328 = vmatprep.subr.mxu0 0.0
    %2329 = vmatpush1.msra.mxu0 %v458
    %2330 = vmatprep.mubr.f32.mxu0 %v1207
    %2331 = vmatmul.mubr.f32.gmra.mrb[0].mxu0 %v1199
    %v2332 = vpop.f32.mrb[0].mxu0
    %v2333 = vadd.f32 %v2263, %v2332
    %v2334 = vpop.f32.mrb[0].mxu0
    %2335 = vdwg.mxu0
    %2336 = vmatprep.subr.mxu0 0.0
    %2337 = vmatpush1.msra.mxu0 %v459
    %2338 = vmatprep.subr.mxu0 0.0
    %2339 = vmatpush1.msra.mxu0 %v460
    %2340 = vmatprep.subr.mxu0 0.0
    %2341 = vmatpush1.msra.mxu0 %v461
    %2342 = vmatprep.subr.mxu0 0.0
    %2343 = vmatpush1.msra.mxu0 %v462
    %2344 = vmatprep.subr.mxu0 0.0
    %2345 = vmatpush1.msra.mxu0 %v463
    %2346 = vmatprep.subr.mxu0 0.0
    %2347 = vmatpush1.msra.mxu0 %v464
    %2348 = vmatprep.subr.mxu0 0.0
    %2349 = vmatpush1.msra.mxu0 %v465
    %2350 = vmatprep.subr.mxu0 0.0
    %2351 = vmatpush1.msra.mxu0 %v466
    %2352 = vmatprep.subr.mxu0 0.0
    %2353 = vmatpush1.msra.mxu0 %v467
    %2354 = vmatprep.subr.mxu0 0.0
    %2355 = vmatpush1.msra.mxu0 %v468
    %2356 = vmatprep.subr.mxu0 0.0
    %2357 = vmatpush1.msra.mxu0 %v469
    %2358 = vmatprep.subr.mxu0 0.0
    %2359 = vmatpush1.msra.mxu0 %v470
    %2360 = vmatprep.subr.mxu0 0.0
    %2361 = vmatpush1.msra.mxu0 %v471
    %2362 = vmatprep.subr.mxu0 0.0
    %2363 = vmatpush1.msra.mxu0 %v472
    %2364 = vmatprep.subr.mxu0 0.0
    %2365 = vmatpush1.msra.mxu0 %v473
    %2366 = vmatprep.subr.mxu0 0.0
    %2367 = vmatpush1.msra.mxu0 %v474
    %2368 = vmatprep.subr.mxu0 0.0
    %2369 = vmatpush1.msra.mxu0 %v475
    %2370 = vmatprep.subr.mxu0 0.0
    %2371 = vmatpush1.msra.mxu0 %v476
    %2372 = vmatprep.subr.mxu0 0.0
    %2373 = vmatpush1.msra.mxu0 %v477
    %2374 = vmatprep.subr.mxu0 0.0
    %2375 = vmatpush1.msra.mxu0 %v478
    %2376 = vmatprep.subr.mxu0 0.0
    %2377 = vmatpush1.msra.mxu0 %v479
    %2378 = vmatprep.subr.mxu0 0.0
    %2379 = vmatpush1.msra.mxu0 %v480
    %2380 = vmatprep.subr.mxu0 0.0
    %2381 = vmatpush1.msra.mxu0 %v481
    %2382 = vmatprep.subr.mxu0 0.0
    %2383 = vmatpush1.msra.mxu0 %v482
    %2384 = vmatprep.subr.mxu0 0.0
    %2385 = vmatpush1.msra.mxu0 %v483
    %2386 = vmatprep.subr.mxu0 0.0
    %2387 = vmatpush1.msra.mxu0 %v484
    %2388 = vmatprep.subr.mxu0 0.0
    %2389 = vmatpush1.msra.mxu0 %v485
    %2390 = vmatprep.subr.mxu0 0.0
    %2391 = vmatpush1.msra.mxu0 %v486
    %2392 = vmatprep.subr.mxu0 0.0
    %2393 = vmatpush1.msra.mxu0 %v487
    %2394 = vmatprep.subr.mxu0 0.0
    %2395 = vmatpush1.msra.mxu0 %v488
    %2396 = vmatprep.subr.mxu0 0.0
    %2397 = vmatpush1.msra.mxu0 %v489
    %2398 = vmatprep.subr.mxu0 0.0
    %2399 = vmatpush1.msra.mxu0 %v490
    %2400 = vmatprep.mubr.f32.mxu0 %v1208
    %2401 = vmatmul.mubr.f32.gmra.mrb[0].mxu0 %v1206
    %v2402 = vpop.f32.mrb[0].mxu0
    %v2403 = vadd.f32 %v2333, %v2402
    %v2404 = vpop.f32.mrb[0].mxu0
    %2405 = vdwg.mxu0
    %2406 = vmatprep.subr.mxu0 0.0
    %2407 = vmatpush1.msra.mxu0 %v491
    %2408 = vmatprep.subr.mxu0 0.0
    %2409 = vmatpush1.msra.mxu0 %v492
    %2410 = vmatprep.subr.mxu0 0.0
    %2411 = vmatpush1.msra.mxu0 %v493
    %2412 = vmatprep.subr.mxu0 0.0
    %2413 = vmatpush1.msra.mxu0 %v494
    %2414 = vmatprep.subr.mxu0 0.0
    %2415 = vmatpush1.msra.mxu0 %v495
    %2416 = vmatprep.subr.mxu0 0.0
    %2417 = vmatpush1.msra.mxu0 %v496
    %2418 = vmatprep.subr.mxu0 0.0
    %2419 = vmatpush1.msra.mxu0 %v497
    %2420 = vmatprep.subr.mxu0 0.0
    %2421 = vmatpush1.msra.mxu0 %v498
    %2422 = vmatprep.subr.mxu0 0.0
    %2423 = vmatpush1.msra.mxu0 %v499
    %2424 = vmatprep.subr.mxu0 0.0
    %2425 = vmatpush1.msra.mxu0 %v500
    %2426 = vmatprep.subr.mxu0 0.0
    %2427 = vmatpush1.msra.mxu0 %v501
    %2428 = vmatprep.subr.mxu0 0.0
    %2429 = vmatpush1.msra.mxu0 %v502
    %2430 = vmatprep.subr.mxu0 0.0
    %2431 = vmatpush1.msra.mxu0 %v503
    %2432 = vmatprep.subr.mxu0 0.0
    %2433 = vmatpush1.msra.mxu0 %v504
    %2434 = vmatprep.subr.mxu0 0.0
    %2435 = vmatpush1.msra.mxu0 %v505
    %2436 = vmatprep.subr.mxu0 0.0
    %2437 = vmatpush1.msra.mxu0 %v506
    %2438 = vmatprep.subr.mxu0 0.0
    %2439 = vmatpush1.msra.mxu0 %v507
    %2440 = vmatprep.subr.mxu0 0.0
    %2441 = vmatpush1.msra.mxu0 %v508
    %2442 = vmatprep.subr.mxu0 0.0
    %2443 = vmatpush1.msra.mxu0 %v509
    %2444 = vmatprep.subr.mxu0 0.0
    %2445 = vmatpush1.msra.mxu0 %v510
    %2446 = vmatprep.subr.mxu0 0.0
    %2447 = vmatpush1.msra.mxu0 %v511
    %2448 = vmatprep.subr.mxu0 0.0
    %2449 = vmatpush1.msra.mxu0 %v512
    %2450 = vmatprep.subr.mxu0 0.0
    %2451 = vmatpush1.msra.mxu0 %v513
    %2452 = vmatprep.subr.mxu0 0.0
    %2453 = vmatpush1.msra.mxu0 %v514
    %2454 = vmatprep.subr.mxu0 0.0
    %2455 = vmatpush1.msra.mxu0 %v515
    %2456 = vmatprep.subr.mxu0 0.0
    %2457 = vmatpush1.msra.mxu0 %v516
    %2458 = vmatprep.subr.mxu0 0.0
    %2459 = vmatpush1.msra.mxu0 %v517
    %2460 = vmatprep.subr.mxu0 0.0
    %2461 = vmatpush1.msra.mxu0 %v518
    %2462 = vmatprep.subr.mxu0 0.0
    %2463 = vmatpush1.msra.mxu0 %v519
    %2464 = vmatprep.subr.mxu0 0.0
    %2465 = vmatpush1.msra.mxu0 %v520
    %2466 = vmatprep.subr.mxu0 0.0
    %2467 = vmatpush1.msra.mxu0 %v521
    %2468 = vmatprep.subr.mxu0 0.0
    %2469 = vmatpush1.msra.mxu0 %v522
    %2470 = vmatprep.mubr.f32.mxu0 %v1224
    %2471 = vmatmul.mubr.f32.gmra.mrb[0].mxu0 %v1216
    %v2472 = vpop.f32.mrb[0].mxu0
    %v2473 = vadd.f32 %v2403, %v2472
    %v2474 = vpop.f32.mrb[0].mxu0
    %2475 = vdwg.mxu0
    %2476 = vmatprep.subr.mxu0 0.0
    %2477 = vmatpush1.msra.mxu0 %v523
    %2478 = vmatprep.subr.mxu0 0.0
    %2479 = vmatpush1.msra.mxu0 %v524
    %2480 = vmatprep.subr.mxu0 0.0
    %2481 = vmatpush1.msra.mxu0 %v525
    %2482 = vmatprep.subr.mxu0 0.0
    %2483 = vmatpush1.msra.mxu0 %v526
    %2484 = vmatprep.subr.mxu0 0.0
    %2485 = vmatpush1.msra.mxu0 %v527
    %2486 = vmatprep.subr.mxu0 0.0
    %2487 = vmatpush1.msra.mxu0 %v528
    %2488 = vmatprep.subr.mxu0 0.0
    %2489 = vmatpush1.msra.mxu0 %v529
    %2490 = vmatprep.subr.mxu0 0.0
    %2491 = vmatpush1.msra.mxu0 %v530
    %2492 = vmatprep.subr.mxu0 0.0
    %2493 = vmatpush1.msra.mxu0 %v531
    %2494 = vmatprep.subr.mxu0 0.0
    %2495 = vmatpush1.msra.mxu0 %v532
    %2496 = vmatprep.subr.mxu0 0.0
    %2497 = vmatpush1.msra.mxu0 %v533
    %2498 = vmatprep.subr.mxu0 0.0
    %2499 = vmatpush1.msra.mxu0 %v534
    %2500 = vmatprep.subr.mxu0 0.0
    %2501 = vmatpush1.msra.mxu0 %v535
    %2502 = vmatprep.subr.mxu0 0.0
    %2503 = vmatpush1.msra.mxu0 %v536
    %2504 = vmatprep.subr.mxu0 0.0
    %2505 = vmatpush1.msra.mxu0 %v537
    %2506 = vmatprep.subr.mxu0 0.0
    %2507 = vmatpush1.msra.mxu0 %v538
    %2508 = vmatprep.subr.mxu0 0.0
    %2509 = vmatpush1.msra.mxu0 %v539
    %2510 = vmatprep.subr.mxu0 0.0
    %2511 = vmatpush1.msra.mxu0 %v540
    %2512 = vmatprep.subr.mxu0 0.0
    %2513 = vmatpush1.msra.mxu0 %v541
    %2514 = vmatprep.subr.mxu0 0.0
    %2515 = vmatpush1.msra.mxu0 %v542
    %2516 = vmatprep.subr.mxu0 0.0
    %2517 = vmatpush1.msra.mxu0 %v543
    %2518 = vmatprep.subr.mxu0 0.0
    %2519 = vmatpush1.msra.mxu0 %v544
    %2520 = vmatprep.subr.mxu0 0.0
    %2521 = vmatpush1.msra.mxu0 %v545
    %2522 = vmatprep.subr.mxu0 0.0
    %2523 = vmatpush1.msra.mxu0 %v546
    %2524 = vmatprep.subr.mxu0 0.0
    %2525 = vmatpush1.msra.mxu0 %v547
    %2526 = vmatprep.subr.mxu0 0.0
    %2527 = vmatpush1.msra.mxu0 %v548
    %2528 = vmatprep.subr.mxu0 0.0
    %2529 = vmatpush1.msra.mxu0 %v549
    %2530 = vmatprep.subr.mxu0 0.0
    %2531 = vmatpush1.msra.mxu0 %v550
    %2532 = vmatprep.subr.mxu0 0.0
    %2533 = vmatpush1.msra.mxu0 %v551
    %2534 = vmatprep.subr.mxu0 0.0
    %2535 = vmatpush1.msra.mxu0 %v552
    %2536 = vmatprep.subr.mxu0 0.0
    %2537 = vmatpush1.msra.mxu0 %v553
    %2538 = vmatprep.subr.mxu0 0.0
    %2539 = vmatpush1.msra.mxu0 %v554
    %2540 = vmatprep.mubr.f32.mxu0 %v1225
    %2541 = vmatmul.mubr.f32.gmra.mrb[0].mxu0 %v1223
    %v2542 = vpop.f32.mrb[0].mxu0
    %v2543 = vadd.f32 %v2473, %v2542
    %v2544 = vpop.f32.mrb[0].mxu0
    %2545 = vdwg.mxu0
    %2546 = vmatprep.subr.mxu0 0.0
    %2547 = vmatpush1.msra.mxu0 %v555
    %2548 = vmatprep.subr.mxu0 0.0
    %2549 = vmatpush1.msra.mxu0 %v556
    %2550 = vmatprep.subr.mxu0 0.0
    %2551 = vmatpush1.msra.mxu0 %v557
    %2552 = vmatprep.subr.mxu0 0.0
    %2553 = vmatpush1.msra.mxu0 %v558
    %2554 = vmatprep.subr.mxu0 0.0
    %2555 = vmatpush1.msra.mxu0 %v559
    %2556 = vmatprep.subr.mxu0 0.0
    %2557 = vmatpush1.msra.mxu0 %v560
    %2558 = vmatprep.subr.mxu0 0.0
    %2559 = vmatpush1.msra.mxu0 %v561
    %2560 = vmatprep.subr.mxu0 0.0
    %2561 = vmatpush1.msra.mxu0 %v562
    %2562 = vmatprep.subr.mxu0 0.0
    %2563 = vmatpush1.msra.mxu0 %v563
    %2564 = vmatprep.subr.mxu0 0.0
    %2565 = vmatpush1.msra.mxu0 %v564
    %2566 = vmatprep.subr.mxu0 0.0
    %2567 = vmatpush1.msra.mxu0 %v565
    %2568 = vmatprep.subr.mxu0 0.0
    %2569 = vmatpush1.msra.mxu0 %v566
    %2570 = vmatprep.subr.mxu0 0.0
    %2571 = vmatpush1.msra.mxu0 %v567
    %2572 = vmatprep.subr.mxu0 0.0
    %2573 = vmatpush1.msra.mxu0 %v568
    %2574 = vmatprep.subr.mxu0 0.0
    %2575 = vmatpush1.msra.mxu0 %v569
    %2576 = vmatprep.subr.mxu0 0.0
    %2577 = vmatpush1.msra.mxu0 %v570
    %2578 = vmatprep.subr.mxu0 0.0
    %2579 = vmatpush1.msra.mxu0 %v571
    %2580 = vmatprep.subr.mxu0 0.0
    %2581 = vmatpush1.msra.mxu0 %v572
    %2582 = vmatprep.subr.mxu0 0.0
    %2583 = vmatpush1.msra.mxu0 %v573
    %2584 = vmatprep.subr.mxu0 0.0
    %2585 = vmatpush1.msra.mxu0 %v574
    %2586 = vmatprep.subr.mxu0 0.0
    %2587 = vmatpush1.msra.mxu0 %v575
    %2588 = vmatprep.subr.mxu0 0.0
    %2589 = vmatpush1.msra.mxu0 %v576
    %2590 = vmatprep.subr.mxu0 0.0
    %2591 = vmatpush1.msra.mxu0 %v577
    %2592 = vmatprep.subr.mxu0 0.0
    %2593 = vmatpush1.msra.mxu0 %v578
    %2594 = vmatprep.subr.mxu0 0.0
    %2595 = vmatpush1.msra.mxu0 %v579
    %2596 = vmatprep.subr.mxu0 0.0
    %2597 = vmatpush1.msra.mxu0 %v580
    %2598 = vmatprep.subr.mxu0 0.0
    %2599 = vmatpush1.msra.mxu0 %v581
    %2600 = vmatprep.subr.mxu0 0.0
    %2601 = vmatpush1.msra.mxu0 %v582
    %2602 = vmatprep.subr.mxu0 0.0
    %2603 = vmatpush1.msra.mxu0 %v583
    %2604 = vmatprep.subr.mxu0 0.0
    %2605 = vmatpush1.msra.mxu0 %v584
    %2606 = vmatprep.subr.mxu0 0.0
    %2607 = vmatpush1.msra.mxu0 %v585
    %2608 = vmatprep.subr.mxu0 0.0
    %2609 = vmatpush1.msra.mxu0 %v586
    %2610 = vmatprep.mubr.f32.mxu0 %v1241
    %2611 = vmatmul.mubr.f32.gmra.mrb[0].mxu0 %v1233
    %v2612 = vpop.f32.mrb[0].mxu0
    %v2613 = vadd.f32 %v2543, %v2612
    %v2614 = vpop.f32.mrb[0].mxu0
    %2615 = vdwg.mxu0
    %2616 = vmatprep.subr.mxu0 0.0
    %2617 = vmatpush1.msra.mxu0 %v587
    %2618 = vmatprep.subr.mxu0 0.0
    %2619 = vmatpush1.msra.mxu0 %v588
    %2620 = vmatprep.subr.mxu0 0.0
    %2621 = vmatpush1.msra.mxu0 %v589
    %2622 = vmatprep.subr.mxu0 0.0
    %2623 = vmatpush1.msra.mxu0 %v590
    %2624 = vmatprep.subr.mxu0 0.0
    %2625 = vmatpush1.msra.mxu0 %v591
    %2626 = vmatprep.subr.mxu0 0.0
    %2627 = vmatpush1.msra.mxu0 %v592
    %2628 = vmatprep.subr.mxu0 0.0
    %2629 = vmatpush1.msra.mxu0 %v593
    %2630 = vmatprep.subr.mxu0 0.0
    %2631 = vmatpush1.msra.mxu0 %v594
    %2632 = vmatprep.subr.mxu0 0.0
    %2633 = vmatpush1.msra.mxu0 %v595
    %2634 = vmatprep.subr.mxu0 0.0
    %2635 = vmatpush1.msra.mxu0 %v596
    %2636 = vmatprep.subr.mxu0 0.0
    %2637 = vmatpush1.msra.mxu0 %v597
    %2638 = vmatprep.subr.mxu0 0.0
    %2639 = vmatpush1.msra.mxu0 %v598
    %2640 = vmatprep.subr.mxu0 0.0
    %2641 = vmatpush1.msra.mxu0 %v599
    %2642 = vmatprep.subr.mxu0 0.0
    %2643 = vmatpush1.msra.mxu0 %v600
    %2644 = vmatprep.subr.mxu0 0.0
    %2645 = vmatpush1.msra.mxu0 %v601
    %2646 = vmatprep.subr.mxu0 0.0
    %2647 = vmatpush1.msra.mxu0 %v602
    %2648 = vmatprep.subr.mxu0 0.0
    %2649 = vmatpush1.msra.mxu0 %v603
    %2650 = vmatprep.subr.mxu0 0.0
    %2651 = vmatpush1.msra.mxu0 %v604
    %2652 = vmatprep.subr.mxu0 0.0
    %2653 = vmatpush1.msra.mxu0 %v605
    %2654 = vmatprep.subr.mxu0 0.0
    %2655 = vmatpush1.msra.mxu0 %v606
    %2656 = vmatprep.subr.mxu0 0.0
    %2657 = vmatpush1.msra.mxu0 %v607
    %2658 = vmatprep.subr.mxu0 0.0
    %2659 = vmatpush1.msra.mxu0 %v608
    %2660 = vmatprep.subr.mxu0 0.0
    %2661 = vmatpush1.msra.mxu0 %v609
    %2662 = vmatprep.subr.mxu0 0.0
    %2663 = vmatpush1.msra.mxu0 %v610
    %2664 = vmatprep.subr.mxu0 0.0
    %2665 = vmatpush1.msra.mxu0 %v611
    %2666 = vmatprep.subr.mxu0 0.0
    %2667 = vmatpush1.msra.mxu0 %v612
    %2668 = vmatprep.subr.mxu0 0.0
    %2669 = vmatpush1.msra.mxu0 %v613
    %2670 = vmatprep.subr.mxu0 0.0
    %2671 = vmatpush1.msra.mxu0 %v614
    %2672 = vmatprep.subr.mxu0 0.0
    %2673 = vmatpush1.msra.mxu0 %v615
    %2674 = vmatprep.subr.mxu0 0.0
    %2675 = vmatpush1.msra.mxu0 %v616
    %2676 = vmatprep.subr.mxu0 0.0
    %2677 = vmatpush1.msra.mxu0 %v617
    %2678 = vmatprep.subr.mxu0 0.0
    %2679 = vmatpush1.msra.mxu0 %v618
    %2680 = vmatprep.mubr.f32.mxu0 %v1242
    %2681 = vmatmul.mubr.f32.gmra.mrb[0].mxu0 %v1240
    %v2682 = vpop.f32.mrb[0].mxu0
    %v2683 = vadd.f32 %v2613, %v2682
    %v2684 = vpop.f32.mrb[0].mxu0
    %2685 = vdwg.mxu0
    %2686 = vmatprep.subr.mxu0 0.0
    %2687 = vmatpush1.msra.mxu0 %v619
    %2688 = vmatprep.subr.mxu0 0.0
    %2689 = vmatpush1.msra.mxu0 %v620
    %2690 = vmatprep.subr.mxu0 0.0
    %2691 = vmatpush1.msra.mxu0 %v621
    %2692 = vmatprep.subr.mxu0 0.0
    %2693 = vmatpush1.msra.mxu0 %v622
    %2694 = vmatprep.subr.mxu0 0.0
    %2695 = vmatpush1.msra.mxu0 %v623
    %2696 = vmatprep.subr.mxu0 0.0
    %2697 = vmatpush1.msra.mxu0 %v624
    %2698 = vmatprep.subr.mxu0 0.0
    %2699 = vmatpush1.msra.mxu0 %v625
    %2700 = vmatprep.subr.mxu0 0.0
    %2701 = vmatpush1.msra.mxu0 %v626
    %2702 = vmatprep.subr.mxu0 0.0
    %2703 = vmatpush1.msra.mxu0 %v627
    %2704 = vmatprep.subr.mxu0 0.0
    %2705 = vmatpush1.msra.mxu0 %v628
    %2706 = vmatprep.subr.mxu0 0.0
    %2707 = vmatpush1.msra.mxu0 %v629
    %2708 = vmatprep.subr.mxu0 0.0
    %2709 = vmatpush1.msra.mxu0 %v630
    %2710 = vmatprep.subr.mxu0 0.0
    %2711 = vmatpush1.msra.mxu0 %v631
    %2712 = vmatprep.subr.mxu0 0.0
    %2713 = vmatpush1.msra.mxu0 %v632
    %2714 = vmatprep.subr.mxu0 0.0
    %2715 = vmatpush1.msra.mxu0 %v633
    %2716 = vmatprep.subr.mxu0 0.0
    %2717 = vmatpush1.msra.mxu0 %v634
    %2718 = vmatprep.subr.mxu0 0.0
    %2719 = vmatpush1.msra.mxu0 %v635
    %2720 = vmatprep.subr.mxu0 0.0
    %2721 = vmatpush1.msra.mxu0 %v636
    %2722 = vmatprep.subr.mxu0 0.0
    %2723 = vmatpush1.msra.mxu0 %v637
    %2724 = vmatprep.subr.mxu0 0.0
    %2725 = vmatpush1.msra.mxu0 %v638
    %2726 = vmatprep.subr.mxu0 0.0
    %2727 = vmatpush1.msra.mxu0 %v639
    %2728 = vmatprep.subr.mxu0 0.0
    %2729 = vmatpush1.msra.mxu0 %v640
    %2730 = vmatprep.subr.mxu0 0.0
    %2731 = vmatpush1.msra.mxu0 %v641
    %2732 = vmatprep.subr.mxu0 0.0
    %2733 = vmatpush1.msra.mxu0 %v642
    %2734 = vmatprep.subr.mxu0 0.0
    %2735 = vmatpush1.msra.mxu0 %v643
    %2736 = vmatprep.subr.mxu0 0.0
    %2737 = vmatpush1.msra.mxu0 %v644
    %2738 = vmatprep.subr.mxu0 0.0
    %2739 = vmatpush1.msra.mxu0 %v645
    %2740 = vmatprep.subr.mxu0 0.0
    %2741 = vmatpush1.msra.mxu0 %v646
    %2742 = vmatprep.subr.mxu0 0.0
    %2743 = vmatpush1.msra.mxu0 %v647
    %2744 = vmatprep.subr.mxu0 0.0
    %2745 = vmatpush1.msra.mxu0 %v648
    %2746 = vmatprep.subr.mxu0 0.0
    %2747 = vmatpush1.msra.mxu0 %v649
    %2748 = vmatprep.subr.mxu0 0.0
    %2749 = vmatpush1.msra.mxu0 %v650
    %2750 = vmatprep.mubr.f32.mxu0 %v1258
    %2751 = vmatmul.mubr.f32.gmra.mrb[0].mxu0 %v1250
    %v2752 = vpop.f32.mrb[0].mxu0
    %v2753 = vadd.f32 %v2683, %v2752
    %v2754 = vpop.f32.mrb[0].mxu0
    %2755 = vdwg.mxu0
    %2756 = vmatprep.subr.mxu0 0.0
    %2757 = vmatpush1.msra.mxu0 %v651
    %2758 = vmatprep.subr.mxu0 0.0
    %2759 = vmatpush1.msra.mxu0 %v652
    %2760 = vmatprep.subr.mxu0 0.0
    %2761 = vmatpush1.msra.mxu0 %v653
    %2762 = vmatprep.subr.mxu0 0.0
    %2763 = vmatpush1.msra.mxu0 %v654
    %2764 = vmatprep.subr.mxu0 0.0
    %2765 = vmatpush1.msra.mxu0 %v655
    %2766 = vmatprep.subr.mxu0 0.0
    %2767 = vmatpush1.msra.mxu0 %v656
    %2768 = vmatprep.subr.mxu0 0.0
    %2769 = vmatpush1.msra.mxu0 %v657
    %2770 = vmatprep.subr.mxu0 0.0
    %2771 = vmatpush1.msra.mxu0 %v658
    %2772 = vmatprep.subr.mxu0 0.0
    %2773 = vmatpush1.msra.mxu0 %v659
    %2774 = vmatprep.subr.mxu0 0.0
    %2775 = vmatpush1.msra.mxu0 %v660
    %2776 = vmatprep.subr.mxu0 0.0
    %2777 = vmatpush1.msra.mxu0 %v661
    %2778 = vmatprep.subr.mxu0 0.0
    %2779 = vmatpush1.msra.mxu0 %v662
    %2780 = vmatprep.subr.mxu0 0.0
    %2781 = vmatpush1.msra.mxu0 %v663
    %2782 = vmatprep.subr.mxu0 0.0
    %2783 = vmatpush1.msra.mxu0 %v664
    %2784 = vmatprep.subr.mxu0 0.0
    %2785 = vmatpush1.msra.mxu0 %v665
    %2786 = vmatprep.subr.mxu0 0.0
    %2787 = vmatpush1.msra.mxu0 %v666
    %2788 = vmatprep.subr.mxu0 0.0
    %2789 = vmatpush1.msra.mxu0 %v667
    %2790 = vmatprep.subr.mxu0 0.0
    %2791 = vmatpush1.msra.mxu0 %v668
    %2792 = vmatprep.subr.mxu0 0.0
    %2793 = vmatpush1.msra.mxu0 %v669
    %2794 = vmatprep.subr.mxu0 0.0
    %2795 = vmatpush1.msra.mxu0 %v670
    %2796 = vmatprep.subr.mxu0 0.0
    %2797 = vmatpush1.msra.mxu0 %v671
    %2798 = vmatprep.subr.mxu0 0.0
    %2799 = vmatpush1.msra.mxu0 %v672
    %2800 = vmatprep.subr.mxu0 0.0
    %2801 = vmatpush1.msra.mxu0 %v673
    %2802 = vmatprep.subr.mxu0 0.0
    %2803 = vmatpush1.msra.mxu0 %v674
    %2804 = vmatprep.subr.mxu0 0.0
    %2805 = vmatpush1.msra.mxu0 %v675
    %2806 = vmatprep.subr.mxu0 0.0
    %2807 = vmatpush1.msra.mxu0 %v676
    %2808 = vmatprep.subr.mxu0 0.0
    %2809 = vmatpush1.msra.mxu0 %v677
    %2810 = vmatprep.subr.mxu0 0.0
    %2811 = vmatpush1.msra.mxu0 %v678
    %2812 = vmatprep.subr.mxu0 0.0
    %2813 = vmatpush1.msra.mxu0 %v679
    %2814 = vmatprep.subr.mxu0 0.0
    %2815 = vmatpush1.msra.mxu0 %v680
    %2816 = vmatprep.subr.mxu0 0.0
    %2817 = vmatpush1.msra.mxu0 %v681
    %2818 = vmatprep.subr.mxu0 0.0
    %2819 = vmatpush1.msra.mxu0 %v682
    %2820 = vmatprep.mubr.f32.mxu0 %v1259
    %2821 = vmatmul.mubr.f32.gmra.mrb[0].mxu0 %v1257
    %v2822 = vpop.f32.mrb[0].mxu0
    %v2823 = vadd.f32 %v2753, %v2822
    %v2824 = vpop.f32.mrb[0].mxu0
    %2825 = vdwg.mxu0
    %2826 = vmatprep.subr.mxu0 0.0
    %2827 = vmatpush1.msra.mxu0 %v683
    %2828 = vmatprep.subr.mxu0 0.0
    %2829 = vmatpush1.msra.mxu0 %v684
    %2830 = vmatprep.subr.mxu0 0.0
    %2831 = vmatpush1.msra.mxu0 %v685
    %2832 = vmatprep.subr.mxu0 0.0
    %2833 = vmatpush1.msra.mxu0 %v686
    %2834 = vmatprep.subr.mxu0 0.0
    %2835 = vmatpush1.msra.mxu0 %v687
    %2836 = vmatprep.subr.mxu0 0.0
    %2837 = vmatpush1.msra.mxu0 %v688
    %2838 = vmatprep.subr.mxu0 0.0
    %2839 = vmatpush1.msra.mxu0 %v689
    %2840 = vmatprep.subr.mxu0 0.0
    %2841 = vmatpush1.msra.mxu0 %v690
    %2842 = vmatprep.subr.mxu0 0.0
    %2843 = vmatpush1.msra.mxu0 %v691
    %2844 = vmatprep.subr.mxu0 0.0
    %2845 = vmatpush1.msra.mxu0 %v692
    %2846 = vmatprep.subr.mxu0 0.0
    %2847 = vmatpush1.msra.mxu0 %v693
    %2848 = vmatprep.subr.mxu0 0.0
    %2849 = vmatpush1.msra.mxu0 %v694
    %2850 = vmatprep.subr.mxu0 0.0
    %2851 = vmatpush1.msra.mxu0 %v695
    %2852 = vmatprep.subr.mxu0 0.0
    %2853 = vmatpush1.msra.mxu0 %v696
    %2854 = vmatprep.subr.mxu0 0.0
    %2855 = vmatpush1.msra.mxu0 %v697
    %2856 = vmatprep.subr.mxu0 0.0
    %2857 = vmatpush1.msra.mxu0 %v698
    %2858 = vmatprep.subr.mxu0 0.0
    %2859 = vmatpush1.msra.mxu0 %v699
    %2860 = vmatprep.subr.mxu0 0.0
    %2861 = vmatpush1.msra.mxu0 %v700
    %2862 = vmatprep.subr.mxu0 0.0
    %2863 = vmatpush1.msra.mxu0 %v701
    %2864 = vmatprep.subr.mxu0 0.0
    %2865 = vmatpush1.msra.mxu0 %v702
    %2866 = vmatprep.subr.mxu0 0.0
    %2867 = vmatpush1.msra.mxu0 %v703
    %2868 = vmatprep.subr.mxu0 0.0
    %2869 = vmatpush1.msra.mxu0 %v704
    %2870 = vmatprep.subr.mxu0 0.0
    %2871 = vmatpush1.msra.mxu0 %v705
    %2872 = vmatprep.subr.mxu0 0.0
    %2873 = vmatpush1.msra.mxu0 %v706
    %2874 = vmatprep.subr.mxu0 0.0
    %2875 = vmatpush1.msra.mxu0 %v707
    %2876 = vmatprep.subr.mxu0 0.0
    %2877 = vmatpush1.msra.mxu0 %v708
    %2878 = vmatprep.subr.mxu0 0.0
    %2879 = vmatpush1.msra.mxu0 %v709
    %2880 = vmatprep.subr.mxu0 0.0
    %2881 = vmatpush1.msra.mxu0 %v710
    %2882 = vmatprep.subr.mxu0 0.0
    %2883 = vmatpush1.msra.mxu0 %v711
    %2884 = vmatprep.subr.mxu0 0.0
    %2885 = vmatpush1.msra.mxu0 %v712
    %2886 = vmatprep.subr.mxu0 0.0
    %2887 = vmatpush1.msra.mxu0 %v713
    %2888 = vmatprep.subr.mxu0 0.0
    %2889 = vmatpush1.msra.mxu0 %v714
    %2890 = vmatprep.mubr.f32.mxu0 %v1275
    %2891 = vmatmul.mubr.f32.gmra.mrb[0].mxu0 %v1267
    %v2892 = vpop.f32.mrb[0].mxu0
    %v2893 = vadd.f32 %v2823, %v2892
    %v2894 = vpop.f32.mrb[0].mxu0
    %2895 = vdwg.mxu0
    %2896 = vmatprep.subr.mxu0 0.0
    %2897 = vmatpush1.msra.mxu0 %v715
    %2898 = vmatprep.subr.mxu0 0.0
    %2899 = vmatpush1.msra.mxu0 %v716
    %2900 = vmatprep.subr.mxu0 0.0
    %2901 = vmatpush1.msra.mxu0 %v717
    %2902 = vmatprep.subr.mxu0 0.0
    %2903 = vmatpush1.msra.mxu0 %v718
    %2904 = vmatprep.subr.mxu0 0.0
    %2905 = vmatpush1.msra.mxu0 %v719
    %2906 = vmatprep.subr.mxu0 0.0
    %2907 = vmatpush1.msra.mxu0 %v720
    %2908 = vmatprep.subr.mxu0 0.0
    %2909 = vmatpush1.msra.mxu0 %v721
    %2910 = vmatprep.subr.mxu0 0.0
    %2911 = vmatpush1.msra.mxu0 %v722
    %2912 = vmatprep.subr.mxu0 0.0
    %2913 = vmatpush1.msra.mxu0 %v723
    %2914 = vmatprep.subr.mxu0 0.0
    %2915 = vmatpush1.msra.mxu0 %v724
    %2916 = vmatprep.subr.mxu0 0.0
    %2917 = vmatpush1.msra.mxu0 %v725
    %2918 = vmatprep.subr.mxu0 0.0
    %2919 = vmatpush1.msra.mxu0 %v726
    %2920 = vmatprep.subr.mxu0 0.0
    %2921 = vmatpush1.msra.mxu0 %v727
    %2922 = vmatprep.subr.mxu0 0.0
    %2923 = vmatpush1.msra.mxu0 %v728
    %2924 = vmatprep.subr.mxu0 0.0
    %2925 = vmatpush1.msra.mxu0 %v729
    %2926 = vmatprep.subr.mxu0 0.0
    %2927 = vmatpush1.msra.mxu0 %v730
    %2928 = vmatprep.subr.mxu0 0.0
    %2929 = vmatpush1.msra.mxu0 %v731
    %2930 = vmatprep.subr.mxu0 0.0
    %2931 = vmatpush1.msra.mxu0 %v732
    %2932 = vmatprep.subr.mxu0 0.0
    %2933 = vmatpush1.msra.mxu0 %v733
    %2934 = vmatprep.subr.mxu0 0.0
    %2935 = vmatpush1.msra.mxu0 %v734
    %2936 = vmatprep.subr.mxu0 0.0
    %2937 = vmatpush1.msra.mxu0 %v735
    %2938 = vmatprep.subr.mxu0 0.0
    %2939 = vmatpush1.msra.mxu0 %v736
    %2940 = vmatprep.subr.mxu0 0.0
    %2941 = vmatpush1.msra.mxu0 %v737
    %2942 = vmatprep.subr.mxu0 0.0
    %2943 = vmatpush1.msra.mxu0 %v738
    %2944 = vmatprep.subr.mxu0 0.0
    %2945 = vmatpush1.msra.mxu0 %v739
    %2946 = vmatprep.subr.mxu0 0.0
    %2947 = vmatpush1.msra.mxu0 %v740
    %2948 = vmatprep.subr.mxu0 0.0
    %2949 = vmatpush1.msra.mxu0 %v741
    %2950 = vmatprep.subr.mxu0 0.0
    %2951 = vmatpush1.msra.mxu0 %v742
    %2952 = vmatprep.subr.mxu0 0.0
    %2953 = vmatpush1.msra.mxu0 %v743
    %2954 = vmatprep.subr.mxu0 0.0
    %2955 = vmatpush1.msra.mxu0 %v744
    %2956 = vmatprep.subr.mxu0 0.0
    %2957 = vmatpush1.msra.mxu0 %v745
    %2958 = vmatprep.subr.mxu0 0.0
    %2959 = vmatpush1.msra.mxu0 %v746
    %2960 = vmatprep.mubr.f32.mxu0 %v1276
    %2961 = vmatmul.mubr.f32.gmra.mrb[0].mxu0 %v1274
    %v2962 = vpop.f32.mrb[0].mxu0
    %v2963 = vadd.f32 %v2893, %v2962
    %v2964 = vpop.f32.mrb[0].mxu0
    %2965 = vdwg.mxu0
    %2966 = vmatprep.subr.mxu0 0.0
    %2967 = vmatpush1.msra.mxu0 %v747
    %2968 = vmatprep.subr.mxu0 0.0
    %2969 = vmatpush1.msra.mxu0 %v748
    %2970 = vmatprep.subr.mxu0 0.0
    %2971 = vmatpush1.msra.mxu0 %v749
    %2972 = vmatprep.subr.mxu0 0.0
    %2973 = vmatpush1.msra.mxu0 %v750
    %2974 = vmatprep.subr.mxu0 0.0
    %2975 = vmatpush1.msra.mxu0 %v751
    %2976 = vmatprep.subr.mxu0 0.0
    %2977 = vmatpush1.msra.mxu0 %v752
    %2978 = vmatprep.subr.mxu0 0.0
    %2979 = vmatpush1.msra.mxu0 %v753
    %2980 = vmatprep.subr.mxu0 0.0
    %2981 = vmatpush1.msra.mxu0 %v754
    %2982 = vmatprep.subr.mxu0 0.0
    %2983 = vmatpush1.msra.mxu0 %v755
    %2984 = vmatprep.subr.mxu0 0.0
    %2985 = vmatpush1.msra.mxu0 %v756
    %2986 = vmatprep.subr.mxu0 0.0
    %2987 = vmatpush1.msra.mxu0 %v757
    %2988 = vmatprep.subr.mxu0 0.0
    %2989 = vmatpush1.msra.mxu0 %v758
    %2990 = vmatprep.subr.mxu0 0.0
    %2991 = vmatpush1.msra.mxu0 %v759
    %2992 = vmatprep.subr.mxu0 0.0
    %2993 = vmatpush1.msra.mxu0 %v760
    %2994 = vmatprep.subr.mxu0 0.0
    %2995 = vmatpush1.msra.mxu0 %v761
    %2996 = vmatprep.subr.mxu0 0.0
    %2997 = vmatpush1.msra.mxu0 %v762
    %2998 = vmatprep.subr.mxu0 0.0
    %2999 = vmatpush1.msra.mxu0 %v763
    %3000 = vmatprep.subr.mxu0 0.0
    %3001 = vmatpush1.msra.mxu0 %v764
    %3002 = vmatprep.subr.mxu0 0.0
    %3003 = vmatpush1.msra.mxu0 %v765
    %3004 = vmatprep.subr.mxu0 0.0
    %3005 = vmatpush1.msra.mxu0 %v766
    %3006 = vmatprep.subr.mxu0 0.0
    %3007 = vmatpush1.msra.mxu0 %v767
    %3008 = vmatprep.subr.mxu0 0.0
    %3009 = vmatpush1.msra.mxu0 %v768
    %3010 = vmatprep.subr.mxu0 0.0
    %3011 = vmatpush1.msra.mxu0 %v769
    %3012 = vmatprep.subr.mxu0 0.0
    %3013 = vmatpush1.msra.mxu0 %v770
    %3014 = vmatprep.subr.mxu0 0.0
    %3015 = vmatpush1.msra.mxu0 %v771
    %3016 = vmatprep.subr.mxu0 0.0
    %3017 = vmatpush1.msra.mxu0 %v772
    %3018 = vmatprep.subr.mxu0 0.0
    %3019 = vmatpush1.msra.mxu0 %v773
    %3020 = vmatprep.subr.mxu0 0.0
    %3021 = vmatpush1.msra.mxu0 %v774
    %3022 = vmatprep.subr.mxu0 0.0
    %3023 = vmatpush1.msra.mxu0 %v775
    %3024 = vmatprep.subr.mxu0 0.0
    %3025 = vmatpush1.msra.mxu0 %v776
    %3026 = vmatprep.subr.mxu0 0.0
    %3027 = vmatpush1.msra.mxu0 %v777
    %3028 = vmatprep.subr.mxu0 0.0
    %3029 = vmatpush1.msra.mxu0 %v778
    %3030 = vmatprep.mubr.f32.mxu0 %v1292
    %3031 = vmatmul.mubr.f32.gmra.mrb[0].mxu0 %v1284
    %v3032 = vpop.f32.mrb[0].mxu0
    %v3033 = vadd.f32 %v2963, %v3032
    %v3034 = vpop.f32.mrb[0].mxu0
    %3035 = vdwg.mxu0
    %3036 = vmatprep.subr.mxu0 0.0
    %3037 = vmatpush1.msra.mxu0 %v779
    %3038 = vmatprep.subr.mxu0 0.0
    %3039 = vmatpush1.msra.mxu0 %v780
    %3040 = vmatprep.subr.mxu0 0.0
    %3041 = vmatpush1.msra.mxu0 %v781
    %3042 = vmatprep.subr.mxu0 0.0
    %3043 = vmatpush1.msra.mxu0 %v782
    %3044 = vmatprep.subr.mxu0 0.0
    %3045 = vmatpush1.msra.mxu0 %v783
    %3046 = vmatprep.subr.mxu0 0.0
    %3047 = vmatpush1.msra.mxu0 %v784
    %3048 = vmatprep.subr.mxu0 0.0
    %3049 = vmatpush1.msra.mxu0 %v785
    %3050 = vmatprep.subr.mxu0 0.0
    %3051 = vmatpush1.msra.mxu0 %v786
    %3052 = vmatprep.subr.mxu0 0.0
    %3053 = vmatpush1.msra.mxu0 %v787
    %3054 = vmatprep.subr.mxu0 0.0
    %3055 = vmatpush1.msra.mxu0 %v788
    %3056 = vmatprep.subr.mxu0 0.0
    %3057 = vmatpush1.msra.mxu0 %v789
    %3058 = vmatprep.subr.mxu0 0.0
    %3059 = vmatpush1.msra.mxu0 %v790
    %3060 = vmatprep.subr.mxu0 0.0
    %3061 = vmatpush1.msra.mxu0 %v791
    %3062 = vmatprep.subr.mxu0 0.0
    %3063 = vmatpush1.msra.mxu0 %v792
    %3064 = vmatprep.subr.mxu0 0.0
    %3065 = vmatpush1.msra.mxu0 %v793
    %3066 = vmatprep.subr.mxu0 0.0
    %3067 = vmatpush1.msra.mxu0 %v794
    %3068 = vmatprep.subr.mxu0 0.0
    %3069 = vmatpush1.msra.mxu0 %v795
    %3070 = vmatprep.subr.mxu0 0.0
    %3071 = vmatpush1.msra.mxu0 %v796
    %3072 = vmatprep.subr.mxu0 0.0
    %3073 = vmatpush1.msra.mxu0 %v797
    %3074 = vmatprep.subr.mxu0 0.0
    %3075 = vmatpush1.msra.mxu0 %v798
    %3076 = vmatprep.subr.mxu0 0.0
    %3077 = vmatpush1.msra.mxu0 %v799
    %3078 = vmatprep.subr.mxu0 0.0
    %3079 = vmatpush1.msra.mxu0 %v800
    %3080 = vmatprep.subr.mxu0 0.0
    %3081 = vmatpush1.msra.mxu0 %v801
    %3082 = vmatprep.subr.mxu0 0.0
    %3083 = vmatpush1.msra.mxu0 %v802
    %3084 = vmatprep.subr.mxu0 0.0
    %3085 = vmatpush1.msra.mxu0 %v803
    %3086 = vmatprep.subr.mxu0 0.0
    %3087 = vmatpush1.msra.mxu0 %v804
    %3088 = vmatprep.subr.mxu0 0.0
    %3089 = vmatpush1.msra.mxu0 %v805
    %3090 = vmatprep.subr.mxu0 0.0
    %3091 = vmatpush1.msra.mxu0 %v806
    %3092 = vmatprep.subr.mxu0 0.0
    %3093 = vmatpush1.msra.mxu0 %v807
    %3094 = vmatprep.subr.mxu0 0.0
    %3095 = vmatpush1.msra.mxu0 %v808
    %3096 = vmatprep.subr.mxu0 0.0
    %3097 = vmatpush1.msra.mxu0 %v809
    %3098 = vmatprep.subr.mxu0 0.0
    %3099 = vmatpush1.msra.mxu0 %v810
    %3100 = vmatprep.mubr.f32.mxu0 %v1293
    %3101 = vmatmul.mubr.f32.gmra.mrb[0].mxu0 %v1291
    %v3102 = vpop.f32.mrb[0].mxu0
    %v3103 = vadd.f32 %v3033, %v3102
    %v3104 = vpop.f32.mrb[0].mxu0
    %3105 = vdwg.mxu0
    %3106 = vmatprep.subr.mxu0 0.0
    %3107 = vmatpush1.msra.mxu0 %v811
    %3108 = vmatprep.subr.mxu0 0.0
    %3109 = vmatpush1.msra.mxu0 %v812
    %3110 = vmatprep.subr.mxu0 0.0
    %3111 = vmatpush1.msra.mxu0 %v813
    %3112 = vmatprep.subr.mxu0 0.0
    %3113 = vmatpush1.msra.mxu0 %v814
    %3114 = vmatprep.subr.mxu0 0.0
    %3115 = vmatpush1.msra.mxu0 %v815
    %3116 = vmatprep.subr.mxu0 0.0
    %3117 = vmatpush1.msra.mxu0 %v816
    %3118 = vmatprep.subr.mxu0 0.0
    %3119 = vmatpush1.msra.mxu0 %v817
    %3120 = vmatprep.subr.mxu0 0.0
    %3121 = vmatpush1.msra.mxu0 %v818
    %3122 = vmatprep.subr.mxu0 0.0
    %3123 = vmatpush1.msra.mxu0 %v819
    %3124 = vmatprep.subr.mxu0 0.0
    %3125 = vmatpush1.msra.mxu0 %v820
    %3126 = vmatprep.subr.mxu0 0.0
    %3127 = vmatpush1.msra.mxu0 %v821
    %3128 = vmatprep.subr.mxu0 0.0
    %3129 = vmatpush1.msra.mxu0 %v822
    %3130 = vmatprep.subr.mxu0 0.0
    %3131 = vmatpush1.msra.mxu0 %v823
    %3132 = vmatprep.subr.mxu0 0.0
    %3133 = vmatpush1.msra.mxu0 %v824
    %3134 = vmatprep.subr.mxu0 0.0
    %3135 = vmatpush1.msra.mxu0 %v825
    %3136 = vmatprep.subr.mxu0 0.0
    %3137 = vmatpush1.msra.mxu0 %v826
    %3138 = vmatprep.subr.mxu0 0.0
    %3139 = vmatpush1.msra.mxu0 %v827
    %3140 = vmatprep.subr.mxu0 0.0
    %3141 = vmatpush1.msra.mxu0 %v828
    %3142 = vmatprep.subr.mxu0 0.0
    %3143 = vmatpush1.msra.mxu0 %v829
    %3144 = vmatprep.subr.mxu0 0.0
    %3145 = vmatpush1.msra.mxu0 %v830
    %3146 = vmatprep.subr.mxu0 0.0
    %3147 = vmatpush1.msra.mxu0 %v831
    %3148 = vmatprep.subr.mxu0 0.0
    %3149 = vmatpush1.msra.mxu0 %v832
    %3150 = vmatprep.subr.mxu0 0.0
    %3151 = vmatpush1.msra.mxu0 %v833
    %3152 = vmatprep.subr.mxu0 0.0
    %3153 = vmatpush1.msra.mxu0 %v834
    %3154 = vmatprep.subr.mxu0 0.0
    %3155 = vmatpush1.msra.mxu0 %v835
    %3156 = vmatprep.subr.mxu0 0.0
    %3157 = vmatpush1.msra.mxu0 %v836
    %3158 = vmatprep.subr.mxu0 0.0
    %3159 = vmatpush1.msra.mxu0 %v837
    %3160 = vmatprep.subr.mxu0 0.0
    %3161 = vmatpush1.msra.mxu0 %v838
    %3162 = vmatprep.subr.mxu0 0.0
    %3163 = vmatpush1.msra.mxu0 %v839
    %3164 = vmatprep.subr.mxu0 0.0
    %3165 = vmatpush1.msra.mxu0 %v840
    %3166 = vmatprep.subr.mxu0 0.0
    %3167 = vmatpush1.msra.mxu0 %v841
    %3168 = vmatprep.subr.mxu0 0.0
    %3169 = vmatpush1.msra.mxu0 %v842
    %3170 = vmatprep.mubr.f32.mxu0 %v1309
    %3171 = vmatmul.mubr.f32.gmra.mrb[0].mxu0 %v1301
    %v3172 = vpop.f32.mrb[0].mxu0
    %v3173 = vadd.f32 %v3103, %v3172
    %v3174 = vpop.f32.mrb[0].mxu0
    %3175 = vdwg.mxu0
    %3176 = vmatprep.subr.mxu0 0.0
    %3177 = vmatpush1.msra.mxu0 %v843
    %3178 = vmatprep.subr.mxu0 0.0
    %3179 = vmatpush1.msra.mxu0 %v844
    %3180 = vmatprep.subr.mxu0 0.0
    %3181 = vmatpush1.msra.mxu0 %v845
    %3182 = vmatprep.subr.mxu0 0.0
    %3183 = vmatpush1.msra.mxu0 %v846
    %3184 = vmatprep.subr.mxu0 0.0
    %3185 = vmatpush1.msra.mxu0 %v847
    %3186 = vmatprep.subr.mxu0 0.0
    %3187 = vmatpush1.msra.mxu0 %v848
    %3188 = vmatprep.subr.mxu0 0.0
    %3189 = vmatpush1.msra.mxu0 %v849
    %3190 = vmatprep.subr.mxu0 0.0
    %3191 = vmatpush1.msra.mxu0 %v850
    %3192 = vmatprep.subr.mxu0 0.0
    %3193 = vmatpush1.msra.mxu0 %v851
    %3194 = vmatprep.subr.mxu0 0.0
    %3195 = vmatpush1.msra.mxu0 %v852
    %3196 = vmatprep.subr.mxu0 0.0
    %3197 = vmatpush1.msra.mxu0 %v853
    %3198 = vmatprep.subr.mxu0 0.0
    %3199 = vmatpush1.msra.mxu0 %v854
    %3200 = vmatprep.subr.mxu0 0.0
    %3201 = vmatpush1.msra.mxu0 %v855
    %3202 = vmatprep.subr.mxu0 0.0
    %3203 = vmatpush1.msra.mxu0 %v856
    %3204 = vmatprep.subr.mxu0 0.0
    %3205 = vmatpush1.msra.mxu0 %v857
    %3206 = vmatprep.subr.mxu0 0.0
    %3207 = vmatpush1.msra.mxu0 %v858
    %3208 = vmatprep.subr.mxu0 0.0
    %3209 = vmatpush1.msra.mxu0 %v859
    %3210 = vmatprep.subr.mxu0 0.0
    %3211 = vmatpush1.msra.mxu0 %v860
    %3212 = vmatprep.subr.mxu0 0.0
    %3213 = vmatpush1.msra.mxu0 %v861
    %3214 = vmatprep.subr.mxu0 0.0
    %3215 = vmatpush1.msra.mxu0 %v862
    %3216 = vmatprep.subr.mxu0 0.0
    %3217 = vmatpush1.msra.mxu0 %v863
    %3218 = vmatprep.subr.mxu0 0.0
    %3219 = vmatpush1.msra.mxu0 %v864
    %3220 = vmatprep.subr.mxu0 0.0
    %3221 = vmatpush1.msra.mxu0 %v865
    %3222 = vmatprep.subr.mxu0 0.0
    %3223 = vmatpush1.msra.mxu0 %v866
    %3224 = vmatprep.subr.mxu0 0.0
    %3225 = vmatpush1.msra.mxu0 %v867
    %3226 = vmatprep.subr.mxu0 0.0
    %3227 = vmatpush1.msra.mxu0 %v868
    %3228 = vmatprep.subr.mxu0 0.0
    %3229 = vmatpush1.msra.mxu0 %v869
    %3230 = vmatprep.subr.mxu0 0.0
    %3231 = vmatpush1.msra.mxu0 %v870
    %3232 = vmatprep.subr.mxu0 0.0
    %3233 = vmatpush1.msra.mxu0 %v871
    %3234 = vmatprep.subr.mxu0 0.0
    %3235 = vmatpush1.msra.mxu0 %v872
    %3236 = vmatprep.subr.mxu0 0.0
    %3237 = vmatpush1.msra.mxu0 %v873
    %3238 = vmatprep.subr.mxu0 0.0
    %3239 = vmatpush1.msra.mxu0 %v874
    %3240 = vmatprep.mubr.f32.mxu0 %v1310
    %3241 = vmatmul.mubr.f32.gmra.mrb[0].mxu0 %v1308
    %v3242 = vpop.f32.mrb[0].mxu0
    %v3243 = vadd.f32 %v3173, %v3242
    %v3244 = vpop.f32.mrb[0].mxu0
    %3245 = vdwg.mxu0
    %3246 = vmatprep.subr.mxu0 0.0
    %3247 = vmatpush1.msra.mxu0 %v875
    %3248 = vmatprep.subr.mxu0 0.0
    %3249 = vmatpush1.msra.mxu0 %v876
    %3250 = vmatprep.subr.mxu0 0.0
    %3251 = vmatpush1.msra.mxu0 %v877
    %3252 = vmatprep.subr.mxu0 0.0
    %3253 = vmatpush1.msra.mxu0 %v878
    %3254 = vmatprep.subr.mxu0 0.0
    %3255 = vmatpush1.msra.mxu0 %v879
    %3256 = vmatprep.subr.mxu0 0.0
    %3257 = vmatpush1.msra.mxu0 %v880
    %3258 = vmatprep.subr.mxu0 0.0
    %3259 = vmatpush1.msra.mxu0 %v881
    %3260 = vmatprep.subr.mxu0 0.0
    %3261 = vmatpush1.msra.mxu0 %v882
    %3262 = vmatprep.subr.mxu0 0.0
    %3263 = vmatpush1.msra.mxu0 %v883
    %3264 = vmatprep.subr.mxu0 0.0
    %3265 = vmatpush1.msra.mxu0 %v884
    %3266 = vmatprep.subr.mxu0 0.0
    %3267 = vmatpush1.msra.mxu0 %v885
    %3268 = vmatprep.subr.mxu0 0.0
    %3269 = vmatpush1.msra.mxu0 %v886
    %3270 = vmatprep.subr.mxu0 0.0
    %3271 = vmatpush1.msra.mxu0 %v887
    %3272 = vmatprep.subr.mxu0 0.0
    %3273 = vmatpush1.msra.mxu0 %v888
    %3274 = vmatprep.subr.mxu0 0.0
    %3275 = vmatpush1.msra.mxu0 %v889
    %3276 = vmatprep.subr.mxu0 0.0
    %3277 = vmatpush1.msra.mxu0 %v890
    %3278 = vmatprep.subr.mxu0 0.0
    %3279 = vmatpush1.msra.mxu0 %v891
    %3280 = vmatprep.subr.mxu0 0.0
    %3281 = vmatpush1.msra.mxu0 %v892
    %3282 = vmatprep.subr.mxu0 0.0
    %3283 = vmatpush1.msra.mxu0 %v893
    %3284 = vmatprep.subr.mxu0 0.0
    %3285 = vmatpush1.msra.mxu0 %v894
    %3286 = vmatprep.subr.mxu0 0.0
    %3287 = vmatpush1.msra.mxu0 %v895
    %3288 = vmatprep.subr.mxu0 0.0
    %3289 = vmatpush1.msra.mxu0 %v896
    %3290 = vmatprep.subr.mxu0 0.0
    %3291 = vmatpush1.msra.mxu0 %v897
    %3292 = vmatprep.subr.mxu0 0.0
    %3293 = vmatpush1.msra.mxu0 %v898
    %3294 = vmatprep.subr.mxu0 0.0
    %3295 = vmatpush1.msra.mxu0 %v899
    %3296 = vmatprep.subr.mxu0 0.0
    %3297 = vmatpush1.msra.mxu0 %v900
    %3298 = vmatprep.subr.mxu0 0.0
    %3299 = vmatpush1.msra.mxu0 %v901
    %3300 = vmatprep.subr.mxu0 0.0
    %3301 = vmatpush1.msra.mxu0 %v902
    %3302 = vmatprep.subr.mxu0 0.0
    %3303 = vmatpush1.msra.mxu0 %v903
    %3304 = vmatprep.subr.mxu0 0.0
    %3305 = vmatpush1.msra.mxu0 %v904
    %3306 = vmatprep.subr.mxu0 0.0
    %3307 = vmatpush1.msra.mxu0 %v905
    %3308 = vmatprep.subr.mxu0 0.0
    %3309 = vmatpush1.msra.mxu0 %v906
    %3310 = vmatprep.mubr.f32.mxu0 %v1326
    %3311 = vmatmul.mubr.f32.gmra.mrb[0].mxu0 %v1318
    %v3312 = vpop.f32.mrb[0].mxu0
    %v3313 = vadd.f32 %v3243, %v3312
    %v3314 = vpop.f32.mrb[0].mxu0
    %3315 = vdwg.mxu0
    %3316 = vmatprep.subr.mxu0 0.0
    %3317 = vmatpush1.msra.mxu0 %v907
    %3318 = vmatprep.subr.mxu0 0.0
    %3319 = vmatpush1.msra.mxu0 %v908
    %3320 = vmatprep.subr.mxu0 0.0
    %3321 = vmatpush1.msra.mxu0 %v909
    %3322 = vmatprep.subr.mxu0 0.0
    %3323 = vmatpush1.msra.mxu0 %v910
    %3324 = vmatprep.subr.mxu0 0.0
    %3325 = vmatpush1.msra.mxu0 %v911
    %3326 = vmatprep.subr.mxu0 0.0
    %3327 = vmatpush1.msra.mxu0 %v912
    %3328 = vmatprep.subr.mxu0 0.0
    %3329 = vmatpush1.msra.mxu0 %v913
    %3330 = vmatprep.subr.mxu0 0.0
    %3331 = vmatpush1.msra.mxu0 %v914
    %3332 = vmatprep.subr.mxu0 0.0
    %3333 = vmatpush1.msra.mxu0 %v915
    %3334 = vmatprep.subr.mxu0 0.0
    %3335 = vmatpush1.msra.mxu0 %v916
    %3336 = vmatprep.subr.mxu0 0.0
    %3337 = vmatpush1.msra.mxu0 %v917
    %3338 = vmatprep.subr.mxu0 0.0
    %3339 = vmatpush1.msra.mxu0 %v918
    %3340 = vmatprep.subr.mxu0 0.0
    %3341 = vmatpush1.msra.mxu0 %v919
    %3342 = vmatprep.subr.mxu0 0.0
    %3343 = vmatpush1.msra.mxu0 %v920
    %3344 = vmatprep.subr.mxu0 0.0
    %3345 = vmatpush1.msra.mxu0 %v921
    %3346 = vmatprep.subr.mxu0 0.0
    %3347 = vmatpush1.msra.mxu0 %v922
    %3348 = vmatprep.subr.mxu0 0.0
    %3349 = vmatpush1.msra.mxu0 %v923
    %3350 = vmatprep.subr.mxu0 0.0
    %3351 = vmatpush1.msra.mxu0 %v924
    %3352 = vmatprep.subr.mxu0 0.0
    %3353 = vmatpush1.msra.mxu0 %v925
    %3354 = vmatprep.subr.mxu0 0.0
    %3355 = vmatpush1.msra.mxu0 %v926
    %3356 = vmatprep.subr.mxu0 0.0
    %3357 = vmatpush1.msra.mxu0 %v927
    %3358 = vmatprep.subr.mxu0 0.0
    %3359 = vmatpush1.msra.mxu0 %v928
    %3360 = vmatprep.subr.mxu0 0.0
    %3361 = vmatpush1.msra.mxu0 %v929
    %3362 = vmatprep.subr.mxu0 0.0
    %3363 = vmatpush1.msra.mxu0 %v930
    %3364 = vmatprep.subr.mxu0 0.0
    %3365 = vmatpush1.msra.mxu0 %v931
    %3366 = vmatprep.subr.mxu0 0.0
    %3367 = vmatpush1.msra.mxu0 %v932
    %3368 = vmatprep.subr.mxu0 0.0
    %3369 = vmatpush1.msra.mxu0 %v933
    %3370 = vmatprep.subr.mxu0 0.0
    %3371 = vmatpush1.msra.mxu0 %v934
    %3372 = vmatprep.subr.mxu0 0.0
    %3373 = vmatpush1.msra.mxu0 %v935
    %3374 = vmatprep.subr.mxu0 0.0
    %3375 = vmatpush1.msra.mxu0 %v936
    %3376 = vmatprep.subr.mxu0 0.0
    %3377 = vmatpush1.msra.mxu0 %v937
    %3378 = vmatprep.subr.mxu0 0.0
    %3379 = vmatpush1.msra.mxu0 %v938
    %3380 = vmatprep.mubr.f32.mxu0 %v1327
    %3381 = vmatmul.mubr.f32.gmra.mrb[0].mxu0 %v1325
    %v3382 = vpop.f32.mrb[0].mxu0
    %v3383 = vadd.f32 %v3313, %v3382
    %v3384 = vpop.f32.mrb[0].mxu0
    %3385 = vdwg.mxu0
    %3386 = vmatprep.subr.mxu0 0.0
    %3387 = vmatpush1.msra.mxu0 %v939
    %3388 = vmatprep.subr.mxu0 0.0
    %3389 = vmatpush1.msra.mxu0 %v940
    %3390 = vmatprep.subr.mxu0 0.0
    %3391 = vmatpush1.msra.mxu0 %v941
    %3392 = vmatprep.subr.mxu0 0.0
    %3393 = vmatpush1.msra.mxu0 %v942
    %3394 = vmatprep.subr.mxu0 0.0
    %3395 = vmatpush1.msra.mxu0 %v943
    %3396 = vmatprep.subr.mxu0 0.0
    %3397 = vmatpush1.msra.mxu0 %v944
    %3398 = vmatprep.subr.mxu0 0.0
    %3399 = vmatpush1.msra.mxu0 %v945
    %3400 = vmatprep.subr.mxu0 0.0
    %3401 = vmatpush1.msra.mxu0 %v946
    %3402 = vmatprep.subr.mxu0 0.0
    %3403 = vmatpush1.msra.mxu0 %v947
    %3404 = vmatprep.subr.mxu0 0.0
    %3405 = vmatpush1.msra.mxu0 %v948
    %3406 = vmatprep.subr.mxu0 0.0
    %3407 = vmatpush1.msra.mxu0 %v949
    %3408 = vmatprep.subr.mxu0 0.0
    %3409 = vmatpush1.msra.mxu0 %v950
    %3410 = vmatprep.subr.mxu0 0.0
    %3411 = vmatpush1.msra.mxu0 %v951
    %3412 = vmatprep.subr.mxu0 0.0
    %3413 = vmatpush1.msra.mxu0 %v952
    %3414 = vmatprep.subr.mxu0 0.0
    %3415 = vmatpush1.msra.mxu0 %v953
    %3416 = vmatprep.subr.mxu0 0.0
    %3417 = vmatpush1.msra.mxu0 %v954
    %3418 = vmatprep.subr.mxu0 0.0
    %3419 = vmatpush1.msra.mxu0 %v955
    %3420 = vmatprep.subr.mxu0 0.0
    %3421 = vmatpush1.msra.mxu0 %v956
    %3422 = vmatprep.subr.mxu0 0.0
    %3423 = vmatpush1.msra.mxu0 %v957
    %3424 = vmatprep.subr.mxu0 0.0
    %3425 = vmatpush1.msra.mxu0 %v958
    %3426 = vmatprep.subr.mxu0 0.0
    %3427 = vmatpush1.msra.mxu0 %v959
    %3428 = vmatprep.subr.mxu0 0.0
    %3429 = vmatpush1.msra.mxu0 %v960
    %3430 = vmatprep.subr.mxu0 0.0
    %3431 = vmatpush1.msra.mxu0 %v961
    %3432 = vmatprep.subr.mxu0 0.0
    %3433 = vmatpush1.msra.mxu0 %v962
    %3434 = vmatprep.subr.mxu0 0.0
    %3435 = vmatpush1.msra.mxu0 %v963
    %3436 = vmatprep.subr.mxu0 0.0
    %3437 = vmatpush1.msra.mxu0 %v964
    %3438 = vmatprep.subr.mxu0 0.0
    %3439 = vmatpush1.msra.mxu0 %v965
    %3440 = vmatprep.subr.mxu0 0.0
    %3441 = vmatpush1.msra.mxu0 %v966
    %3442 = vmatprep.subr.mxu0 0.0
    %3443 = vmatpush1.msra.mxu0 %v967
    %3444 = vmatprep.subr.mxu0 0.0
    %3445 = vmatpush1.msra.mxu0 %v968
    %3446 = vmatprep.subr.mxu0 0.0
    %3447 = vmatpush1.msra.mxu0 %v969
    %3448 = vmatprep.subr.mxu0 0.0
    %3449 = vmatpush1.msra.mxu0 %v970
    %3450 = vmatprep.mubr.f32.mxu0 %v1343
    %3451 = vmatmul.mubr.f32.gmra.mrb[0].mxu0 %v1335
    %v3452 = vpop.f32.mrb[0].mxu0
    %v3453 = vadd.f32 %v3383, %v3452
    %v3454 = vpop.f32.mrb[0].mxu0
    %3455 = vdwg.mxu0
    %3456 = vmatprep.subr.mxu0 0.0
    %3457 = vmatpush1.msra.mxu0 %v971
    %3458 = vmatprep.subr.mxu0 0.0
    %3459 = vmatpush1.msra.mxu0 %v972
    %3460 = vmatprep.subr.mxu0 0.0
    %3461 = vmatpush1.msra.mxu0 %v973
    %3462 = vmatprep.subr.mxu0 0.0
    %3463 = vmatpush1.msra.mxu0 %v974
    %3464 = vmatprep.subr.mxu0 0.0
    %3465 = vmatpush1.msra.mxu0 %v975
    %3466 = vmatprep.subr.mxu0 0.0
    %3467 = vmatpush1.msra.mxu0 %v976
    %3468 = vmatprep.subr.mxu0 0.0
    %3469 = vmatpush1.msra.mxu0 %v977
    %3470 = vmatprep.subr.mxu0 0.0
    %3471 = vmatpush1.msra.mxu0 %v978
    %3472 = vmatprep.subr.mxu0 0.0
    %3473 = vmatpush1.msra.mxu0 %v979
    %3474 = vmatprep.subr.mxu0 0.0
    %3475 = vmatpush1.msra.mxu0 %v980
    %3476 = vmatprep.subr.mxu0 0.0
    %3477 = vmatpush1.msra.mxu0 %v981
    %3478 = vmatprep.subr.mxu0 0.0
    %3479 = vmatpush1.msra.mxu0 %v982
    %3480 = vmatprep.subr.mxu0 0.0
    %3481 = vmatpush1.msra.mxu0 %v983
    %3482 = vmatprep.subr.mxu0 0.0
    %3483 = vmatpush1.msra.mxu0 %v984
    %3484 = vmatprep.subr.mxu0 0.0
    %3485 = vmatpush1.msra.mxu0 %v985
    %3486 = vmatprep.subr.mxu0 0.0
    %3487 = vmatpush1.msra.mxu0 %v986
    %3488 = vmatprep.subr.mxu0 0.0
    %3489 = vmatpush1.msra.mxu0 %v987
    %3490 = vmatprep.subr.mxu0 0.0
    %3491 = vmatpush1.msra.mxu0 %v988
    %3492 = vmatprep.subr.mxu0 0.0
    %3493 = vmatpush1.msra.mxu0 %v989
    %3494 = vmatprep.subr.mxu0 0.0
    %3495 = vmatpush1.msra.mxu0 %v990
    %3496 = vmatprep.subr.mxu0 0.0
    %3497 = vmatpush1.msra.mxu0 %v991
    %3498 = vmatprep.subr.mxu0 0.0
    %3499 = vmatpush1.msra.mxu0 %v992
    %3500 = vmatprep.subr.mxu0 0.0
    %3501 = vmatpush1.msra.mxu0 %v993
    %3502 = vmatprep.subr.mxu0 0.0
    %3503 = vmatpush1.msra.mxu0 %v994
    %3504 = vmatprep.subr.mxu0 0.0
    %3505 = vmatpush1.msra.mxu0 %v995
    %3506 = vmatprep.subr.mxu0 0.0
    %3507 = vmatpush1.msra.mxu0 %v996
    %3508 = vmatprep.subr.mxu0 0.0
    %3509 = vmatpush1.msra.mxu0 %v997
    %3510 = vmatprep.subr.mxu0 0.0
    %3511 = vmatpush1.msra.mxu0 %v998
    %3512 = vmatprep.subr.mxu0 0.0
    %3513 = vmatpush1.msra.mxu0 %v999
    %3514 = vmatprep.subr.mxu0 0.0
    %3515 = vmatpush1.msra.mxu0 %v1000
    %3516 = vmatprep.subr.mxu0 0.0
    %3517 = vmatpush1.msra.mxu0 %v1001
    %3518 = vmatprep.subr.mxu0 0.0
    %3519 = vmatpush1.msra.mxu0 %v1002
    %3520 = vmatprep.mubr.f32.mxu0 %v1344
    %3521 = vmatmul.mubr.f32.gmra.mrb[0].mxu0 %v1342
    %v3522 = vpop.f32.mrb[0].mxu0
    %v3523 = vadd.f32 %v3453, %v3522
    %v3524 = vpop.f32.mrb[0].mxu0
    %3525 = vdwg.mxu0
    %3526 = vmatprep.subr.mxu0 0.0
    %3527 = vmatpush1.msra.mxu0 %v1003
    %3528 = vmatprep.subr.mxu0 0.0
    %3529 = vmatpush1.msra.mxu0 %v1004
    %3530 = vmatprep.subr.mxu0 0.0
    %3531 = vmatpush1.msra.mxu0 %v1005
    %3532 = vmatprep.subr.mxu0 0.0
    %3533 = vmatpush1.msra.mxu0 %v1006
    %3534 = vmatprep.subr.mxu0 0.0
    %3535 = vmatpush1.msra.mxu0 %v1007
    %3536 = vmatprep.subr.mxu0 0.0
    %3537 = vmatpush1.msra.mxu0 %v1008
    %3538 = vmatprep.subr.mxu0 0.0
    %3539 = vmatpush1.msra.mxu0 %v1009
    %3540 = vmatprep.subr.mxu0 0.0
    %3541 = vmatpush1.msra.mxu0 %v1010
    %3542 = vmatprep.subr.mxu0 0.0
    %3543 = vmatpush1.msra.mxu0 %v1011
    %3544 = vmatprep.subr.mxu0 0.0
    %3545 = vmatpush1.msra.mxu0 %v1012
    %3546 = vmatprep.subr.mxu0 0.0
    %3547 = vmatpush1.msra.mxu0 %v1013
    %3548 = vmatprep.subr.mxu0 0.0
    %3549 = vmatpush1.msra.mxu0 %v1014
    %3550 = vmatprep.subr.mxu0 0.0
    %3551 = vmatpush1.msra.mxu0 %v1015
    %3552 = vmatprep.subr.mxu0 0.0
    %3553 = vmatpush1.msra.mxu0 %v1016
    %3554 = vmatprep.subr.mxu0 0.0
    %3555 = vmatpush1.msra.mxu0 %v1017
    %3556 = vmatprep.subr.mxu0 0.0
    %3557 = vmatpush1.msra.mxu0 %v1018
    %3558 = vmatprep.subr.mxu0 0.0
    %3559 = vmatpush1.msra.mxu0 %v1019
    %3560 = vmatprep.subr.mxu0 0.0
    %3561 = vmatpush1.msra.mxu0 %v1020
    %3562 = vmatprep.subr.mxu0 0.0
    %3563 = vmatpush1.msra.mxu0 %v1021
    %3564 = vmatprep.subr.mxu0 0.0
    %3565 = vmatpush1.msra.mxu0 %v1022
    %3566 = vmatprep.subr.mxu0 0.0
    %3567 = vmatpush1.msra.mxu0 %v1023
    %3568 = vmatprep.subr.mxu0 0.0
    %3569 = vmatpush1.msra.mxu0 %v1024
    %3570 = vmatprep.subr.mxu0 0.0
    %3571 = vmatpush1.msra.mxu0 %v1025
    %3572 = vmatprep.subr.mxu0 0.0
    %3573 = vmatpush1.msra.mxu0 %v1026
    %3574 = vmatprep.subr.mxu0 0.0
    %3575 = vmatpush1.msra.mxu0 %v1027
    %3576 = vmatprep.subr.mxu0 0.0
    %3577 = vmatpush1.msra.mxu0 %v1028
    %3578 = vmatprep.subr.mxu0 0.0
    %3579 = vmatpush1.msra.mxu0 %v1029
    %3580 = vmatprep.subr.mxu0 0.0
    %3581 = vmatpush1.msra.mxu0 %v1030
    %3582 = vmatprep.subr.mxu0 0.0
    %3583 = vmatpush1.msra.mxu0 %v1031
    %3584 = vmatprep.subr.mxu0 0.0
    %3585 = vmatpush1.msra.mxu0 %v1032
    %3586 = vmatprep.subr.mxu0 0.0
    %3587 = vmatpush1.msra.mxu0 %v1033
    %3588 = vmatprep.subr.mxu0 0.0
    %3589 = vmatpush1.msra.mxu0 %v1034
    %3590 = vmatprep.mubr.f32.mxu0 %v1360
    %3591 = vmatmul.mubr.f32.gmra.mrb[0].mxu0 %v1352
    %v3592 = vpop.f32.mrb[0].mxu0
    %v3593 = vadd.f32 %v3523, %v3592
    %v3594 = vpop.f32.mrb[0].mxu0
    %3595 = vdwg.mxu0
    %3596 = vmatprep.subr.mxu0 0.0
    %3597 = vmatpush1.msra.mxu0 %v1035
    %3598 = vmatprep.subr.mxu0 0.0
    %3599 = vmatpush1.msra.mxu0 %v1036
    %3600 = vmatprep.subr.mxu0 0.0
    %3601 = vmatpush1.msra.mxu0 %v1037
    %3602 = vmatprep.subr.mxu0 0.0
    %3603 = vmatpush1.msra.mxu0 %v1038
    %3604 = vmatprep.subr.mxu0 0.0
    %3605 = vmatpush1.msra.mxu0 %v1039
    %3606 = vmatprep.subr.mxu0 0.0
    %3607 = vmatpush1.msra.mxu0 %v1040
    %3608 = vmatprep.subr.mxu0 0.0
    %3609 = vmatpush1.msra.mxu0 %v1041
    %3610 = vmatprep.subr.mxu0 0.0
    %3611 = vmatpush1.msra.mxu0 %v1042
    %3612 = vmatprep.subr.mxu0 0.0
    %3613 = vmatpush1.msra.mxu0 %v1043
    %3614 = vmatprep.subr.mxu0 0.0
    %3615 = vmatpush1.msra.mxu0 %v1044
    %3616 = vmatprep.subr.mxu0 0.0
    %3617 = vmatpush1.msra.mxu0 %v1045
    %3618 = vmatprep.subr.mxu0 0.0
    %3619 = vmatpush1.msra.mxu0 %v1046
    %3620 = vmatprep.subr.mxu0 0.0
    %3621 = vmatpush1.msra.mxu0 %v1047
    %3622 = vmatprep.subr.mxu0 0.0
    %3623 = vmatpush1.msra.mxu0 %v1048
    %3624 = vmatprep.subr.mxu0 0.0
    %3625 = vmatpush1.msra.mxu0 %v1049
    %3626 = vmatprep.subr.mxu0 0.0
    %3627 = vmatpush1.msra.mxu0 %v1050
    %3628 = vmatprep.subr.mxu0 0.0
    %3629 = vmatpush1.msra.mxu0 %v1051
    %3630 = vmatprep.subr.mxu0 0.0
    %3631 = vmatpush1.msra.mxu0 %v1052
    %3632 = vmatprep.subr.mxu0 0.0
    %3633 = vmatpush1.msra.mxu0 %v1053
    %3634 = vmatprep.subr.mxu0 0.0
    %3635 = vmatpush1.msra.mxu0 %v1054
    %3636 = vmatprep.subr.mxu0 0.0
    %3637 = vmatpush1.msra.mxu0 %v1055
    %3638 = vmatprep.subr.mxu0 0.0
    %3639 = vmatpush1.msra.mxu0 %v1056
    %3640 = vmatprep.subr.mxu0 0.0
    %3641 = vmatpush1.msra.mxu0 %v1057
    %3642 = vmatprep.subr.mxu0 0.0
    %3643 = vmatpush1.msra.mxu0 %v1058
    %3644 = vmatprep.subr.mxu0 0.0
    %3645 = vmatpush1.msra.mxu0 %v1059
    %3646 = vmatprep.subr.mxu0 0.0
    %3647 = vmatpush1.msra.mxu0 %v1060
    %3648 = vmatprep.subr.mxu0 0.0
    %3649 = vmatpush1.msra.mxu0 %v1061
    %3650 = vmatprep.subr.mxu0 0.0
    %3651 = vmatpush1.msra.mxu0 %v1062
    %3652 = vmatprep.subr.mxu0 0.0
    %3653 = vmatpush1.msra.mxu0 %v1063
    %3654 = vmatprep.subr.mxu0 0.0
    %3655 = vmatpush1.msra.mxu0 %v1064
    %3656 = vmatprep.subr.mxu0 0.0
    %3657 = vmatpush1.msra.mxu0 %v1065
    %3658 = vmatprep.subr.mxu0 0.0
    %3659 = vmatpush1.msra.mxu0 %v1066
    %3660 = vmatprep.mubr.f32.mxu0 %v1361
    %3661 = vmatmul.mubr.f32.gmra.mrb[0].mxu0 %v1359
    %v3662 = vpop.f32.mrb[0].mxu0
    %v3663 = vadd.f32 %v3593, %v3662
    %v3664 = vpop.f32.mrb[0].mxu0
    %3665 = vdwg.mxu0
    %v3666 = vmax.f32 %v3663, 0.0
    %v3667 = vld [vmem:[%s3] sm:$0xff]
    %v3668 = vld [vmem:[%s3 + $0x8] sm:$0xff]
    %v3669 = vld [vmem:[%s3 + $0x10] sm:$0xff]
    %v3670 = vld [vmem:[%s3 + $0x18] sm:$0xff]
    %v3671 = vld [vmem:[%s3 + $0x20] sm:$0xff]
    %v3672 = vld [vmem:[%s3 + $0x28] sm:$0xff]
    %v3673 = vld [vmem:[%s3 + $0x30] sm:$0xff]
    %v3674 = vld [vmem:[%s3 + $0x38] sm:$0xff]
    %v3675 = vld [vmem:[%s4] sm:$0x1]
    %v3677 = vlaneseq
    %v3678 = vshrl.u32 %v3677, 7
    %v3679 = vsub.s32 0, %v3678
    %v3680 = vrot.slane %v3675, %v3679
    %vm3682 = vcmask 523264
    %v3684 = vsel %vm3682, %v3666, 0
    %3686 = vmatprep.subr.mxu0 0.0
    %3687 = vmatpush1.msra.mxu0 %v3667
    %3688 = vmatprep.subr.mxu0 0.0
    %3689 = vmatpush1.msra.mxu0 %v3668
    %3690 = vmatprep.subr.mxu0 0.0
    %3691 = vmatpush1.msra.mxu0 %v3669
    %3692 = vmatprep.subr.mxu0 0.0
    %3693 = vmatpush1.msra.mxu0 %v3670
    %3694 = vmatprep.subr.mxu0 0.0
    %3695 = vmatpush1.msra.mxu0 %v3671
    %3696 = vmatprep.subr.mxu0 0.0
    %3697 = vmatpush1.msra.mxu0 %v3672
    %3698 = vmatprep.subr.mxu0 0.0
    %3699 = vmatpush1.msra.mxu0 %v3673
    %3700 = vmatprep.subr.mxu0 0.0
    %3701 = vmatpush1.msra.mxu0 %v3674
    %3702 = vmatprep.subr.mxu0 0.0
    %3703 = vmatpush1.msra.mxu0 0.0
    %3704 = vmatprep.subr.mxu0 0.0
    %3705 = vmatpush1.msra.mxu0 0.0
    %3706 = vmatprep.subr.mxu0 0.0
    %3707 = vmatpush1.msra.mxu0 0.0
    %3708 = vmatprep.subr.mxu0 0.0
    %3709 = vmatpush1.msra.mxu0 0.0
    %3710 = vmatprep.subr.mxu0 0.0
    %3711 = vmatpush1.msra.mxu0 0.0
    %3712 = vmatprep.subr.mxu0 0.0
    %3713 = vmatpush1.msra.mxu0 0.0
    %3714 = vmatprep.subr.mxu0 0.0
    %3715 = vmatpush1.msra.mxu0 0.0
    %3716 = vmatprep.subr.mxu0 0.0
    %3717 = vmatpush1.msra.mxu0 0.0
    %3718 = vmatprep.subr.mxu0 0.0
    %3719 = vmatpush1.msra.mxu0 0.0
    %3720 = vmatprep.subr.mxu0 0.0
    %3721 = vmatpush1.msra.mxu0 0.0
    %3722 = vmatprep.subr.mxu0 0.0
    %3723 = vmatpush1.msra.mxu0 0.0
    %3724 = vmatprep.subr.mxu0 0.0
    %3725 = vmatpush1.msra.mxu0 0.0
    %3726 = vmatprep.subr.mxu0 0.0
    %3727 = vmatpush1.msra.mxu0 0.0
    %3728 = vmatprep.subr.mxu0 0.0
    %3729 = vmatpush1.msra.mxu0 0.0
    %3730 = vmatprep.subr.mxu0 0.0
    %3731 = vmatpush1.msra.mxu0 0.0
    %3732 = vmatprep.subr.mxu0 0.0
    %3733 = vmatpush1.msra.mxu0 0.0
    %3734 = vmatprep.subr.mxu0 0.0
    %3735 = vmatpush1.msra.mxu0 0.0
    %3736 = vmatprep.subr.mxu0 0.0
    %3737 = vmatpush1.msra.mxu0 0.0
    %3738 = vmatprep.subr.mxu0 0.0
    %3739 = vmatpush1.msra.mxu0 0.0
    %3740 = vmatprep.subr.mxu0 0.0
    %3741 = vmatpush1.msra.mxu0 0.0
    %3742 = vmatprep.subr.mxu0 0.0
    %3743 = vmatpush1.msra.mxu0 0.0
    %3744 = vmatprep.subr.mxu0 0.0
    %3745 = vmatpush1.msra.mxu0 0.0
    %3746 = vmatprep.subr.mxu0 0.0
    %3747 = vmatpush1.msra.mxu0 0.0
    %3748 = vmatprep.subr.mxu0 0.0
    %3749 = vmatpush1.msra.mxu0 0.0
    %3750 = vmatprep.mubr.f32.mxu0 0.0
    %3751 = vmatmul.mubr.f32.gmra.mrb[0].mxu0 %v3684
    %v3752 = vpop.f32.mrb[0].mxu0
    %v3753 = vadd.f32 %v3680, %v3752
    %v3754 = vpop.f32.mrb[0].mxu0
    %3755 = vdwg.mxu0
    %v3756 = vld [vmem:[%s5] sm:$0xff]
    %v3757 = vld [vmem:[%s5 + $0x8] sm:$0xff]
    %v3758 = vld [vmem:[%s5 + $0x10] sm:$0xff]
    %v3759 = vld [vmem:[%s5 + $0x18] sm:$0xff]
    %v3760 = vld [vmem:[%s5 + $0x20] sm:$0xff]
    %v3761 = vld [vmem:[%s5 + $0x28] sm:$0xff]
    %v3762 = vld [vmem:[%s5 + $0x30] sm:$0xff]
    %v3763 = vld [vmem:[%s5 + $0x38] sm:$0xff]
    %v3764 = vld [vmem:[%s6] sm:$0x1]
    %v3766 = vlaneseq
    %v3767 = vshrl.u32 %v3766, 7
    %v3768 = vsub.s32 0, %v3767
    %v3769 = vrot.slane %v3764, %v3768
    %v3772 = vsel %vm3682, %v3753, 0
    %3774 = vmatprep.subr.mxu0 0.0
    %3775 = vmatpush1.msra.mxu0 %v3756
    %3776 = vmatprep.subr.mxu0 0.0
    %3777 = vmatpush1.msra.mxu0 %v3757
    %3778 = vmatprep.subr.mxu0 0.0
    %3779 = vmatpush1.msra.mxu0 %v3758
    %3780 = vmatprep.subr.mxu0 0.0
    %3781 = vmatpush1.msra.mxu0 %v3759
    %3782 = vmatprep.subr.mxu0 0.0
    %3783 = vmatpush1.msra.mxu0 %v3760
    %3784 = vmatprep.subr.mxu0 0.0
    %3785 = vmatpush1.msra.mxu0 %v3761
    %3786 = vmatprep.subr.mxu0 0.0
    %3787 = vmatpush1.msra.mxu0 %v3762
    %3788 = vmatprep.subr.mxu0 0.0
    %3789 = vmatpush1.msra.mxu0 %v3763
    %3790 = vmatprep.subr.mxu0 0.0
    %3791 = vmatpush1.msra.mxu0 0.0
    %3792 = vmatprep.subr.mxu0 0.0
    %3793 = vmatpush1.msra.mxu0 0.0
    %3794 = vmatprep.subr.mxu0 0.0
    %3795 = vmatpush1.msra.mxu0 0.0
    %3796 = vmatprep.subr.mxu0 0.0
    %3797 = vmatpush1.msra.mxu0 0.0
    %3798 = vmatprep.subr.mxu0 0.0
    %3799 = vmatpush1.msra.mxu0 0.0
    %3800 = vmatprep.subr.mxu0 0.0
    %3801 = vmatpush1.msra.mxu0 0.0
    %3802 = vmatprep.subr.mxu0 0.0
    %3803 = vmatpush1.msra.mxu0 0.0
    %3804 = vmatprep.subr.mxu0 0.0
    %3805 = vmatpush1.msra.mxu0 0.0
    %3806 = vmatprep.subr.mxu0 0.0
    %3807 = vmatpush1.msra.mxu0 0.0
    %3808 = vmatprep.subr.mxu0 0.0
    %3809 = vmatpush1.msra.mxu0 0.0
    %3810 = vmatprep.subr.mxu0 0.0
    %3811 = vmatpush1.msra.mxu0 0.0
    %3812 = vmatprep.subr.mxu0 0.0
    %3813 = vmatpush1.msra.mxu0 0.0
    %3814 = vmatprep.subr.mxu0 0.0
    %3815 = vmatpush1.msra.mxu0 0.0
    %3816 = vmatprep.subr.mxu0 0.0
    %3817 = vmatpush1.msra.mxu0 0.0
    %3818 = vmatprep.subr.mxu0 0.0
    %3819 = vmatpush1.msra.mxu0 0.0
    %3820 = vmatprep.subr.mxu0 0.0
    %3821 = vmatpush1.msra.mxu0 0.0
    %3822 = vmatprep.subr.mxu0 0.0
    %3823 = vmatpush1.msra.mxu0 0.0
    %3824 = vmatprep.subr.mxu0 0.0
    %3825 = vmatpush1.msra.mxu0 0.0
    %3826 = vmatprep.subr.mxu0 0.0
    %3827 = vmatpush1.msra.mxu0 0.0
    %3828 = vmatprep.subr.mxu0 0.0
    %3829 = vmatpush1.msra.mxu0 0.0
    %3830 = vmatprep.subr.mxu0 0.0
    %3831 = vmatpush1.msra.mxu0 0.0
    %3832 = vmatprep.subr.mxu0 0.0
    %3833 = vmatpush1.msra.mxu0 0.0
    %3834 = vmatprep.subr.mxu0 0.0
    %3835 = vmatpush1.msra.mxu0 0.0
    %3836 = vmatprep.subr.mxu0 0.0
    %3837 = vmatpush1.msra.mxu0 0.0
    %3838 = vmatprep.mubr.f32.mxu0 0.0
    %3839 = vmatmul.mubr.f32.gmra.mrb[0].mxu0 %v3772
    %v3840 = vpop.f32.mrb[0].mxu0
    %v3841 = vadd.f32 %v3769, %v3840
    %v3842 = vpop.f32.mrb[0].mxu0
    %3843 = vdwg.mxu0
    %vm3844 = vcmask 25600
    %3845 = vst.msk [vmem:[#allocation2] sm:$0x3] %vm3844, %v3841
    // Predicated region
    $region30: #{qnetwork_forward.3} parent=1 // pred_check
      _
    $region31: #{qnetwork_forward.3} parent=1 // pred_check_branch
      %3847 = sbr.rel (0) target = $region33
    $region32: #{qnetwork_forward.3} parent=1 // pred_region
      %s3849 = ssub.s32 32, 32
      %3850 = vsyncadd [#allocation3], %s3849
      %s3852 = sshll.u32 [#allocation2], 4
      %s3853 = int_to_ptr.vmem [resolvable:$true] %s3852
      %3855 = dma.vmem_to_hbm [thread:$0]  %s3853, 32, %s7, [#allocation3]
    $region33: #{qnetwork_forward.3} parent=1 // pred_fallthru
      _
    // Predicated region
    $region34: #{qnetwork_forward.3} parent=1 // pred_check
      _
    $region35: #{qnetwork_forward.3} parent=1 // pred_check_branch
      %3857 = sbr.rel (0) target = $region37
    $region36: #{qnetwork_forward.3} parent=1 // pred_region
      %3858 = dma.done [#allocation3], 32
    $region37: #{qnetwork_forward.3} parent=1 // pred_fallthru
      _
    %3859 = vsyncpa [#allocation3], 1

// kernel: qnetwork_forward.2
$region0: #{qnetwork_forward.2}
  #allocation0 [shape = 'u32[]', space=smem, size = 0x4, offset = 0x4, fixed_abs, tag = 'smem constant byte address 0x4 - core index']
  #allocation1 [shape = 'u32[144,128]{1,0:T(1,128)}', space=vmem, size = 0x12000, scoped, tag = 'internal scratch']
  #allocation2 [shape = 'f32[18,18,3]{2,1,0:T(8,128)}', space=vmem, size = 0x36000, scoped, tag = 'scratch operand']
  #allocation3 [shape = 'f32[256,27]{1,0:T(8,128)}', space=vmem, size = 0x20000, scoped, tag = 'scratch operand']
  #allocation4 [shape = 'f32[18,18,8]{2,1,0:T(8,128)}', space=vmem, size = 0x36000, scoped, tag = 'scratch operand']
  #allocation5 [shape = 'f32[256,72]{1,0:T(8,128)}', space=vmem, size = 0x20000, scoped, tag = 'scratch operand']
  #allocation6 [shape = 'f32[18,18,16]{2,1,0:T(8,128)}', space=vmem, size = 0x36000, scoped, tag = 'scratch operand']
  #allocation7 [shape = 'f32[256,144]{1,0:T(8,128)}', space=vmem, size = 0x40000, scoped, tag = 'scratch operand']
  %s0 = inlined_call_operand.vmem [shape: f32[2,16,16,3], index: 0, kind: input, shape index: {}]
  %s1 = inlined_call_operand.vmem [shape: f32[27,8], index: 1, kind: input, shape index: {}]
  %s2 = inlined_call_operand.hbm [shape: f32[1,8], index: 2, kind: input, shape index: {}]
  %s3 = inlined_call_operand.vmem [shape: f32[72,16], index: 3, kind: input, shape index: {}]
  %s4 = inlined_call_operand.hbm [shape: f32[1,16], index: 4, kind: input, shape index: {}]
  %s5 = inlined_call_operand.vmem [shape: f32[144,32], index: 5, kind: input, shape index: {}]
  %s6 = inlined_call_operand.hbm [shape: f32[1,32], index: 6, kind: input, shape index: {}]
  %s7 = inlined_call_operand.vmem [shape: f32[2,256,32], index: 7, kind: output, shape index: {}]
  %s8 = sld [smem:[#allocation0]]
  $region73: #{qnetwork_forward.2} parent=0
    _
  %s10 = ssub.s32 1, %s8
  %s11 = scalar_select 0, %s10, %s8
  $region1: #{qnetwork_forward.2} parent=0
    #allocation8 [shape = 'u8[512]{0}', space=vmem, size = 0x400, scoped, tag = 'input window, operand 2, single buffered']
    #allocation9 [shape = 's32[2]{0}', space=sflag, size = 0x8, scoped, tag = 'scoped memory for qnetwork_forward.2']
    #allocation10 [shape = 'u8[512]{0}', space=vmem, size = 0x400, scoped, tag = 'input window, operand 4, single buffered']
    #allocation11 [shape = 's32[1]{0}', space=sflag, size = 0x4, scoped, tag = 'scoped memory for qnetwork_forward.2']
    #allocation12 [shape = 'u8[512]{0}', space=vmem, size = 0x400, scoped, tag = 'input window, operand 6, single buffered']
    %12 = vsyncpa [#allocation9], 0
    %13 = vsyncpa [#allocation11], 0
    loop: start=0, step=1, limit=4
    $region2: #{qnetwork_forward.2} parent=1 // loop_pre_header
      _
    $region3: #{qnetwork_forward.2} parent=1 // loop_header
      %s15 = sphi 0, %s19
      %p16 = scmp.ge.s32.totalorder %s15, 4
      %s25 = sphi 0, %s27
      %s28 = sphi 0, %s25
      %s29 = sphi 0, %s28
      %s45 = sphi 0, %s29
      %s49 = sphi 0, %s49
      %s51 = sphi 0, %s49
      %s52 = sphi 0, %s51
      %s66 = sphi 0, %s52
      %s70 = sphi 0, %s70
      %s72 = sphi 0, %s70
      %s73 = sphi 0, %s72
      %s87 = sphi 0, %s73
      %s91 = sphi 0, %s91
      %s93 = sphi 0, %s91
      %s94 = sphi 0, %s93
      %s108 = sphi 0, %s94
      %s112 = sphi 0, %s112
      %s114 = sphi 0, %s112
      %s115 = sphi 0, %s114
      %s129 = sphi 0, %s115
      %s133 = sphi 0, %s133
      %s135 = sphi 0, %s133
      %s136 = sphi 0, %s135
      %s150 = sphi 0, %s136
      %s154 = sphi 0, %s154
      %s156 = sphi 0, %s154
      %s157 = sphi 0, %s156
      %s171 = sphi 0, %s157
      %s177 = sphi 0, %s179
      %s180 = sphi 0, %s177
      %s181 = sphi 0, %s180
      %s197 = sphi 0, %s181
    $region4: #{qnetwork_forward.2} parent=1 // loop_header_branch
      %18 = sbr.rel (%p16) target = $region8
    $region5: #{qnetwork_forward.2} parent=1 // loop_body
      %s20 = ssub.s32 %s15, 1
      %s21 = ssub.s32 %s15, 2
      %s22 = sadd.s32 %s15, 1
      %s23 = ssub.s32 %s15, %s22
      %p24 = scmp.eq.s32.totalorder %s23, 0
      %s26 = sadd.s32 %s25, 1
      %s27 = scalar_select %p24, %s25, %s26
      %p30 = pneg %p24
      %p31 = scmp.eq.s32.totalorder %s15, 1
      %p32 = por %p30, %p31
      %p33 = scmp.ne.s32.totalorder %s25, %s28
      %p34 = scmp.eq.s32.totalorder %s15, 0
      %p35 = por %p33, %p34
      %p36 = scmp.ne.s32.totalorder %s25, %s28
      %p37 = scmp.eq.s32.totalorder %s20, 1
      %p38 = por %p36, %p37
      %p39 = scmp.ne.s32.totalorder %s28, %s29
      %p40 = scmp.eq.s32.totalorder %s20, 0
      %p41 = por %p39, %p40
      %p42 = scmp.ne.s32.totalorder %s28, %s29
      %p43 = scmp.eq.s32.totalorder %s21, 1
      %p44 = por %p42, %p43
      %p46 = scmp.ne.s32.totalorder %s29, %s45
      %p47 = scmp.eq.s32.totalorder %s21, 0
      %p48 = por %p46, %p47
      %s50 = sadd.s32 %s49, 1
      %p53 = scmp.eq.s32.totalorder %s15, 1
      %p54 = scmp.ne.s32.totalorder %s49, %s51
      %p55 = scmp.eq.s32.totalorder %s15, 0
      %p56 = por %p54, %p55
      %p57 = scmp.ne.s32.totalorder %s49, %s51
      %p58 = scmp.eq.s32.totalorder %s20, 1
      %p59 = por %p57, %p58
      %p60 = scmp.ne.s32.totalorder %s51, %s52
      %p61 = scmp.eq.s32.totalorder %s20, 0
      %p62 = por %p60, %p61
      %p63 = scmp.ne.s32.totalorder %s51, %s52
      %p64 = scmp.eq.s32.totalorder %s21, 1
      %p65 = por %p63, %p64
      %p67 = scmp.ne.s32.totalorder %s52, %s66
      %p68 = scmp.eq.s32.totalorder %s21, 0
      %p69 = por %p67, %p68
      %s71 = sadd.s32 %s70, 1
      %p74 = scmp.eq.s32.totalorder %s15, 1
      %p75 = scmp.ne.s32.totalorder %s70, %s72
      %p76 = scmp.eq.s32.totalorder %s15, 0
      %p77 = por %p75, %p76
      %p78 = scmp.ne.s32.totalorder %s70, %s72
      %p79 = scmp.eq.s32.totalorder %s20, 1
      %p80 = por %p78, %p79
      %p81 = scmp.ne.s32.totalorder %s72, %s73
      %p82 = scmp.eq.s32.totalorder %s20, 0
      %p83 = por %p81, %p82
      %p84 = scmp.ne.s32.totalorder %s72, %s73
      %p85 = scmp.eq.s32.totalorder %s21, 1
      %p86 = por %p84, %p85
      %p88 = scmp.ne.s32.totalorder %s73, %s87
      %p89 = scmp.eq.s32.totalorder %s21, 0
      %p90 = por %p88, %p89
      %s92 = sadd.s32 %s91, 1
      %p95 = scmp.eq.s32.totalorder %s15, 1
      %p96 = scmp.ne.s32.totalorder %s91, %s93
      %p97 = scmp.eq.s32.totalorder %s15, 0
      %p98 = por %p96, %p97
      %p99 = scmp.ne.s32.totalorder %s91, %s93
      %p100 = scmp.eq.s32.totalorder %s20, 1
      %p101 = por %p99, %p100
      %p102 = scmp.ne.s32.totalorder %s93, %s94
      %p103 = scmp.eq.s32.totalorder %s20, 0
      %p104 = por %p102, %p103
      %p105 = scmp.ne.s32.totalorder %s93, %s94
      %p106 = scmp.eq.s32.totalorder %s21, 1
      %p107 = por %p105, %p106
      %p109 = scmp.ne.s32.totalorder %s94, %s108
      %p110 = scmp.eq.s32.totalorder %s21, 0
      %p111 = por %p109, %p110
      %s113 = sadd.s32 %s112, 1
      %p116 = scmp.eq.s32.totalorder %s15, 1
      %p117 = scmp.ne.s32.totalorder %s112, %s114
      %p118 = scmp.eq.s32.totalorder %s15, 0
      %p119 = por %p117, %p118
      %p120 = scmp.ne.s32.totalorder %s112, %s114
      %p121 = scmp.eq.s32.totalorder %s20, 1
      %p122 = por %p120, %p121
      %p123 = scmp.ne.s32.totalorder %s114, %s115
      %p124 = scmp.eq.s32.totalorder %s20, 0
      %p125 = por %p123, %p124
      %p126 = scmp.ne.s32.totalorder %s114, %s115
      %p127 = scmp.eq.s32.totalorder %s21, 1
      %p128 = por %p126, %p127
      %p130 = scmp.ne.s32.totalorder %s115, %s129
      %p131 = scmp.eq.s32.totalorder %s21, 0
      %p132 = por %p130, %p131
      %s134 = sadd.s32 %s133, 1
      %p137 = scmp.eq.s32.totalorder %s15, 1
      %p138 = scmp.ne.s32.totalorder %s133, %s135
      %p139 = scmp.eq.s32.totalorder %s15, 0
      %p140 = por %p138, %p139
      %p141 = scmp.ne.s32.totalorder %s133, %s135
      %p142 = scmp.eq.s32.totalorder %s20, 1
      %p143 = por %p141, %p142
      %p144 = scmp.ne.s32.totalorder %s135, %s136
      %p145 = scmp.eq.s32.totalorder %s20, 0
      %p146 = por %p144, %p145
      %p147 = scmp.ne.s32.totalorder %s135, %s136
      %p148 = scmp.eq.s32.totalorder %s21, 1
      %p149 = por %p147, %p148
      %p151 = scmp.ne.s32.totalorder %s136, %s150
      %p152 = scmp.eq.s32.totalorder %s21, 0
      %p153 = por %p151, %p152
      %s155 = sadd.s32 %s154, 1
      %p158 = scmp.eq.s32.totalorder %s15, 1
      %p159 = scmp.ne.s32.totalorder %s154, %s156
      %p160 = scmp.eq.s32.totalorder %s15, 0
      %p161 = por %p159, %p160
      %p162 = scmp.ne.s32.totalorder %s154, %s156
      %p163 = scmp.eq.s32.totalorder %s20, 1
      %p164 = por %p162, %p163
      %p165 = scmp.ne.s32.totalorder %s156, %s157
      %p166 = scmp.eq.s32.totalorder %s20, 0
      %p167 = por %p165, %p166
      %p168 = scmp.ne.s32.totalorder %s156, %s157
      %p169 = scmp.eq.s32.totalorder %s21, 1
      %p170 = por %p168, %p169
      %p172 = scmp.ne.s32.totalorder %s157, %s171
      %p173 = scmp.eq.s32.totalorder %s21, 0
      %p174 = por %p172, %p173
      %s175 = ssub.s32 %s15, %s22
      %p176 = scmp.eq.s32.totalorder %s175, 0
      %s178 = sadd.s32 %s177, 1
      %s179 = scalar_select %p176, %s177, %s178
      %p182 = pneg %p176
      %p183 = scmp.eq.s32.totalorder %s15, 1
      %p184 = por %p182, %p183
      %p185 = scmp.ne.s32.totalorder %s177, %s180
      %p186 = scmp.eq.s32.totalorder %s15, 0
      %p187 = por %p185, %p186
      %p188 = scmp.ne.s32.totalorder %s177, %s180
      %p189 = scmp.eq.s32.totalorder %s20, 1
      %p190 = por %p188, %p189
      %p191 = scmp.ne.s32.totalorder %s180, %s181
      %p192 = scmp.eq.s32.totalorder %s20, 0
      %p193 = por %p191, %p192
      %p194 = scmp.ne.s32.totalorder %s180, %s181
      %p195 = scmp.eq.s32.totalorder %s21, 1
      %p196 = por %p194, %p195
      %p198 = scmp.ne.s32.totalorder %s181, %s197
      %p199 = scmp.eq.s32.totalorder %s21, 0
      %p200 = por %p198, %p199
      %p201 = scmp.le.s32.totalorder 1, %s15
      %p202 = scmp.lt.s32.totalorder %s15, 3
      %p203 = pnand %p201, %p202
      %p204 = pneg %p203
      // Predicated region
      $region9: #{qnetwork_forward.2} parent=5 // pred_check
        _
      $region10: #{qnetwork_forward.2} parent=5 // pred_check_branch
        %206 = sbr.rel (%p203) target = $region12
      $region11: #{qnetwork_forward.2} parent=5 // pred_region
        %s207 = ssub.s32 %s15, 1
        // Predicated region
        $region13: #{qnetwork_forward.2} parent=11 // pred_check
          %p208 = pneg %p62
        $region14: #{qnetwork_forward.2} parent=11 // pred_check_branch
          %210 = sbr.rel (%p208) target = $region16
        $region15: #{qnetwork_forward.2} parent=11 // pred_region
          _
        $region16: #{qnetwork_forward.2} parent=11 // pred_fallthru
          _
        // Predicated region
        $region17: #{qnetwork_forward.2} parent=11 // pred_check
          %p211 = pneg %p83
        $region18: #{qnetwork_forward.2} parent=11 // pred_check_branch
          %213 = sbr.rel (%p211) target = $region20
        $region19: #{qnetwork_forward.2} parent=11 // pred_region
          %s215 = ssub.s32 16, 16
          %216 = vsyncadd [#allocation9], %s215
          %s218 = sshll.u32 [#allocation8], 4
          %s219 = int_to_ptr.vmem [resolvable:$true] %s218
          %221 = dma.hbm_to_vmem [thread:$0]  %s2, 16, %s219, [#allocation9]
        $region20: #{qnetwork_forward.2} parent=11 // pred_fallthru
          _
        // Predicated region
        $region21: #{qnetwork_forward.2} parent=11 // pred_check
          %p222 = pneg %p104
        $region22: #{qnetwork_forward.2} parent=11 // pred_check_branch
          %224 = sbr.rel (%p222) target = $region24
        $region23: #{qnetwork_forward.2} parent=11 // pred_region
          _
        $region24: #{qnetwork_forward.2} parent=11 // pred_fallthru
          _
        // Predicated region
        $region25: #{qnetwork_forward.2} parent=11 // pred_check
          %p225 = pneg %p125
        $region26: #{qnetwork_forward.2} parent=11 // pred_check_branch
          %227 = sbr.rel (%p225) target = $region28
        $region27: #{qnetwork_forward.2} parent=11 // pred_region
          %s229 = ssub.s32 16, 16
          %230 = vsyncadd [#allocation11], %s229
          %s232 = sshll.u32 [#allocation10], 4
          %s233 = int_to_ptr.vmem [resolvable:$true] %s232
          %235 = dma.hbm_to_vmem [thread:$0]  %s4, 16, %s233, [#allocation11]
        $region28: #{qnetwork_forward.2} parent=11 // pred_fallthru
          _
        // Predicated region
        $region29: #{qnetwork_forward.2} parent=11 // pred_check
          %p236 = pneg %p146
        $region30: #{qnetwork_forward.2} parent=11 // pred_check_branch
          %238 = sbr.rel (%p236) target = $region32
        $region31: #{qnetwork_forward.2} parent=11 // pred_region
          _
        $region32: #{qnetwork_forward.2} parent=11 // pred_fallthru
          _
        // Predicated region
        $region33: #{qnetwork_forward.2} parent=11 // pred_check
          %p239 = pneg %p167
        $region34: #{qnetwork_forward.2} parent=11 // pred_check_branch
          %241 = sbr.rel (%p239) target = $region36
        $region35: #{qnetwork_forward.2} parent=11 // pred_region
          %s243 = ssub.s32 16, 16
          %244 = vsyncadd [#allocation11], %s243
          %s246 = sshll.u32 [#allocation12], 4
          %s247 = int_to_ptr.vmem [resolvable:$true] %s246
          %249 = dma.hbm_to_vmem [thread:$0]  %s6, 16, %s247, [#allocation11]
        $region36: #{qnetwork_forward.2} parent=11 // pred_fallthru
          _
      $region12: #{qnetwork_forward.2} parent=5 // pred_fallthru
        _
      %p250 = scmp.lt.s32.totalorder %s15, 2
      // Predicated region
      $region37: #{qnetwork_forward.2} parent=5 // pred_check
        %p251 = pneg %p250
      $region38: #{qnetwork_forward.2} parent=5 // pred_check_branch
        %253 = sbr.rel (%p251) target = $region40
      $region39: #{qnetwork_forward.2} parent=5 // pred_region
        // Predicated region
        $region41: #{qnetwork_forward.2} parent=39 // pred_check
          %p254 = pneg %p35
        $region42: #{qnetwork_forward.2} parent=39 // pred_check_branch
          %256 = sbr.rel (%p254) target = $region44
        $region43: #{qnetwork_forward.2} parent=39 // pred_region
          %p257 = scmp.lt.s32.totalorder %s15, 1
          %s258 = scalar_select %p257, %s15, 1
          %s259 = smul.addr %s258, 32
          %s260 = smul.addr %s259, 8
          %s261 = scalar_lea.vmem %s0, %s260
        $region44: #{qnetwork_forward.2} parent=39 // pred_fallthru
          _
      $region40: #{qnetwork_forward.2} parent=5 // pred_fallthru
        _
      %p262 = scmp.le.s32.totalorder 1, %s15
      %p263 = scmp.lt.s32.totalorder %s15, 3
      %p264 = pnand %p262, %p263
      %p265 = pneg %p264
      // Predicated region
      $region45: #{qnetwork_forward.2} parent=5 // pred_check
        _
      $region46: #{qnetwork_forward.2} parent=5 // pred_check_branch
        %267 = sbr.rel (%p264) target = $region48
      $region47: #{qnetwork_forward.2} parent=5 // pred_region
        %s268 = ssub.s32 %s15, 1
        // Predicated region
        $region49: #{qnetwork_forward.2} parent=47 // pred_check
          %p269 = pneg %p83
        $region50: #{qnetwork_forward.2} parent=47 // pred_check_branch
          %271 = sbr.rel (%p269) target = $region52
        $region51: #{qnetwork_forward.2} parent=47 // pred_region
          %272 = dma.done [#allocation9], 16
        $region52: #{qnetwork_forward.2} parent=47 // pred_fallthru
          _
        // Predicated region
        $region53: #{qnetwork_forward.2} parent=47 // pred_check
          %p273 = pneg %p125
        $region54: #{qnetwork_forward.2} parent=47 // pred_check_branch
          %275 = sbr.rel (%p273) target = $region56
        $region55: #{qnetwork_forward.2} parent=47 // pred_region
          %276 = dma.done [#allocation11], 16
        $region56: #{qnetwork_forward.2} parent=47 // pred_fallthru
          _
        // Predicated region
        $region57: #{qnetwork_forward.2} parent=47 // pred_check
          %p277 = pneg %p167
        $region58: #{qnetwork_forward.2} parent=47 // pred_check_branch
          %279 = sbr.rel (%p277) target = $region60
        $region59: #{qnetwork_forward.2} parent=47 // pred_region
          %280 = dma.done [#allocation11], 16
        $region60: #{qnetwork_forward.2} parent=47 // pred_fallthru
          _
        %p281 = scmp.lt.s32.totalorder %s20, 1
        %s282 = scalar_select %p281, %s20, 1
        %s283 = smul.addr %s282, 32
        %s284 = smul.addr %s283, 8
        %s285 = scalar_lea.vmem %s0, %s284
        %p286 = pneg %p41
        %p287 = pneg %p38
        %p288 = pneg %p62
        %p289 = pneg %p59
        %p290 = pneg %p83
        %p291 = pneg %p80
        %p292 = pneg %p104
        %p293 = pneg %p101
        %p294 = pneg %p125
        %p295 = pneg %p122
        %p296 = pneg %p146
        %p297 = pneg %p143
        %p298 = pneg %p167
        %p299 = pneg %p164
        %p300 = pneg %p193
        %p301 = pneg %p190
        %p302 = scmp.lt.s32.totalorder %s20, 1
        %s303 = scalar_select %p302, %s20, 1
        %s304 = smul.addr %s303, 32
        %s305 = smul.addr %s304, 8
        %s306 = scalar_lea.vmem %s7, %s305
        %p307 = scmp.lt.s32.totalorder %s20, 1
        %s308 = scalar_select %p307, %s20, 1
        %s309 = smul.addr %s308, 32
        %s310 = smul.addr %s309, 8
        %s311 = scalar_lea.vmem %s0, %s310
        %p312 = scmp.lt.s32.totalorder %s20, 1
        %s313 = scalar_select %p312, %s20, 1
        %s314 = smul.addr %s313, 32
        %s315 = smul.addr %s314, 8
        %s316 = scalar_lea.vmem %s7, %s315
        %vm317 = vcmask 23552
        %318 = vst.msk [vmem:[#allocation2] sm:$0xff] %vm317, 0.0
        %319 = vst.msk [vmem:[#allocation2 + $0x8] sm:$0xff] %vm317, 0.0
        %vm320 = vcmask 17408
        %321 = vst.msk [vmem:[#allocation2 + $0x10] sm:$0x3] %vm320, 0.0
        %322 = vst.msk [vmem:[#allocation2 + $0x18] sm:$0xff] %vm317, 0.0
        %323 = vst.msk [vmem:[#allocation2 + $0x20] sm:$0xff] %vm317, 0.0
        %324 = vst.msk [vmem:[#allocation2 + $0x28] sm:$0x3] %vm320, 0.0
        %325 = vst.msk [vmem:[#allocation2 + $0x30] sm:$0xff] %vm317, 0.0
        %326 = vst.msk [vmem:[#allocation2 + $0x38] sm:$0xff] %vm317, 0.0
        %327 = vst.msk [vmem:[#allocation2 + $0x40] sm:$0x3] %vm320, 0.0
        %328 = vst.msk [vmem:[#allocation2 + $0x48] sm:$0xff] %vm317, 0.0
        %329 = vst.msk [vmem:[#allocation2 + $0x50] sm:$0xff] %vm317, 0.0
        %330 = vst.msk [vmem:[#allocation2 + $0x58] sm:$0x3] %vm320, 0.0
        %331 = vst.msk [vmem:[#allocation2 + $0x60] sm:$0xff] %vm317, 0.0
        %332 = vst.msk [vmem:[#allocation2 + $0x68] sm:$0xff] %vm317, 0.0
        %333 = vst.msk [vmem:[#allocation2 + $0x70] sm:$0x3] %vm320, 0.0
        %334 = vst.msk [vmem:[#allocation2 + $0x78] sm:$0xff] %vm317, 0.0
        %335 = vst.msk [vmem:[#allocation2 + $0x80] sm:$0xff] %vm317, 0.0
        %336 = vst.msk [vmem:[#allocation2 + $0x88] sm:$0x3] %vm320, 0.0
        %337 = vst.msk [vmem:[#allocation2 + $0x90] sm:$0xff] %vm317, 0.0
        %338 = vst.msk [vmem:[#allocation2 + $0x98] sm:$0xff] %vm317, 0.0
        %339 = vst.msk [vmem:[#allocation2 + $0xa0] sm:$0x3] %vm320, 0.0
        %340 = vst.msk [vmem:[#allocation2 + $0xa8] sm:$0xff] %vm317, 0.0
        %341 = vst.msk [vmem:[#allocation2 + $0xb0] sm:$0xff] %vm317, 0.0
        %342 = vst.msk [vmem:[#allocation2 + $0xb8] sm:$0x3] %vm320, 0.0
        %343 = vst.msk [vmem:[#allocation2 + $0xc0] sm:$0xff] %vm317, 0.0
        %344 = vst.msk [vmem:[#allocation2 + $0xc8] sm:$0xff] %vm317, 0.0
        %345 = vst.msk [vmem:[#allocation2 + $0xd0] sm:$0x3] %vm320, 0.0
        %346 = vst.msk [vmem:[#allocation2 + $0xd8] sm:$0xff] %vm317, 0.0
        %347 = vst.msk [vmem:[#allocation2 + $0xe0] sm:$0xff] %vm317, 0.0
        %348 = vst.msk [vmem:[#allocation2 + $0xe8] sm:$0x3] %vm320, 0.0
        %349 = vst.msk [vmem:[#allocation2 + $0xf0] sm:$0xff] %vm317, 0.0
        %350 = vst.msk [vmem:[#allocation2 + $0xf8] sm:$0xff] %vm317, 0.0
        %351 = vst.msk [vmem:[#allocation2 + $0x100] sm:$0x3] %vm320, 0.0
        %352 = vst.msk [vmem:[#allocation2 + $0x108] sm:$0xff] %vm317, 0.0
        %353 = vst.msk [vmem:[#allocation2 + $0x110] sm:$0xff] %vm317, 0.0
        %354 = vst.msk [vmem:[#allocation2 + $0x118] sm:$0x3] %vm320, 0.0
        %355 = vst.msk [vmem:[#allocation2 + $0x120] sm:$0xff] %vm317, 0.0
        %356 = vst.msk [vmem:[#allocation2 + $0x128] sm:$0xff] %vm317, 0.0
        %357 = vst.msk [vmem:[#allocation2 + $0x130] sm:$0x3] %vm320, 0.0
        %358 = vst.msk [vmem:[#allocation2 + $0x138] sm:$0xff] %vm317, 0.0
        %359 = vst.msk [vmem:[#allocation2 + $0x140] sm:$0xff] %vm317, 0.0
        %360 = vst.msk [vmem:[#allocation2 + $0x148] sm:$0x3] %vm320, 0.0
        %361 = vst.msk [vmem:[#allocation2 + $0x150] sm:$0xff] %vm317, 0.0
        %362 = vst.msk [vmem:[#allocation2 + $0x158] sm:$0xff] %vm317, 0.0
        %363 = vst.msk [vmem:[#allocation2 + $0x160] sm:$0x3] %vm320, 0.0
        %364 = vst.msk [vmem:[#allocation2 + $0x168] sm:$0xff] %vm317, 0.0
        %365 = vst.msk [vmem:[#allocation2 + $0x170] sm:$0xff] %vm317, 0.0
        %366 = vst.msk [vmem:[#allocation2 + $0x178] sm:$0x3] %vm320, 0.0
        %367 = vst.msk [vmem:[#allocation2 + $0x180] sm:$0xff] %vm317, 0.0
        %368 = vst.msk [vmem:[#allocation2 + $0x188] sm:$0xff] %vm317, 0.0
        %369 = vst.msk [vmem:[#allocation2 + $0x190] sm:$0x3] %vm320, 0.0
        %370 = vst.msk [vmem:[#allocation2 + $0x198] sm:$0xff] %vm317, 0.0
        %371 = vst.msk [vmem:[#allocation2 + $0x1a0] sm:$0xff] %vm317, 0.0
        %372 = vst.msk [vmem:[#allocation2 + $0x1a8] sm:$0x3] %vm320, 0.0
        %v373 = vld [vmem:[%s311] sm:$0xff]
        %v374 = vld [vmem:[%s311 + $0x8] sm:$0xff]
        %v375 = vld [vmem:[%s311 + $0x10] sm:$0xff]
        %v376 = vld [vmem:[%s311 + $0x18] sm:$0xff]
        %v377 = vld [vmem:[%s311 + $0x20] sm:$0xff]
        %v378 = vld [vmem:[%s311 + $0x28] sm:$0xff]
        %v379 = vld [vmem:[%s311 + $0x30] sm:$0xff]
        %v380 = vld [vmem:[%s311 + $0x38] sm:$0xff]
        %v381 = vld [vmem:[%s311 + $0x40] sm:$0xff]
        %v382 = vld [vmem:[%s311 + $0x48] sm:$0xff]
        %v383 = vld [vmem:[%s311 + $0x50] sm:$0xff]
        %v384 = vld [vmem:[%s311 + $0x58] sm:$0xff]
        %v385 = vld [vmem:[%s311 + $0x60] sm:$0xff]
        %v386 = vld [vmem:[%s311 + $0x68] sm:$0xff]
        %v387 = vld [vmem:[%s311 + $0x70] sm:$0xff]
        %v388 = vld [vmem:[%s311 + $0x78] sm:$0xff]
        %v389 = vld [vmem:[%s311 + $0x80] sm:$0xff]
        %v390 = vld [vmem:[%s311 + $0x88] sm:$0xff]
        %v391 = vld [vmem:[%s311 + $0x90] sm:$0xff]
        %v392 = vld [vmem:[%s311 + $0x98] sm:$0xff]
        %v393 = vld [vmem:[%s311 + $0xa0] sm:$0xff]
        %v394 = vld [vmem:[%s311 + $0xa8] sm:$0xff]
        %v395 = vld [vmem:[%s311 + $0xb0] sm:$0xff]
        %v396 = vld [vmem:[%s311 + $0xb8] sm:$0xff]
        %v397 = vld [vmem:[%s311 + $0xc0] sm:$0xff]
        %v398 = vld [vmem:[%s311 + $0xc8] sm:$0xff]
        %v399 = vld [vmem:[%s311 + $0xd0] sm:$0xff]
        %v400 = vld [vmem:[%s311 + $0xd8] sm:$0xff]
        %v401 = vld [vmem:[%s311 + $0xe0] sm:$0xff]
        %v402 = vld [vmem:[%s311 + $0xe8] sm:$0xff]
        %v403 = vld [vmem:[%s311 + $0xf0] sm:$0xff]
        %v404 = vld [vmem:[%s311 + $0xf8] sm:$0xff]
        %s405 = scalar_lea.vmem [#allocation2], 24
        %406 = vst.msk [vmem:[%s405 + $0x1] sm:$0xff] %vm317, %v373
        %407 = vst.msk [vmem:[%s405 + $0x9] sm:$0xff] %vm317, %v374
        %408 = vst.msk [vmem:[%s405 + $0x19] sm:$0xff] %vm317, %v375
        %409 = vst.msk [vmem:[%s405 + $0x21] sm:$0xff] %vm317, %v376
        %410 = vst.msk [vmem:[%s405 + $0x31] sm:$0xff] %vm317, %v377
        %411 = vst.msk [vmem:[%s405 + $0x39] sm:$0xff] %vm317, %v378
        %412 = vst.msk [vmem:[%s405 + $0x49] sm:$0xff] %vm317, %v379
        %413 = vst.msk [vmem:[%s405 + $0x51] sm:$0xff] %vm317, %v380
        %414 = vst.msk [vmem:[%s405 + $0x61] sm:$0xff] %vm317, %v381
        %415 = vst.msk [vmem:[%s405 + $0x69] sm:$0xff] %vm317, %v382
        %416 = vst.msk [vmem:[%s405 + $0x79] sm:$0xff] %vm317, %v383
        %417 = vst.msk [vmem:[%s405 + $0x81] sm:$0xff] %vm317, %v384
        %418 = vst.msk [vmem:[%s405 + $0x91] sm:$0xff] %vm317, %v385
        %419 = vst.msk [vmem:[%s405 + $0x99] sm:$0xff] %vm317, %v386
        %420 = vst.msk [vmem:[%s405 + $0xa9] sm:$0xff] %vm317, %v387
        %421 = vst.msk [vmem:[%s405 + $0xb1] sm:$0xff] %vm317, %v388
        %422 = vst.msk [vmem:[%s405 + $0xc1] sm:$0xff] %vm317, %v389
        %423 = vst.msk [vmem:[%s405 + $0xc9] sm:$0xff] %vm317, %v390
        %424 = vst.msk [vmem:[%s405 + $0xd9] sm:$0xff] %vm317, %v391
        %425 = vst.msk [vmem:[%s405 + $0xe1] sm:$0xff] %vm317, %v392
        %426 = vst.msk [vmem:[%s405 + $0xf1] sm:$0xff] %vm317, %v393
        %427 = vst.msk [vmem:[%s405 + $0xf9] sm:$0xff] %vm317, %v394
        %428 = vst.msk [vmem:[%s405 + $0x109] sm:$0xff] %vm317, %v395
        %429 = vst.msk [vmem:[%s405 + $0x111] sm:$0xff] %vm317, %v396
        %430 = vst.msk [vmem:[%s405 + $0x121] sm:$0xff] %vm317, %v397
        %431 = vst.msk [vmem:[%s405 + $0x129] sm:$0xff] %vm317, %v398
        %432 = vst.msk [vmem:[%s405 + $0x139] sm:$0xff] %vm317, %v399
        %433 = vst.msk [vmem:[%s405 + $0x141] sm:$0xff] %vm317, %v400
        %434 = vst.msk [vmem:[%s405 + $0x151] sm:$0xff] %vm317, %v401
        %435 = vst.msk [vmem:[%s405 + $0x159] sm:$0xff] %vm317, %v402
        %436 = vst.msk [vmem:[%s405 + $0x169] sm:$0xff] %vm317, %v403
        %437 = vst.msk [vmem:[%s405 + $0x171] sm:$0xff] %vm317, %v404
        %v438 = vld [vmem:[#allocation2] sm:$0xff]
        %v439 = vld [vmem:[#allocation2 + $0x8] sm:$0xff]
        %v440 = vld [vmem:[#allocation2 + $0x18] sm:$0xff]
        %v441 = vld [vmem:[#allocation2 + $0x20] sm:$0xff]
        %v442 = vld [vmem:[#allocation2 + $0x30] sm:$0xff]
        %v443 = vld [vmem:[#allocation2 + $0x38] sm:$0xff]
        %v444 = vld [vmem:[#allocation2 + $0x48] sm:$0xff]
        %v445 = vld [vmem:[#allocation2 + $0x50] sm:$0xff]
        %v446 = vld [vmem:[#allocation2 + $0x60] sm:$0xff]
        %v447 = vld [vmem:[#allocation2 + $0x68] sm:$0xff]
        %v448 = vld [vmem:[#allocation2 + $0x78] sm:$0xff]
        %v449 = vld [vmem:[#allocation2 + $0x80] sm:$0xff]
        %v450 = vld [vmem:[#allocation2 + $0x90] sm:$0xff]
        %v451 = vld [vmem:[#allocation2 + $0x98] sm:$0xff]
        %v452 = vld [vmem:[#allocation2 + $0xa8] sm:$0xff]
        %v453 = vld [vmem:[#allocation2 + $0xb0] sm:$0xff]
        %v454 = vld [vmem:[#allocation2 + $0xc0] sm:$0xff]
        %v455 = vld [vmem:[#allocation2 + $0xc8] sm:$0xff]
        %v456 = vld [vmem:[#allocation2 + $0xd8] sm:$0xff]
        %v457 = vld [vmem:[#allocation2 + $0xe0] sm:$0xff]
        %v458 = vld [vmem:[#allocation2 + $0xf0] sm:$0xff]
        %v459 = vld [vmem:[#allocation2 + $0xf8] sm:$0xff]
        %v460 = vld [vmem:[#allocation2 + $0x108] sm:$0xff]
        %v461 = vld [vmem:[#allocation2 + $0x110] sm:$0xff]
        %v462 = vld [vmem:[#allocation2 + $0x120] sm:$0xff]
        %v463 = vld [vmem:[#allocation2 + $0x128] sm:$0xff]
        %v464 = vld [vmem:[#allocation2 + $0x138] sm:$0xff]
        %v465 = vld [vmem:[#allocation2 + $0x140] sm:$0xff]
        %v466 = vld [vmem:[#allocation2 + $0x150] sm:$0xff]
        %v467 = vld [vmem:[#allocation2 + $0x158] sm:$0xff]
        %v468 = vld [vmem:[#allocation2 + $0x168] sm:$0xff]
        %v469 = vld [vmem:[#allocation2 + $0x170] sm:$0xff]
        %470 = vst.msk [vmem:[#allocation3] sm:$0xff] %vm317, %v438
        %471 = vst.msk [vmem:[#allocation3 + $0x8] sm:$0xff] %vm317, %v439
        %472 = vst.msk [vmem:[#allocation3 + $0x10] sm:$0xff] %vm317, %v440
        %473 = vst.msk [vmem:[#allocation3 + $0x18] sm:$0xff] %vm317, %v441
        %474 = vst.msk [vmem:[#allocation3 + $0x20] sm:$0xff] %vm317, %v442
        %475 = vst.msk [vmem:[#allocation3 + $0x28] sm:$0xff] %vm317, %v443
        %476 = vst.msk [vmem:[#allocation3 + $0x30] sm:$0xff] %vm317, %v444
        %477 = vst.msk [vmem:[#allocation3 + $0x38] sm:$0xff] %vm317, %v445
        %478 = vst.msk [vmem:[#allocation3 + $0x40] sm:$0xff] %vm317, %v446
        %479 = vst.msk [vmem:[#allocation3 + $0x48] sm:$0xff] %vm317, %v447
        %480 = vst.msk [vmem:[#allocation3 + $0x50] sm:$0xff] %vm317, %v448
        %481 = vst.msk [vmem:[#allocation3 + $0x58] sm:$0xff] %vm317, %v449
        %482 = vst.msk [vmem:[#allocation3 + $0x60] sm:$0xff] %vm317, %v450
        %483 = vst.msk [vmem:[#allocation3 + $0x68] sm:$0xff] %vm317, %v451
        %484 = vst.msk [vmem:[#allocation3 + $0x70] sm:$0xff] %vm317, %v452
        %485 = vst.msk [vmem:[#allocation3 + $0x78] sm:$0xff] %vm317, %v453
        %486 = vst.msk [vmem:[#allocation3 + $0x80] sm:$0xff] %vm317, %v454
        %487 = vst.msk [vmem:[#allocation3 + $0x88] sm:$0xff] %vm317, %v455
        %488 = vst.msk [vmem:[#allocation3 + $0x90] sm:$0xff] %vm317, %v456
        %489 = vst.msk [vmem:[#allocation3 + $0x98] sm:$0xff] %vm317, %v457
        %490 = vst.msk [vmem:[#allocation3 + $0xa0] sm:$0xff] %vm317, %v458
        %491 = vst.msk [vmem:[#allocation3 + $0xa8] sm:$0xff] %vm317, %v459
        %492 = vst.msk [vmem:[#allocation3 + $0xb0] sm:$0xff] %vm317, %v460
        %493 = vst.msk [vmem:[#allocation3 + $0xb8] sm:$0xff] %vm317, %v461
        %494 = vst.msk [vmem:[#allocation3 + $0xc0] sm:$0xff] %vm317, %v462
        %495 = vst.msk [vmem:[#allocation3 + $0xc8] sm:$0xff] %vm317, %v463
        %496 = vst.msk [vmem:[#allocation3 + $0xd0] sm:$0xff] %vm317, %v464
        %497 = vst.msk [vmem:[#allocation3 + $0xd8] sm:$0xff] %vm317, %v465
        %498 = vst.msk [vmem:[#allocation3 + $0xe0] sm:$0xff] %vm317, %v466
        %499 = vst.msk [vmem:[#allocation3 + $0xe8] sm:$0xff] %vm317, %v467
        %500 = vst.msk [vmem:[#allocation3 + $0xf0] sm:$0xff] %vm317, %v468
        %501 = vst.msk [vmem:[#allocation3 + $0xf8] sm:$0xff] %vm317, %v469
        %v502 = vld [vmem:[#allocation2 + $0x1] sm:$0xff]
        %v503 = vld [vmem:[#allocation2 + $0x9] sm:$0xff]
        %v504 = vld [vmem:[#allocation2 + $0x19] sm:$0xff]
        %v505 = vld [vmem:[#allocation2 + $0x21] sm:$0xff]
        %v506 = vld [vmem:[#allocation2 + $0x31] sm:$0xff]
        %v507 = vld [vmem:[#allocation2 + $0x39] sm:$0xff]
        %v508 = vld [vmem:[#allocation2 + $0x49] sm:$0xff]
        %v509 = vld [vmem:[#allocation2 + $0x51] sm:$0xff]
        %v510 = vld [vmem:[#allocation2 + $0x61] sm:$0xff]
        %v511 = vld [vmem:[#allocation2 + $0x69] sm:$0xff]
        %v512 = vld [vmem:[#allocation2 + $0x79] sm:$0xff]
        %v513 = vld [vmem:[#allocation2 + $0x81] sm:$0xff]
        %v514 = vld [vmem:[#allocation2 + $0x91] sm:$0xff]
        %v515 = vld [vmem:[#allocation2 + $0x99] sm:$0xff]
        %v516 = vld [vmem:[#allocation2 + $0xa9] sm:$0xff]
        %v517 = vld [vmem:[#allocation2 + $0xb1] sm:$0xff]
        %v518 = vld [vmem:[#allocation2 + $0xc1] sm:$0xff]
        %v519 = vld [vmem:[#allocation2 + $0xc9] sm:$0xff]
        %v520 = vld [vmem:[#allocation2 + $0xd9] sm:$0xff]
        %v521 = vld [vmem:[#allocation2 + $0xe1] sm:$0xff]
        %v522 = vld [vmem:[#allocation2 + $0xf1] sm:$0xff]
        %v523 = vld [vmem:[#allocation2 + $0xf9] sm:$0xff]
        %v524 = vld [vmem:[#allocation2 + $0x109] sm:$0xff]
        %v525 = vld [vmem:[#allocation2 + $0x111] sm:$0xff]
        %v526 = vld [vmem:[#allocation2 + $0x121] sm:$0xff]
        %v527 = vld [vmem:[#allocation2 + $0x129] sm:$0xff]
        %v528 = vld [vmem:[#allocation2 + $0x139] sm:$0xff]
        %v529 = vld [vmem:[#allocation2 + $0x141] sm:$0xff]
        %v530 = vld [vmem:[#allocation2 + $0x151] sm:$0xff]
        %v531 = vld [vmem:[#allocation2 + $0x159] sm:$0xff]
        %v532 = vld [vmem:[#allocation2 + $0x169] sm:$0xff]
        %v533 = vld [vmem:[#allocation2 + $0x171] sm:$0xff]
        %566 = vrot.lane.b32.xlu0 %v502, 3
        %v567 = vpop.permute.xlu0 %566
        %568 = vrot.lane.b32.xlu0 %v503, 3
        %v569 = vpop.permute.xlu0 %568
        %570 = vrot.lane.b32.xlu0 %v504, 3
        %v571 = vpop.permute.xlu0 %570
        %572 = vrot.lane.b32.xlu0 %v505, 3
        %v573 = vpop.permute.xlu0 %572
        %574 = vrot.lane.b32.xlu0 %v506, 3
        %v575 = vpop.permute.xlu0 %574
        %576 = vrot.lane.b32.xlu0 %v507, 3
        %v577 = vpop.permute.xlu0 %576
        %578 = vrot.lane.b32.xlu0 %v508, 3
        %v579 = vpop.permute.xlu0 %578
        %580 = vrot.lane.b32.xlu0 %v509, 3
        %v581 = vpop.permute.xlu0 %580
        %582 = vrot.lane.b32.xlu0 %v510, 3
        %v583 = vpop.permute.xlu0 %582
        %584 = vrot.lane.b32.xlu0 %v511, 3
        %v585 = vpop.permute.xlu0 %584
        %586 = vrot.lane.b32.xlu0 %v512, 3
        %v587 = vpop.permute.xlu0 %586
        %588 = vrot.lane.b32.xlu0 %v513, 3
        %v589 = vpop.permute.xlu0 %588
        %590 = vrot.lane.b32.xlu0 %v514, 3
        %v591 = vpop.permute.xlu0 %590
        %592 = vrot.lane.b32.xlu0 %v515, 3
        %v593 = vpop.permute.xlu0 %592
        %594 = vrot.lane.b32.xlu0 %v516, 3
        %v595 = vpop.permute.xlu0 %594
        %596 = vrot.lane.b32.xlu0 %v517, 3
        %v597 = vpop.permute.xlu0 %596
        %598 = vrot.lane.b32.xlu0 %v518, 3
        %v599 = vpop.permute.xlu0 %598
        %600 = vrot.lane.b32.xlu0 %v519, 3
        %v601 = vpop.permute.xlu0 %600
        %602 = vrot.lane.b32.xlu0 %v520, 3
        %v603 = vpop.permute.xlu0 %602
        %604 = vrot.lane.b32.xlu0 %v521, 3
        %v605 = vpop.permute.xlu0 %604
        %606 = vrot.lane.b32.xlu0 %v522, 3
        %v607 = vpop.permute.xlu0 %606
        %608 = vrot.lane.b32.xlu0 %v523, 3
        %v609 = vpop.permute.xlu0 %608
        %610 = vrot.lane.b32.xlu0 %v524, 3
        %v611 = vpop.permute.xlu0 %610
        %612 = vrot.lane.b32.xlu0 %v525, 3
        %v613 = vpop.permute.xlu0 %612
        %614 = vrot.lane.b32.xlu0 %v526, 3
        %v615 = vpop.permute.xlu0 %614
        %616 = vrot.lane.b32.xlu0 %v527, 3
        %v617 = vpop.permute.xlu0 %616
        %618 = vrot.lane.b32.xlu0 %v528, 3
        %v619 = vpop.permute.xlu0 %618
        %620 = vrot.lane.b32.xlu0 %v529, 3
        %v621 = vpop.permute.xlu0 %620
        %622 = vrot.lane.b32.xlu0 %v530, 3
        %v623 = vpop.permute.xlu0 %622
        %624 = vrot.lane.b32.xlu0 %v531, 3
        %v625 = vpop.permute.xlu0 %624
        %626 = vrot.lane.b32.xlu0 %v532, 3
        %v627 = vpop.permute.xlu0 %626
        %628 = vrot.lane.b32.xlu0 %v533, 3
        %v629 = vpop.permute.xlu0 %628
        %vm662 = vcmask 48152
        %663 = vst.msk [vmem:[#allocation3] sm:$0xff] %vm662, %v567
        %664 = vst.msk [vmem:[#allocation3 + $0x8] sm:$0xff] %vm662, %v569
        %665 = vst.msk [vmem:[#allocation3 + $0x10] sm:$0xff] %vm662, %v571
        %666 = vst.msk [vmem:[#allocation3 + $0x18] sm:$0xff] %vm662, %v573
        %667 = vst.msk [vmem:[#allocation3 + $0x20] sm:$0xff] %vm662, %v575
        %668 = vst.msk [vmem:[#allocation3 + $0x28] sm:$0xff] %vm662, %v577
        %669 = vst.msk [vmem:[#allocation3 + $0x30] sm:$0xff] %vm662, %v579
        %670 = vst.msk [vmem:[#allocation3 + $0x38] sm:$0xff] %vm662, %v581
        %671 = vst.msk [vmem:[#allocation3 + $0x40] sm:$0xff] %vm662, %v583
        %672 = vst.msk [vmem:[#allocation3 + $0x48] sm:$0xff] %vm662, %v585
        %673 = vst.msk [vmem:[#allocation3 + $0x50] sm:$0xff] %vm662, %v587
        %674 = vst.msk [vmem:[#allocation3 + $0x58] sm:$0xff] %vm662, %v589
        %675 = vst.msk [vmem:[#allocation3 + $0x60] sm:$0xff] %vm662, %v591
        %676 = vst.msk [vmem:[#allocation3 + $0x68] sm:$0xff] %vm662, %v593
        %677 = vst.msk [vmem:[#allocation3 + $0x70] sm:$0xff] %vm662, %v595
        %678 = vst.msk [vmem:[#allocation3 + $0x78] sm:$0xff] %vm662, %v597
        %679 = vst.msk [vmem:[#allocation3 + $0x80] sm:$0xff] %vm662, %v599
        %680 = vst.msk [vmem:[#allocation3 + $0x88] sm:$0xff] %vm662, %v601
        %681 = vst.msk [vmem:[#allocation3 + $0x90] sm:$0xff] %vm662, %v603
        %682 = vst.msk [vmem:[#allocation3 + $0x98] sm:$0xff] %vm662, %v605
        %683 = vst.msk [vmem:[#allocation3 + $0xa0] sm:$0xff] %vm662, %v607
        %684 = vst.msk [vmem:[#allocation3 + $0xa8] sm:$0xff] %vm662, %v609
        %685 = vst.msk [vmem:[#allocation3 + $0xb0] sm:$0xff] %vm662, %v611
        %686 = vst.msk [vmem:[#allocation3 + $0xb8] sm:$0xff] %vm662, %v613
        %687 = vst.msk [vmem:[#allocation3 + $0xc0] sm:$0xff] %vm662, %v615
        %688 = vst.msk [vmem:[#allocation3 + $0xc8] sm:$0xff] %vm662, %v617
        %689 = vst.msk [vmem:[#allocation3 + $0xd0] sm:$0xff] %vm662, %v619
        %690 = vst.msk [vmem:[#allocation3 + $0xd8] sm:$0xff] %vm662, %v621
        %691 = vst.msk [vmem:[#allocation3 + $0xe0] sm:$0xff] %vm662, %v623
        %692 = vst.msk [vmem:[#allocation3 + $0xe8] sm:$0xff] %vm662, %v625
        %693 = vst.msk [vmem:[#allocation3 + $0xf0] sm:$0xff] %vm662, %v627
        %694 = vst.msk [vmem:[#allocation3 + $0xf8] sm:$0xff] %vm662, %v629
        %v695 = vld [vmem:[#allocation2 + $0x2] sm:$0xff]
        %v696 = vld [vmem:[#allocation2 + $0xa] sm:$0xff]
        %v697 = vld [vmem:[#allocation2 + $0x1a] sm:$0xff]
        %v698 = vld [vmem:[#allocation2 + $0x22] sm:$0xff]
        %v699 = vld [vmem:[#allocation2 + $0x32] sm:$0xff]
        %v700 = vld [vmem:[#allocation2 + $0x3a] sm:$0xff]
        %v701 = vld [vmem:[#allocation2 + $0x4a] sm:$0xff]
        %v702 = vld [vmem:[#allocation2 + $0x52] sm:$0xff]
        %v703 = vld [vmem:[#allocation2 + $0x62] sm:$0xff]
        %v704 = vld [vmem:[#allocation2 + $0x6a] sm:$0xff]
        %v705 = vld [vmem:[#allocation2 + $0x7a] sm:$0xff]
        %v706 = vld [vmem:[#allocation2 + $0x82] sm:$0xff]
        %v707 = vld [vmem:[#allocation2 + $0x92] sm:$0xff]
        %v708 = vld [vmem:[#allocation2 + $0x9a] sm:$0xff]
        %v709 = vld [vmem:[#allocation2 + $0xaa] sm:$0xff]
        %v710 = vld [vmem:[#allocation2 + $0xb2] sm:$0xff]
        %v711 = vld [vmem:[#allocation2 + $0xc2] sm:$0xff]
        %v712 = vld [vmem:[#allocation2 + $0xca] sm:$0xff]
        %v713 = vld [vmem:[#allocation2 + $0xda] sm:$0xff]
        %v714 = vld [vmem:[#allocation2 + $0xe2] sm:$0xff]
        %v715 = vld [vmem:[#allocation2 + $0xf2] sm:$0xff]
        %v716 = vld [vmem:[#allocation2 + $0xfa] sm:$0xff]
        %v717 = vld [vmem:[#allocation2 + $0x10a] sm:$0xff]
        %v718 = vld [vmem:[#allocation2 + $0x112] sm:$0xff]
        %v719 = vld [vmem:[#allocation2 + $0x122] sm:$0xff]
        %v720 = vld [vmem:[#allocation2 + $0x12a] sm:$0xff]
        %v721 = vld [vmem:[#allocation2 + $0x13a] sm:$0xff]
        %v722 = vld [vmem:[#allocation2 + $0x142] sm:$0xff]
        %v723 = vld [vmem:[#allocation2 + $0x152] sm:$0xff]
        %v724 = vld [vmem:[#allocation2 + $0x15a] sm:$0xff]
        %v725 = vld [vmem:[#allocation2 + $0x16a] sm:$0xff]
        %v726 = vld [vmem:[#allocation2 + $0x172] sm:$0xff]
        %759 = vrot.lane.b32.xlu0 %v695, 6
        %v760 = vpop.permute.xlu0 %759
        %761 = vrot.lane.b32.xlu0 %v696, 6
        %v762 = vpop.permute.xlu0 %761
        %763 = vrot.lane.b32.xlu0 %v697, 6
        %v764 = vpop.permute.xlu0 %763
        %765 = vrot.lane.b32.xlu0 %v698, 6
        %v766 = vpop.permute.xlu0 %765
        %767 = vrot.lane.b32.xlu0 %v699, 6
        %v768 = vpop.permute.xlu0 %767
        %769 = vrot.lane.b32.xlu0 %v700, 6
        %v770 = vpop.permute.xlu0 %769
        %771 = vrot.lane.b32.xlu0 %v701, 6
        %v772 = vpop.permute.xlu0 %771
        %773 = vrot.lane.b32.xlu0 %v702, 6
        %v774 = vpop.permute.xlu0 %773
        %775 = vrot.lane.b32.xlu0 %v703, 6
        %v776 = vpop.permute.xlu0 %775
        %777 = vrot.lane.b32.xlu0 %v704, 6
        %v778 = vpop.permute.xlu0 %777
        %779 = vrot.lane.b32.xlu0 %v705, 6
        %v780 = vpop.permute.xlu0 %779
        %781 = vrot.lane.b32.xlu0 %v706, 6
        %v782 = vpop.permute.xlu0 %781
        %783 = vrot.lane.b32.xlu0 %v707, 6
        %v784 = vpop.permute.xlu0 %783
        %785 = vrot.lane.b32.xlu0 %v708, 6
        %v786 = vpop.permute.xlu0 %785
        %787 = vrot.lane.b32.xlu0 %v709, 6
        %v788 = vpop.permute.xlu0 %787
        %789 = vrot.lane.b32.xlu0 %v710, 6
        %v790 = vpop.permute.xlu0 %789
        %791 = vrot.lane.b32.xlu0 %v711, 6
        %v792 = vpop.permute.xlu0 %791
        %793 = vrot.lane.b32.xlu0 %v712, 6
        %v794 = vpop.permute.xlu0 %793
        %795 = vrot.lane.b32.xlu0 %v713, 6
        %v796 = vpop.permute.xlu0 %795
        %797 = vrot.lane.b32.xlu0 %v714, 6
        %v798 = vpop.permute.xlu0 %797
        %799 = vrot.lane.b32.xlu0 %v715, 6
        %v800 = vpop.permute.xlu0 %799
        %801 = vrot.lane.b32.xlu0 %v716, 6
        %v802 = vpop.permute.xlu0 %801
        %803 = vrot.lane.b32.xlu0 %v717, 6
        %v804 = vpop.permute.xlu0 %803
        %805 = vrot.lane.b32.xlu0 %v718, 6
        %v806 = vpop.permute.xlu0 %805
        %807 = vrot.lane.b32.xlu0 %v719, 6
        %v808 = vpop.permute.xlu0 %807
        %809 = vrot.lane.b32.xlu0 %v720, 6
        %v810 = vpop.permute.xlu0 %809
        %811 = vrot.lane.b32.xlu0 %v721, 6
        %v812 = vpop.permute.xlu0 %811
        %813 = vrot.lane.b32.xlu0 %v722, 6
        %v814 = vpop.permute.xlu0 %813
        %815 = vrot.lane.b32.xlu0 %v723, 6
        %v816 = vpop.permute.xlu0 %815
        %817 = vrot.lane.b32.xlu0 %v724, 6
        %v818 = vpop.permute.xlu0 %817
        %819 = vrot.lane.b32.xlu0 %v725, 6
        %v820 = vpop.permute.xlu0 %819
        %821 = vrot.lane.b32.xlu0 %v726, 6
        %v822 = vpop.permute.xlu0 %821
        %vm855 = vcmask 72752
        %856 = vst.msk [vmem:[#allocation3] sm:$0xff] %vm855, %v760
        %857 = vst.msk [vmem:[#allocation3 + $0x8] sm:$0xff] %vm855, %v762
        %858 = vst.msk [vmem:[#allocation3 + $0x10] sm:$0xff] %vm855, %v764
        %859 = vst.msk [vmem:[#allocation3 + $0x18] sm:$0xff] %vm855, %v766
        %860 = vst.msk [vmem:[#allocation3 + $0x20] sm:$0xff] %vm855, %v768
        %861 = vst.msk [vmem:[#allocation3 + $0x28] sm:$0xff] %vm855, %v770
        %862 = vst.msk [vmem:[#allocation3 + $0x30] sm:$0xff] %vm855, %v772
        %863 = vst.msk [vmem:[#allocation3 + $0x38] sm:$0xff] %vm855, %v774
        %864 = vst.msk [vmem:[#allocation3 + $0x40] sm:$0xff] %vm855, %v776
        %865 = vst.msk [vmem:[#allocation3 + $0x48] sm:$0xff] %vm855, %v778
        %866 = vst.msk [vmem:[#allocation3 + $0x50] sm:$0xff] %vm855, %v780
        %867 = vst.msk [vmem:[#allocation3 + $0x58] sm:$0xff] %vm855, %v782
        %868 = vst.msk [vmem:[#allocation3 + $0x60] sm:$0xff] %vm855, %v784
        %869 = vst.msk [vmem:[#allocation3 + $0x68] sm:$0xff] %vm855, %v786
        %870 = vst.msk [vmem:[#allocation3 + $0x70] sm:$0xff] %vm855, %v788
        %871 = vst.msk [vmem:[#allocation3 + $0x78] sm:$0xff] %vm855, %v790
        %872 = vst.msk [vmem:[#allocation3 + $0x80] sm:$0xff] %vm855, %v792
        %873 = vst.msk [vmem:[#allocation3 + $0x88] sm:$0xff] %vm855, %v794
        %874 = vst.msk [vmem:[#allocation3 + $0x90] sm:$0xff] %vm855, %v796
        %875 = vst.msk [vmem:[#allocation3 + $0x98] sm:$0xff] %vm855, %v798
        %876 = vst.msk [vmem:[#allocation3 + $0xa0] sm:$0xff] %vm855, %v800
        %877 = vst.msk [vmem:[#allocation3 + $0xa8] sm:$0xff] %vm855, %v802
        %878 = vst.msk [vmem:[#allocation3 + $0xb0] sm:$0xff] %vm855, %v804
        %879 = vst.msk [vmem:[#allocation3 + $0xb8] sm:$0xff] %vm855, %v806
        %880 = vst.msk [vmem:[#allocation3 + $0xc0] sm:$0xff] %vm855, %v808
        %881 = vst.msk [vmem:[#allocation3 + $0xc8] sm:$0xff] %vm855, %v810
        %882 = vst.msk [vmem:[#allocation3 + $0xd0] sm:$0xff] %vm855, %v812
        %883 = vst.msk [vmem:[#allocation3 + $0xd8] sm:$0xff] %vm855, %v814
        %884 = vst.msk [vmem:[#allocation3 + $0xe0] sm:$0xff] %vm855, %v816
        %885 = vst.msk [vmem:[#allocation3 + $0xe8] sm:$0xff] %vm855, %v818
        %886 = vst.msk [vmem:[#allocation3 + $0xf0] sm:$0xff] %vm855, %v820
        %887 = vst.msk [vmem:[#allocation3 + $0xf8] sm:$0xff] %vm855, %v822
        %v888 = vld [vmem:[%s405] sm:$0xff]
        %v889 = vld [vmem:[%s405 + $0x8] sm:$0xff]
        %v890 = vld [vmem:[%s405 + $0x18] sm:$0xff]
        %v891 = vld [vmem:[%s405 + $0x20] sm:$0xff]
        %v892 = vld [vmem:[%s405 + $0x30] sm:$0xff]
        %v893 = vld [vmem:[%s405 + $0x38] sm:$0xff]
        %v894 = vld [vmem:[%s405 + $0x48] sm:$0xff]
        %v895 = vld [vmem:[%s405 + $0x50] sm:$0xff]
        %v896 = vld [vmem:[%s405 + $0x60] sm:$0xff]
        %v897 = vld [vmem:[%s405 + $0x68] sm:$0xff]
        %v898 = vld [vmem:[%s405 + $0x78] sm:$0xff]
        %v899 = vld [vmem:[%s405 + $0x80] sm:$0xff]
        %v900 = vld [vmem:[%s405 + $0x90] sm:$0xff]
        %v901 = vld [vmem:[%s405 + $0x98] sm:$0xff]
        %v902 = vld [vmem:[%s405 + $0xa8] sm:$0xff]
        %v903 = vld [vmem:[%s405 + $0xb0] sm:$0xff]
        %v904 = vld [vmem:[%s405 + $0xc0] sm:$0xff]
        %v905 = vld [vmem:[%s405 + $0xc8] sm:$0xff]
        %v906 = vld [vmem:[%s405 + $0xd8] sm:$0xff]
        %v907 = vld [vmem:[%s405 + $0xe0] sm:$0xff]
        %v908 = vld [vmem:[%s405 + $0xf0] sm:$0xff]
        %v909 = vld [vmem:[%s405 + $0xf8] sm:$0xff]
        %v910 = vld [vmem:[%s405 + $0x108] sm:$0xff]
        %v911 = vld [vmem:[%s405 + $0x110] sm:$0xff]
        %v912 = vld [vmem:[%s405 + $0x120] sm:$0xff]
        %v913 = vld [vmem:[%s405 + $0x128] sm:$0xff]
        %v914 = vld [vmem:[%s405 + $0x138] sm:$0xff]
        %v915 = vld [vmem:[%s405 + $0x140] sm:$0xff]
        %v916 = vld [vmem:[%s405 + $0x150] sm:$0xff]
        %v917 = vld [vmem:[%s405 + $0x158] sm:$0xff]
        %v918 = vld [vmem:[%s405 + $0x168] sm:$0xff]
        %v919 = vld [vmem:[%s405 + $0x170] sm:$0xff]
        %952 = vrot.lane.b32.xlu0 %v888, 9
        %v953 = vpop.permute.xlu0 %952
        %954 = vrot.lane.b32.xlu0 %v889, 9
        %v955 = vpop.permute.xlu0 %954
        %956 = vrot.lane.b32.xlu0 %v890, 9
        %v957 = vpop.permute.xlu0 %956
        %958 = vrot.lane.b32.xlu0 %v891, 9
        %v959 = vpop.permute.xlu0 %958
        %960 = vrot.lane.b32.xlu0 %v892, 9
        %v961 = vpop.permute.xlu0 %960
        %962 = vrot.lane.b32.xlu0 %v893, 9
        %v963 = vpop.permute.xlu0 %962
        %964 = vrot.lane.b32.xlu0 %v894, 9
        %v965 = vpop.permute.xlu0 %964
        %966 = vrot.lane.b32.xlu0 %v895, 9
        %v967 = vpop.permute.xlu0 %966
        %968 = vrot.lane.b32.xlu0 %v896, 9
        %v969 = vpop.permute.xlu0 %968
        %970 = vrot.lane.b32.xlu0 %v897, 9
        %v971 = vpop.permute.xlu0 %970
        %972 = vrot.lane.b32.xlu0 %v898, 9
        %v973 = vpop.permute.xlu0 %972
        %974 = vrot.lane.b32.xlu0 %v899, 9
        %v975 = vpop.permute.xlu0 %974
        %976 = vrot.lane.b32.xlu0 %v900, 9
        %v977 = vpop.permute.xlu0 %976
        %978 = vrot.lane.b32.xlu0 %v901, 9
        %v979 = vpop.permute.xlu0 %978
        %980 = vrot.lane.b32.xlu0 %v902, 9
        %v981 = vpop.permute.xlu0 %980
        %982 = vrot.lane.b32.xlu0 %v903, 9
        %v983 = vpop.permute.xlu0 %982
        %984 = vrot.lane.b32.xlu0 %v904, 9
        %v985 = vpop.permute.xlu0 %984
        %986 = vrot.lane.b32.xlu0 %v905, 9
        %v987 = vpop.permute.xlu0 %986
        %988 = vrot.lane.b32.xlu0 %v906, 9
        %v989 = vpop.permute.xlu0 %988
        %990 = vrot.lane.b32.xlu0 %v907, 9
        %v991 = vpop.permute.xlu0 %990
        %992 = vrot.lane.b32.xlu0 %v908, 9
        %v993 = vpop.permute.xlu0 %992
        %994 = vrot.lane.b32.xlu0 %v909, 9
        %v995 = vpop.permute.xlu0 %994
        %996 = vrot.lane.b32.xlu0 %v910, 9
        %v997 = vpop.permute.xlu0 %996
        %998 = vrot.lane.b32.xlu0 %v911, 9
        %v999 = vpop.permute.xlu0 %998
        %1000 = vrot.lane.b32.xlu0 %v912, 9
        %v1001 = vpop.permute.xlu0 %1000
        %1002 = vrot.lane.b32.xlu0 %v913, 9
        %v1003 = vpop.permute.xlu0 %1002
        %1004 = vrot.lane.b32.xlu0 %v914, 9
        %v1005 = vpop.permute.xlu0 %1004
        %1006 = vrot.lane.b32.xlu0 %v915, 9
        %v1007 = vpop.permute.xlu0 %1006
        %1008 = vrot.lane.b32.xlu0 %v916, 9
        %v1009 = vpop.permute.xlu0 %1008
        %1010 = vrot.lane.b32.xlu0 %v917, 9
        %v1011 = vpop.permute.xlu0 %1010
        %1012 = vrot.lane.b32.xlu0 %v918, 9
        %v1013 = vpop.permute.xlu0 %1012
        %1014 = vrot.lane.b32.xlu0 %v919, 9
        %v1015 = vpop.permute.xlu0 %1014
        %vm1048 = vcmask 97352
        %1049 = vst.msk [vmem:[#allocation3] sm:$0xff] %vm1048, %v953
        %1050 = vst.msk [vmem:[#allocation3 + $0x8] sm:$0xff] %vm1048, %v955
        %1051 = vst.msk [vmem:[#allocation3 + $0x10] sm:$0xff] %vm1048, %v957
        %1052 = vst.msk [vmem:[#allocation3 + $0x18] sm:$0xff] %vm1048, %v959
        %1053 = vst.msk [vmem:[#allocation3 + $0x20] sm:$0xff] %vm1048, %v961
        %1054 = vst.msk [vmem:[#allocation3 + $0x28] sm:$0xff] %vm1048, %v963
        %1055 = vst.msk [vmem:[#allocation3 + $0x30] sm:$0xff] %vm1048, %v965
        %1056 = vst.msk [vmem:[#allocation3 + $0x38] sm:$0xff] %vm1048, %v967
        %1057 = vst.msk [vmem:[#allocation3 + $0x40] sm:$0xff] %vm1048, %v969
        %1058 = vst.msk [vmem:[#allocation3 + $0x48] sm:$0xff] %vm1048, %v971
        %1059 = vst.msk [vmem:[#allocation3 + $0x50] sm:$0xff] %vm1048, %v973
        %1060 = vst.msk [vmem:[#allocation3 + $0x58] sm:$0xff] %vm1048, %v975
        %1061 = vst.msk [vmem:[#allocation3 + $0x60] sm:$0xff] %vm1048, %v977
        %1062 = vst.msk [vmem:[#allocation3 + $0x68] sm:$0xff] %vm1048, %v979
        %1063 = vst.msk [vmem:[#allocation3 + $0x70] sm:$0xff] %vm1048, %v981
        %1064 = vst.msk [vmem:[#allocation3 + $0x78] sm:$0xff] %vm1048, %v983
        %1065 = vst.msk [vmem:[#allocation3 + $0x80] sm:$0xff] %vm1048, %v985
        %1066 = vst.msk [vmem:[#allocation3 + $0x88] sm:$0xff] %vm1048, %v987
        %1067 = vst.msk [vmem:[#allocation3 + $0x90] sm:$0xff] %vm1048, %v989
        %1068 = vst.msk [vmem:[#allocation3 + $0x98] sm:$0xff] %vm1048, %v991
        %1069 = vst.msk [vmem:[#allocation3 + $0xa0] sm:$0xff] %vm1048, %v993
        %1070 = vst.msk [vmem:[#allocation3 + $0xa8] sm:$0xff] %vm1048, %v995
        %1071 = vst.msk [vmem:[#allocation3 + $0xb0] sm:$0xff] %vm1048, %v997
        %1072 = vst.msk [vmem:[#allocation3 + $0xb8] sm:$0xff] %vm1048, %v999
        %1073 = vst.msk [vmem:[#allocation3 + $0xc0] sm:$0xff] %vm1048, %v1001
        %1074 = vst.msk [vmem:[#allocation3 + $0xc8] sm:$0xff] %vm1048, %v1003
        %1075 = vst.msk [vmem:[#allocation3 + $0xd0] sm:$0xff] %vm1048, %v1005
        %1076 = vst.msk [vmem:[#allocation3 + $0xd8] sm:$0xff] %vm1048, %v1007
        %1077 = vst.msk [vmem:[#allocation3 + $0xe0] sm:$0xff] %vm1048, %v1009
        %1078 = vst.msk [vmem:[#allocation3 + $0xe8] sm:$0xff] %vm1048, %v1011
        %1079 = vst.msk [vmem:[#allocation3 + $0xf0] sm:$0xff] %vm1048, %v1013
        %1080 = vst.msk [vmem:[#allocation3 + $0xf8] sm:$0xff] %vm1048, %v1015
        %v1081 = vld [vmem:[%s405 + $0x1] sm:$0xff]
        %v1082 = vld [vmem:[%s405 + $0x9] sm:$0xff]
        %v1083 = vld [vmem:[%s405 + $0x19] sm:$0xff]
        %v1084 = vld [vmem:[%s405 + $0x21] sm:$0xff]
        %v1085 = vld [vmem:[%s405 + $0x31] sm:$0xff]
        %v1086 = vld [vmem:[%s405 + $0x39] sm:$0xff]
        %v1087 = vld [vmem:[%s405 + $0x49] sm:$0xff]
        %v1088 = vld [vmem:[%s405 + $0x51] sm:$0xff]
        %v1089 = vld [vmem:[%s405 + $0x61] sm:$0xff]
        %v1090 = vld [vmem:[%s405 + $0x69] sm:$0xff]
        %v1091 = vld [vmem:[%s405 + $0x79] sm:$0xff]
        %v1092 = vld [vmem:[%s405 + $0x81] sm:$0xff]
        %v1093 = vld [vmem:[%s405 + $0x91] sm:$0xff]
        %v1094 = vld [vmem:[%s405 + $0x99] sm:$0xff]
        %v1095 = vld [vmem:[%s405 + $0xa9] sm:$0xff]
        %v1096 = vld [vmem:[%s405 + $0xb1] sm:$0xff]
        %v1097 = vld [vmem:[%s405 + $0xc1] sm:$0xff]
        %v1098 = vld [vmem:[%s405 + $0xc9] sm:$0xff]
        %v1099 = vld [vmem:[%s405 + $0xd9] sm:$0xff]
        %v1100 = vld [vmem:[%s405 + $0xe1] sm:$0xff]
        %v1101 = vld [vmem:[%s405 + $0xf1] sm:$0xff]
        %v1102 = vld [vmem:[%s405 + $0xf9] sm:$0xff]
        %v1103 = vld [vmem:[%s405 + $0x109] sm:$0xff]
        %v1104 = vld [vmem:[%s405 + $0x111] sm:$0xff]
        %v1105 = vld [vmem:[%s405 + $0x121] sm:$0xff]
        %v1106 = vld [vmem:[%s405 + $0x129] sm:$0xff]
        %v1107 = vld [vmem:[%s405 + $0x139] sm:$0xff]
        %v1108 = vld [vmem:[%s405 + $0x141] sm:$0xff]
        %v1109 = vld [vmem:[%s405 + $0x151] sm:$0xff]
        %v1110 = vld [vmem:[%s405 + $0x159] sm:$0xff]
        %v1111 = vld [vmem:[%s405 + $0x169] sm:$0xff]
        %v1112 = vld [vmem:[%s405 + $0x171] sm:$0xff]
        %1145 = vrot.lane.b32.xlu0 %v1081, 12
        %v1146 = vpop.permute.xlu0 %1145
        %1147 = vrot.lane.b32.xlu0 %v1082, 12
        %v1148 = vpop.permute.xlu0 %1147
        %1149 = vrot.lane.b32.xlu0 %v1083, 12
        %v1150 = vpop.permute.xlu0 %1149
        %1151 = vrot.lane.b32.xlu0 %v1084, 12
        %v1152 = vpop.permute.xlu0 %1151
        %1153 = vrot.lane.b32.xlu0 %v1085, 12
        %v1154 = vpop.permute.xlu0 %1153
        %1155 = vrot.lane.b32.xlu0 %v1086, 12
        %v1156 = vpop.permute.xlu0 %1155
        %1157 = vrot.lane.b32.xlu0 %v1087, 12
        %v1158 = vpop.permute.xlu0 %1157
        %1159 = vrot.lane.b32.xlu0 %v1088, 12
        %v1160 = vpop.permute.xlu0 %1159
        %1161 = vrot.lane.b32.xlu0 %v1089, 12
        %v1162 = vpop.permute.xlu0 %1161
        %1163 = vrot.lane.b32.xlu0 %v1090, 12
        %v1164 = vpop.permute.xlu0 %1163
        %1165 = vrot.lane.b32.xlu0 %v1091, 12
        %v1166 = vpop.permute.xlu0 %1165
        %1167 = vrot.lane.b32.xlu0 %v1092, 12
        %v1168 = vpop.permute.xlu0 %1167
        %1169 = vrot.lane.b32.xlu0 %v1093, 12
        %v1170 = vpop.permute.xlu0 %1169
        %1171 = vrot.lane.b32.xlu0 %v1094, 12
        %v1172 = vpop.permute.xlu0 %1171
        %1173 = vrot.lane.b32.xlu0 %v1095, 12
        %v1174 = vpop.permute.xlu0 %1173
        %1175 = vrot.lane.b32.xlu0 %v1096, 12
        %v1176 = vpop.permute.xlu0 %1175
        %1177 = vrot.lane.b32.xlu0 %v1097, 12
        %v1178 = vpop.permute.xlu0 %1177
        %1179 = vrot.lane.b32.xlu0 %v1098, 12
        %v1180 = vpop.permute.xlu0 %1179
        %1181 = vrot.lane.b32.xlu0 %v1099, 12
        %v1182 = vpop.permute.xlu0 %1181
        %1183 = vrot.lane.b32.xlu0 %v1100, 12
        %v1184 = vpop.permute.xlu0 %1183
        %1185 = vrot.lane.b32.xlu0 %v1101, 12
        %v1186 = vpop.permute.xlu0 %1185
        %1187 = vrot.lane.b32.xlu0 %v1102, 12
        %v1188 = vpop.permute.xlu0 %1187
        %1189 = vrot.lane.b32.xlu0 %v1103, 12
        %v1190 = vpop.permute.xlu0 %1189
        %1191 = vrot.lane.b32.xlu0 %v1104, 12
        %v1192 = vpop.permute.xlu0 %1191
        %1193 = vrot.lane.b32.xlu0 %v1105, 12
        %v1194 = vpop.permute.xlu0 %1193
        %1195 = vrot.lane.b32.xlu0 %v1106, 12
        %v1196 = vpop.permute.xlu0 %1195
        %1197 = vrot.lane.b32.xlu0 %v1107, 12
        %v1198 = vpop.permute.xlu0 %1197
        %1199 = vrot.lane.b32.xlu0 %v1108, 12
        %v1200 = vpop.permute.xlu0 %1199
        %1201 = vrot.lane.b32.xlu0 %v1109, 12
        %v1202 = vpop.permute.xlu0 %1201
        %1203 = vrot.lane.b32.xlu0 %v1110, 12
        %v1204 = vpop.permute.xlu0 %1203
        %1205 = vrot.lane.b32.xlu0 %v1111, 12
        %v1206 = vpop.permute.xlu0 %1205
        %1207 = vrot.lane.b32.xlu0 %v1112, 12
        %v1208 = vpop.permute.xlu0 %1207
        %vm1241 = vcmask 121952
        %1242 = vst.msk [vmem:[#allocation3] sm:$0xff] %vm1241, %v1146
        %1243 = vst.msk [vmem:[#allocation3 + $0x8] sm:$0xff] %vm1241, %v1148
        %1244 = vst.msk [vmem:[#allocation3 + $0x10] sm:$0xff] %vm1241, %v1150
        %1245 = vst.msk [vmem:[#allocation3 + $0x18] sm:$0xff] %vm1241, %v1152
        %1246 = vst.msk [vmem:[#allocation3 + $0x20] sm:$0xff] %vm1241, %v1154
        %1247 = vst.msk [vmem:[#allocation3 + $0x28] sm:$0xff] %vm1241, %v1156
        %1248 = vst.msk [vmem:[#allocation3 + $0x30] sm:$0xff] %vm1241, %v1158
        %1249 = vst.msk [vmem:[#allocation3 + $0x38] sm:$0xff] %vm1241, %v1160
        %1250 = vst.msk [vmem:[#allocation3 + $0x40] sm:$0xff] %vm1241, %v1162
        %1251 = vst.msk [vmem:[#allocation3 + $0x48] sm:$0xff] %vm1241, %v1164
        %1252 = vst.msk [vmem:[#allocation3 + $0x50] sm:$0xff] %vm1241, %v1166
        %1253 = vst.msk [vmem:[#allocation3 + $0x58] sm:$0xff] %vm1241, %v1168
        %1254 = vst.msk [vmem:[#allocation3 + $0x60] sm:$0xff] %vm1241, %v1170
        %1255 = vst.msk [vmem:[#allocation3 + $0x68] sm:$0xff] %vm1241, %v1172
        %1256 = vst.msk [vmem:[#allocation3 + $0x70] sm:$0xff] %vm1241, %v1174
        %1257 = vst.msk [vmem:[#allocation3 + $0x78] sm:$0xff] %vm1241, %v1176
        %1258 = vst.msk [vmem:[#allocation3 + $0x80] sm:$0xff] %vm1241, %v1178
        %1259 = vst.msk [vmem:[#allocation3 + $0x88] sm:$0xff] %vm1241, %v1180
        %1260 = vst.msk [vmem:[#allocation3 + $0x90] sm:$0xff] %vm1241, %v1182
        %1261 = vst.msk [vmem:[#allocation3 + $0x98] sm:$0xff] %vm1241, %v1184
        %1262 = vst.msk [vmem:[#allocation3 + $0xa0] sm:$0xff] %vm1241, %v1186
        %1263 = vst.msk [vmem:[#allocation3 + $0xa8] sm:$0xff] %vm1241, %v1188
        %1264 = vst.msk [vmem:[#allocation3 + $0xb0] sm:$0xff] %vm1241, %v1190
        %1265 = vst.msk [vmem:[#allocation3 + $0xb8] sm:$0xff] %vm1241, %v1192
        %1266 = vst.msk [vmem:[#allocation3 + $0xc0] sm:$0xff] %vm1241, %v1194
        %1267 = vst.msk [vmem:[#allocation3 + $0xc8] sm:$0xff] %vm1241, %v1196
        %1268 = vst.msk [vmem:[#allocation3 + $0xd0] sm:$0xff] %vm1241, %v1198
        %1269 = vst.msk [vmem:[#allocation3 + $0xd8] sm:$0xff] %vm1241, %v1200
        %1270 = vst.msk [vmem:[#allocation3 + $0xe0] sm:$0xff] %vm1241, %v1202
        %1271 = vst.msk [vmem:[#allocation3 + $0xe8] sm:$0xff] %vm1241, %v1204
        %1272 = vst.msk [vmem:[#allocation3 + $0xf0] sm:$0xff] %vm1241, %v1206
        %1273 = vst.msk [vmem:[#allocation3 + $0xf8] sm:$0xff] %vm1241, %v1208
        %v1274 = vld [vmem:[%s405 + $0x2] sm:$0xff]
        %v1275 = vld [vmem:[%s405 + $0xa] sm:$0xff]
        %v1276 = vld [vmem:[%s405 + $0x1a] sm:$0xff]
        %v1277 = vld [vmem:[%s405 + $0x22] sm:$0xff]
        %v1278 = vld [vmem:[%s405 + $0x32] sm:$0xff]
        %v1279 = vld [vmem:[%s405 + $0x3a] sm:$0xff]
        %v1280 = vld [vmem:[%s405 + $0x4a] sm:$0xff]
        %v1281 = vld [vmem:[%s405 + $0x52] sm:$0xff]
        %v1282 = vld [vmem:[%s405 + $0x62] sm:$0xff]
        %v1283 = vld [vmem:[%s405 + $0x6a] sm:$0xff]
        %v1284 = vld [vmem:[%s405 + $0x7a] sm:$0xff]
        %v1285 = vld [vmem:[%s405 + $0x82] sm:$0xff]
        %v1286 = vld [vmem:[%s405 + $0x92] sm:$0xff]
        %v1287 = vld [vmem:[%s405 + $0x9a] sm:$0xff]
        %v1288 = vld [vmem:[%s405 + $0xaa] sm:$0xff]
        %v1289 = vld [vmem:[%s405 + $0xb2] sm:$0xff]
        %v1290 = vld [vmem:[%s405 + $0xc2] sm:$0xff]
        %v1291 = vld [vmem:[%s405 + $0xca] sm:$0xff]
        %v1292 = vld [vmem:[%s405 + $0xda] sm:$0xff]
        %v1293 = vld [vmem:[%s405 + $0xe2] sm:$0xff]
        %v1294 = vld [vmem:[%s405 + $0xf2] sm:$0xff]
        %v1295 = vld [vmem:[%s405 + $0xfa] sm:$0xff]
        %v1296 = vld [vmem:[%s405 + $0x10a] sm:$0xff]
        %v1297 = vld [vmem:[%s405 + $0x112] sm:$0xff]
        %v1298 = vld [vmem:[%s405 + $0x122] sm:$0xff]
        %v1299 = vld [vmem:[%s405 + $0x12a] sm:$0xff]
        %v1300 = vld [vmem:[%s405 + $0x13a] sm:$0xff]
        %v1301 = vld [vmem:[%s405 + $0x142] sm:$0xff]
        %v1302 = vld [vmem:[%s405 + $0x152] sm:$0xff]
        %v1303 = vld [vmem:[%s405 + $0x15a] sm:$0xff]
        %v1304 = vld [vmem:[%s405 + $0x16a] sm:$0xff]
        %v1305 = vld [vmem:[%s405 + $0x172] sm:$0xff]
        %1338 = vrot.lane.b32.xlu0 %v1274, 15
        %v1339 = vpop.permute.xlu0 %1338
        %1340 = vrot.lane.b32.xlu0 %v1275, 15
        %v1341 = vpop.permute.xlu0 %1340
        %1342 = vrot.lane.b32.xlu0 %v1276, 15
        %v1343 = vpop.permute.xlu0 %1342
        %1344 = vrot.lane.b32.xlu0 %v1277, 15
        %v1345 = vpop.permute.xlu0 %1344
        %1346 = vrot.lane.b32.xlu0 %v1278, 15
        %v1347 = vpop.permute.xlu0 %1346
        %1348 = vrot.lane.b32.xlu0 %v1279, 15
        %v1349 = vpop.permute.xlu0 %1348
        %1350 = vrot.lane.b32.xlu0 %v1280, 15
        %v1351 = vpop.permute.xlu0 %1350
        %1352 = vrot.lane.b32.xlu0 %v1281, 15
        %v1353 = vpop.permute.xlu0 %1352
        %1354 = vrot.lane.b32.xlu0 %v1282, 15
        %v1355 = vpop.permute.xlu0 %1354
        %1356 = vrot.lane.b32.xlu0 %v1283, 15
        %v1357 = vpop.permute.xlu0 %1356
        %1358 = vrot.lane.b32.xlu0 %v1284, 15
        %v1359 = vpop.permute.xlu0 %1358
        %1360 = vrot.lane.b32.xlu0 %v1285, 15
        %v1361 = vpop.permute.xlu0 %1360
        %1362 = vrot.lane.b32.xlu0 %v1286, 15
        %v1363 = vpop.permute.xlu0 %1362
        %1364 = vrot.lane.b32.xlu0 %v1287, 15
        %v1365 = vpop.permute.xlu0 %1364
        %1366 = vrot.lane.b32.xlu0 %v1288, 15
        %v1367 = vpop.permute.xlu0 %1366
        %1368 = vrot.lane.b32.xlu0 %v1289, 15
        %v1369 = vpop.permute.xlu0 %1368
        %1370 = vrot.lane.b32.xlu0 %v1290, 15
        %v1371 = vpop.permute.xlu0 %1370
        %1372 = vrot.lane.b32.xlu0 %v1291, 15
        %v1373 = vpop.permute.xlu0 %1372
        %1374 = vrot.lane.b32.xlu0 %v1292, 15
        %v1375 = vpop.permute.xlu0 %1374
        %1376 = vrot.lane.b32.xlu0 %v1293, 15
        %v1377 = vpop.permute.xlu0 %1376
        %1378 = vrot.lane.b32.xlu0 %v1294, 15
        %v1379 = vpop.permute.xlu0 %1378
        %1380 = vrot.lane.b32.xlu0 %v1295, 15
        %v1381 = vpop.permute.xlu0 %1380
        %1382 = vrot.lane.b32.xlu0 %v1296, 15
        %v1383 = vpop.permute.xlu0 %1382
        %1384 = vrot.lane.b32.xlu0 %v1297, 15
        %v1385 = vpop.permute.xlu0 %1384
        %1386 = vrot.lane.b32.xlu0 %v1298, 15
        %v1387 = vpop.permute.xlu0 %1386
        %1388 = vrot.lane.b32.xlu0 %v1299, 15
        %v1389 = vpop.permute.xlu0 %1388
        %1390 = vrot.lane.b32.xlu0 %v1300, 15
        %v1391 = vpop.permute.xlu0 %1390
        %1392 = vrot.lane.b32.xlu0 %v1301, 15
        %v1393 = vpop.permute.xlu0 %1392
        %1394 = vrot.lane.b32.xlu0 %v1302, 15
        %v1395 = vpop.permute.xlu0 %1394
        %1396 = vrot.lane.b32.xlu0 %v1303, 15
        %v1397 = vpop.permute.xlu0 %1396
        %1398 = vrot.lane.b32.xlu0 %v1304, 15
        %v1399 = vpop.permute.xlu0 %1398
        %1400 = vrot.lane.b32.xlu0 %v1305, 15
        %v1401 = vpop.permute.xlu0 %1400
        %vm1434 = vcmask 146552
        %1435 = vst.msk [vmem:[#allocation3] sm:$0xff] %vm1434, %v1339
        %1436 = vst.msk [vmem:[#allocation3 + $0x8] sm:$0xff] %vm1434, %v1341
        %1437 = vst.msk [vmem:[#allocation3 + $0x10] sm:$0xff] %vm1434, %v1343
        %1438 = vst.msk [vmem:[#allocation3 + $0x18] sm:$0xff] %vm1434, %v1345
        %1439 = vst.msk [vmem:[#allocation3 + $0x20] sm:$0xff] %vm1434, %v1347
        %1440 = vst.msk [vmem:[#allocation3 + $0x28] sm:$0xff] %vm1434, %v1349
        %1441 = vst.msk [vmem:[#allocation3 + $0x30] sm:$0xff] %vm1434, %v1351
        %1442 = vst.msk [vmem:[#allocation3 + $0x38] sm:$0xff] %vm1434, %v1353
        %1443 = vst.msk [vmem:[#allocation3 + $0x40] sm:$0xff] %vm1434, %v1355
        %1444 = vst.msk [vmem:[#allocation3 + $0x48] sm:$0xff] %vm1434, %v1357
        %1445 = vst.msk [vmem:[#allocation3 + $0x50] sm:$0xff] %vm1434, %v1359
        %1446 = vst.msk [vmem:[#allocation3 + $0x58] sm:$0xff] %vm1434, %v1361
        %1447 = vst.msk [vmem:[#allocation3 + $0x60] sm:$0xff] %vm1434, %v1363
        %1448 = vst.msk [vmem:[#allocation3 + $0x68] sm:$0xff] %vm1434, %v1365
        %1449 = vst.msk [vmem:[#allocation3 + $0x70] sm:$0xff] %vm1434, %v1367
        %1450 = vst.msk [vmem:[#allocation3 + $0x78] sm:$0xff] %vm1434, %v1369
        %1451 = vst.msk [vmem:[#allocation3 + $0x80] sm:$0xff] %vm1434, %v1371
        %1452 = vst.msk [vmem:[#allocation3 + $0x88] sm:$0xff] %vm1434, %v1373
        %1453 = vst.msk [vmem:[#allocation3 + $0x90] sm:$0xff] %vm1434, %v1375
        %1454 = vst.msk [vmem:[#allocation3 + $0x98] sm:$0xff] %vm1434, %v1377
        %1455 = vst.msk [vmem:[#allocation3 + $0xa0] sm:$0xff] %vm1434, %v1379
        %1456 = vst.msk [vmem:[#allocation3 + $0xa8] sm:$0xff] %vm1434, %v1381
        %1457 = vst.msk [vmem:[#allocation3 + $0xb0] sm:$0xff] %vm1434, %v1383
        %1458 = vst.msk [vmem:[#allocation3 + $0xb8] sm:$0xff] %vm1434, %v1385
        %1459 = vst.msk [vmem:[#allocation3 + $0xc0] sm:$0xff] %vm1434, %v1387
        %1460 = vst.msk [vmem:[#allocation3 + $0xc8] sm:$0xff] %vm1434, %v1389
        %1461 = vst.msk [vmem:[#allocation3 + $0xd0] sm:$0xff] %vm1434, %v1391
        %1462 = vst.msk [vmem:[#allocation3 + $0xd8] sm:$0xff] %vm1434, %v1393
        %1463 = vst.msk [vmem:[#allocation3 + $0xe0] sm:$0xff] %vm1434, %v1395
        %1464 = vst.msk [vmem:[#allocation3 + $0xe8] sm:$0xff] %vm1434, %v1397
        %1465 = vst.msk [vmem:[#allocation3 + $0xf0] sm:$0xff] %vm1434, %v1399
        %1466 = vst.msk [vmem:[#allocation3 + $0xf8] sm:$0xff] %vm1434, %v1401
        %s1467 = scalar_lea.vmem [#allocation2], 48
        %v1468 = vld [vmem:[%s1467] sm:$0xff]
        %v1469 = vld [vmem:[%s1467 + $0x8] sm:$0xff]
        %v1470 = vld [vmem:[%s1467 + $0x18] sm:$0xff]
        %v1471 = vld [vmem:[%s1467 + $0x20] sm:$0xff]
        %v1472 = vld [vmem:[%s1467 + $0x30] sm:$0xff]
        %v1473 = vld [vmem:[%s1467 + $0x38] sm:$0xff]
        %v1474 = vld [vmem:[%s1467 + $0x48] sm:$0xff]
        %v1475 = vld [vmem:[%s1467 + $0x50] sm:$0xff]
        %v1476 = vld [vmem:[%s1467 + $0x60] sm:$0xff]
        %v1477 = vld [vmem:[%s1467 + $0x68] sm:$0xff]
        %v1478 = vld [vmem:[%s1467 + $0x78] sm:$0xff]
        %v1479 = vld [vmem:[%s1467 + $0x80] sm:$0xff]
        %v1480 = vld [vmem:[%s1467 + $0x90] sm:$0xff]
        %v1481 = vld [vmem:[%s1467 + $0x98] sm:$0xff]
        %v1482 = vld [vmem:[%s1467 + $0xa8] sm:$0xff]
        %v1483 = vld [vmem:[%s1467 + $0xb0] sm:$0xff]
        %v1484 = vld [vmem:[%s1467 + $0xc0] sm:$0xff]
        %v1485 = vld [vmem:[%s1467 + $0xc8] sm:$0xff]
        %v1486 = vld [vmem:[%s1467 + $0xd8] sm:$0xff]
        %v1487 = vld [vmem:[%s1467 + $0xe0] sm:$0xff]
        %v1488 = vld [vmem:[%s1467 + $0xf0] sm:$0xff]
        %v1489 = vld [vmem:[%s1467 + $0xf8] sm:$0xff]
        %v1490 = vld [vmem:[%s1467 + $0x108] sm:$0xff]
        %v1491 = vld [vmem:[%s1467 + $0x110] sm:$0xff]
        %v1492 = vld [vmem:[%s1467 + $0x120] sm:$0xff]
        %v1493 = vld [vmem:[%s1467 + $0x128] sm:$0xff]
        %v1494 = vld [vmem:[%s1467 + $0x138] sm:$0xff]
        %v1495 = vld [vmem:[%s1467 + $0x140] sm:$0xff]
        %v1496 = vld [vmem:[%s1467 + $0x150] sm:$0xff]
        %v1497 = vld [vmem:[%s1467 + $0x158] sm:$0xff]
        %v1498 = vld [vmem:[%s1467 + $0x168] sm:$0xff]
        %v1499 = vld [vmem:[%s1467 + $0x170] sm:$0xff]
        %1532 = vrot.lane.b32.xlu0 %v1468, 18
        %v1533 = vpop.permute.xlu0 %1532
        %1534 = vrot.lane.b32.xlu0 %v1469, 18
        %v1535 = vpop.permute.xlu0 %1534
        %1536 = vrot.lane.b32.xlu0 %v1470, 18
        %v1537 = vpop.permute.xlu0 %1536
        %1538 = vrot.lane.b32.xlu0 %v1471, 18
        %v1539 = vpop.permute.xlu0 %1538
        %1540 = vrot.lane.b32.xlu0 %v1472, 18
        %v1541 = vpop.permute.xlu0 %1540
        %1542 = vrot.lane.b32.xlu0 %v1473, 18
        %v1543 = vpop.permute.xlu0 %1542
        %1544 = vrot.lane.b32.xlu0 %v1474, 18
        %v1545 = vpop.permute.xlu0 %1544
        %1546 = vrot.lane.b32.xlu0 %v1475, 18
        %v1547 = vpop.permute.xlu0 %1546
        %1548 = vrot.lane.b32.xlu0 %v1476, 18
        %v1549 = vpop.permute.xlu0 %1548
        %1550 = vrot.lane.b32.xlu0 %v1477, 18
        %v1551 = vpop.permute.xlu0 %1550
        %1552 = vrot.lane.b32.xlu0 %v1478, 18
        %v1553 = vpop.permute.xlu0 %1552
        %1554 = vrot.lane.b32.xlu0 %v1479, 18
        %v1555 = vpop.permute.xlu0 %1554
        %1556 = vrot.lane.b32.xlu0 %v1480, 18
        %v1557 = vpop.permute.xlu0 %1556
        %1558 = vrot.lane.b32.xlu0 %v1481, 18
        %v1559 = vpop.permute.xlu0 %1558
        %1560 = vrot.lane.b32.xlu0 %v1482, 18
        %v1561 = vpop.permute.xlu0 %1560
        %1562 = vrot.lane.b32.xlu0 %v1483, 18
        %v1563 = vpop.permute.xlu0 %1562
        %1564 = vrot.lane.b32.xlu0 %v1484, 18
        %v1565 = vpop.permute.xlu0 %1564
        %1566 = vrot.lane.b32.xlu0 %v1485, 18
        %v1567 = vpop.permute.xlu0 %1566
        %1568 = vrot.lane.b32.xlu0 %v1486, 18
        %v1569 = vpop.permute.xlu0 %1568
        %1570 = vrot.lane.b32.xlu0 %v1487, 18
        %v1571 = vpop.permute.xlu0 %1570
        %1572 = vrot.lane.b32.xlu0 %v1488, 18
        %v1573 = vpop.permute.xlu0 %1572
        %1574 = vrot.lane.b32.xlu0 %v1489, 18
        %v1575 = vpop.permute.xlu0 %1574
        %1576 = vrot.lane.b32.xlu0 %v1490, 18
        %v1577 = vpop.permute.xlu0 %1576
        %1578 = vrot.lane.b32.xlu0 %v1491, 18
        %v1579 = vpop.permute.xlu0 %1578
        %1580 = vrot.lane.b32.xlu0 %v1492, 18
        %v1581 = vpop.permute.xlu0 %1580
        %1582 = vrot.lane.b32.xlu0 %v1493, 18
        %v1583 = vpop.permute.xlu0 %1582
        %1584 = vrot.lane.b32.xlu0 %v1494, 18
        %v1585 = vpop.permute.xlu0 %1584
        %1586 = vrot.lane.b32.xlu0 %v1495, 18
        %v1587 = vpop.permute.xlu0 %1586
        %1588 = vrot.lane.b32.xlu0 %v1496, 18
        %v1589 = vpop.permute.xlu0 %1588
        %1590 = vrot.lane.b32.xlu0 %v1497, 18
        %v1591 = vpop.permute.xlu0 %1590
        %1592 = vrot.lane.b32.xlu0 %v1498, 18
        %v1593 = vpop.permute.xlu0 %1592
        %1594 = vrot.lane.b32.xlu0 %v1499, 18
        %v1595 = vpop.permute.xlu0 %1594
        %vm1628 = vcmask 171152
        %1629 = vst.msk [vmem:[#allocation3] sm:$0xff] %vm1628, %v1533
        %1630 = vst.msk [vmem:[#allocation3 + $0x8] sm:$0xff] %vm1628, %v1535
        %1631 = vst.msk [vmem:[#allocation3 + $0x10] sm:$0xff] %vm1628, %v1537
        %1632 = vst.msk [vmem:[#allocation3 + $0x18] sm:$0xff] %vm1628, %v1539
        %1633 = vst.msk [vmem:[#allocation3 + $0x20] sm:$0xff] %vm1628, %v1541
        %1634 = vst.msk [vmem:[#allocation3 + $0x28] sm:$0xff] %vm1628, %v1543
        %1635 = vst.msk [vmem:[#allocation3 + $0x30] sm:$0xff] %vm1628, %v1545
        %1636 = vst.msk [vmem:[#allocation3 + $0x38] sm:$0xff] %vm1628, %v1547
        %1637 = vst.msk [vmem:[#allocation3 + $0x40] sm:$0xff] %vm1628, %v1549
        %1638 = vst.msk [vmem:[#allocation3 + $0x48] sm:$0xff] %vm1628, %v1551
        %1639 = vst.msk [vmem:[#allocation3 + $0x50] sm:$0xff] %vm1628, %v1553
        %1640 = vst.msk [vmem:[#allocation3 + $0x58] sm:$0xff] %vm1628, %v1555
        %1641 = vst.msk [vmem:[#allocation3 + $0x60] sm:$0xff] %vm1628, %v1557
        %1642 = vst.msk [vmem:[#allocation3 + $0x68] sm:$0xff] %vm1628, %v1559
        %1643 = vst.msk [vmem:[#allocation3 + $0x70] sm:$0xff] %vm1628, %v1561
        %1644 = vst.msk [vmem:[#allocation3 + $0x78] sm:$0xff] %vm1628, %v1563
        %1645 = vst.msk [vmem:[#allocation3 + $0x80] sm:$0xff] %vm1628, %v1565
        %1646 = vst.msk [vmem:[#allocation3 + $0x88] sm:$0xff] %vm1628, %v1567
        %1647 = vst.msk [vmem:[#allocation3 + $0x90] sm:$0xff] %vm1628, %v1569
        %1648 = vst.msk [vmem:[#allocation3 + $0x98] sm:$0xff] %vm1628, %v1571
        %1649 = vst.msk [vmem:[#allocation3 + $0xa0] sm:$0xff] %vm1628, %v1573
        %1650 = vst.msk [vmem:[#allocation3 + $0xa8] sm:$0xff] %vm1628, %v1575
        %1651 = vst.msk [vmem:[#allocation3 + $0xb0] sm:$0xff] %vm1628, %v1577
        %1652 = vst.msk [vmem:[#allocation3 + $0xb8] sm:$0xff] %vm1628, %v1579
        %1653 = vst.msk [vmem:[#allocation3 + $0xc0] sm:$0xff] %vm1628, %v1581
        %1654 = vst.msk [vmem:[#allocation3 + $0xc8] sm:$0xff] %vm1628, %v1583
        %1655 = vst.msk [vmem:[#allocation3 + $0xd0] sm:$0xff] %vm1628, %v1585
        %1656 = vst.msk [vmem:[#allocation3 + $0xd8] sm:$0xff] %vm1628, %v1587
        %1657 = vst.msk [vmem:[#allocation3 + $0xe0] sm:$0xff] %vm1628, %v1589
        %1658 = vst.msk [vmem:[#allocation3 + $0xe8] sm:$0xff] %vm1628, %v1591
        %1659 = vst.msk [vmem:[#allocation3 + $0xf0] sm:$0xff] %vm1628, %v1593
        %1660 = vst.msk [vmem:[#allocation3 + $0xf8] sm:$0xff] %vm1628, %v1595
        %v1661 = vld [vmem:[%s1467 + $0x1] sm:$0xff]
        %v1662 = vld [vmem:[%s1467 + $0x9] sm:$0xff]
        %v1663 = vld [vmem:[%s1467 + $0x19] sm:$0xff]
        %v1664 = vld [vmem:[%s1467 + $0x21] sm:$0xff]
        %v1665 = vld [vmem:[%s1467 + $0x31] sm:$0xff]
        %v1666 = vld [vmem:[%s1467 + $0x39] sm:$0xff]
        %v1667 = vld [vmem:[%s1467 + $0x49] sm:$0xff]
        %v1668 = vld [vmem:[%s1467 + $0x51] sm:$0xff]
        %v1669 = vld [vmem:[%s1467 + $0x61] sm:$0xff]
        %v1670 = vld [vmem:[%s1467 + $0x69] sm:$0xff]
        %v1671 = vld [vmem:[%s1467 + $0x79] sm:$0xff]
        %v1672 = vld [vmem:[%s1467 + $0x81] sm:$0xff]
        %v1673 = vld [vmem:[%s1467 + $0x91] sm:$0xff]
        %v1674 = vld [vmem:[%s1467 + $0x99] sm:$0xff]
        %v1675 = vld [vmem:[%s1467 + $0xa9] sm:$0xff]
        %v1676 = vld [vmem:[%s1467 + $0xb1] sm:$0xff]
        %v1677 = vld [vmem:[%s1467 + $0xc1] sm:$0xff]
        %v1678 = vld [vmem:[%s1467 + $0xc9] sm:$0xff]
        %v1679 = vld [vmem:[%s1467 + $0xd9] sm:$0xff]
        %v1680 = vld [vmem:[%s1467 + $0xe1] sm:$0xff]
        %v1681 = vld [vmem:[%s1467 + $0xf1] sm:$0xff]
        %v1682 = vld [vmem:[%s1467 + $0xf9] sm:$0xff]
        %v1683 = vld [vmem:[%s1467 + $0x109] sm:$0xff]
        %v1684 = vld [vmem:[%s1467 + $0x111] sm:$0xff]
        %v1685 = vld [vmem:[%s1467 + $0x121] sm:$0xff]
        %v1686 = vld [vmem:[%s1467 + $0x129] sm:$0xff]
        %v1687 = vld [vmem:[%s1467 + $0x139] sm:$0xff]
        %v1688 = vld [vmem:[%s1467 + $0x141] sm:$0xff]
        %v1689 = vld [vmem:[%s1467 + $0x151] sm:$0xff]
        %v1690 = vld [vmem:[%s1467 + $0x159] sm:$0xff]
        %v1691 = vld [vmem:[%s1467 + $0x169] sm:$0xff]
        %v1692 = vld [vmem:[%s1467 + $0x171] sm:$0xff]
        %1725 = vrot.lane.b32.xlu0 %v1661, 21
        %v1726 = vpop.permute.xlu0 %1725
        %1727 = vrot.lane.b32.xlu0 %v1662, 21
        %v1728 = vpop.permute.xlu0 %1727
        %1729 = vrot.lane.b32.xlu0 %v1663, 21
        %v1730 = vpop.permute.xlu0 %1729
        %1731 = vrot.lane.b32.xlu0 %v1664, 21
        %v1732 = vpop.permute.xlu0 %1731
        %1733 = vrot.lane.b32.xlu0 %v1665, 21
        %v1734 = vpop.permute.xlu0 %1733
        %1735 = vrot.lane.b32.xlu0 %v1666, 21
        %v1736 = vpop.permute.xlu0 %1735
        %1737 = vrot.lane.b32.xlu0 %v1667, 21
        %v1738 = vpop.permute.xlu0 %1737
        %1739 = vrot.lane.b32.xlu0 %v1668, 21
        %v1740 = vpop.permute.xlu0 %1739
        %1741 = vrot.lane.b32.xlu0 %v1669, 21
        %v1742 = vpop.permute.xlu0 %1741
        %1743 = vrot.lane.b32.xlu0 %v1670, 21
        %v1744 = vpop.permute.xlu0 %1743
        %1745 = vrot.lane.b32.xlu0 %v1671, 21
        %v1746 = vpop.permute.xlu0 %1745
        %1747 = vrot.lane.b32.xlu0 %v1672, 21
        %v1748 = vpop.permute.xlu0 %1747
        %1749 = vrot.lane.b32.xlu0 %v1673, 21
        %v1750 = vpop.permute.xlu0 %1749
        %1751 = vrot.lane.b32.xlu0 %v1674, 21
        %v1752 = vpop.permute.xlu0 %1751
        %1753 = vrot.lane.b32.xlu0 %v1675, 21
        %v1754 = vpop.permute.xlu0 %1753
        %1755 = vrot.lane.b32.xlu0 %v1676, 21
        %v1756 = vpop.permute.xlu0 %1755
        %1757 = vrot.lane.b32.xlu0 %v1677, 21
        %v1758 = vpop.permute.xlu0 %1757
        %1759 = vrot.lane.b32.xlu0 %v1678, 21
        %v1760 = vpop.permute.xlu0 %1759
        %1761 = vrot.lane.b32.xlu0 %v1679, 21
        %v1762 = vpop.permute.xlu0 %1761
        %1763 = vrot.lane.b32.xlu0 %v1680, 21
        %v1764 = vpop.permute.xlu0 %1763
        %1765 = vrot.lane.b32.xlu0 %v1681, 21
        %v1766 = vpop.permute.xlu0 %1765
        %1767 = vrot.lane.b32.xlu0 %v1682, 21
        %v1768 = vpop.permute.xlu0 %1767
        %1769 = vrot.lane.b32.xlu0 %v1683, 21
        %v1770 = vpop.permute.xlu0 %1769
        %1771 = vrot.lane.b32.xlu0 %v1684, 21
        %v1772 = vpop.permute.xlu0 %1771
        %1773 = vrot.lane.b32.xlu0 %v1685, 21
        %v1774 = vpop.permute.xlu0 %1773
        %1775 = vrot.lane.b32.xlu0 %v1686, 21
        %v1776 = vpop.permute.xlu0 %1775
        %1777 = vrot.lane.b32.xlu0 %v1687, 21
        %v1778 = vpop.permute.xlu0 %1777
        %1779 = vrot.lane.b32.xlu0 %v1688, 21
        %v1780 = vpop.permute.xlu0 %1779
        %1781 = vrot.lane.b32.xlu0 %v1689, 21
        %v1782 = vpop.permute.xlu0 %1781
        %1783 = vrot.lane.b32.xlu0 %v1690, 21
        %v1784 = vpop.permute.xlu0 %1783
        %1785 = vrot.lane.b32.xlu0 %v1691, 21
        %v1786 = vpop.permute.xlu0 %1785
        %1787 = vrot.lane.b32.xlu0 %v1692, 21
        %v1788 = vpop.permute.xlu0 %1787
        %vm1821 = vcmask 195752
        %1822 = vst.msk [vmem:[#allocation3] sm:$0xff] %vm1821, %v1726
        %1823 = vst.msk [vmem:[#allocation3 + $0x8] sm:$0xff] %vm1821, %v1728
        %1824 = vst.msk [vmem:[#allocation3 + $0x10] sm:$0xff] %vm1821, %v1730
        %1825 = vst.msk [vmem:[#allocation3 + $0x18] sm:$0xff] %vm1821, %v1732
        %1826 = vst.msk [vmem:[#allocation3 + $0x20] sm:$0xff] %vm1821, %v1734
        %1827 = vst.msk [vmem:[#allocation3 + $0x28] sm:$0xff] %vm1821, %v1736
        %1828 = vst.msk [vmem:[#allocation3 + $0x30] sm:$0xff] %vm1821, %v1738
        %1829 = vst.msk [vmem:[#allocation3 + $0x38] sm:$0xff] %vm1821, %v1740
        %1830 = vst.msk [vmem:[#allocation3 + $0x40] sm:$0xff] %vm1821, %v1742
        %1831 = vst.msk [vmem:[#allocation3 + $0x48] sm:$0xff] %vm1821, %v1744
        %1832 = vst.msk [vmem:[#allocation3 + $0x50] sm:$0xff] %vm1821, %v1746
        %1833 = vst.msk [vmem:[#allocation3 + $0x58] sm:$0xff] %vm1821, %v1748
        %1834 = vst.msk [vmem:[#allocation3 + $0x60] sm:$0xff] %vm1821, %v1750
        %1835 = vst.msk [vmem:[#allocation3 + $0x68] sm:$0xff] %vm1821, %v1752
        %1836 = vst.msk [vmem:[#allocation3 + $0x70] sm:$0xff] %vm1821, %v1754
        %1837 = vst.msk [vmem:[#allocation3 + $0x78] sm:$0xff] %vm1821, %v1756
        %1838 = vst.msk [vmem:[#allocation3 + $0x80] sm:$0xff] %vm1821, %v1758
        %1839 = vst.msk [vmem:[#allocation3 + $0x88] sm:$0xff] %vm1821, %v1760
        %1840 = vst.msk [vmem:[#allocation3 + $0x90] sm:$0xff] %vm1821, %v1762
        %1841 = vst.msk [vmem:[#allocation3 + $0x98] sm:$0xff] %vm1821, %v1764
        %1842 = vst.msk [vmem:[#allocation3 + $0xa0] sm:$0xff] %vm1821, %v1766
        %1843 = vst.msk [vmem:[#allocation3 + $0xa8] sm:$0xff] %vm1821, %v1768
        %1844 = vst.msk [vmem:[#allocation3 + $0xb0] sm:$0xff] %vm1821, %v1770
        %1845 = vst.msk [vmem:[#allocation3 + $0xb8] sm:$0xff] %vm1821, %v1772
        %1846 = vst.msk [vmem:[#allocation3 + $0xc0] sm:$0xff] %vm1821, %v1774
        %1847 = vst.msk [vmem:[#allocation3 + $0xc8] sm:$0xff] %vm1821, %v1776
        %1848 = vst.msk [vmem:[#allocation3 + $0xd0] sm:$0xff] %vm1821, %v1778
        %1849 = vst.msk [vmem:[#allocation3 + $0xd8] sm:$0xff] %vm1821, %v1780
        %1850 = vst.msk [vmem:[#allocation3 + $0xe0] sm:$0xff] %vm1821, %v1782
        %1851 = vst.msk [vmem:[#allocation3 + $0xe8] sm:$0xff] %vm1821, %v1784
        %1852 = vst.msk [vmem:[#allocation3 + $0xf0] sm:$0xff] %vm1821, %v1786
        %1853 = vst.msk [vmem:[#allocation3 + $0xf8] sm:$0xff] %vm1821, %v1788
        %v1854 = vld [vmem:[%s1467 + $0x2] sm:$0xff]
        %v1855 = vld [vmem:[%s1467 + $0xa] sm:$0xff]
        %v1856 = vld [vmem:[%s1467 + $0x1a] sm:$0xff]
        %v1857 = vld [vmem:[%s1467 + $0x22] sm:$0xff]
        %v1858 = vld [vmem:[%s1467 + $0x32] sm:$0xff]
        %v1859 = vld [vmem:[%s1467 + $0x3a] sm:$0xff]
        %v1860 = vld [vmem:[%s1467 + $0x4a] sm:$0xff]
        %v1861 = vld [vmem:[%s1467 + $0x52] sm:$0xff]
        %v1862 = vld [vmem:[%s1467 + $0x62] sm:$0xff]
        %v1863 = vld [vmem:[%s1467 + $0x6a] sm:$0xff]
        %v1864 = vld [vmem:[%s1467 + $0x7a] sm:$0xff]
        %v1865 = vld [vmem:[%s1467 + $0x82] sm:$0xff]
        %v1866 = vld [vmem:[%s1467 + $0x92] sm:$0xff]
        %v1867 = vld [vmem:[%s1467 + $0x9a] sm:$0xff]
        %v1868 = vld [vmem:[%s1467 + $0xaa] sm:$0xff]
        %v1869 = vld [vmem:[%s1467 + $0xb2] sm:$0xff]
        %v1870 = vld [vmem:[%s1467 + $0xc2] sm:$0xff]
        %v1871 = vld [vmem:[%s1467 + $0xca] sm:$0xff]
        %v1872 = vld [vmem:[%s1467 + $0xda] sm:$0xff]
        %v1873 = vld [vmem:[%s1467 + $0xe2] sm:$0xff]
        %v1874 = vld [vmem:[%s1467 + $0xf2] sm:$0xff]
        %v1875 = vld [vmem:[%s1467 + $0xfa] sm:$0xff]
        %v1876 = vld [vmem:[%s1467 + $0x10a] sm:$0xff]
        %v1877 = vld [vmem:[%s1467 + $0x112] sm:$0xff]
        %v1878 = vld [vmem:[%s1467 + $0x122] sm:$0xff]
        %v1879 = vld [vmem:[%s1467 + $0x12a] sm:$0xff]
        %v1880 = vld [vmem:[%s1467 + $0x13a] sm:$0xff]
        %v1881 = vld [vmem:[%s1467 + $0x142] sm:$0xff]
        %v1882 = vld [vmem:[%s1467 + $0x152] sm:$0xff]
        %v1883 = vld [vmem:[%s1467 + $0x15a] sm:$0xff]
        %v1884 = vld [vmem:[%s1467 + $0x16a] sm:$0xff]
        %v1885 = vld [vmem:[%s1467 + $0x172] sm:$0xff]
        %1918 = vrot.lane.b32.xlu0 %v1854, 24
        %v1919 = vpop.permute.xlu0 %1918
        %1920 = vrot.lane.b32.xlu0 %v1855, 24
        %v1921 = vpop.permute.xlu0 %1920
        %1922 = vrot.lane.b32.xlu0 %v1856, 24
        %v1923 = vpop.permute.xlu0 %1922
        %1924 = vrot.lane.b32.xlu0 %v1857, 24
        %v1925 = vpop.permute.xlu0 %1924
        %1926 = vrot.lane.b32.xlu0 %v1858, 24
        %v1927 = vpop.permute.xlu0 %1926
        %1928 = vrot.lane.b32.xlu0 %v1859, 24
        %v1929 = vpop.permute.xlu0 %1928
        %1930 = vrot.lane.b32.xlu0 %v1860, 24
        %v1931 = vpop.permute.xlu0 %1930
        %1932 = vrot.lane.b32.xlu0 %v1861, 24
        %v1933 = vpop.permute.xlu0 %1932
        %1934 = vrot.lane.b32.xlu0 %v1862, 24
        %v1935 = vpop.permute.xlu0 %1934
        %1936 = vrot.lane.b32.xlu0 %v1863, 24
        %v1937 = vpop.permute.xlu0 %1936
        %1938 = vrot.lane.b32.xlu0 %v1864, 24
        %v1939 = vpop.permute.xlu0 %1938
        %1940 = vrot.lane.b32.xlu0 %v1865, 24
        %v1941 = vpop.permute.xlu0 %1940
        %1942 = vrot.lane.b32.xlu0 %v1866, 24
        %v1943 = vpop.permute.xlu0 %1942
        %1944 = vrot.lane.b32.xlu0 %v1867, 24
        %v1945 = vpop.permute.xlu0 %1944
        %1946 = vrot.lane.b32.xlu0 %v1868, 24
        %v1947 = vpop.permute.xlu0 %1946
        %1948 = vrot.lane.b32.xlu0 %v1869, 24
        %v1949 = vpop.permute.xlu0 %1948
        %1950 = vrot.lane.b32.xlu0 %v1870, 24
        %v1951 = vpop.permute.xlu0 %1950
        %1952 = vrot.lane.b32.xlu0 %v1871, 24
        %v1953 = vpop.permute.xlu0 %1952
        %1954 = vrot.lane.b32.xlu0 %v1872, 24
        %v1955 = vpop.permute.xlu0 %1954
        %1956 = vrot.lane.b32.xlu0 %v1873, 24
        %v1957 = vpop.permute.xlu0 %1956
        %1958 = vrot.lane.b32.xlu0 %v1874, 24
        %v1959 = vpop.permute.xlu0 %1958
        %1960 = vrot.lane.b32.xlu0 %v1875, 24
        %v1961 = vpop.permute.xlu0 %1960
        %1962 = vrot.lane.b32.xlu0 %v1876, 24
        %v1963 = vpop.permute.xlu0 %1962
        %1964 = vrot.lane.b32.xlu0 %v1877, 24
        %v1965 = vpop.permute.xlu0 %1964
        %1966 = vrot.lane.b32.xlu0 %v1878, 24
        %v1967 = vpop.permute.xlu0 %1966
        %1968 = vrot.lane.b32.xlu0 %v1879, 24
        %v1969 = vpop.permute.xlu0 %1968
        %1970 = vrot.lane.b32.xlu0 %v1880, 24
        %v1971 = vpop.permute.xlu0 %1970
        %1972 = vrot.lane.b32.xlu0 %v1881, 24
        %v1973 = vpop.permute.xlu0 %1972
        %1974 = vrot.lane.b32.xlu0 %v1882, 24
        %v1975 = vpop.permute.xlu0 %1974
        %1976 = vrot.lane.b32.xlu0 %v1883, 24
        %v1977 = vpop.permute.xlu0 %1976
        %1978 = vrot.lane.b32.xlu0 %v1884, 24
        %v1979 = vpop.permute.xlu0 %1978
        %1980 = vrot.lane.b32.xlu0 %v1885, 24
        %v1981 = vpop.permute.xlu0 %1980
        %vm2014 = vcmask 220352
        %2015 = vst.msk [vmem:[#allocation3] sm:$0xff] %vm2014, %v1919
        %2016 = vst.msk [vmem:[#allocation3 + $0x8] sm:$0xff] %vm2014, %v1921
        %2017 = vst.msk [vmem:[#allocation3 + $0x10] sm:$0xff] %vm2014, %v1923
        %2018 = vst.msk [vmem:[#allocation3 + $0x18] sm:$0xff] %vm2014, %v1925
        %2019 = vst.msk [vmem:[#allocation3 + $0x20] sm:$0xff] %vm2014, %v1927
        %2020 = vst.msk [vmem:[#allocation3 + $0x28] sm:$0xff] %vm2014, %v1929
        %2021 = vst.msk [vmem:[#allocation3 + $0x30] sm:$0xff] %vm2014, %v1931
        %2022 = vst.msk [vmem:[#allocation3 + $0x38] sm:$0xff] %vm2014, %v1933
        %2023 = vst.msk [vmem:[#allocation3 + $0x40] sm:$0xff] %vm2014, %v1935
        %2024 = vst.msk [vmem:[#allocation3 + $0x48] sm:$0xff] %vm2014, %v1937
        %2025 = vst.msk [vmem:[#allocation3 + $0x50] sm:$0xff] %vm2014, %v1939
        %2026 = vst.msk [vmem:[#allocation3 + $0x58] sm:$0xff] %vm2014, %v1941
        %2027 = vst.msk [vmem:[#allocation3 + $0x60] sm:$0xff] %vm2014, %v1943
        %2028 = vst.msk [vmem:[#allocation3 + $0x68] sm:$0xff] %vm2014, %v1945
        %2029 = vst.msk [vmem:[#allocation3 + $0x70] sm:$0xff] %vm2014, %v1947
        %2030 = vst.msk [vmem:[#allocation3 + $0x78] sm:$0xff] %vm2014, %v1949
        %2031 = vst.msk [vmem:[#allocation3 + $0x80] sm:$0xff] %vm2014, %v1951
        %2032 = vst.msk [vmem:[#allocation3 + $0x88] sm:$0xff] %vm2014, %v1953
        %2033 = vst.msk [vmem:[#allocation3 + $0x90] sm:$0xff] %vm2014, %v1955
        %2034 = vst.msk [vmem:[#allocation3 + $0x98] sm:$0xff] %vm2014, %v1957
        %2035 = vst.msk [vmem:[#allocation3 + $0xa0] sm:$0xff] %vm2014, %v1959
        %2036 = vst.msk [vmem:[#allocation3 + $0xa8] sm:$0xff] %vm2014, %v1961
        %2037 = vst.msk [vmem:[#allocation3 + $0xb0] sm:$0xff] %vm2014, %v1963
        %2038 = vst.msk [vmem:[#allocation3 + $0xb8] sm:$0xff] %vm2014, %v1965
        %2039 = vst.msk [vmem:[#allocation3 + $0xc0] sm:$0xff] %vm2014, %v1967
        %2040 = vst.msk [vmem:[#allocation3 + $0xc8] sm:$0xff] %vm2014, %v1969
        %2041 = vst.msk [vmem:[#allocation3 + $0xd0] sm:$0xff] %vm2014, %v1971
        %2042 = vst.msk [vmem:[#allocation3 + $0xd8] sm:$0xff] %vm2014, %v1973
        %2043 = vst.msk [vmem:[#allocation3 + $0xe0] sm:$0xff] %vm2014, %v1975
        %2044 = vst.msk [vmem:[#allocation3 + $0xe8] sm:$0xff] %vm2014, %v1977
        %2045 = vst.msk [vmem:[#allocation3 + $0xf0] sm:$0xff] %vm2014, %v1979
        %2046 = vst.msk [vmem:[#allocation3 + $0xf8] sm:$0xff] %vm2014, %v1981
        %v2047 = vld [vmem:[#allocation3] sm:$0xff]
        %v2048 = vld [vmem:[#allocation3 + $0x8] sm:$0xff]
        %v2049 = vld [vmem:[#allocation3 + $0x10] sm:$0xff]
        %v2050 = vld [vmem:[#allocation3 + $0x18] sm:$0xff]
        %v2051 = vld [vmem:[#allocation3 + $0x20] sm:$0xff]
        %v2052 = vld [vmem:[#allocation3 + $0x28] sm:$0xff]
        %v2053 = vld [vmem:[#allocation3 + $0x30] sm:$0xff]
        %v2054 = vld [vmem:[#allocation3 + $0x38] sm:$0xff]
        %v2055 = vld [vmem:[#allocation3 + $0x40] sm:$0xff]
        %v2056 = vld [vmem:[#allocation3 + $0x48] sm:$0xff]
        %v2057 = vld [vmem:[#allocation3 + $0x50] sm:$0xff]
        %v2058 = vld [vmem:[#allocation3 + $0x58] sm:$0xff]
        %v2059 = vld [vmem:[#allocation3 + $0x60] sm:$0xff]
        %v2060 = vld [vmem:[#allocation3 + $0x68] sm:$0xff]
        %v2061 = vld [vmem:[#allocation3 + $0x70] sm:$0xff]
        %v2062 = vld [vmem:[#allocation3 + $0x78] sm:$0xff]
        %v2063 = vld [vmem:[#allocation3 + $0x80] sm:$0xff]
        %v2064 = vld [vmem:[#allocation3 + $0x88] sm:$0xff]
        %v2065 = vld [vmem:[#allocation3 + $0x90] sm:$0xff]
        %v2066 = vld [vmem:[#allocation3 + $0x98] sm:$0xff]
        %v2067 = vld [vmem:[#allocation3 + $0xa0] sm:$0xff]
        %v2068 = vld [vmem:[#allocation3 + $0xa8] sm:$0xff]
        %v2069 = vld [vmem:[#allocation3 + $0xb0] sm:$0xff]
        %v2070 = vld [vmem:[#allocation3 + $0xb8] sm:$0xff]
        %v2071 = vld [vmem:[#allocation3 + $0xc0] sm:$0xff]
        %v2072 = vld [vmem:[#allocation3 + $0xc8] sm:$0xff]
        %v2073 = vld [vmem:[#allocation3 + $0xd0] sm:$0xff]
        %v2074 = vld [vmem:[#allocation3 + $0xd8] sm:$0xff]
        %v2075 = vld [vmem:[#allocation3 + $0xe0] sm:$0xff]
        %v2076 = vld [vmem:[#allocation3 + $0xe8] sm:$0xff]
        %v2077 = vld [vmem:[#allocation3 + $0xf0] sm:$0xff]
        %v2078 = vld [vmem:[#allocation3 + $0xf8] sm:$0xff]
        %v2079 = vld [vmem:[%s1] sm:$0xff]
        %v2080 = vld [vmem:[%s1 + $0x8] sm:$0xff]
        %v2081 = vld [vmem:[%s1 + $0x10] sm:$0xff]
        %v2082 = vld [vmem:[%s1 + $0x18] sm:$0x7]
        %v2083 = vld [vmem:[#allocation8] sm:$0x1]
        %v2085 = vlaneseq
        %v2086 = vshrl.u32 %v2085, 7
        %v2087 = vsub.s32 0, %v2086
        %v2088 = vrot.slane %v2083, %v2087
        %vm2090 = vcmask 220160
        %v2092 = vsel %vm2090, %v2047, 0
        %v2095 = vsel %vm2090, %v2048, 0
        %v2098 = vsel %vm2090, %v2049, 0
        %v2101 = vsel %vm2090, %v2050, 0
        %v2104 = vsel %vm2090, %v2051, 0
        %v2107 = vsel %vm2090, %v2052, 0
        %v2110 = vsel %vm2090, %v2053, 0
        %v2113 = vsel %vm2090, %v2054, 0
        %v2116 = vsel %vm2090, %v2055, 0
        %v2119 = vsel %vm2090, %v2056, 0
        %v2122 = vsel %vm2090, %v2057, 0
        %v2125 = vsel %vm2090, %v2058, 0
        %v2128 = vsel %vm2090, %v2059, 0
        %v2131 = vsel %vm2090, %v2060, 0
        %v2134 = vsel %vm2090, %v2061, 0
        %v2137 = vsel %vm2090, %v2062, 0
        %v2140 = vsel %vm2090, %v2063, 0
        %v2143 = vsel %vm2090, %v2064, 0
        %v2146 = vsel %vm2090, %v2065, 0
        %v2149 = vsel %vm2090, %v2066, 0
        %v2152 = vsel %vm2090, %v2067, 0
        %v2155 = vsel %vm2090, %v2068, 0
        %v2158 = vsel %vm2090, %v2069, 0
        %v2161 = vsel %vm2090, %v2070, 0
        %v2164 = vsel %vm2090, %v2071, 0
        %v2167 = vsel %vm2090, %v2072, 0
        %v2170 = vsel %vm2090, %v2073, 0
        %v2173 = vsel %vm2090, %v2074, 0
        %v2176 = vsel %vm2090, %v2075, 0
        %v2179 = vsel %vm2090, %v2076, 0
        %v2182 = vsel %vm2090, %v2077, 0
        %v2185 = vsel %vm2090, %v2078, 0
        %vm2187 = vcmask 1042432
        %v2189 = vsel %vm2187, %v2082, 0
        %2191 = vmatprep.subr.mxu0 0.0
        %2192 = vmatpush1.msra.mxu0 %v2079
        %2193 = vmatprep.subr.mxu0 0.0
        %2194 = vmatpush1.msra.mxu0 %v2080
        %2195 = vmatprep.subr.mxu0 0.0
        %2196 = vmatpush1.msra.mxu0 %v2081
        %2197 = vmatprep.subr.mxu0 0.0
        %2198 = vmatpush1.msra.mxu0 %v2189
        %2199 = vmatprep.subr.mxu0 0.0
        %2200 = vmatpush1.msra.mxu0 0.0
        %2201 = vmatprep.subr.mxu0 0.0
        %2202 = vmatpush1.msra.mxu0 0.0
        %2203 = vmatprep.subr.mxu0 0.0
        %2204 = vmatpush1.msra.mxu0 0.0
        %2205 = vmatprep.subr.mxu0 0.0
        %2206 = vmatpush1.msra.mxu0 0.0
        %2207 = vmatprep.subr.mxu0 0.0
        %2208 = vmatpush1.msra.mxu0 0.0
        %2209 = vmatprep.subr.mxu0 0.0
        %2210 = vmatpush1.msra.mxu0 0.0
        %2211 = vmatprep.subr.mxu0 0.0
        %2212 = vmatpush1.msra.mxu0 0.0
        %2213 = vmatprep.subr.mxu0 0.0
        %2214 = vmatpush1.msra.mxu0 0.0
        %2215 = vmatprep.subr.mxu0 0.0
        %2216 = vmatpush1.msra.mxu0 0.0
        %2217 = vmatprep.subr.mxu0 0.0
        %2218 = vmatpush1.msra.mxu0 0.0
        %2219 = vmatprep.subr.mxu0 0.0
        %2220 = vmatpush1.msra.mxu0 0.0
        %2221 = vmatprep.subr.mxu0 0.0
        %2222 = vmatpush1.msra.mxu0 0.0
        %2223 = vmatprep.subr.mxu0 0.0
        %2224 = vmatpush1.msra.mxu0 0.0
        %2225 = vmatprep.subr.mxu0 0.0
        %2226 = vmatpush1.msra.mxu0 0.0
        %2227 = vmatprep.subr.mxu0 0.0
        %2228 = vmatpush1.msra.mxu0 0.0
        %2229 = vmatprep.subr.mxu0 0.0
        %2230 = vmatpush1.msra.mxu0 0.0
        %2231 = vmatprep.subr.mxu0 0.0
        %2232 = vmatpush1.msra.mxu0 0.0
        %2233 = vmatprep.subr.mxu0 0.0
        %2234 = vmatpush1.msra.mxu0 0.0
        %2235 = vmatprep.subr.mxu0 0.0
        %2236 = vmatpush1.msra.mxu0 0.0
        %2237 = vmatprep.subr.mxu0 0.0
        %2238 = vmatpush1.msra.mxu0 0.0
        %2239 = vmatprep.subr.mxu0 0.0
        %2240 = vmatpush1.msra.mxu0 0.0
        %2241 = vmatprep.subr.mxu0 0.0
        %2242 = vmatpush1.msra.mxu0 0.0
        %2243 = vmatprep.subr.mxu0 0.0
        %2244 = vmatpush1.msra.mxu0 0.0
        %2245 = vmatprep.subr.mxu0 0.0
        %2246 = vmatpush1.msra.mxu0 0.0
        %2247 = vmatprep.subr.mxu0 0.0
        %2248 = vmatpush1.msra.mxu0 0.0
        %2249 = vmatprep.subr.mxu0 0.0
        %2250 = vmatpush1.msra.mxu0 0.0
        %2251 = vmatprep.subr.mxu0 0.0
        %2252 = vmatpush1.msra.mxu0 0.0
        %2253 = vmatprep.subr.mxu0 0.0
        %2254 = vmatpush1.msra.mxu0 0.0
        %2255 = vmatprep.mubr.f32.mxu0 0.0
        %2256 = vmatmul.mubr.f32.gmra.mrb[0].mxu0 %v2092
        %v2257 = vpop.f32.mrb[0].mxu0
        %v2258 = vadd.f32 %v2088, %v2257
        %v2259 = vpop.f32.mrb[0].mxu0
        %2260 = vmatprep.mubr.f32.mxu0 0.0
        %2261 = vmatmul.mubr.f32.gmra.mrb[0].mxu0 %v2095
        %v2262 = vpop.f32.mrb[0].mxu0
        %v2263 = vadd.f32 %v2088, %v2262
        %v2264 = vpop.f32.mrb[0].mxu0
        %2265 = vmatprep.mubr.f32.mxu0 0.0
        %2266 = vmatmul.mubr.f32.gmra.mrb[0].mxu0 %v2098
        %v2267 = vpop.f32.mrb[0].mxu0
        %v2268 = vadd.f32 %v2088, %v2267
        %v2269 = vpop.f32.mrb[0].mxu0
        %2270 = vmatprep.mubr.f32.mxu0 0.0
        %2271 = vmatmul.mubr.f32.gmra.mrb[0].mxu0 %v2101
        %v2272 = vpop.f32.mrb[0].mxu0
        %v2273 = vadd.f32 %v2088, %v2272
        %v2274 = vpop.f32.mrb[0].mxu0
        %2275 = vmatprep.mubr.f32.mxu0 0.0
        %2276 = vmatmul.mubr.f32.gmra.mrb[0].mxu0 %v2104
        %v2277 = vpop.f32.mrb[0].mxu0
        %v2278 = vadd.f32 %v2088, %v2277
        %v2279 = vpop.f32.mrb[0].mxu0
        %2280 = vmatprep.mubr.f32.mxu0 0.0
        %2281 = vmatmul.mubr.f32.gmra.mrb[0].mxu0 %v2107
        %v2282 = vpop.f32.mrb[0].mxu0
        %v2283 = vadd.f32 %v2088, %v2282
        %v2284 = vpop.f32.mrb[0].mxu0
        %2285 = vmatprep.mubr.f32.mxu0 0.0
        %2286 = vmatmul.mubr.f32.gmra.mrb[0].mxu0 %v2110
        %v2287 = vpop.f32.mrb[0].mxu0
        %v2288 = vadd.f32 %v2088, %v2287
        %v2289 = vpop.f32.mrb[0].mxu0
        %2290 = vmatprep.mubr.f32.mxu0 0.0
        %2291 = vmatmul.mubr.f32.gmra.mrb[0].mxu0 %v2113
        %v2292 = vpop.f32.mrb[0].mxu0
        %v2293 = vadd.f32 %v2088, %v2292
        %v2294 = vpop.f32.mrb[0].mxu0
        %2295 = vmatprep.mubr.f32.mxu0 0.0
        %2296 = vmatmul.mubr.f32.gmra.mrb[0].mxu0 %v2116
        %v2297 = vpop.f32.mrb[0].mxu0
        %v2298 = vadd.f32 %v2088, %v2297
        %v2299 = vpop.f32.mrb[0].mxu0
        %2300 = vmatprep.mubr.f32.mxu0 0.0
        %2301 = vmatmul.mubr.f32.gmra.mrb[0].mxu0 %v2119
        %v2302 = vpop.f32.mrb[0].mxu0
        %v2303 = vadd.f32 %v2088, %v2302
        %v2304 = vpop.f32.mrb[0].mxu0
        %2305 = vmatprep.mubr.f32.mxu0 0.0
        %2306 = vmatmul.mubr.f32.gmra.mrb[0].mxu0 %v2122
        %v2307 = vpop.f32.mrb[0].mxu0
        %v2308 = vadd.f32 %v2088, %v2307
        %v2309 = vpop.f32.mrb[0].mxu0
        %2310 = vmatprep.mubr.f32.mxu0 0.0
        %2311 = vmatmul.mubr.f32.gmra.mrb[0].mxu0 %v2125
        %v2312 = vpop.f32.mrb[0].mxu0
        %v2313 = vadd.f32 %v2088, %v2312
        %v2314 = vpop.f32.mrb[0].mxu0
        %2315 = vmatprep.mubr.f32.mxu0 0.0
        %2316 = vmatmul.mubr.f32.gmra.mrb[0].mxu0 %v2128
        %v2317 = vpop.f32.mrb[0].mxu0
        %v2318 = vadd.f32 %v2088, %v2317
        %v2319 = vpop.f32.mrb[0].mxu0
        %2320 = vmatprep.mubr.f32.mxu0 0.0
        %2321 = vmatmul.mubr.f32.gmra.mrb[0].mxu0 %v2131
        %v2322 = vpop.f32.mrb[0].mxu0
        %v2323 = vadd.f32 %v2088, %v2322
        %v2324 = vpop.f32.mrb[0].mxu0
        %2325 = vmatprep.mubr.f32.mxu0 0.0
        %2326 = vmatmul.mubr.f32.gmra.mrb[0].mxu0 %v2134
        %v2327 = vpop.f32.mrb[0].mxu0
        %v2328 = vadd.f32 %v2088, %v2327
        %v2329 = vpop.f32.mrb[0].mxu0
        %2330 = vmatprep.mubr.f32.mxu0 0.0
        %2331 = vmatmul.mubr.f32.gmra.mrb[0].mxu0 %v2137
        %v2332 = vpop.f32.mrb[0].mxu0
        %v2333 = vadd.f32 %v2088, %v2332
        %v2334 = vpop.f32.mrb[0].mxu0
        %2335 = vmatprep.mubr.f32.mxu0 0.0
        %2336 = vmatmul.mubr.f32.gmra.mrb[0].mxu0 %v2140
        %v2337 = vpop.f32.mrb[0].mxu0
        %v2338 = vadd.f32 %v2088, %v2337
        %v2339 = vpop.f32.mrb[0].mxu0
        %2340 = vmatprep.mubr.f32.mxu0 0.0
        %2341 = vmatmul.mubr.f32.gmra.mrb[0].mxu0 %v2143
        %v2342 = vpop.f32.mrb[0].mxu0
        %v2343 = vadd.f32 %v2088, %v2342
        %v2344 = vpop.f32.mrb[0].mxu0
        %2345 = vmatprep.mubr.f32.mxu0 0.0
        %2346 = vmatmul.mubr.f32.gmra.mrb[0].mxu0 %v2146
        %v2347 = vpop.f32.mrb[0].mxu0
        %v2348 = vadd.f32 %v2088, %v2347
        %v2349 = vpop.f32.mrb[0].mxu0
        %2350 = vmatprep.mubr.f32.mxu0 0.0
        %2351 = vmatmul.mubr.f32.gmra.mrb[0].mxu0 %v2149
        %v2352 = vpop.f32.mrb[0].mxu0
        %v2353 = vadd.f32 %v2088, %v2352
        %v2354 = vpop.f32.mrb[0].mxu0
        %2355 = vmatprep.mubr.f32.mxu0 0.0
        %2356 = vmatmul.mubr.f32.gmra.mrb[0].mxu0 %v2152
        %v2357 = vpop.f32.mrb[0].mxu0
        %v2358 = vadd.f32 %v2088, %v2357
        %v2359 = vpop.f32.mrb[0].mxu0
        %2360 = vmatprep.mubr.f32.mxu0 0.0
        %2361 = vmatmul.mubr.f32.gmra.mrb[0].mxu0 %v2155
        %v2362 = vpop.f32.mrb[0].mxu0
        %v2363 = vadd.f32 %v2088, %v2362
        %v2364 = vpop.f32.mrb[0].mxu0
        %2365 = vmatprep.mubr.f32.mxu0 0.0
        %2366 = vmatmul.mubr.f32.gmra.mrb[0].mxu0 %v2158
        %v2367 = vpop.f32.mrb[0].mxu0
        %v2368 = vadd.f32 %v2088, %v2367
        %v2369 = vpop.f32.mrb[0].mxu0
        %2370 = vmatprep.mubr.f32.mxu0 0.0
        %2371 = vmatmul.mubr.f32.gmra.mrb[0].mxu0 %v2161
        %v2372 = vpop.f32.mrb[0].mxu0
        %v2373 = vadd.f32 %v2088, %v2372
        %v2374 = vpop.f32.mrb[0].mxu0
        %2375 = vmatprep.mubr.f32.mxu0 0.0
        %2376 = vmatmul.mubr.f32.gmra.mrb[0].mxu0 %v2164
        %v2377 = vpop.f32.mrb[0].mxu0
        %v2378 = vadd.f32 %v2088, %v2377
        %v2379 = vpop.f32.mrb[0].mxu0
        %2380 = vmatprep.mubr.f32.mxu0 0.0
        %2381 = vmatmul.mubr.f32.gmra.mrb[0].mxu0 %v2167
        %v2382 = vpop.f32.mrb[0].mxu0
        %v2383 = vadd.f32 %v2088, %v2382
        %v2384 = vpop.f32.mrb[0].mxu0
        %2385 = vmatprep.mubr.f32.mxu0 0.0
        %2386 = vmatmul.mubr.f32.gmra.mrb[0].mxu0 %v2170
        %v2387 = vpop.f32.mrb[0].mxu0
        %v2388 = vadd.f32 %v2088, %v2387
        %v2389 = vpop.f32.mrb[0].mxu0
        %2390 = vmatprep.mubr.f32.mxu0 0.0
        %2391 = vmatmul.mubr.f32.gmra.mrb[0].mxu0 %v2173
        %v2392 = vpop.f32.mrb[0].mxu0
        %v2393 = vadd.f32 %v2088, %v2392
        %v2394 = vpop.f32.mrb[0].mxu0
        %2395 = vmatprep.mubr.f32.mxu0 0.0
        %2396 = vmatmul.mubr.f32.gmra.mrb[0].mxu0 %v2176
        %v2397 = vpop.f32.mrb[0].mxu0
        %v2398 = vadd.f32 %v2088, %v2397
        %v2399 = vpop.f32.mrb[0].mxu0
        %2400 = vmatprep.mubr.f32.mxu0 0.0
        %2401 = vmatmul.mubr.f32.gmra.mrb[0].mxu0 %v2179
        %v2402 = vpop.f32.mrb[0].mxu0
        %v2403 = vadd.f32 %v2088, %v2402
        %v2404 = vpop.f32.mrb[0].mxu0
        %2405 = vmatprep.mubr.f32.mxu0 0.0
        %2406 = vmatmul.mubr.f32.gmra.mrb[0].mxu0 %v2182
        %v2407 = vpop.f32.mrb[0].mxu0
        %v2408 = vadd.f32 %v2088, %v2407
        %v2409 = vpop.f32.mrb[0].mxu0
        %2410 = vmatprep.mubr.f32.mxu0 0.0
        %2411 = vmatmul.mubr.f32.gmra.mrb[0].mxu0 %v2185
        %v2412 = vpop.f32.mrb[0].mxu0
        %v2413 = vadd.f32 %v2088, %v2412
        %v2414 = vpop.f32.mrb[0].mxu0
        %2415 = vdwg.mxu0
        %v2416 = vmax.f32 %v2258, 0.0
        %v2417 = vmax.f32 %v2263, 0.0
        %v2418 = vmax.f32 %v2268, 0.0
        %v2419 = vmax.f32 %v2273, 0.0
        %v2420 = vmax.f32 %v2278, 0.0
        %v2421 = vmax.f32 %v2283, 0.0
        %v2422 = vmax.f32 %v2288, 0.0
        %v2423 = vmax.f32 %v2293, 0.0
        %v2424 = vmax.f32 %v2298, 0.0
        %v2425 = vmax.f32 %v2303, 0.0
        %v2426 = vmax.f32 %v2308, 0.0
        %v2427 = vmax.f32 %v2313, 0.0
        %v2428 = vmax.f32 %v2318, 0.0
        %v2429 = vmax.f32 %v2323, 0.0
        %v2430 = vmax.f32 %v2328, 0.0
        %v2431 = vmax.f32 %v2333, 0.0
        %v2432 = vmax.f32 %v2338, 0.0
        %v2433 = vmax.f32 %v2343, 0.0
        %v2434 = vmax.f32 %v2348, 0.0
        %v2435 = vmax.f32 %v2353, 0.0
        %v2436 = vmax.f32 %v2358, 0.0
        %v2437 = vmax.f32 %v2363, 0.0
        %v2438 = vmax.f32 %v2368, 0.0
        %v2439 = vmax.f32 %v2373, 0.0
        %v2440 = vmax.f32 %v2378, 0.0
        %v2441 = vmax.f32 %v2383, 0.0
        %v2442 = vmax.f32 %v2388, 0.0
        %v2443 = vmax.f32 %v2393, 0.0
        %v2444 = vmax.f32 %v2398, 0.0
        %v2445 = vmax.f32 %v2403, 0.0
        %v2446 = vmax.f32 %v2408, 0.0
        %v2447 = vmax.f32 %v2413, 0.0
        %vm2448 = vcmask 64512
        %2449 = vst.msk [vmem:[#allocation4] sm:$0xff] %vm2448, 0.0
        %2450 = vst.msk [vmem:[#allocation4 + $0x8] sm:$0xff] %vm2448, 0.0
        %vm2451 = vcmask 58368
        %2452 = vst.msk [vmem:[#allocation4 + $0x10] sm:$0x3] %vm2451, 0.0
        %2453 = vst.msk [vmem:[#allocation4 + $0x18] sm:$0xff] %vm2448, 0.0
        %2454 = vst.msk [vmem:[#allocation4 + $0x20] sm:$0xff] %vm2448, 0.0
        %2455 = vst.msk [vmem:[#allocation4 + $0x28] sm:$0x3] %vm2451, 0.0
        %2456 = vst.msk [vmem:[#allocation4 + $0x30] sm:$0xff] %vm2448, 0.0
        %2457 = vst.msk [vmem:[#allocation4 + $0x38] sm:$0xff] %vm2448, 0.0
        %2458 = vst.msk [vmem:[#allocation4 + $0x40] sm:$0x3] %vm2451, 0.0
        %2459 = vst.msk [vmem:[#allocation4 + $0x48] sm:$0xff] %vm2448, 0.0
        %2460 = vst.msk [vmem:[#allocation4 + $0x50] sm:$0xff] %vm2448, 0.0
        %2461 = vst.msk [vmem:[#allocation4 + $0x58] sm:$0x3] %vm2451, 0.0
        %2462 = vst.msk [vmem:[#allocation4 + $0x60] sm:$0xff] %vm2448, 0.0
        %2463 = vst.msk [vmem:[#allocation4 + $0x68] sm:$0xff] %vm2448, 0.0
        %2464 = vst.msk [vmem:[#allocation4 + $0x70] sm:$0x3] %vm2451, 0.0
        %2465 = vst.msk [vmem:[#allocation4 + $0x78] sm:$0xff] %vm2448, 0.0
        %2466 = vst.msk [vmem:[#allocation4 + $0x80] sm:$0xff] %vm2448, 0.0
        %2467 = vst.msk [vmem:[#allocation4 + $0x88] sm:$0x3] %vm2451, 0.0
        %2468 = vst.msk [vmem:[#allocation4 + $0x90] sm:$0xff] %vm2448, 0.0
        %2469 = vst.msk [vmem:[#allocation4 + $0x98] sm:$0xff] %vm2448, 0.0
        %2470 = vst.msk [vmem:[#allocation4 + $0xa0] sm:$0x3] %vm2451, 0.0
        %2471 = vst.msk [vmem:[#allocation4 + $0xa8] sm:$0xff] %vm2448, 0.0
        %2472 = vst.msk [vmem:[#allocation4 + $0xb0] sm:$0xff] %vm2448, 0.0
        %2473 = vst.msk [vmem:[#allocation4 + $0xb8] sm:$0x3] %vm2451, 0.0
        %2474 = vst.msk [vmem:[#allocation4 + $0xc0] sm:$0xff] %vm2448, 0.0
        %2475 = vst.msk [vmem:[#allocation4 + $0xc8] sm:$0xff] %vm2448, 0.0
        %2476 = vst.msk [vmem:[#allocation4 + $0xd0] sm:$0x3] %vm2451, 0.0
        %2477 = vst.msk [vmem:[#allocation4 + $0xd8] sm:$0xff] %vm2448, 0.0
        %2478 = vst.msk [vmem:[#allocation4 + $0xe0] sm:$0xff] %vm2448, 0.0
        %2479 = vst.msk [vmem:[#allocation4 + $0xe8] sm:$0x3] %vm2451, 0.0
        %2480 = vst.msk [vmem:[#allocation4 + $0xf0] sm:$0xff] %vm2448, 0.0
        %2481 = vst.msk [vmem:[#allocation4 + $0xf8] sm:$0xff] %vm2448, 0.0
        %2482 = vst.msk [vmem:[#allocation4 + $0x100] sm:$0x3] %vm2451, 0.0
        %2483 = vst.msk [vmem:[#allocation4 + $0x108] sm:$0xff] %vm2448, 0.0
        %2484 = vst.msk [vmem:[#allocation4 + $0x110] sm:$0xff] %vm2448, 0.0
        %2485 = vst.msk [vmem:[#allocation4 + $0x118] sm:$0x3] %vm2451, 0.0
        %2486 = vst.msk [vmem:[#allocation4 + $0x120] sm:$0xff] %vm2448, 0.0
        %2487 = vst.msk [vmem:[#allocation4 + $0x128] sm:$0xff] %vm2448, 0.0
        %2488 = vst.msk [vmem:[#allocation4 + $0x130] sm:$0x3] %vm2451, 0.0
        %2489 = vst.msk [vmem:[#allocation4 + $0x138] sm:$0xff] %vm2448, 0.0
        %2490 = vst.msk [vmem:[#allocation4 + $0x140] sm:$0xff] %vm2448, 0.0
        %2491 = vst.msk [vmem:[#allocation4 + $0x148] sm:$0x3] %vm2451, 0.0
        %2492 = vst.msk [vmem:[#allocation4 + $0x150] sm:$0xff] %vm2448, 0.0
        %2493 = vst.msk [vmem:[#allocation4 + $0x158] sm:$0xff] %vm2448, 0.0
        %2494 = vst.msk [vmem:[#allocation4 + $0x160] sm:$0x3] %vm2451, 0.0
        %2495 = vst.msk [vmem:[#allocation4 + $0x168] sm:$0xff] %vm2448, 0.0
        %2496 = vst.msk [vmem:[#allocation4 + $0x170] sm:$0xff] %vm2448, 0.0
        %2497 = vst.msk [vmem:[#allocation4 + $0x178] sm:$0x3] %vm2451, 0.0
        %2498 = vst.msk [vmem:[#allocation4 + $0x180] sm:$0xff] %vm2448, 0.0
        %2499 = vst.msk [vmem:[#allocation4 + $0x188] sm:$0xff] %vm2448, 0.0
        %2500 = vst.msk [vmem:[#allocation4 + $0x190] sm:$0x3] %vm2451, 0.0
        %2501 = vst.msk [vmem:[#allocation4 + $0x198] sm:$0xff] %vm2448, 0.0
        %2502 = vst.msk [vmem:[#allocation4 + $0x1a0] sm:$0xff] %vm2448, 0.0
        %2503 = vst.msk [vmem:[#allocation4 + $0x1a8] sm:$0x3] %vm2451, 0.0
        %s2504 = scalar_lea.vmem [#allocation4], 24
        %2505 = vst.msk [vmem:[%s2504 + $0x1] sm:$0xff] %vm2448, %v2416
        %2506 = vst.msk [vmem:[%s2504 + $0x9] sm:$0xff] %vm2448, %v2417
        %2507 = vst.msk [vmem:[%s2504 + $0x19] sm:$0xff] %vm2448, %v2418
        %2508 = vst.msk [vmem:[%s2504 + $0x21] sm:$0xff] %vm2448, %v2419
        %2509 = vst.msk [vmem:[%s2504 + $0x31] sm:$0xff] %vm2448, %v2420
        %2510 = vst.msk [vmem:[%s2504 + $0x39] sm:$0xff] %vm2448, %v2421
        %2511 = vst.msk [vmem:[%s2504 + $0x49] sm:$0xff] %vm2448, %v2422
        %2512 = vst.msk [vmem:[%s2504 + $0x51] sm:$0xff] %vm2448, %v2423
        %2513 = vst.msk [vmem:[%s2504 + $0x61] sm:$0xff] %vm2448, %v2424
        %2514 = vst.msk [vmem:[%s2504 + $0x69] sm:$0xff] %vm2448, %v2425
        %2515 = vst.msk [vmem:[%s2504 + $0x79] sm:$0xff] %vm2448, %v2426
        %2516 = vst.msk [vmem:[%s2504 + $0x81] sm:$0xff] %vm2448, %v2427
        %2517 = vst.msk [vmem:[%s2504 + $0x91] sm:$0xff] %vm2448, %v2428
        %2518 = vst.msk [vmem:[%s2504 + $0x99] sm:$0xff] %vm2448, %v2429
        %2519 = vst.msk [vmem:[%s2504 + $0xa9] sm:$0xff] %vm2448, %v2430
        %2520 = vst.msk [vmem:[%s2504 + $0xb1] sm:$0xff] %vm2448, %v2431
        %2521 = vst.msk [vmem:[%s2504 + $0xc1] sm:$0xff] %vm2448, %v2432
        %2522 = vst.msk [vmem:[%s2504 + $0xc9] sm:$0xff] %vm2448, %v2433
        %2523 = vst.msk [vmem:[%s2504 + $0xd9] sm:$0xff] %vm2448, %v2434
        %2524 = vst.msk [vmem:[%s2504 + $0xe1] sm:$0xff] %vm2448, %v2435
        %2525 = vst.msk [vmem:[%s2504 + $0xf1] sm:$0xff] %vm2448, %v2436
        %2526 = vst.msk [vmem:[%s2504 + $0xf9] sm:$0xff] %vm2448, %v2437
        %2527 = vst.msk [vmem:[%s2504 + $0x109] sm:$0xff] %vm2448, %v2438
        %2528 = vst.msk [vmem:[%s2504 + $0x111] sm:$0xff] %vm2448, %v2439
        %2529 = vst.msk [vmem:[%s2504 + $0x121] sm:$0xff] %vm2448, %v2440
        %2530 = vst.msk [vmem:[%s2504 + $0x129] sm:$0xff] %vm2448, %v2441
        %2531 = vst.msk [vmem:[%s2504 + $0x139] sm:$0xff] %vm2448, %v2442
        %2532 = vst.msk [vmem:[%s2504 + $0x141] sm:$0xff] %vm2448, %v2443
        %2533 = vst.msk [vmem:[%s2504 + $0x151] sm:$0xff] %vm2448, %v2444
        %2534 = vst.msk [vmem:[%s2504 + $0x159] sm:$0xff] %vm2448, %v2445
        %2535 = vst.msk [vmem:[%s2504 + $0x169] sm:$0xff] %vm2448, %v2446
        %2536 = vst.msk [vmem:[%s2504 + $0x171] sm:$0xff] %vm2448, %v2447
        %v2537 = vld [vmem:[#allocation4] sm:$0xff]
        %v2538 = vld [vmem:[#allocation4 + $0x8] sm:$0xff]
        %v2539 = vld [vmem:[#allocation4 + $0x18] sm:$0xff]
        %v2540 = vld [vmem:[#allocation4 + $0x20] sm:$0xff]
        %v2541 = vld [vmem:[#allocation4 + $0x30] sm:$0xff]
        %v2542 = vld [vmem:[#allocation4 + $0x38] sm:$0xff]
        %v2543 = vld [vmem:[#allocation4 + $0x48] sm:$0xff]
        %v2544 = vld [vmem:[#allocation4 + $0x50] sm:$0xff]
        %v2545 = vld [vmem:[#allocation4 + $0x60] sm:$0xff]
        %v2546 = vld [vmem:[#allocation4 + $0x68] sm:$0xff]
        %v2547 = vld [vmem:[#allocation4 + $0x78] sm:$0xff]
        %v2548 = vld [vmem:[#allocation4 + $0x80] sm:$0xff]
        %v2549 = vld [vmem:[#allocation4 + $0x90] sm:$0xff]
        %v2550 = vld [vmem:[#allocation4 + $0x98] sm:$0xff]
        %v2551 = vld [vmem:[#allocation4 + $0xa8] sm:$0xff]
        %v2552 = vld [vmem:[#allocation4 + $0xb0] sm:$0xff]
        %v2553 = vld [vmem:[#allocation4 + $0xc0] sm:$0xff]
        %v2554 = vld [vmem:[#allocation4 + $0xc8] sm:$0xff]
        %v2555 = vld [vmem:[#allocation4 + $0xd8] sm:$0xff]
        %v2556 = vld [vmem:[#allocation4 + $0xe0] sm:$0xff]
        %v2557 = vld [vmem:[#allocation4 + $0xf0] sm:$0xff]
        %v2558 = vld [vmem:[#allocation4 + $0xf8] sm:$0xff]
        %v2559 = vld [vmem:[#allocation4 + $0x108] sm:$0xff]
        %v2560 = vld [vmem:[#allocation4 + $0x110] sm:$0xff]
        %v2561 = vld [vmem:[#allocation4 + $0x120] sm:$0xff]
        %v2562 = vld [vmem:[#allocation4 + $0x128] sm:$0xff]
        %v2563 = vld [vmem:[#allocation4 + $0x138] sm:$0xff]
        %v2564 = vld [vmem:[#allocation4 + $0x140] sm:$0xff]
        %v2565 = vld [vmem:[#allocation4 + $0x150] sm:$0xff]
        %v2566 = vld [vmem:[#allocation4 + $0x158] sm:$0xff]
        %v2567 = vld [vmem:[#allocation4 + $0x168] sm:$0xff]
        %v2568 = vld [vmem:[#allocation4 + $0x170] sm:$0xff]
        %2569 = vst.msk [vmem:[#allocation5] sm:$0xff] %vm2448, %v2537
        %2570 = vst.msk [vmem:[#allocation5 + $0x8] sm:$0xff] %vm2448, %v2538
        %2571 = vst.msk [vmem:[#allocation5 + $0x10] sm:$0xff] %vm2448, %v2539
        %2572 = vst.msk [vmem:[#allocation5 + $0x18] sm:$0xff] %vm2448, %v2540
        %2573 = vst.msk [vmem:[#allocation5 + $0x20] sm:$0xff] %vm2448, %v2541
        %2574 = vst.msk [vmem:[#allocation5 + $0x28] sm:$0xff] %vm2448, %v2542
        %2575 = vst.msk [vmem:[#allocation5 + $0x30] sm:$0xff] %vm2448, %v2543
        %2576 = vst.msk [vmem:[#allocation5 + $0x38] sm:$0xff] %vm2448, %v2544
        %2577 = vst.msk [vmem:[#allocation5 + $0x40] sm:$0xff] %vm2448, %v2545
        %2578 = vst.msk [vmem:[#allocation5 + $0x48] sm:$0xff] %vm2448, %v2546
        %2579 = vst.msk [vmem:[#allocation5 + $0x50] sm:$0xff] %vm2448, %v2547
        %2580 = vst.msk [vmem:[#allocation5 + $0x58] sm:$0xff] %vm2448, %v2548
        %2581 = vst.msk [vmem:[#allocation5 + $0x60] sm:$0xff] %vm2448, %v2549
        %2582 = vst.msk [vmem:[#allocation5 + $0x68] sm:$0xff] %vm2448, %v2550
        %2583 = vst.msk [vmem:[#allocation5 + $0x70] sm:$0xff] %vm2448, %v2551
        %2584 = vst.msk [vmem:[#allocation5 + $0x78] sm:$0xff] %vm2448, %v2552
        %2585 = vst.msk [vmem:[#allocation5 + $0x80] sm:$0xff] %vm2448, %v2553
        %2586 = vst.msk [vmem:[#allocation5 + $0x88] sm:$0xff] %vm2448, %v2554
        %2587 = vst.msk [vmem:[#allocation5 + $0x90] sm:$0xff] %vm2448, %v2555
        %2588 = vst.msk [vmem:[#allocation5 + $0x98] sm:$0xff] %vm2448, %v2556
        %2589 = vst.msk [vmem:[#allocation5 + $0xa0] sm:$0xff] %vm2448, %v2557
        %2590 = vst.msk [vmem:[#allocation5 + $0xa8] sm:$0xff] %vm2448, %v2558
        %2591 = vst.msk [vmem:[#allocation5 + $0xb0] sm:$0xff] %vm2448, %v2559
        %2592 = vst.msk [vmem:[#allocation5 + $0xb8] sm:$0xff] %vm2448, %v2560
        %2593 = vst.msk [vmem:[#allocation5 + $0xc0] sm:$0xff] %vm2448, %v2561
        %2594 = vst.msk [vmem:[#allocation5 + $0xc8] sm:$0xff] %vm2448, %v2562
        %2595 = vst.msk [vmem:[#allocation5 + $0xd0] sm:$0xff] %vm2448, %v2563
        %2596 = vst.msk [vmem:[#allocation5 + $0xd8] sm:$0xff] %vm2448, %v2564
        %2597 = vst.msk [vmem:[#allocation5 + $0xe0] sm:$0xff] %vm2448, %v2565
        %2598 = vst.msk [vmem:[#allocation5 + $0xe8] sm:$0xff] %vm2448, %v2566
        %2599 = vst.msk [vmem:[#allocation5 + $0xf0] sm:$0xff] %vm2448, %v2567
        %2600 = vst.msk [vmem:[#allocation5 + $0xf8] sm:$0xff] %vm2448, %v2568
        %v2601 = vld [vmem:[#allocation4 + $0x1] sm:$0xff]
        %v2602 = vld [vmem:[#allocation4 + $0x9] sm:$0xff]
        %v2603 = vld [vmem:[#allocation4 + $0x19] sm:$0xff]
        %v2604 = vld [vmem:[#allocation4 + $0x21] sm:$0xff]
        %v2605 = vld [vmem:[#allocation4 + $0x31] sm:$0xff]
        %v2606 = vld [vmem:[#allocation4 + $0x39] sm:$0xff]
        %v2607 = vld [vmem:[#allocation4 + $0x49] sm:$0xff]
        %v2608 = vld [vmem:[#allocation4 + $0x51] sm:$0xff]
        %v2609 = vld [vmem:[#allocation4 + $0x61] sm:$0xff]
        %v2610 = vld [vmem:[#allocation4 + $0x69] sm:$0xff]
        %v2611 = vld [vmem:[#allocation4 + $0x79] sm:$0xff]
        %v2612 = vld [vmem:[#allocation4 + $0x81] sm:$0xff]
        %v2613 = vld [vmem:[#allocation4 + $0x91] sm:$0xff]
        %v2614 = vld [vmem:[#allocation4 + $0x99] sm:$0xff]
        %v2615 = vld [vmem:[#allocation4 + $0xa9] sm:$0xff]
        %v2616 = vld [vmem:[#allocation4 + $0xb1] sm:$0xff]
        %v2617 = vld [vmem:[#allocation4 + $0xc1] sm:$0xff]
        %v2618 = vld [vmem:[#allocation4 + $0xc9] sm:$0xff]
        %v2619 = vld [vmem:[#allocation4 + $0xd9] sm:$0xff]
        %v2620 = vld [vmem:[#allocation4 + $0xe1] sm:$0xff]
        %v2621 = vld [vmem:[#allocation4 + $0xf1] sm:$0xff]
        %v2622 = vld [vmem:[#allocation4 + $0xf9] sm:$0xff]
        %v2623 = vld [vmem:[#allocation4 + $0x109] sm:$0xff]
        %v2624 = vld [vmem:[#allocation4 + $0x111] sm:$0xff]
        %v2625 = vld [vmem:[#allocation4 + $0x121] sm:$0xff]
        %v2626 = vld [vmem:[#allocation4 + $0x129] sm:$0xff]
        %v2627 = vld [vmem:[#allocation4 + $0x139] sm:$0xff]
        %v2628 = vld [vmem:[#allocation4 + $0x141] sm:$0xff]
        %v2629 = vld [vmem:[#allocation4 + $0x151] sm:$0xff]
        %v2630 = vld [vmem:[#allocation4 + $0x159] sm:$0xff]
        %v2631 = vld [vmem:[#allocation4 + $0x169] sm:$0xff]
        %v2632 = vld [vmem:[#allocation4 + $0x171] sm:$0xff]
        %2665 = vrot.lane.b32.xlu0 %v2601, 8
        %v2666 = vpop.permute.xlu0 %2665
        %2667 = vrot.lane.b32.xlu0 %v2602, 8
        %v2668 = vpop.permute.xlu0 %2667
        %2669 = vrot.lane.b32.xlu0 %v2603, 8
        %v2670 = vpop.permute.xlu0 %2669
        %2671 = vrot.lane.b32.xlu0 %v2604, 8
        %v2672 = vpop.permute.xlu0 %2671
        %2673 = vrot.lane.b32.xlu0 %v2605, 8
        %v2674 = vpop.permute.xlu0 %2673
        %2675 = vrot.lane.b32.xlu0 %v2606, 8
        %v2676 = vpop.permute.xlu0 %2675
        %2677 = vrot.lane.b32.xlu0 %v2607, 8
        %v2678 = vpop.permute.xlu0 %2677
        %2679 = vrot.lane.b32.xlu0 %v2608, 8
        %v2680 = vpop.permute.xlu0 %2679
        %2681 = vrot.lane.b32.xlu0 %v2609, 8
        %v2682 = vpop.permute.xlu0 %2681
        %2683 = vrot.lane.b32.xlu0 %v2610, 8
        %v2684 = vpop.permute.xlu0 %2683
        %2685 = vrot.lane.b32.xlu0 %v2611, 8
        %v2686 = vpop.permute.xlu0 %2685
        %2687 = vrot.lane.b32.xlu0 %v2612, 8
        %v2688 = vpop.permute.xlu0 %2687
        %2689 = vrot.lane.b32.xlu0 %v2613, 8
        %v2690 = vpop.permute.xlu0 %2689
        %2691 = vrot.lane.b32.xlu0 %v2614, 8
        %v2692 = vpop.permute.xlu0 %2691
        %2693 = vrot.lane.b32.xlu0 %v2615, 8
        %v2694 = vpop.permute.xlu0 %2693
        %2695 = vrot.lane.b32.xlu0 %v2616, 8
        %v2696 = vpop.permute.xlu0 %2695
        %2697 = vrot.lane.b32.xlu0 %v2617, 8
        %v2698 = vpop.permute.xlu0 %2697
        %2699 = vrot.lane.b32.xlu0 %v2618, 8
        %v2700 = vpop.permute.xlu0 %2699
        %2701 = vrot.lane.b32.xlu0 %v2619, 8
        %v2702 = vpop.permute.xlu0 %2701
        %2703 = vrot.lane.b32.xlu0 %v2620, 8
        %v2704 = vpop.permute.xlu0 %2703
        %2705 = vrot.lane.b32.xlu0 %v2621, 8
        %v2706 = vpop.permute.xlu0 %2705
        %2707 = vrot.lane.b32.xlu0 %v2622, 8
        %v2708 = vpop.permute.xlu0 %2707
        %2709 = vrot.lane.b32.xlu0 %v2623, 8
        %v2710 = vpop.permute.xlu0 %2709
        %2711 = vrot.lane.b32.xlu0 %v2624, 8
        %v2712 = vpop.permute.xlu0 %2711
        %2713 = vrot.lane.b32.xlu0 %v2625, 8
        %v2714 = vpop.permute.xlu0 %2713
        %2715 = vrot.lane.b32.xlu0 %v2626, 8
        %v2716 = vpop.permute.xlu0 %2715
        %2717 = vrot.lane.b32.xlu0 %v2627, 8
        %v2718 = vpop.permute.xlu0 %2717
        %2719 = vrot.lane.b32.xlu0 %v2628, 8
        %v2720 = vpop.permute.xlu0 %2719
        %2721 = vrot.lane.b32.xlu0 %v2629, 8
        %v2722 = vpop.permute.xlu0 %2721
        %2723 = vrot.lane.b32.xlu0 %v2630, 8
        %v2724 = vpop.permute.xlu0 %2723
        %2725 = vrot.lane.b32.xlu0 %v2631, 8
        %v2726 = vpop.permute.xlu0 %2725
        %2727 = vrot.lane.b32.xlu0 %v2632, 8
        %v2728 = vpop.permute.xlu0 %2727
        %vm2761 = vcmask 130112
        %2762 = vst.msk [vmem:[#allocation5] sm:$0xff] %vm2761, %v2666
        %2763 = vst.msk [vmem:[#allocation5 + $0x8] sm:$0xff] %vm2761, %v2668
        %2764 = vst.msk [vmem:[#allocation5 + $0x10] sm:$0xff] %vm2761, %v2670
        %2765 = vst.msk [vmem:[#allocation5 + $0x18] sm:$0xff] %vm2761, %v2672
        %2766 = vst.msk [vmem:[#allocation5 + $0x20] sm:$0xff] %vm2761, %v2674
        %2767 = vst.msk [vmem:[#allocation5 + $0x28] sm:$0xff] %vm2761, %v2676
        %2768 = vst.msk [vmem:[#allocation5 + $0x30] sm:$0xff] %vm2761, %v2678
        %2769 = vst.msk [vmem:[#allocation5 + $0x38] sm:$0xff] %vm2761, %v2680
        %2770 = vst.msk [vmem:[#allocation5 + $0x40] sm:$0xff] %vm2761, %v2682
        %2771 = vst.msk [vmem:[#allocation5 + $0x48] sm:$0xff] %vm2761, %v2684
        %2772 = vst.msk [vmem:[#allocation5 + $0x50] sm:$0xff] %vm2761, %v2686
        %2773 = vst.msk [vmem:[#allocation5 + $0x58] sm:$0xff] %vm2761, %v2688
        %2774 = vst.msk [vmem:[#allocation5 + $0x60] sm:$0xff] %vm2761, %v2690
        %2775 = vst.msk [vmem:[#allocation5 + $0x68] sm:$0xff] %vm2761, %v2692
        %2776 = vst.msk [vmem:[#allocation5 + $0x70] sm:$0xff] %vm2761, %v2694
        %2777 = vst.msk [vmem:[#allocation5 + $0x78] sm:$0xff] %vm2761, %v2696
        %2778 = vst.msk [vmem:[#allocation5 + $0x80] sm:$0xff] %vm2761, %v2698
        %2779 = vst.msk [vmem:[#allocation5 + $0x88] sm:$0xff] %vm2761, %v2700
        %2780 = vst.msk [vmem:[#allocation5 + $0x90] sm:$0xff] %vm2761, %v2702
        %2781 = vst.msk [vmem:[#allocation5 + $0x98] sm:$0xff] %vm2761, %v2704
        %2782 = vst.msk [vmem:[#allocation5 + $0xa0] sm:$0xff] %vm2761, %v2706
        %2783 = vst.msk [vmem:[#allocation5 + $0xa8] sm:$0xff] %vm2761, %v2708
        %2784 = vst.msk [vmem:[#allocation5 + $0xb0] sm:$0xff] %vm2761, %v2710
        %2785 = vst.msk [vmem:[#allocation5 + $0xb8] sm:$0xff] %vm2761, %v2712
        %2786 = vst.msk [vmem:[#allocation5 + $0xc0] sm:$0xff] %vm2761, %v2714
        %2787 = vst.msk [vmem:[#allocation5 + $0xc8] sm:$0xff] %vm2761, %v2716
        %2788 = vst.msk [vmem:[#allocation5 + $0xd0] sm:$0xff] %vm2761, %v2718
        %2789 = vst.msk [vmem:[#allocation5 + $0xd8] sm:$0xff] %vm2761, %v2720
        %2790 = vst.msk [vmem:[#allocation5 + $0xe0] sm:$0xff] %vm2761, %v2722
        %2791 = vst.msk [vmem:[#allocation5 + $0xe8] sm:$0xff] %vm2761, %v2724
        %2792 = vst.msk [vmem:[#allocation5 + $0xf0] sm:$0xff] %vm2761, %v2726
        %2793 = vst.msk [vmem:[#allocation5 + $0xf8] sm:$0xff] %vm2761, %v2728
        %v2794 = vld [vmem:[#allocation4 + $0x2] sm:$0xff]
        %v2795 = vld [vmem:[#allocation4 + $0xa] sm:$0xff]
        %v2796 = vld [vmem:[#allocation4 + $0x1a] sm:$0xff]
        %v2797 = vld [vmem:[#allocation4 + $0x22] sm:$0xff]
        %v2798 = vld [vmem:[#allocation4 + $0x32] sm:$0xff]
        %v2799 = vld [vmem:[#allocation4 + $0x3a] sm:$0xff]
        %v2800 = vld [vmem:[#allocation4 + $0x4a] sm:$0xff]
        %v2801 = vld [vmem:[#allocation4 + $0x52] sm:$0xff]
        %v2802 = vld [vmem:[#allocation4 + $0x62] sm:$0xff]
        %v2803 = vld [vmem:[#allocation4 + $0x6a] sm:$0xff]
        %v2804 = vld [vmem:[#allocation4 + $0x7a] sm:$0xff]
        %v2805 = vld [vmem:[#allocation4 + $0x82] sm:$0xff]
        %v2806 = vld [vmem:[#allocation4 + $0x92] sm:$0xff]
        %v2807 = vld [vmem:[#allocation4 + $0x9a] sm:$0xff]
        %v2808 = vld [vmem:[#allocation4 + $0xaa] sm:$0xff]
        %v2809 = vld [vmem:[#allocation4 + $0xb2] sm:$0xff]
        %v2810 = vld [vmem:[#allocation4 + $0xc2] sm:$0xff]
        %v2811 = vld [vmem:[#allocation4 + $0xca] sm:$0xff]
        %v2812 = vld [vmem:[#allocation4 + $0xda] sm:$0xff]
        %v2813 = vld [vmem:[#allocation4 + $0xe2] sm:$0xff]
        %v2814 = vld [vmem:[#allocation4 + $0xf2] sm:$0xff]
        %v2815 = vld [vmem:[#allocation4 + $0xfa] sm:$0xff]
        %v2816 = vld [vmem:[#allocation4 + $0x10a] sm:$0xff]
        %v2817 = vld [vmem:[#allocation4 + $0x112] sm:$0xff]
        %v2818 = vld [vmem:[#allocation4 + $0x122] sm:$0xff]
        %v2819 = vld [vmem:[#allocation4 + $0x12a] sm:$0xff]
        %v2820 = vld [vmem:[#allocation4 + $0x13a] sm:$0xff]
        %v2821 = vld [vmem:[#allocation4 + $0x142] sm:$0xff]
        %v2822 = vld [vmem:[#allocation4 + $0x152] sm:$0xff]
        %v2823 = vld [vmem:[#allocation4 + $0x15a] sm:$0xff]
        %v2824 = vld [vmem:[#allocation4 + $0x16a] sm:$0xff]
        %v2825 = vld [vmem:[#allocation4 + $0x172] sm:$0xff]
        %2858 = vrot.lane.b32.xlu0 %v2794, 16
        %v2859 = vpop.permute.xlu0 %2858
        %2860 = vrot.lane.b32.xlu0 %v2795, 16
        %v2861 = vpop.permute.xlu0 %2860
        %2862 = vrot.lane.b32.xlu0 %v2796, 16
        %v2863 = vpop.permute.xlu0 %2862
        %2864 = vrot.lane.b32.xlu0 %v2797, 16
        %v2865 = vpop.permute.xlu0 %2864
        %2866 = vrot.lane.b32.xlu0 %v2798, 16
        %v2867 = vpop.permute.xlu0 %2866
        %2868 = vrot.lane.b32.xlu0 %v2799, 16
        %v2869 = vpop.permute.xlu0 %2868
        %2870 = vrot.lane.b32.xlu0 %v2800, 16
        %v2871 = vpop.permute.xlu0 %2870
        %2872 = vrot.lane.b32.xlu0 %v2801, 16
        %v2873 = vpop.permute.xlu0 %2872
        %2874 = vrot.lane.b32.xlu0 %v2802, 16
        %v2875 = vpop.permute.xlu0 %2874
        %2876 = vrot.lane.b32.xlu0 %v2803, 16
        %v2877 = vpop.permute.xlu0 %2876
        %2878 = vrot.lane.b32.xlu0 %v2804, 16
        %v2879 = vpop.permute.xlu0 %2878
        %2880 = vrot.lane.b32.xlu0 %v2805, 16
        %v2881 = vpop.permute.xlu0 %2880
        %2882 = vrot.lane.b32.xlu0 %v2806, 16
        %v2883 = vpop.permute.xlu0 %2882
        %2884 = vrot.lane.b32.xlu0 %v2807, 16
        %v2885 = vpop.permute.xlu0 %2884
        %2886 = vrot.lane.b32.xlu0 %v2808, 16
        %v2887 = vpop.permute.xlu0 %2886
        %2888 = vrot.lane.b32.xlu0 %v2809, 16
        %v2889 = vpop.permute.xlu0 %2888
        %2890 = vrot.lane.b32.xlu0 %v2810, 16
        %v2891 = vpop.permute.xlu0 %2890
        %2892 = vrot.lane.b32.xlu0 %v2811, 16
        %v2893 = vpop.permute.xlu0 %2892
        %2894 = vrot.lane.b32.xlu0 %v2812, 16
        %v2895 = vpop.permute.xlu0 %2894
        %2896 = vrot.lane.b32.xlu0 %v2813, 16
        %v2897 = vpop.permute.xlu0 %2896
        %2898 = vrot.lane.b32.xlu0 %v2814, 16
        %v2899 = vpop.permute.xlu0 %2898
        %2900 = vrot.lane.b32.xlu0 %v2815, 16
        %v2901 = vpop.permute.xlu0 %2900
        %2902 = vrot.lane.b32.xlu0 %v2816, 16
        %v2903 = vpop.permute.xlu0 %2902
        %2904 = vrot.lane.b32.xlu0 %v2817, 16
        %v2905 = vpop.permute.xlu0 %2904
        %2906 = vrot.lane.b32.xlu0 %v2818, 16
        %v2907 = vpop.permute.xlu0 %2906
        %2908 = vrot.lane.b32.xlu0 %v2819, 16
        %v2909 = vpop.permute.xlu0 %2908
        %2910 = vrot.lane.b32.xlu0 %v2820, 16
        %v2911 = vpop.permute.xlu0 %2910
        %2912 = vrot.lane.b32.xlu0 %v2821, 16
        %v2913 = vpop.permute.xlu0 %2912
        %2914 = vrot.lane.b32.xlu0 %v2822, 16
        %v2915 = vpop.permute.xlu0 %2914
        %2916 = vrot.lane.b32.xlu0 %v2823, 16
        %v2917 = vpop.permute.xlu0 %2916
        %2918 = vrot.lane.b32.xlu0 %v2824, 16
        %v2919 = vpop.permute.xlu0 %2918
        %2920 = vrot.lane.b32.xlu0 %v2825, 16
        %v2921 = vpop.permute.xlu0 %2920
        %vm2954 = vcmask 195712
        %2955 = vst.msk [vmem:[#allocation5] sm:$0xff] %vm2954, %v2859
        %2956 = vst.msk [vmem:[#allocation5 + $0x8] sm:$0xff] %vm2954, %v2861
        %2957 = vst.msk [vmem:[#allocation5 + $0x10] sm:$0xff] %vm2954, %v2863
        %2958 = vst.msk [vmem:[#allocation5 + $0x18] sm:$0xff] %vm2954, %v2865
        %2959 = vst.msk [vmem:[#allocation5 + $0x20] sm:$0xff] %vm2954, %v2867
        %2960 = vst.msk [vmem:[#allocation5 + $0x28] sm:$0xff] %vm2954, %v2869
        %2961 = vst.msk [vmem:[#allocation5 + $0x30] sm:$0xff] %vm2954, %v2871
        %2962 = vst.msk [vmem:[#allocation5 + $0x38] sm:$0xff] %vm2954, %v2873
        %2963 = vst.msk [vmem:[#allocation5 + $0x40] sm:$0xff] %vm2954, %v2875
        %2964 = vst.msk [vmem:[#allocation5 + $0x48] sm:$0xff] %vm2954, %v2877
        %2965 = vst.msk [vmem:[#allocation5 + $0x50] sm:$0xff] %vm2954, %v2879
        %2966 = vst.msk [vmem:[#allocation5 + $0x58] sm:$0xff] %vm2954, %v2881
        %2967 = vst.msk [vmem:[#allocation5 + $0x60] sm:$0xff] %vm2954, %v2883
        %2968 = vst.msk [vmem:[#allocation5 + $0x68] sm:$0xff] %vm2954, %v2885
        %2969 = vst.msk [vmem:[#allocation5 + $0x70] sm:$0xff] %vm2954, %v2887
        %2970 = vst.msk [vmem:[#allocation5 + $0x78] sm:$0xff] %vm2954, %v2889
        %2971 = vst.msk [vmem:[#allocation5 + $0x80] sm:$0xff] %vm2954, %v2891
        %2972 = vst.msk [vmem:[#allocation5 + $0x88] sm:$0xff] %vm2954, %v2893
        %2973 = vst.msk [vmem:[#allocation5 + $0x90] sm:$0xff] %vm2954, %v2895
        %2974 = vst.msk [vmem:[#allocation5 + $0x98] sm:$0xff] %vm2954, %v2897
        %2975 = vst.msk [vmem:[#allocation5 + $0xa0] sm:$0xff] %vm2954, %v2899
        %2976 = vst.msk [vmem:[#allocation5 + $0xa8] sm:$0xff] %vm2954, %v2901
        %2977 = vst.msk [vmem:[#allocation5 + $0xb0] sm:$0xff] %vm2954, %v2903
        %2978 = vst.msk [vmem:[#allocation5 + $0xb8] sm:$0xff] %vm2954, %v2905
        %2979 = vst.msk [vmem:[#allocation5 + $0xc0] sm:$0xff] %vm2954, %v2907
        %2980 = vst.msk [vmem:[#allocation5 + $0xc8] sm:$0xff] %vm2954, %v2909
        %2981 = vst.msk [vmem:[#allocation5 + $0xd0] sm:$0xff] %vm2954, %v2911
        %2982 = vst.msk [vmem:[#allocation5 + $0xd8] sm:$0xff] %vm2954, %v2913
        %2983 = vst.msk [vmem:[#allocation5 + $0xe0] sm:$0xff] %vm2954, %v2915
        %2984 = vst.msk [vmem:[#allocation5 + $0xe8] sm:$0xff] %vm2954, %v2917
        %2985 = vst.msk [vmem:[#allocation5 + $0xf0] sm:$0xff] %vm2954, %v2919
        %2986 = vst.msk [vmem:[#allocation5 + $0xf8] sm:$0xff] %vm2954, %v2921
        %v2987 = vld [vmem:[%s2504] sm:$0xff]
        %v2988 = vld [vmem:[%s2504 + $0x8] sm:$0xff]
        %v2989 = vld [vmem:[%s2504 + $0x18] sm:$0xff]
        %v2990 = vld [vmem:[%s2504 + $0x20] sm:$0xff]
        %v2991 = vld [vmem:[%s2504 + $0x30] sm:$0xff]
        %v2992 = vld [vmem:[%s2504 + $0x38] sm:$0xff]
        %v2993 = vld [vmem:[%s2504 + $0x48] sm:$0xff]
        %v2994 = vld [vmem:[%s2504 + $0x50] sm:$0xff]
        %v2995 = vld [vmem:[%s2504 + $0x60] sm:$0xff]
        %v2996 = vld [vmem:[%s2504 + $0x68] sm:$0xff]
        %v2997 = vld [vmem:[%s2504 + $0x78] sm:$0xff]
        %v2998 = vld [vmem:[%s2504 + $0x80] sm:$0xff]
        %v2999 = vld [vmem:[%s2504 + $0x90] sm:$0xff]
        %v3000 = vld [vmem:[%s2504 + $0x98] sm:$0xff]
        %v3001 = vld [vmem:[%s2504 + $0xa8] sm:$0xff]
        %v3002 = vld [vmem:[%s2504 + $0xb0] sm:$0xff]
        %v3003 = vld [vmem:[%s2504 + $0xc0] sm:$0xff]
        %v3004 = vld [vmem:[%s2504 + $0xc8] sm:$0xff]
        %v3005 = vld [vmem:[%s2504 + $0xd8] sm:$0xff]
        %v3006 = vld [vmem:[%s2504 + $0xe0] sm:$0xff]
        %v3007 = vld [vmem:[%s2504 + $0xf0] sm:$0xff]
        %v3008 = vld [vmem:[%s2504 + $0xf8] sm:$0xff]
        %v3009 = vld [vmem:[%s2504 + $0x108] sm:$0xff]
        %v3010 = vld [vmem:[%s2504 + $0x110] sm:$0xff]
        %v3011 = vld [vmem:[%s2504 + $0x120] sm:$0xff]
        %v3012 = vld [vmem:[%s2504 + $0x128] sm:$0xff]
        %v3013 = vld [vmem:[%s2504 + $0x138] sm:$0xff]
        %v3014 = vld [vmem:[%s2504 + $0x140] sm:$0xff]
        %v3015 = vld [vmem:[%s2504 + $0x150] sm:$0xff]
        %v3016 = vld [vmem:[%s2504 + $0x158] sm:$0xff]
        %v3017 = vld [vmem:[%s2504 + $0x168] sm:$0xff]
        %v3018 = vld [vmem:[%s2504 + $0x170] sm:$0xff]
        %3051 = vrot.lane.b32.xlu0 %v2987, 24
        %v3052 = vpop.permute.xlu0 %3051
        %3053 = vrot.lane.b32.xlu0 %v2988, 24
        %v3054 = vpop.permute.xlu0 %3053
        %3055 = vrot.lane.b32.xlu0 %v2989, 24
        %v3056 = vpop.permute.xlu0 %3055
        %3057 = vrot.lane.b32.xlu0 %v2990, 24
        %v3058 = vpop.permute.xlu0 %3057
        %3059 = vrot.lane.b32.xlu0 %v2991, 24
        %v3060 = vpop.permute.xlu0 %3059
        %3061 = vrot.lane.b32.xlu0 %v2992, 24
        %v3062 = vpop.permute.xlu0 %3061
        %3063 = vrot.lane.b32.xlu0 %v2993, 24
        %v3064 = vpop.permute.xlu0 %3063
        %3065 = vrot.lane.b32.xlu0 %v2994, 24
        %v3066 = vpop.permute.xlu0 %3065
        %3067 = vrot.lane.b32.xlu0 %v2995, 24
        %v3068 = vpop.permute.xlu0 %3067
        %3069 = vrot.lane.b32.xlu0 %v2996, 24
        %v3070 = vpop.permute.xlu0 %3069
        %3071 = vrot.lane.b32.xlu0 %v2997, 24
        %v3072 = vpop.permute.xlu0 %3071
        %3073 = vrot.lane.b32.xlu0 %v2998, 24
        %v3074 = vpop.permute.xlu0 %3073
        %3075 = vrot.lane.b32.xlu0 %v2999, 24
        %v3076 = vpop.permute.xlu0 %3075
        %3077 = vrot.lane.b32.xlu0 %v3000, 24
        %v3078 = vpop.permute.xlu0 %3077
        %3079 = vrot.lane.b32.xlu0 %v3001, 24
        %v3080 = vpop.permute.xlu0 %3079
        %3081 = vrot.lane.b32.xlu0 %v3002, 24
        %v3082 = vpop.permute.xlu0 %3081
        %3083 = vrot.lane.b32.xlu0 %v3003, 24
        %v3084 = vpop.permute.xlu0 %3083
        %3085 = vrot.lane.b32.xlu0 %v3004, 24
        %v3086 = vpop.permute.xlu0 %3085
        %3087 = vrot.lane.b32.xlu0 %v3005, 24
        %v3088 = vpop.permute.xlu0 %3087
        %3089 = vrot.lane.b32.xlu0 %v3006, 24
        %v3090 = vpop.permute.xlu0 %3089
        %3091 = vrot.lane.b32.xlu0 %v3007, 24
        %v3092 = vpop.permute.xlu0 %3091
        %3093 = vrot.lane.b32.xlu0 %v3008, 24
        %v3094 = vpop.permute.xlu0 %3093
        %3095 = vrot.lane.b32.xlu0 %v3009, 24
        %v3096 = vpop.permute.xlu0 %3095
        %3097 = vrot.lane.b32.xlu0 %v3010, 24
        %v3098 = vpop.permute.xlu0 %3097
        %3099 = vrot.lane.b32.xlu0 %v3011, 24
        %v3100 = vpop.permute.xlu0 %3099
        %3101 = vrot.lane.b32.xlu0 %v3012, 24
        %v3102 = vpop.permute.xlu0 %3101
        %3103 = vrot.lane.b32.xlu0 %v3013, 24
        %v3104 = vpop.permute.xlu0 %3103
        %3105 = vrot.lane.b32.xlu0 %v3014, 24
        %v3106 = vpop.permute.xlu0 %3105
        %3107 = vrot.lane.b32.xlu0 %v3015, 24
        %v3108 = vpop.permute.xlu0 %3107
        %3109 = vrot.lane.b32.xlu0 %v3016, 24
        %v3110 = vpop.permute.xlu0 %3109
        %3111 = vrot.lane.b32.xlu0 %v3017, 24
        %v3112 = vpop.permute.xlu0 %3111
        %3113 = vrot.lane.b32.xlu0 %v3018, 24
        %v3114 = vpop.permute.xlu0 %3113
        %vm3147 = vcmask 261312
        %3148 = vst.msk [vmem:[#allocation5] sm:$0xff] %vm3147, %v3052
        %3149 = vst.msk [vmem:[#allocation5 + $0x8] sm:$0xff] %vm3147, %v3054
        %3150 = vst.msk [vmem:[#allocation5 + $0x10] sm:$0xff] %vm3147, %v3056
        %3151 = vst.msk [vmem:[#allocation5 + $0x18] sm:$0xff] %vm3147, %v3058
        %3152 = vst.msk [vmem:[#allocation5 + $0x20] sm:$0xff] %vm3147, %v3060
        %3153 = vst.msk [vmem:[#allocation5 + $0x28] sm:$0xff] %vm3147, %v3062
        %3154 = vst.msk [vmem:[#allocation5 + $0x30] sm:$0xff] %vm3147, %v3064
        %3155 = vst.msk [vmem:[#allocation5 + $0x38] sm:$0xff] %vm3147, %v3066
        %3156 = vst.msk [vmem:[#allocation5 + $0x40] sm:$0xff] %vm3147, %v3068
        %3157 = vst.msk [vmem:[#allocation5 + $0x48] sm:$0xff] %vm3147, %v3070
        %3158 = vst.msk [vmem:[#allocation5 + $0x50] sm:$0xff] %vm3147, %v3072
        %3159 = vst.msk [vmem:[#allocation5 + $0x58] sm:$0xff] %vm3147, %v3074
        %3160 = vst.msk [vmem:[#allocation5 + $0x60] sm:$0xff] %vm3147, %v3076
        %3161 = vst.msk [vmem:[#allocation5 + $0x68] sm:$0xff] %vm3147, %v3078
        %3162 = vst.msk [vmem:[#allocation5 + $0x70] sm:$0xff] %vm3147, %v3080
        %3163 = vst.msk [vmem:[#allocation5 + $0x78] sm:$0xff] %vm3147, %v3082
        %3164 = vst.msk [vmem:[#allocation5 + $0x80] sm:$0xff] %vm3147, %v3084
        %3165 = vst.msk [vmem:[#allocation5 + $0x88] sm:$0xff] %vm3147, %v3086
        %3166 = vst.msk [vmem:[#allocation5 + $0x90] sm:$0xff] %vm3147, %v3088
        %3167 = vst.msk [vmem:[#allocation5 + $0x98] sm:$0xff] %vm3147, %v3090
        %3168 = vst.msk [vmem:[#allocation5 + $0xa0] sm:$0xff] %vm3147, %v3092
        %3169 = vst.msk [vmem:[#allocation5 + $0xa8] sm:$0xff] %vm3147, %v3094
        %3170 = vst.msk [vmem:[#allocation5 + $0xb0] sm:$0xff] %vm3147, %v3096
        %3171 = vst.msk [vmem:[#allocation5 + $0xb8] sm:$0xff] %vm3147, %v3098
        %3172 = vst.msk [vmem:[#allocation5 + $0xc0] sm:$0xff] %vm3147, %v3100
        %3173 = vst.msk [vmem:[#allocation5 + $0xc8] sm:$0xff] %vm3147, %v3102
        %3174 = vst.msk [vmem:[#allocation5 + $0xd0] sm:$0xff] %vm3147, %v3104
        %3175 = vst.msk [vmem:[#allocation5 + $0xd8] sm:$0xff] %vm3147, %v3106
        %3176 = vst.msk [vmem:[#allocation5 + $0xe0] sm:$0xff] %vm3147, %v3108
        %3177 = vst.msk [vmem:[#allocation5 + $0xe8] sm:$0xff] %vm3147, %v3110
        %3178 = vst.msk [vmem:[#allocation5 + $0xf0] sm:$0xff] %vm3147, %v3112
        %3179 = vst.msk [vmem:[#allocation5 + $0xf8] sm:$0xff] %vm3147, %v3114
        %v3180 = vld [vmem:[%s2504 + $0x1] sm:$0xff]
        %v3181 = vld [vmem:[%s2504 + $0x9] sm:$0xff]
        %v3182 = vld [vmem:[%s2504 + $0x19] sm:$0xff]
        %v3183 = vld [vmem:[%s2504 + $0x21] sm:$0xff]
        %v3184 = vld [vmem:[%s2504 + $0x31] sm:$0xff]
        %v3185 = vld [vmem:[%s2504 + $0x39] sm:$0xff]
        %v3186 = vld [vmem:[%s2504 + $0x49] sm:$0xff]
        %v3187 = vld [vmem:[%s2504 + $0x51] sm:$0xff]
        %v3188 = vld [vmem:[%s2504 + $0x61] sm:$0xff]
        %v3189 = vld [vmem:[%s2504 + $0x69] sm:$0xff]
        %v3190 = vld [vmem:[%s2504 + $0x79] sm:$0xff]
        %v3191 = vld [vmem:[%s2504 + $0x81] sm:$0xff]
        %v3192 = vld [vmem:[%s2504 + $0x91] sm:$0xff]
        %v3193 = vld [vmem:[%s2504 + $0x99] sm:$0xff]
        %v3194 = vld [vmem:[%s2504 + $0xa9] sm:$0xff]
        %v3195 = vld [vmem:[%s2504 + $0xb1] sm:$0xff]
        %v3196 = vld [vmem:[%s2504 + $0xc1] sm:$0xff]
        %v3197 = vld [vmem:[%s2504 + $0xc9] sm:$0xff]
        %v3198 = vld [vmem:[%s2504 + $0xd9] sm:$0xff]
        %v3199 = vld [vmem:[%s2504 + $0xe1] sm:$0xff]
        %v3200 = vld [vmem:[%s2504 + $0xf1] sm:$0xff]
        %v3201 = vld [vmem:[%s2504 + $0xf9] sm:$0xff]
        %v3202 = vld [vmem:[%s2504 + $0x109] sm:$0xff]
        %v3203 = vld [vmem:[%s2504 + $0x111] sm:$0xff]
        %v3204 = vld [vmem:[%s2504 + $0x121] sm:$0xff]
        %v3205 = vld [vmem:[%s2504 + $0x129] sm:$0xff]
        %v3206 = vld [vmem:[%s2504 + $0x139] sm:$0xff]
        %v3207 = vld [vmem:[%s2504 + $0x141] sm:$0xff]
        %v3208 = vld [vmem:[%s2504 + $0x151] sm:$0xff]
        %v3209 = vld [vmem:[%s2504 + $0x159] sm:$0xff]
        %v3210 = vld [vmem:[%s2504 + $0x169] sm:$0xff]
        %v3211 = vld [vmem:[%s2504 + $0x171] sm:$0xff]
        %3244 = vrot.lane.b32.xlu0 %v3180, 32
        %v3245 = vpop.permute.xlu0 %3244
        %3246 = vrot.lane.b32.xlu0 %v3181, 32
        %v3247 = vpop.permute.xlu0 %3246
        %3248 = vrot.lane.b32.xlu0 %v3182, 32
        %v3249 = vpop.permute.xlu0 %3248
        %3250 = vrot.lane.b32.xlu0 %v3183, 32
        %v3251 = vpop.permute.xlu0 %3250
        %3252 = vrot.lane.b32.xlu0 %v3184, 32
        %v3253 = vpop.permute.xlu0 %3252
        %3254 = vrot.lane.b32.xlu0 %v3185, 32
        %v3255 = vpop.permute.xlu0 %3254
        %3256 = vrot.lane.b32.xlu0 %v3186, 32
        %v3257 = vpop.permute.xlu0 %3256
        %3258 = vrot.lane.b32.xlu0 %v3187, 32
        %v3259 = vpop.permute.xlu0 %3258
        %3260 = vrot.lane.b32.xlu0 %v3188, 32
        %v3261 = vpop.permute.xlu0 %3260
        %3262 = vrot.lane.b32.xlu0 %v3189, 32
        %v3263 = vpop.permute.xlu0 %3262
        %3264 = vrot.lane.b32.xlu0 %v3190, 32
        %v3265 = vpop.permute.xlu0 %3264
        %3266 = vrot.lane.b32.xlu0 %v3191, 32
        %v3267 = vpop.permute.xlu0 %3266
        %3268 = vrot.lane.b32.xlu0 %v3192, 32
        %v3269 = vpop.permute.xlu0 %3268
        %3270 = vrot.lane.b32.xlu0 %v3193, 32
        %v3271 = vpop.permute.xlu0 %3270
        %3272 = vrot.lane.b32.xlu0 %v3194, 32
        %v3273 = vpop.permute.xlu0 %3272
        %3274 = vrot.lane.b32.xlu0 %v3195, 32
        %v3275 = vpop.permute.xlu0 %3274
        %3276 = vrot.lane.b32.xlu0 %v3196, 32
        %v3277 = vpop.permute.xlu0 %3276
        %3278 = vrot.lane.b32.xlu0 %v3197, 32
        %v3279 = vpop.permute.xlu0 %3278
        %3280 = vrot.lane.b32.xlu0 %v3198, 32
        %v3281 = vpop.permute.xlu0 %3280
        %3282 = vrot.lane.b32.xlu0 %v3199, 32
        %v3283 = vpop.permute.xlu0 %3282
        %3284 = vrot.lane.b32.xlu0 %v3200, 32
        %v3285 = vpop.permute.xlu0 %3284
        %3286 = vrot.lane.b32.xlu0 %v3201, 32
        %v3287 = vpop.permute.xlu0 %3286
        %3288 = vrot.lane.b32.xlu0 %v3202, 32
        %v3289 = vpop.permute.xlu0 %3288
        %3290 = vrot.lane.b32.xlu0 %v3203, 32
        %v3291 = vpop.permute.xlu0 %3290
        %3292 = vrot.lane.b32.xlu0 %v3204, 32
        %v3293 = vpop.permute.xlu0 %3292
        %3294 = vrot.lane.b32.xlu0 %v3205, 32
        %v3295 = vpop.permute.xlu0 %3294
        %3296 = vrot.lane.b32.xlu0 %v3206, 32
        %v3297 = vpop.permute.xlu0 %3296
        %3298 = vrot.lane.b32.xlu0 %v3207, 32
        %v3299 = vpop.permute.xlu0 %3298
        %3300 = vrot.lane.b32.xlu0 %v3208, 32
        %v3301 = vpop.permute.xlu0 %3300
        %3302 = vrot.lane.b32.xlu0 %v3209, 32
        %v3303 = vpop.permute.xlu0 %3302
        %3304 = vrot.lane.b32.xlu0 %v3210, 32
        %v3305 = vpop.permute.xlu0 %3304
        %3306 = vrot.lane.b32.xlu0 %v3211, 32
        %v3307 = vpop.permute.xlu0 %3306
        %vm3340 = vcmask 326912
        %3341 = vst.msk [vmem:[#allocation5] sm:$0xff] %vm3340, %v3245
        %3342 = vst.msk [vmem:[#allocation5 + $0x8] sm:$0xff] %vm3340, %v3247
        %3343 = vst.msk [vmem:[#allocation5 + $0x10] sm:$0xff] %vm3340, %v3249
        %3344 = vst.msk [vmem:[#allocation5 + $0x18] sm:$0xff] %vm3340, %v3251
        %3345 = vst.msk [vmem:[#allocation5 + $0x20] sm:$0xff] %vm3340, %v3253
        %3346 = vst.msk [vmem:[#allocation5 + $0x28] sm:$0xff] %vm3340, %v3255
        %3347 = vst.msk [vmem:[#allocation5 + $0x30] sm:$0xff] %vm3340, %v3257
        %3348 = vst.msk [vmem:[#allocation5 + $0x38] sm:$0xff] %vm3340, %v3259
        %3349 = vst.msk [vmem:[#allocation5 + $0x40] sm:$0xff] %vm3340, %v3261
        %3350 = vst.msk [vmem:[#allocation5 + $0x48] sm:$0xff] %vm3340, %v3263
        %3351 = vst.msk [vmem:[#allocation5 + $0x50] sm:$0xff] %vm3340, %v3265
        %3352 = vst.msk [vmem:[#allocation5 + $0x58] sm:$0xff] %vm3340, %v3267
        %3353 = vst.msk [vmem:[#allocation5 + $0x60] sm:$0xff] %vm3340, %v3269
        %3354 = vst.msk [vmem:[#allocation5 + $0x68] sm:$0xff] %vm3340, %v3271
        %3355 = vst.msk [vmem:[#allocation5 + $0x70] sm:$0xff] %vm3340, %v3273
        %3356 = vst.msk [vmem:[#allocation5 + $0x78] sm:$0xff] %vm3340, %v3275
        %3357 = vst.msk [vmem:[#allocation5 + $0x80] sm:$0xff] %vm3340, %v3277
        %3358 = vst.msk [vmem:[#allocation5 + $0x88] sm:$0xff] %vm3340, %v3279
        %3359 = vst.msk [vmem:[#allocation5 + $0x90] sm:$0xff] %vm3340, %v3281
        %3360 = vst.msk [vmem:[#allocation5 + $0x98] sm:$0xff] %vm3340, %v3283
        %3361 = vst.msk [vmem:[#allocation5 + $0xa0] sm:$0xff] %vm3340, %v3285
        %3362 = vst.msk [vmem:[#allocation5 + $0xa8] sm:$0xff] %vm3340, %v3287
        %3363 = vst.msk [vmem:[#allocation5 + $0xb0] sm:$0xff] %vm3340, %v3289
        %3364 = vst.msk [vmem:[#allocation5 + $0xb8] sm:$0xff] %vm3340, %v3291
        %3365 = vst.msk [vmem:[#allocation5 + $0xc0] sm:$0xff] %vm3340, %v3293
        %3366 = vst.msk [vmem:[#allocation5 + $0xc8] sm:$0xff] %vm3340, %v3295
        %3367 = vst.msk [vmem:[#allocation5 + $0xd0] sm:$0xff] %vm3340, %v3297
        %3368 = vst.msk [vmem:[#allocation5 + $0xd8] sm:$0xff] %vm3340, %v3299
        %3369 = vst.msk [vmem:[#allocation5 + $0xe0] sm:$0xff] %vm3340, %v3301
        %3370 = vst.msk [vmem:[#allocation5 + $0xe8] sm:$0xff] %vm3340, %v3303
        %3371 = vst.msk [vmem:[#allocation5 + $0xf0] sm:$0xff] %vm3340, %v3305
        %3372 = vst.msk [vmem:[#allocation5 + $0xf8] sm:$0xff] %vm3340, %v3307
        %v3373 = vld [vmem:[%s2504 + $0x2] sm:$0xff]
        %v3374 = vld [vmem:[%s2504 + $0xa] sm:$0xff]
        %v3375 = vld [vmem:[%s2504 + $0x1a] sm:$0xff]
        %v3376 = vld [vmem:[%s2504 + $0x22] sm:$0xff]
        %v3377 = vld [vmem:[%s2504 + $0x32] sm:$0xff]
        %v3378 = vld [vmem:[%s2504 + $0x3a] sm:$0xff]
        %v3379 = vld [vmem:[%s2504 + $0x4a] sm:$0xff]
        %v3380 = vld [vmem:[%s2504 + $0x52] sm:$0xff]
        %v3381 = vld [vmem:[%s2504 + $0x62] sm:$0xff]
        %v3382 = vld [vmem:[%s2504 + $0x6a] sm:$0xff]
        %v3383 = vld [vmem:[%s2504 + $0x7a] sm:$0xff]
        %v3384 = vld [vmem:[%s2504 + $0x82] sm:$0xff]
        %v3385 = vld [vmem:[%s2504 + $0x92] sm:$0xff]
        %v3386 = vld [vmem:[%s2504 + $0x9a] sm:$0xff]
        %v3387 = vld [vmem:[%s2504 + $0xaa] sm:$0xff]
        %v3388 = vld [vmem:[%s2504 + $0xb2] sm:$0xff]
        %v3389 = vld [vmem:[%s2504 + $0xc2] sm:$0xff]
        %v3390 = vld [vmem:[%s2504 + $0xca] sm:$0xff]
        %v3391 = vld [vmem:[%s2504 + $0xda] sm:$0xff]
        %v3392 = vld [vmem:[%s2504 + $0xe2] sm:$0xff]
        %v3393 = vld [vmem:[%s2504 + $0xf2] sm:$0xff]
        %v3394 = vld [vmem:[%s2504 + $0xfa] sm:$0xff]
        %v3395 = vld [vmem:[%s2504 + $0x10a] sm:$0xff]
        %v3396 = vld [vmem:[%s2504 + $0x112] sm:$0xff]
        %v3397 = vld [vmem:[%s2504 + $0x122] sm:$0xff]
        %v3398 = vld [vmem:[%s2504 + $0x12a] sm:$0xff]
        %v3399 = vld [vmem:[%s2504 + $0x13a] sm:$0xff]
        %v3400 = vld [vmem:[%s2504 + $0x142] sm:$0xff]
        %v3401 = vld [vmem:[%s2504 + $0x152] sm:$0xff]
        %v3402 = vld [vmem:[%s2504 + $0x15a] sm:$0xff]
        %v3403 = vld [vmem:[%s2504 + $0x16a] sm:$0xff]
        %v3404 = vld [vmem:[%s2504 + $0x172] sm:$0xff]
        %3437 = vrot.lane.b32.xlu0 %v3373, 40
        %v3438 = vpop.permute.xlu0 %3437
        %3439 = vrot.lane.b32.xlu0 %v3374, 40
        %v3440 = vpop.permute.xlu0 %3439
        %3441 = vrot.lane.b32.xlu0 %v3375, 40
        %v3442 = vpop.permute.xlu0 %3441
        %3443 = vrot.lane.b32.xlu0 %v3376, 40
        %v3444 = vpop.permute.xlu0 %3443
        %3445 = vrot.lane.b32.xlu0 %v3377, 40
        %v3446 = vpop.permute.xlu0 %3445
        %3447 = vrot.lane.b32.xlu0 %v3378, 40
        %v3448 = vpop.permute.xlu0 %3447
        %3449 = vrot.lane.b32.xlu0 %v3379, 40
        %v3450 = vpop.permute.xlu0 %3449
        %3451 = vrot.lane.b32.xlu0 %v3380, 40
        %v3452 = vpop.permute.xlu0 %3451
        %3453 = vrot.lane.b32.xlu0 %v3381, 40
        %v3454 = vpop.permute.xlu0 %3453
        %3455 = vrot.lane.b32.xlu0 %v3382, 40
        %v3456 = vpop.permute.xlu0 %3455
        %3457 = vrot.lane.b32.xlu0 %v3383, 40
        %v3458 = vpop.permute.xlu0 %3457
        %3459 = vrot.lane.b32.xlu0 %v3384, 40
        %v3460 = vpop.permute.xlu0 %3459
        %3461 = vrot.lane.b32.xlu0 %v3385, 40
        %v3462 = vpop.permute.xlu0 %3461
        %3463 = vrot.lane.b32.xlu0 %v3386, 40
        %v3464 = vpop.permute.xlu0 %3463
        %3465 = vrot.lane.b32.xlu0 %v3387, 40
        %v3466 = vpop.permute.xlu0 %3465
        %3467 = vrot.lane.b32.xlu0 %v3388, 40
        %v3468 = vpop.permute.xlu0 %3467
        %3469 = vrot.lane.b32.xlu0 %v3389, 40
        %v3470 = vpop.permute.xlu0 %3469
        %3471 = vrot.lane.b32.xlu0 %v3390, 40
        %v3472 = vpop.permute.xlu0 %3471
        %3473 = vrot.lane.b32.xlu0 %v3391, 40
        %v3474 = vpop.permute.xlu0 %3473
        %3475 = vrot.lane.b32.xlu0 %v3392, 40
        %v3476 = vpop.permute.xlu0 %3475
        %3477 = vrot.lane.b32.xlu0 %v3393, 40
        %v3478 = vpop.permute.xlu0 %3477
        %3479 = vrot.lane.b32.xlu0 %v3394, 40
        %v3480 = vpop.permute.xlu0 %3479
        %3481 = vrot.lane.b32.xlu0 %v3395, 40
        %v3482 = vpop.permute.xlu0 %3481
        %3483 = vrot.lane.b32.xlu0 %v3396, 40
        %v3484 = vpop.permute.xlu0 %3483
        %3485 = vrot.lane.b32.xlu0 %v3397, 40
        %v3486 = vpop.permute.xlu0 %3485
        %3487 = vrot.lane.b32.xlu0 %v3398, 40
        %v3488 = vpop.permute.xlu0 %3487
        %3489 = vrot.lane.b32.xlu0 %v3399, 40
        %v3490 = vpop.permute.xlu0 %3489
        %3491 = vrot.lane.b32.xlu0 %v3400, 40
        %v3492 = vpop.permute.xlu0 %3491
        %3493 = vrot.lane.b32.xlu0 %v3401, 40
        %v3494 = vpop.permute.xlu0 %3493
        %3495 = vrot.lane.b32.xlu0 %v3402, 40
        %v3496 = vpop.permute.xlu0 %3495
        %3497 = vrot.lane.b32.xlu0 %v3403, 40
        %v3498 = vpop.permute.xlu0 %3497
        %3499 = vrot.lane.b32.xlu0 %v3404, 40
        %v3500 = vpop.permute.xlu0 %3499
        %vm3533 = vcmask 392512
        %3534 = vst.msk [vmem:[#allocation5] sm:$0xff] %vm3533, %v3438
        %3535 = vst.msk [vmem:[#allocation5 + $0x8] sm:$0xff] %vm3533, %v3440
        %3536 = vst.msk [vmem:[#allocation5 + $0x10] sm:$0xff] %vm3533, %v3442
        %3537 = vst.msk [vmem:[#allocation5 + $0x18] sm:$0xff] %vm3533, %v3444
        %3538 = vst.msk [vmem:[#allocation5 + $0x20] sm:$0xff] %vm3533, %v3446
        %3539 = vst.msk [vmem:[#allocation5 + $0x28] sm:$0xff] %vm3533, %v3448
        %3540 = vst.msk [vmem:[#allocation5 + $0x30] sm:$0xff] %vm3533, %v3450
        %3541 = vst.msk [vmem:[#allocation5 + $0x38] sm:$0xff] %vm3533, %v3452
        %3542 = vst.msk [vmem:[#allocation5 + $0x40] sm:$0xff] %vm3533, %v3454
        %3543 = vst.msk [vmem:[#allocation5 + $0x48] sm:$0xff] %vm3533, %v3456
        %3544 = vst.msk [vmem:[#allocation5 + $0x50] sm:$0xff] %vm3533, %v3458
        %3545 = vst.msk [vmem:[#allocation5 + $0x58] sm:$0xff] %vm3533, %v3460
        %3546 = vst.msk [vmem:[#allocation5 + $0x60] sm:$0xff] %vm3533, %v3462
        %3547 = vst.msk [vmem:[#allocation5 + $0x68] sm:$0xff] %vm3533, %v3464
        %3548 = vst.msk [vmem:[#allocation5 + $0x70] sm:$0xff] %vm3533, %v3466
        %3549 = vst.msk [vmem:[#allocation5 + $0x78] sm:$0xff] %vm3533, %v3468
        %3550 = vst.msk [vmem:[#allocation5 + $0x80] sm:$0xff] %vm3533, %v3470
        %3551 = vst.msk [vmem:[#allocation5 + $0x88] sm:$0xff] %vm3533, %v3472
        %3552 = vst.msk [vmem:[#allocation5 + $0x90] sm:$0xff] %vm3533, %v3474
        %3553 = vst.msk [vmem:[#allocation5 + $0x98] sm:$0xff] %vm3533, %v3476
        %3554 = vst.msk [vmem:[#allocation5 + $0xa0] sm:$0xff] %vm3533, %v3478
        %3555 = vst.msk [vmem:[#allocation5 + $0xa8] sm:$0xff] %vm3533, %v3480
        %3556 = vst.msk [vmem:[#allocation5 + $0xb0] sm:$0xff] %vm3533, %v3482
        %3557 = vst.msk [vmem:[#allocation5 + $0xb8] sm:$0xff] %vm3533, %v3484
        %3558 = vst.msk [vmem:[#allocation5 + $0xc0] sm:$0xff] %vm3533, %v3486
        %3559 = vst.msk [vmem:[#allocation5 + $0xc8] sm:$0xff] %vm3533, %v3488
        %3560 = vst.msk [vmem:[#allocation5 + $0xd0] sm:$0xff] %vm3533, %v3490
        %3561 = vst.msk [vmem:[#allocation5 + $0xd8] sm:$0xff] %vm3533, %v3492
        %3562 = vst.msk [vmem:[#allocation5 + $0xe0] sm:$0xff] %vm3533, %v3494
        %3563 = vst.msk [vmem:[#allocation5 + $0xe8] sm:$0xff] %vm3533, %v3496
        %3564 = vst.msk [vmem:[#allocation5 + $0xf0] sm:$0xff] %vm3533, %v3498
        %3565 = vst.msk [vmem:[#allocation5 + $0xf8] sm:$0xff] %vm3533, %v3500
        %s3566 = scalar_lea.vmem [#allocation4], 48
        %v3567 = vld [vmem:[%s3566] sm:$0xff]
        %v3568 = vld [vmem:[%s3566 + $0x8] sm:$0xff]
        %v3569 = vld [vmem:[%s3566 + $0x18] sm:$0xff]
        %v3570 = vld [vmem:[%s3566 + $0x20] sm:$0xff]
        %v3571 = vld [vmem:[%s3566 + $0x30] sm:$0xff]
        %v3572 = vld [vmem:[%s3566 + $0x38] sm:$0xff]
        %v3573 = vld [vmem:[%s3566 + $0x48] sm:$0xff]
        %v3574 = vld [vmem:[%s3566 + $0x50] sm:$0xff]
        %v3575 = vld [vmem:[%s3566 + $0x60] sm:$0xff]
        %v3576 = vld [vmem:[%s3566 + $0x68] sm:$0xff]
        %v3577 = vld [vmem:[%s3566 + $0x78] sm:$0xff]
        %v3578 = vld [vmem:[%s3566 + $0x80] sm:$0xff]
        %v3579 = vld [vmem:[%s3566 + $0x90] sm:$0xff]
        %v3580 = vld [vmem:[%s3566 + $0x98] sm:$0xff]
        %v3581 = vld [vmem:[%s3566 + $0xa8] sm:$0xff]
        %v3582 = vld [vmem:[%s3566 + $0xb0] sm:$0xff]
        %v3583 = vld [vmem:[%s3566 + $0xc0] sm:$0xff]
        %v3584 = vld [vmem:[%s3566 + $0xc8] sm:$0xff]
        %v3585 = vld [vmem:[%s3566 + $0xd8] sm:$0xff]
        %v3586 = vld [vmem:[%s3566 + $0xe0] sm:$0xff]
        %v3587 = vld [vmem:[%s3566 + $0xf0] sm:$0xff]
        %v3588 = vld [vmem:[%s3566 + $0xf8] sm:$0xff]
        %v3589 = vld [vmem:[%s3566 + $0x108] sm:$0xff]
        %v3590 = vld [vmem:[%s3566 + $0x110] sm:$0xff]
        %v3591 = vld [vmem:[%s3566 + $0x120] sm:$0xff]
        %v3592 = vld [vmem:[%s3566 + $0x128] sm:$0xff]
        %v3593 = vld [vmem:[%s3566 + $0x138] sm:$0xff]
        %v3594 = vld [vmem:[%s3566 + $0x140] sm:$0xff]
        %v3595 = vld [vmem:[%s3566 + $0x150] sm:$0xff]
        %v3596 = vld [vmem:[%s3566 + $0x158] sm:$0xff]
        %v3597 = vld [vmem:[%s3566 + $0x168] sm:$0xff]
        %v3598 = vld [vmem:[%s3566 + $0x170] sm:$0xff]
        %3631 = vrot.lane.b32.xlu0 %v3567, 48
        %v3632 = vpop.permute.xlu0 %3631
        %3633 = vrot.lane.b32.xlu0 %v3568, 48
        %v3634 = vpop.permute.xlu0 %3633
        %3635 = vrot.lane.b32.xlu0 %v3569, 48
        %v3636 = vpop.permute.xlu0 %3635
        %3637 = vrot.lane.b32.xlu0 %v3570, 48
        %v3638 = vpop.permute.xlu0 %3637
        %3639 = vrot.lane.b32.xlu0 %v3571, 48
        %v3640 = vpop.permute.xlu0 %3639
        %3641 = vrot.lane.b32.xlu0 %v3572, 48
        %v3642 = vpop.permute.xlu0 %3641
        %3643 = vrot.lane.b32.xlu0 %v3573, 48
        %v3644 = vpop.permute.xlu0 %3643
        %3645 = vrot.lane.b32.xlu0 %v3574, 48
        %v3646 = vpop.permute.xlu0 %3645
        %3647 = vrot.lane.b32.xlu0 %v3575, 48
        %v3648 = vpop.permute.xlu0 %3647
        %3649 = vrot.lane.b32.xlu0 %v3576, 48
        %v3650 = vpop.permute.xlu0 %3649
        %3651 = vrot.lane.b32.xlu0 %v3577, 48
        %v3652 = vpop.permute.xlu0 %3651
        %3653 = vrot.lane.b32.xlu0 %v3578, 48
        %v3654 = vpop.permute.xlu0 %3653
        %3655 = vrot.lane.b32.xlu0 %v3579, 48
        %v3656 = vpop.permute.xlu0 %3655
        %3657 = vrot.lane.b32.xlu0 %v3580, 48
        %v3658 = vpop.permute.xlu0 %3657
        %3659 = vrot.lane.b32.xlu0 %v3581, 48
        %v3660 = vpop.permute.xlu0 %3659
        %3661 = vrot.lane.b32.xlu0 %v3582, 48
        %v3662 = vpop.permute.xlu0 %3661
        %3663 = vrot.lane.b32.xlu0 %v3583, 48
        %v3664 = vpop.permute.xlu0 %3663
        %3665 = vrot.lane.b32.xlu0 %v3584, 48
        %v3666 = vpop.permute.xlu0 %3665
        %3667 = vrot.lane.b32.xlu0 %v3585, 48
        %v3668 = vpop.permute.xlu0 %3667
        %3669 = vrot.lane.b32.xlu0 %v3586, 48
        %v3670 = vpop.permute.xlu0 %3669
        %3671 = vrot.lane.b32.xlu0 %v3587, 48
        %v3672 = vpop.permute.xlu0 %3671
        %3673 = vrot.lane.b32.xlu0 %v3588, 48
        %v3674 = vpop.permute.xlu0 %3673
        %3675 = vrot.lane.b32.xlu0 %v3589, 48
        %v3676 = vpop.permute.xlu0 %3675
        %3677 = vrot.lane.b32.xlu0 %v3590, 48
        %v3678 = vpop.permute.xlu0 %3677
        %3679 = vrot.lane.b32.xlu0 %v3591, 48
        %v3680 = vpop.permute.xlu0 %3679
        %3681 = vrot.lane.b32.xlu0 %v3592, 48
        %v3682 = vpop.permute.xlu0 %3681
        %3683 = vrot.lane.b32.xlu0 %v3593, 48
        %v3684 = vpop.permute.xlu0 %3683
        %3685 = vrot.lane.b32.xlu0 %v3594, 48
        %v3686 = vpop.permute.xlu0 %3685
        %3687 = vrot.lane.b32.xlu0 %v3595, 48
        %v3688 = vpop.permute.xlu0 %3687
        %3689 = vrot.lane.b32.xlu0 %v3596, 48
        %v3690 = vpop.permute.xlu0 %3689
        %3691 = vrot.lane.b32.xlu0 %v3597, 48
        %v3692 = vpop.permute.xlu0 %3691
        %3693 = vrot.lane.b32.xlu0 %v3598, 48
        %v3694 = vpop.permute.xlu0 %3693
        %vm3727 = vcmask 458112
        %3728 = vst.msk [vmem:[#allocation5] sm:$0xff] %vm3727, %v3632
        %3729 = vst.msk [vmem:[#allocation5 + $0x8] sm:$0xff] %vm3727, %v3634
        %3730 = vst.msk [vmem:[#allocation5 + $0x10] sm:$0xff] %vm3727, %v3636
        %3731 = vst.msk [vmem:[#allocation5 + $0x18] sm:$0xff] %vm3727, %v3638
        %3732 = vst.msk [vmem:[#allocation5 + $0x20] sm:$0xff] %vm3727, %v3640
        %3733 = vst.msk [vmem:[#allocation5 + $0x28] sm:$0xff] %vm3727, %v3642
        %3734 = vst.msk [vmem:[#allocation5 + $0x30] sm:$0xff] %vm3727, %v3644
        %3735 = vst.msk [vmem:[#allocation5 + $0x38] sm:$0xff] %vm3727, %v3646
        %3736 = vst.msk [vmem:[#allocation5 + $0x40] sm:$0xff] %vm3727, %v3648
        %3737 = vst.msk [vmem:[#allocation5 + $0x48] sm:$0xff] %vm3727, %v3650
        %3738 = vst.msk [vmem:[#allocation5 + $0x50] sm:$0xff] %vm3727, %v3652
        %3739 = vst.msk [vmem:[#allocation5 + $0x58] sm:$0xff] %vm3727, %v3654
        %3740 = vst.msk [vmem:[#allocation5 + $0x60] sm:$0xff] %vm3727, %v3656
        %3741 = vst.msk [vmem:[#allocation5 + $0x68] sm:$0xff] %vm3727, %v3658
        %3742 = vst.msk [vmem:[#allocation5 + $0x70] sm:$0xff] %vm3727, %v3660
        %3743 = vst.msk [vmem:[#allocation5 + $0x78] sm:$0xff] %vm3727, %v3662
        %3744 = vst.msk [vmem:[#allocation5 + $0x80] sm:$0xff] %vm3727, %v3664
        %3745 = vst.msk [vmem:[#allocation5 + $0x88] sm:$0xff] %vm3727, %v3666
        %3746 = vst.msk [vmem:[#allocation5 + $0x90] sm:$0xff] %vm3727, %v3668
        %3747 = vst.msk [vmem:[#allocation5 + $0x98] sm:$0xff] %vm3727, %v3670
        %3748 = vst.msk [vmem:[#allocation5 + $0xa0] sm:$0xff] %vm3727, %v3672
        %3749 = vst.msk [vmem:[#allocation5 + $0xa8] sm:$0xff] %vm3727, %v3674
        %3750 = vst.msk [vmem:[#allocation5 + $0xb0] sm:$0xff] %vm3727, %v3676
        %3751 = vst.msk [vmem:[#allocation5 + $0xb8] sm:$0xff] %vm3727, %v3678
        %3752 = vst.msk [vmem:[#allocation5 + $0xc0] sm:$0xff] %vm3727, %v3680
        %3753 = vst.msk [vmem:[#allocation5 + $0xc8] sm:$0xff] %vm3727, %v3682
        %3754 = vst.msk [vmem:[#allocation5 + $0xd0] sm:$0xff] %vm3727, %v3684
        %3755 = vst.msk [vmem:[#allocation5 + $0xd8] sm:$0xff] %vm3727, %v3686
        %3756 = vst.msk [vmem:[#allocation5 + $0xe0] sm:$0xff] %vm3727, %v3688
        %3757 = vst.msk [vmem:[#allocation5 + $0xe8] sm:$0xff] %vm3727, %v3690
        %3758 = vst.msk [vmem:[#allocation5 + $0xf0] sm:$0xff] %vm3727, %v3692
        %3759 = vst.msk [vmem:[#allocation5 + $0xf8] sm:$0xff] %vm3727, %v3694
        %v3760 = vld [vmem:[%s3566 + $0x1] sm:$0xff]
        %v3761 = vld [vmem:[%s3566 + $0x9] sm:$0xff]
        %v3762 = vld [vmem:[%s3566 + $0x19] sm:$0xff]
        %v3763 = vld [vmem:[%s3566 + $0x21] sm:$0xff]
        %v3764 = vld [vmem:[%s3566 + $0x31] sm:$0xff]
        %v3765 = vld [vmem:[%s3566 + $0x39] sm:$0xff]
        %v3766 = vld [vmem:[%s3566 + $0x49] sm:$0xff]
        %v3767 = vld [vmem:[%s3566 + $0x51] sm:$0xff]
        %v3768 = vld [vmem:[%s3566 + $0x61] sm:$0xff]
        %v3769 = vld [vmem:[%s3566 + $0x69] sm:$0xff]
        %v3770 = vld [vmem:[%s3566 + $0x79] sm:$0xff]
        %v3771 = vld [vmem:[%s3566 + $0x81] sm:$0xff]
        %v3772 = vld [vmem:[%s3566 + $0x91] sm:$0xff]
        %v3773 = vld [vmem:[%s3566 + $0x99] sm:$0xff]
        %v3774 = vld [vmem:[%s3566 + $0xa9] sm:$0xff]
        %v3775 = vld [vmem:[%s3566 + $0xb1] sm:$0xff]
        %v3776 = vld [vmem:[%s3566 + $0xc1] sm:$0xff]
        %v3777 = vld [vmem:[%s3566 + $0xc9] sm:$0xff]
        %v3778 = vld [vmem:[%s3566 + $0xd9] sm:$0xff]
        %v3779 = vld [vmem:[%s3566 + $0xe1] sm:$0xff]
        %v3780 = vld [vmem:[%s3566 + $0xf1] sm:$0xff]
        %v3781 = vld [vmem:[%s3566 + $0xf9] sm:$0xff]
        %v3782 = vld [vmem:[%s3566 + $0x109] sm:$0xff]
        %v3783 = vld [vmem:[%s3566 + $0x111] sm:$0xff]
        %v3784 = vld [vmem:[%s3566 + $0x121] sm:$0xff]
        %v3785 = vld [vmem:[%s3566 + $0x129] sm:$0xff]
        %v3786 = vld [vmem:[%s3566 + $0x139] sm:$0xff]
        %v3787 = vld [vmem:[%s3566 + $0x141] sm:$0xff]
        %v3788 = vld [vmem:[%s3566 + $0x151] sm:$0xff]
        %v3789 = vld [vmem:[%s3566 + $0x159] sm:$0xff]
        %v3790 = vld [vmem:[%s3566 + $0x169] sm:$0xff]
        %v3791 = vld [vmem:[%s3566 + $0x171] sm:$0xff]
        %3824 = vrot.lane.b32.xlu0 %v3760, 56
        %v3825 = vpop.permute.xlu0 %3824
        %3826 = vrot.lane.b32.xlu0 %v3761, 56
        %v3827 = vpop.permute.xlu0 %3826
        %3828 = vrot.lane.b32.xlu0 %v3762, 56
        %v3829 = vpop.permute.xlu0 %3828
        %3830 = vrot.lane.b32.xlu0 %v3763, 56
        %v3831 = vpop.permute.xlu0 %3830
        %3832 = vrot.lane.b32.xlu0 %v3764, 56
        %v3833 = vpop.permute.xlu0 %3832
        %3834 = vrot.lane.b32.xlu0 %v3765, 56
        %v3835 = vpop.permute.xlu0 %3834
        %3836 = vrot.lane.b32.xlu0 %v3766, 56
        %v3837 = vpop.permute.xlu0 %3836
        %3838 = vrot.lane.b32.xlu0 %v3767, 56
        %v3839 = vpop.permute.xlu0 %3838
        %3840 = vrot.lane.b32.xlu0 %v3768, 56
        %v3841 = vpop.permute.xlu0 %3840
        %3842 = vrot.lane.b32.xlu0 %v3769, 56
        %v3843 = vpop.permute.xlu0 %3842
        %3844 = vrot.lane.b32.xlu0 %v3770, 56
        %v3845 = vpop.permute.xlu0 %3844
        %3846 = vrot.lane.b32.xlu0 %v3771, 56
        %v3847 = vpop.permute.xlu0 %3846
        %3848 = vrot.lane.b32.xlu0 %v3772, 56
        %v3849 = vpop.permute.xlu0 %3848
        %3850 = vrot.lane.b32.xlu0 %v3773, 56
        %v3851 = vpop.permute.xlu0 %3850
        %3852 = vrot.lane.b32.xlu0 %v3774, 56
        %v3853 = vpop.permute.xlu0 %3852
        %3854 = vrot.lane.b32.xlu0 %v3775, 56
        %v3855 = vpop.permute.xlu0 %3854
        %3856 = vrot.lane.b32.xlu0 %v3776, 56
        %v3857 = vpop.permute.xlu0 %3856
        %3858 = vrot.lane.b32.xlu0 %v3777, 56
        %v3859 = vpop.permute.xlu0 %3858
        %3860 = vrot.lane.b32.xlu0 %v3778, 56
        %v3861 = vpop.permute.xlu0 %3860
        %3862 = vrot.lane.b32.xlu0 %v3779, 56
        %v3863 = vpop.permute.xlu0 %3862
        %3864 = vrot.lane.b32.xlu0 %v3780, 56
        %v3865 = vpop.permute.xlu0 %3864
        %3866 = vrot.lane.b32.xlu0 %v3781, 56
        %v3867 = vpop.permute.xlu0 %3866
        %3868 = vrot.lane.b32.xlu0 %v3782, 56
        %v3869 = vpop.permute.xlu0 %3868
        %3870 = vrot.lane.b32.xlu0 %v3783, 56
        %v3871 = vpop.permute.xlu0 %3870
        %3872 = vrot.lane.b32.xlu0 %v3784, 56
        %v3873 = vpop.permute.xlu0 %3872
        %3874 = vrot.lane.b32.xlu0 %v3785, 56
        %v3875 = vpop.permute.xlu0 %3874
        %3876 = vrot.lane.b32.xlu0 %v3786, 56
        %v3877 = vpop.permute.xlu0 %3876
        %3878 = vrot.lane.b32.xlu0 %v3787, 56
        %v3879 = vpop.permute.xlu0 %3878
        %3880 = vrot.lane.b32.xlu0 %v3788, 56
        %v3881 = vpop.permute.xlu0 %3880
        %3882 = vrot.lane.b32.xlu0 %v3789, 56
        %v3883 = vpop.permute.xlu0 %3882
        %3884 = vrot.lane.b32.xlu0 %v3790, 56
        %v3885 = vpop.permute.xlu0 %3884
        %3886 = vrot.lane.b32.xlu0 %v3791, 56
        %v3887 = vpop.permute.xlu0 %3886
        %vm3920 = vcmask 523712
        %3921 = vst.msk [vmem:[#allocation5] sm:$0xff] %vm3920, %v3825
        %3922 = vst.msk [vmem:[#allocation5 + $0x8] sm:$0xff] %vm3920, %v3827
        %3923 = vst.msk [vmem:[#allocation5 + $0x10] sm:$0xff] %vm3920, %v3829
        %3924 = vst.msk [vmem:[#allocation5 + $0x18] sm:$0xff] %vm3920, %v3831
        %3925 = vst.msk [vmem:[#allocation5 + $0x20] sm:$0xff] %vm3920, %v3833
        %3926 = vst.msk [vmem:[#allocation5 + $0x28] sm:$0xff] %vm3920, %v3835
        %3927 = vst.msk [vmem:[#allocation5 + $0x30] sm:$0xff] %vm3920, %v3837
        %3928 = vst.msk [vmem:[#allocation5 + $0x38] sm:$0xff] %vm3920, %v3839
        %3929 = vst.msk [vmem:[#allocation5 + $0x40] sm:$0xff] %vm3920, %v3841
        %3930 = vst.msk [vmem:[#allocation5 + $0x48] sm:$0xff] %vm3920, %v3843
        %3931 = vst.msk [vmem:[#allocation5 + $0x50] sm:$0xff] %vm3920, %v3845
        %3932 = vst.msk [vmem:[#allocation5 + $0x58] sm:$0xff] %vm3920, %v3847
        %3933 = vst.msk [vmem:[#allocation5 + $0x60] sm:$0xff] %vm3920, %v3849
        %3934 = vst.msk [vmem:[#allocation5 + $0x68] sm:$0xff] %vm3920, %v3851
        %3935 = vst.msk [vmem:[#allocation5 + $0x70] sm:$0xff] %vm3920, %v3853
        %3936 = vst.msk [vmem:[#allocation5 + $0x78] sm:$0xff] %vm3920, %v3855
        %3937 = vst.msk [vmem:[#allocation5 + $0x80] sm:$0xff] %vm3920, %v3857
        %3938 = vst.msk [vmem:[#allocation5 + $0x88] sm:$0xff] %vm3920, %v3859
        %3939 = vst.msk [vmem:[#allocation5 + $0x90] sm:$0xff] %vm3920, %v3861
        %3940 = vst.msk [vmem:[#allocation5 + $0x98] sm:$0xff] %vm3920, %v3863
        %3941 = vst.msk [vmem:[#allocation5 + $0xa0] sm:$0xff] %vm3920, %v3865
        %3942 = vst.msk [vmem:[#allocation5 + $0xa8] sm:$0xff] %vm3920, %v3867
        %3943 = vst.msk [vmem:[#allocation5 + $0xb0] sm:$0xff] %vm3920, %v3869
        %3944 = vst.msk [vmem:[#allocation5 + $0xb8] sm:$0xff] %vm3920, %v3871
        %3945 = vst.msk [vmem:[#allocation5 + $0xc0] sm:$0xff] %vm3920, %v3873
        %3946 = vst.msk [vmem:[#allocation5 + $0xc8] sm:$0xff] %vm3920, %v3875
        %3947 = vst.msk [vmem:[#allocation5 + $0xd0] sm:$0xff] %vm3920, %v3877
        %3948 = vst.msk [vmem:[#allocation5 + $0xd8] sm:$0xff] %vm3920, %v3879
        %3949 = vst.msk [vmem:[#allocation5 + $0xe0] sm:$0xff] %vm3920, %v3881
        %3950 = vst.msk [vmem:[#allocation5 + $0xe8] sm:$0xff] %vm3920, %v3883
        %3951 = vst.msk [vmem:[#allocation5 + $0xf0] sm:$0xff] %vm3920, %v3885
        %3952 = vst.msk [vmem:[#allocation5 + $0xf8] sm:$0xff] %vm3920, %v3887
        %v3953 = vld [vmem:[%s3566 + $0x2] sm:$0xff]
        %v3954 = vld [vmem:[%s3566 + $0xa] sm:$0xff]
        %v3955 = vld [vmem:[%s3566 + $0x1a] sm:$0xff]
        %v3956 = vld [vmem:[%s3566 + $0x22] sm:$0xff]
        %v3957 = vld [vmem:[%s3566 + $0x32] sm:$0xff]
        %v3958 = vld [vmem:[%s3566 + $0x3a] sm:$0xff]
        %v3959 = vld [vmem:[%s3566 + $0x4a] sm:$0xff]
        %v3960 = vld [vmem:[%s3566 + $0x52] sm:$0xff]
        %v3961 = vld [vmem:[%s3566 + $0x62] sm:$0xff]
        %v3962 = vld [vmem:[%s3566 + $0x6a] sm:$0xff]
        %v3963 = vld [vmem:[%s3566 + $0x7a] sm:$0xff]
        %v3964 = vld [vmem:[%s3566 + $0x82] sm:$0xff]
        %v3965 = vld [vmem:[%s3566 + $0x92] sm:$0xff]
        %v3966 = vld [vmem:[%s3566 + $0x9a] sm:$0xff]
        %v3967 = vld [vmem:[%s3566 + $0xaa] sm:$0xff]
        %v3968 = vld [vmem:[%s3566 + $0xb2] sm:$0xff]
        %v3969 = vld [vmem:[%s3566 + $0xc2] sm:$0xff]
        %v3970 = vld [vmem:[%s3566 + $0xca] sm:$0xff]
        %v3971 = vld [vmem:[%s3566 + $0xda] sm:$0xff]
        %v3972 = vld [vmem:[%s3566 + $0xe2] sm:$0xff]
        %v3973 = vld [vmem:[%s3566 + $0xf2] sm:$0xff]
        %v3974 = vld [vmem:[%s3566 + $0xfa] sm:$0xff]
        %v3975 = vld [vmem:[%s3566 + $0x10a] sm:$0xff]
        %v3976 = vld [vmem:[%s3566 + $0x112] sm:$0xff]
        %v3977 = vld [vmem:[%s3566 + $0x122] sm:$0xff]
        %v3978 = vld [vmem:[%s3566 + $0x12a] sm:$0xff]
        %v3979 = vld [vmem:[%s3566 + $0x13a] sm:$0xff]
        %v3980 = vld [vmem:[%s3566 + $0x142] sm:$0xff]
        %v3981 = vld [vmem:[%s3566 + $0x152] sm:$0xff]
        %v3982 = vld [vmem:[%s3566 + $0x15a] sm:$0xff]
        %v3983 = vld [vmem:[%s3566 + $0x16a] sm:$0xff]
        %v3984 = vld [vmem:[%s3566 + $0x172] sm:$0xff]
        %4017 = vrot.lane.b32.xlu0 %v3953, 64
        %v4018 = vpop.permute.xlu0 %4017
        %4019 = vrot.lane.b32.xlu0 %v3954, 64
        %v4020 = vpop.permute.xlu0 %4019
        %4021 = vrot.lane.b32.xlu0 %v3955, 64
        %v4022 = vpop.permute.xlu0 %4021
        %4023 = vrot.lane.b32.xlu0 %v3956, 64
        %v4024 = vpop.permute.xlu0 %4023
        %4025 = vrot.lane.b32.xlu0 %v3957, 64
        %v4026 = vpop.permute.xlu0 %4025
        %4027 = vrot.lane.b32.xlu0 %v3958, 64
        %v4028 = vpop.permute.xlu0 %4027
        %4029 = vrot.lane.b32.xlu0 %v3959, 64
        %v4030 = vpop.permute.xlu0 %4029
        %4031 = vrot.lane.b32.xlu0 %v3960, 64
        %v4032 = vpop.permute.xlu0 %4031
        %4033 = vrot.lane.b32.xlu0 %v3961, 64
        %v4034 = vpop.permute.xlu0 %4033
        %4035 = vrot.lane.b32.xlu0 %v3962, 64
        %v4036 = vpop.permute.xlu0 %4035
        %4037 = vrot.lane.b32.xlu0 %v3963, 64
        %v4038 = vpop.permute.xlu0 %4037
        %4039 = vrot.lane.b32.xlu0 %v3964, 64
        %v4040 = vpop.permute.xlu0 %4039
        %4041 = vrot.lane.b32.xlu0 %v3965, 64
        %v4042 = vpop.permute.xlu0 %4041
        %4043 = vrot.lane.b32.xlu0 %v3966, 64
        %v4044 = vpop.permute.xlu0 %4043
        %4045 = vrot.lane.b32.xlu0 %v3967, 64
        %v4046 = vpop.permute.xlu0 %4045
        %4047 = vrot.lane.b32.xlu0 %v3968, 64
        %v4048 = vpop.permute.xlu0 %4047
        %4049 = vrot.lane.b32.xlu0 %v3969, 64
        %v4050 = vpop.permute.xlu0 %4049
        %4051 = vrot.lane.b32.xlu0 %v3970, 64
        %v4052 = vpop.permute.xlu0 %4051
        %4053 = vrot.lane.b32.xlu0 %v3971, 64
        %v4054 = vpop.permute.xlu0 %4053
        %4055 = vrot.lane.b32.xlu0 %v3972, 64
        %v4056 = vpop.permute.xlu0 %4055
        %4057 = vrot.lane.b32.xlu0 %v3973, 64
        %v4058 = vpop.permute.xlu0 %4057
        %4059 = vrot.lane.b32.xlu0 %v3974, 64
        %v4060 = vpop.permute.xlu0 %4059
        %4061 = vrot.lane.b32.xlu0 %v3975, 64
        %v4062 = vpop.permute.xlu0 %4061
        %4063 = vrot.lane.b32.xlu0 %v3976, 64
        %v4064 = vpop.permute.xlu0 %4063
        %4065 = vrot.lane.b32.xlu0 %v3977, 64
        %v4066 = vpop.permute.xlu0 %4065
        %4067 = vrot.lane.b32.xlu0 %v3978, 64
        %v4068 = vpop.permute.xlu0 %4067
        %4069 = vrot.lane.b32.xlu0 %v3979, 64
        %v4070 = vpop.permute.xlu0 %4069
        %4071 = vrot.lane.b32.xlu0 %v3980, 64
        %v4072 = vpop.permute.xlu0 %4071
        %4073 = vrot.lane.b32.xlu0 %v3981, 64
        %v4074 = vpop.permute.xlu0 %4073
        %4075 = vrot.lane.b32.xlu0 %v3982, 64
        %v4076 = vpop.permute.xlu0 %4075
        %4077 = vrot.lane.b32.xlu0 %v3983, 64
        %v4078 = vpop.permute.xlu0 %4077
        %4079 = vrot.lane.b32.xlu0 %v3984, 64
        %v4080 = vpop.permute.xlu0 %4079
        %vm4113 = vcmask 589312
        %4114 = vst.msk [vmem:[#allocation5] sm:$0xff] %vm4113, %v4018
        %4115 = vst.msk [vmem:[#allocation5 + $0x8] sm:$0xff] %vm4113, %v4020
        %4116 = vst.msk [vmem:[#allocation5 + $0x10] sm:$0xff] %vm4113, %v4022
        %4117 = vst.msk [vmem:[#allocation5 + $0x18] sm:$0xff] %vm4113, %v4024
        %4118 = vst.msk [vmem:[#allocation5 + $0x20] sm:$0xff] %vm4113, %v4026
        %4119 = vst.msk [vmem:[#allocation5 + $0x28] sm:$0xff] %vm4113, %v4028
        %4120 = vst.msk [vmem:[#allocation5 + $0x30] sm:$0xff] %vm4113, %v4030
        %4121 = vst.msk [vmem:[#allocation5 + $0x38] sm:$0xff] %vm4113, %v4032
        %4122 = vst.msk [vmem:[#allocation5 + $0x40] sm:$0xff] %vm4113, %v4034
        %4123 = vst.msk [vmem:[#allocation5 + $0x48] sm:$0xff] %vm4113, %v4036
        %4124 = vst.msk [vmem:[#allocation5 + $0x50] sm:$0xff] %vm4113, %v4038
        %4125 = vst.msk [vmem:[#allocation5 + $0x58] sm:$0xff] %vm4113, %v4040
        %4126 = vst.msk [vmem:[#allocation5 + $0x60] sm:$0xff] %vm4113, %v4042
        %4127 = vst.msk [vmem:[#allocation5 + $0x68] sm:$0xff] %vm4113, %v4044
        %4128 = vst.msk [vmem:[#allocation5 + $0x70] sm:$0xff] %vm4113, %v4046
        %4129 = vst.msk [vmem:[#allocation5 + $0x78] sm:$0xff] %vm4113, %v4048
        %4130 = vst.msk [vmem:[#allocation5 + $0x80] sm:$0xff] %vm4113, %v4050
        %4131 = vst.msk [vmem:[#allocation5 + $0x88] sm:$0xff] %vm4113, %v4052
        %4132 = vst.msk [vmem:[#allocation5 + $0x90] sm:$0xff] %vm4113, %v4054
        %4133 = vst.msk [vmem:[#allocation5 + $0x98] sm:$0xff] %vm4113, %v4056
        %4134 = vst.msk [vmem:[#allocation5 + $0xa0] sm:$0xff] %vm4113, %v4058
        %4135 = vst.msk [vmem:[#allocation5 + $0xa8] sm:$0xff] %vm4113, %v4060
        %4136 = vst.msk [vmem:[#allocation5 + $0xb0] sm:$0xff] %vm4113, %v4062
        %4137 = vst.msk [vmem:[#allocation5 + $0xb8] sm:$0xff] %vm4113, %v4064
        %4138 = vst.msk [vmem:[#allocation5 + $0xc0] sm:$0xff] %vm4113, %v4066
        %4139 = vst.msk [vmem:[#allocation5 + $0xc8] sm:$0xff] %vm4113, %v4068
        %4140 = vst.msk [vmem:[#allocation5 + $0xd0] sm:$0xff] %vm4113, %v4070
        %4141 = vst.msk [vmem:[#allocation5 + $0xd8] sm:$0xff] %vm4113, %v4072
        %4142 = vst.msk [vmem:[#allocation5 + $0xe0] sm:$0xff] %vm4113, %v4074
        %4143 = vst.msk [vmem:[#allocation5 + $0xe8] sm:$0xff] %vm4113, %v4076
        %4144 = vst.msk [vmem:[#allocation5 + $0xf0] sm:$0xff] %vm4113, %v4078
        %4145 = vst.msk [vmem:[#allocation5 + $0xf8] sm:$0xff] %vm4113, %v4080
        %v4146 = vld [vmem:[#allocation5] sm:$0xff]
        %v4147 = vld [vmem:[#allocation5 + $0x8] sm:$0xff]
        %v4148 = vld [vmem:[#allocation5 + $0x10] sm:$0xff]
        %v4149 = vld [vmem:[#allocation5 + $0x18] sm:$0xff]
        %v4150 = vld [vmem:[#allocation5 + $0x20] sm:$0xff]
        %v4151 = vld [vmem:[#allocation5 + $0x28] sm:$0xff]
        %v4152 = vld [vmem:[#allocation5 + $0x30] sm:$0xff]
        %v4153 = vld [vmem:[#allocation5 + $0x38] sm:$0xff]
        %v4154 = vld [vmem:[#allocation5 + $0x40] sm:$0xff]
        %v4155 = vld [vmem:[#allocation5 + $0x48] sm:$0xff]
        %v4156 = vld [vmem:[#allocation5 + $0x50] sm:$0xff]
        %v4157 = vld [vmem:[#allocation5 + $0x58] sm:$0xff]
        %v4158 = vld [vmem:[#allocation5 + $0x60] sm:$0xff]
        %v4159 = vld [vmem:[#allocation5 + $0x68] sm:$0xff]
        %v4160 = vld [vmem:[#allocation5 + $0x70] sm:$0xff]
        %v4161 = vld [vmem:[#allocation5 + $0x78] sm:$0xff]
        %v4162 = vld [vmem:[#allocation5 + $0x80] sm:$0xff]
        %v4163 = vld [vmem:[#allocation5 + $0x88] sm:$0xff]
        %v4164 = vld [vmem:[#allocation5 + $0x90] sm:$0xff]
        %v4165 = vld [vmem:[#allocation5 + $0x98] sm:$0xff]
        %v4166 = vld [vmem:[#allocation5 + $0xa0] sm:$0xff]
        %v4167 = vld [vmem:[#allocation5 + $0xa8] sm:$0xff]
        %v4168 = vld [vmem:[#allocation5 + $0xb0] sm:$0xff]
        %v4169 = vld [vmem:[#allocation5 + $0xb8] sm:$0xff]
        %v4170 = vld [vmem:[#allocation5 + $0xc0] sm:$0xff]
        %v4171 = vld [vmem:[#allocation5 + $0xc8] sm:$0xff]
        %v4172 = vld [vmem:[#allocation5 + $0xd0] sm:$0xff]
        %v4173 = vld [vmem:[#allocation5 + $0xd8] sm:$0xff]
        %v4174 = vld [vmem:[#allocation5 + $0xe0] sm:$0xff]
        %v4175 = vld [vmem:[#allocation5 + $0xe8] sm:$0xff]
        %v4176 = vld [vmem:[#allocation5 + $0xf0] sm:$0xff]
        %v4177 = vld [vmem:[#allocation5 + $0xf8] sm:$0xff]
        %v4178 = vld [vmem:[%s3] sm:$0xff]
        %v4179 = vld [vmem:[%s3 + $0x8] sm:$0xff]
        %v4180 = vld [vmem:[%s3 + $0x10] sm:$0xff]
        %v4181 = vld [vmem:[%s3 + $0x18] sm:$0xff]
        %v4182 = vld [vmem:[%s3 + $0x20] sm:$0xff]
        %v4183 = vld [vmem:[%s3 + $0x28] sm:$0xff]
        %v4184 = vld [vmem:[%s3 + $0x30] sm:$0xff]
        %v4185 = vld [vmem:[%s3 + $0x38] sm:$0xff]
        %v4186 = vld [vmem:[%s3 + $0x40] sm:$0xff]
        %v4187 = vld [vmem:[#allocation10] sm:$0x1]
        %v4189 = vlaneseq
        %v4190 = vshrl.u32 %v4189, 7
        %v4191 = vsub.s32 0, %v4190
        %v4192 = vrot.slane %v4187, %v4191
        %vm4194 = vcmask 588800
        %v4196 = vsel %vm4194, %v4146, 0
        %v4199 = vsel %vm4194, %v4147, 0
        %v4202 = vsel %vm4194, %v4148, 0
        %v4205 = vsel %vm4194, %v4149, 0
        %v4208 = vsel %vm4194, %v4150, 0
        %v4211 = vsel %vm4194, %v4151, 0
        %v4214 = vsel %vm4194, %v4152, 0
        %v4217 = vsel %vm4194, %v4153, 0
        %v4220 = vsel %vm4194, %v4154, 0
        %v4223 = vsel %vm4194, %v4155, 0
        %v4226 = vsel %vm4194, %v4156, 0
        %v4229 = vsel %vm4194, %v4157, 0
        %v4232 = vsel %vm4194, %v4158, 0
        %v4235 = vsel %vm4194, %v4159, 0
        %v4238 = vsel %vm4194, %v4160, 0
        %v4241 = vsel %vm4194, %v4161, 0
        %v4244 = vsel %vm4194, %v4162, 0
        %v4247 = vsel %vm4194, %v4163, 0
        %v4250 = vsel %vm4194, %v4164, 0
        %v4253 = vsel %vm4194, %v4165, 0
        %v4256 = vsel %vm4194, %v4166, 0
        %v4259 = vsel %vm4194, %v4167, 0
        %v4262 = vsel %vm4194, %v4168, 0
        %v4265 = vsel %vm4194, %v4169, 0
        %v4268 = vsel %vm4194, %v4170, 0
        %v4271 = vsel %vm4194, %v4171, 0
        %v4274 = vsel %vm4194, %v4172, 0
        %v4277 = vsel %vm4194, %v4173, 0
        %v4280 = vsel %vm4194, %v4174, 0
        %v4283 = vsel %vm4194, %v4175, 0
        %v4286 = vsel %vm4194, %v4176, 0
        %v4289 = vsel %vm4194, %v4177, 0
        %4291 = vmatprep.subr.mxu0 0.0
        %4292 = vmatpush1.msra.mxu0 %v4178
        %4293 = vmatprep.subr.mxu0 0.0
        %4294 = vmatpush1.msra.mxu0 %v4179
        %4295 = vmatprep.subr.mxu0 0.0
        %4296 = vmatpush1.msra.mxu0 %v4180
        %4297 = vmatprep.subr.mxu0 0.0
        %4298 = vmatpush1.msra.mxu0 %v4181
        %4299 = vmatprep.subr.mxu0 0.0
        %4300 = vmatpush1.msra.mxu0 %v4182
        %4301 = vmatprep.subr.mxu0 0.0
        %4302 = vmatpush1.msra.mxu0 %v4183
        %4303 = vmatprep.subr.mxu0 0.0
        %4304 = vmatpush1.msra.mxu0 %v4184
        %4305 = vmatprep.subr.mxu0 0.0
        %4306 = vmatpush1.msra.mxu0 %v4185
        %4307 = vmatprep.subr.mxu0 0.0
        %4308 = vmatpush1.msra.mxu0 %v4186
        %4309 = vmatprep.subr.mxu0 0.0
        %4310 = vmatpush1.msra.mxu0 0.0
        %4311 = vmatprep.subr.mxu0 0.0
        %4312 = vmatpush1.msra.mxu0 0.0
        %4313 = vmatprep.subr.mxu0 0.0
        %4314 = vmatpush1.msra.mxu0 0.0
        %4315 = vmatprep.subr.mxu0 0.0
        %4316 = vmatpush1.msra.mxu0 0.0
        %4317 = vmatprep.subr.mxu0 0.0
        %4318 = vmatpush1.msra.mxu0 0.0
        %4319 = vmatprep.subr.mxu0 0.0
        %4320 = vmatpush1.msra.mxu0 0.0
        %4321 = vmatprep.subr.mxu0 0.0
        %4322 = vmatpush1.msra.mxu0 0.0
        %4323 = vmatprep.subr.mxu0 0.0
        %4324 = vmatpush1.msra.mxu0 0.0
        %4325 = vmatprep.subr.mxu0 0.0
        %4326 = vmatpush1.msra.mxu0 0.0
        %4327 = vmatprep.subr.mxu0 0.0
        %4328 = vmatpush1.msra.mxu0 0.0
        %4329 = vmatprep.subr.mxu0 0.0
        %4330 = vmatpush1.msra.mxu0 0.0
        %4331 = vmatprep.subr.mxu0 0.0
        %4332 = vmatpush1.msra.mxu0 0.0
        %4333 = vmatprep.subr.mxu0 0.0
        %4334 = vmatpush1.msra.mxu0 0.0
        %4335 = vmatprep.subr.mxu0 0.0
        %4336 = vmatpush1.msra.mxu0 0.0
        %4337 = vmatprep.subr.mxu0 0.0
        %4338 = vmatpush1.msra.mxu0 0.0
        %4339 = vmatprep.subr.mxu0 0.0
        %4340 = vmatpush1.msra.mxu0 0.0
        %4341 = vmatprep.subr.mxu0 0.0
        %4342 = vmatpush1.msra.mxu0 0.0
        %4343 = vmatprep.subr.mxu0 0.0
        %4344 = vmatpush1.msra.mxu0 0.0
        %4345 = vmatprep.subr.mxu0 0.0
        %4346 = vmatpush1.msra.mxu0 0.0
        %4347 = vmatprep.subr.mxu0 0.0
        %4348 = vmatpush1.msra.mxu0 0.0
        %4349 = vmatprep.subr.mxu0 0.0
        %4350 = vmatpush1.msra.mxu0 0.0
        %4351 = vmatprep.subr.mxu0 0.0
        %4352 = vmatpush1.msra.mxu0 0.0
        %4353 = vmatprep.subr.mxu0 0.0
        %4354 = vmatpush1.msra.mxu0 0.0
        %4355 = vmatprep.mubr.f32.mxu0 0.0
        %4356 = vmatmul.mubr.f32.gmra.mrb[0].mxu0 %v4196
        %v4357 = vpop.f32.mrb[0].mxu0
        %v4358 = vadd.f32 %v4192, %v4357
        %v4359 = vpop.f32.mrb[0].mxu0
        %4360 = vmatprep.mubr.f32.mxu0 0.0
        %4361 = vmatmul.mubr.f32.gmra.mrb[0].mxu0 %v4199
        %v4362 = vpop.f32.mrb[0].mxu0
        %v4363 = vadd.f32 %v4192, %v4362
        %v4364 = vpop.f32.mrb[0].mxu0
        %4365 = vmatprep.mubr.f32.mxu0 0.0
        %4366 = vmatmul.mubr.f32.gmra.mrb[0].mxu0 %v4202
        %v4367 = vpop.f32.mrb[0].mxu0
        %v4368 = vadd.f32 %v4192, %v4367
        %v4369 = vpop.f32.mrb[0].mxu0
        %4370 = vmatprep.mubr.f32.mxu0 0.0
        %4371 = vmatmul.mubr.f32.gmra.mrb[0].mxu0 %v4205
        %v4372 = vpop.f32.mrb[0].mxu0
        %v4373 = vadd.f32 %v4192, %v4372
        %v4374 = vpop.f32.mrb[0].mxu0
        %4375 = vmatprep.mubr.f32.mxu0 0.0
        %4376 = vmatmul.mubr.f32.gmra.mrb[0].mxu0 %v4208
        %v4377 = vpop.f32.mrb[0].mxu0
        %v4378 = vadd.f32 %v4192, %v4377
        %v4379 = vpop.f32.mrb[0].mxu0
        %4380 = vmatprep.mubr.f32.mxu0 0.0
        %4381 = vmatmul.mubr.f32.gmra.mrb[0].mxu0 %v4211
        %v4382 = vpop.f32.mrb[0].mxu0
        %v4383 = vadd.f32 %v4192, %v4382
        %v4384 = vpop.f32.mrb[0].mxu0
        %4385 = vmatprep.mubr.f32.mxu0 0.0
        %4386 = vmatmul.mubr.f32.gmra.mrb[0].mxu0 %v4214
        %v4387 = vpop.f32.mrb[0].mxu0
        %v4388 = vadd.f32 %v4192, %v4387
        %v4389 = vpop.f32.mrb[0].mxu0
        %4390 = vmatprep.mubr.f32.mxu0 0.0
        %4391 = vmatmul.mubr.f32.gmra.mrb[0].mxu0 %v4217
        %v4392 = vpop.f32.mrb[0].mxu0
        %v4393 = vadd.f32 %v4192, %v4392
        %v4394 = vpop.f32.mrb[0].mxu0
        %4395 = vmatprep.mubr.f32.mxu0 0.0
        %4396 = vmatmul.mubr.f32.gmra.mrb[0].mxu0 %v4220
        %v4397 = vpop.f32.mrb[0].mxu0
        %v4398 = vadd.f32 %v4192, %v4397
        %v4399 = vpop.f32.mrb[0].mxu0
        %4400 = vmatprep.mubr.f32.mxu0 0.0
        %4401 = vmatmul.mubr.f32.gmra.mrb[0].mxu0 %v4223
        %v4402 = vpop.f32.mrb[0].mxu0
        %v4403 = vadd.f32 %v4192, %v4402
        %v4404 = vpop.f32.mrb[0].mxu0
        %4405 = vmatprep.mubr.f32.mxu0 0.0
        %4406 = vmatmul.mubr.f32.gmra.mrb[0].mxu0 %v4226
        %v4407 = vpop.f32.mrb[0].mxu0
        %v4408 = vadd.f32 %v4192, %v4407
        %v4409 = vpop.f32.mrb[0].mxu0
        %4410 = vmatprep.mubr.f32.mxu0 0.0
        %4411 = vmatmul.mubr.f32.gmra.mrb[0].mxu0 %v4229
        %v4412 = vpop.f32.mrb[0].mxu0
        %v4413 = vadd.f32 %v4192, %v4412
        %v4414 = vpop.f32.mrb[0].mxu0
        %4415 = vmatprep.mubr.f32.mxu0 0.0
        %4416 = vmatmul.mubr.f32.gmra.mrb[0].mxu0 %v4232
        %v4417 = vpop.f32.mrb[0].mxu0
        %v4418 = vadd.f32 %v4192, %v4417
        %v4419 = vpop.f32.mrb[0].mxu0
        %4420 = vmatprep.mubr.f32.mxu0 0.0
        %4421 = vmatmul.mubr.f32.gmra.mrb[0].mxu0 %v4235
        %v4422 = vpop.f32.mrb[0].mxu0
        %v4423 = vadd.f32 %v4192, %v4422
        %v4424 = vpop.f32.mrb[0].mxu0
        %4425 = vmatprep.mubr.f32.mxu0 0.0
        %4426 = vmatmul.mubr.f32.gmra.mrb[0].mxu0 %v4238
        %v4427 = vpop.f32.mrb[0].mxu0
        %v4428 = vadd.f32 %v4192, %v4427
        %v4429 = vpop.f32.mrb[0].mxu0
        %4430 = vmatprep.mubr.f32.mxu0 0.0
        %4431 = vmatmul.mubr.f32.gmra.mrb[0].mxu0 %v4241
        %v4432 = vpop.f32.mrb[0].mxu0
        %v4433 = vadd.f32 %v4192, %v4432
        %v4434 = vpop.f32.mrb[0].mxu0
        %4435 = vmatprep.mubr.f32.mxu0 0.0
        %4436 = vmatmul.mubr.f32.gmra.mrb[0].mxu0 %v4244
        %v4437 = vpop.f32.mrb[0].mxu0
        %v4438 = vadd.f32 %v4192, %v4437
        %v4439 = vpop.f32.mrb[0].mxu0
        %4440 = vmatprep.mubr.f32.mxu0 0.0
        %4441 = vmatmul.mubr.f32.gmra.mrb[0].mxu0 %v4247
        %v4442 = vpop.f32.mrb[0].mxu0
        %v4443 = vadd.f32 %v4192, %v4442
        %v4444 = vpop.f32.mrb[0].mxu0
        %4445 = vmatprep.mubr.f32.mxu0 0.0
        %4446 = vmatmul.mubr.f32.gmra.mrb[0].mxu0 %v4250
        %v4447 = vpop.f32.mrb[0].mxu0
        %v4448 = vadd.f32 %v4192, %v4447
        %v4449 = vpop.f32.mrb[0].mxu0
        %4450 = vmatprep.mubr.f32.mxu0 0.0
        %4451 = vmatmul.mubr.f32.gmra.mrb[0].mxu0 %v4253
        %v4452 = vpop.f32.mrb[0].mxu0
        %v4453 = vadd.f32 %v4192, %v4452
        %v4454 = vpop.f32.mrb[0].mxu0
        %4455 = vmatprep.mubr.f32.mxu0 0.0
        %4456 = vmatmul.mubr.f32.gmra.mrb[0].mxu0 %v4256
        %v4457 = vpop.f32.mrb[0].mxu0
        %v4458 = vadd.f32 %v4192, %v4457
        %v4459 = vpop.f32.mrb[0].mxu0
        %4460 = vmatprep.mubr.f32.mxu0 0.0
        %4461 = vmatmul.mubr.f32.gmra.mrb[0].mxu0 %v4259
        %v4462 = vpop.f32.mrb[0].mxu0
        %v4463 = vadd.f32 %v4192, %v4462
        %v4464 = vpop.f32.mrb[0].mxu0
        %4465 = vmatprep.mubr.f32.mxu0 0.0
        %4466 = vmatmul.mubr.f32.gmra.mrb[0].mxu0 %v4262
        %v4467 = vpop.f32.mrb[0].mxu0
        %v4468 = vadd.f32 %v4192, %v4467
        %v4469 = vpop.f32.mrb[0].mxu0
        %4470 = vmatprep.mubr.f32.mxu0 0.0
        %4471 = vmatmul.mubr.f32.gmra.mrb[0].mxu0 %v4265
        %v4472 = vpop.f32.mrb[0].mxu0
        %v4473 = vadd.f32 %v4192, %v4472
        %v4474 = vpop.f32.mrb[0].mxu0
        %4475 = vmatprep.mubr.f32.mxu0 0.0
        %4476 = vmatmul.mubr.f32.gmra.mrb[0].mxu0 %v4268
        %v4477 = vpop.f32.mrb[0].mxu0
        %v4478 = vadd.f32 %v4192, %v4477
        %v4479 = vpop.f32.mrb[0].mxu0
        %4480 = vmatprep.mubr.f32.mxu0 0.0
        %4481 = vmatmul.mubr.f32.gmra.mrb[0].mxu0 %v4271
        %v4482 = vpop.f32.mrb[0].mxu0
        %v4483 = vadd.f32 %v4192, %v4482
        %v4484 = vpop.f32.mrb[0].mxu0
        %4485 = vmatprep.mubr.f32.mxu0 0.0
        %4486 = vmatmul.mubr.f32.gmra.mrb[0].mxu0 %v4274
        %v4487 = vpop.f32.mrb[0].mxu0
        %v4488 = vadd.f32 %v4192, %v4487
        %v4489 = vpop.f32.mrb[0].mxu0
        %4490 = vmatprep.mubr.f32.mxu0 0.0
        %4491 = vmatmul.mubr.f32.gmra.mrb[0].mxu0 %v4277
        %v4492 = vpop.f32.mrb[0].mxu0
        %v4493 = vadd.f32 %v4192, %v4492
        %v4494 = vpop.f32.mrb[0].mxu0
        %4495 = vmatprep.mubr.f32.mxu0 0.0
        %4496 = vmatmul.mubr.f32.gmra.mrb[0].mxu0 %v4280
        %v4497 = vpop.f32.mrb[0].mxu0
        %v4498 = vadd.f32 %v4192, %v4497
        %v4499 = vpop.f32.mrb[0].mxu0
        %4500 = vmatprep.mubr.f32.mxu0 0.0
        %4501 = vmatmul.mubr.f32.gmra.mrb[0].mxu0 %v4283
        %v4502 = vpop.f32.mrb[0].mxu0
        %v4503 = vadd.f32 %v4192, %v4502
        %v4504 = vpop.f32.mrb[0].mxu0
        %4505 = vmatprep.mubr.f32.mxu0 0.0
        %4506 = vmatmul.mubr.f32.gmra.mrb[0].mxu0 %v4286
        %v4507 = vpop.f32.mrb[0].mxu0
        %v4508 = vadd.f32 %v4192, %v4507
        %v4509 = vpop.f32.mrb[0].mxu0
        %4510 = vmatprep.mubr.f32.mxu0 0.0
        %4511 = vmatmul.mubr.f32.gmra.mrb[0].mxu0 %v4289
        %v4512 = vpop.f32.mrb[0].mxu0
        %v4513 = vadd.f32 %v4192, %v4512
        %v4514 = vpop.f32.mrb[0].mxu0
        %4515 = vdwg.mxu0
        %v4516 = vmax.f32 %v4358, 0.0
        %v4517 = vmax.f32 %v4363, 0.0
        %v4518 = vmax.f32 %v4368, 0.0
        %v4519 = vmax.f32 %v4373, 0.0
        %v4520 = vmax.f32 %v4378, 0.0
        %v4521 = vmax.f32 %v4383, 0.0
        %v4522 = vmax.f32 %v4388, 0.0
        %v4523 = vmax.f32 %v4393, 0.0
        %v4524 = vmax.f32 %v4398, 0.0
        %v4525 = vmax.f32 %v4403, 0.0
        %v4526 = vmax.f32 %v4408, 0.0
        %v4527 = vmax.f32 %v4413, 0.0
        %v4528 = vmax.f32 %v4418, 0.0
        %v4529 = vmax.f32 %v4423, 0.0
        %v4530 = vmax.f32 %v4428, 0.0
        %v4531 = vmax.f32 %v4433, 0.0
        %v4532 = vmax.f32 %v4438, 0.0
        %v4533 = vmax.f32 %v4443, 0.0
        %v4534 = vmax.f32 %v4448, 0.0
        %v4535 = vmax.f32 %v4453, 0.0
        %v4536 = vmax.f32 %v4458, 0.0
        %v4537 = vmax.f32 %v4463, 0.0
        %v4538 = vmax.f32 %v4468, 0.0
        %v4539 = vmax.f32 %v4473, 0.0
        %v4540 = vmax.f32 %v4478, 0.0
        %v4541 = vmax.f32 %v4483, 0.0
        %v4542 = vmax.f32 %v4488, 0.0
        %v4543 = vmax.f32 %v4493, 0.0
        %v4544 = vmax.f32 %v4498, 0.0
        %v4545 = vmax.f32 %v4503, 0.0
        %v4546 = vmax.f32 %v4508, 0.0
        %v4547 = vmax.f32 %v4513, 0.0
        %vm4548 = vcmask 130048
        %4549 = vst.msk [vmem:[#allocation6] sm:$0xff] %vm4548, 0.0
        %4550 = vst.msk [vmem:[#allocation6 + $0x8] sm:$0xff] %vm4548, 0.0
        %vm4551 = vcmask 123904
        %4552 = vst.msk [vmem:[#allocation6 + $0x10] sm:$0x3] %vm4551, 0.0
        %4553 = vst.msk [vmem:[#allocation6 + $0x18] sm:$0xff] %vm4548, 0.0
        %4554 = vst.msk [vmem:[#allocation6 + $0x20] sm:$0xff] %vm4548, 0.0
        %4555 = vst.msk [vmem:[#allocation6 + $0x28] sm:$0x3] %vm4551, 0.0
        %4556 = vst.msk [vmem:[#allocation6 + $0x30] sm:$0xff] %vm4548, 0.0
        %4557 = vst.msk [vmem:[#allocation6 + $0x38] sm:$0xff] %vm4548, 0.0
        %4558 = vst.msk [vmem:[#allocation6 + $0x40] sm:$0x3] %vm4551, 0.0
        %4559 = vst.msk [vmem:[#allocation6 + $0x48] sm:$0xff] %vm4548, 0.0
        %4560 = vst.msk [vmem:[#allocation6 + $0x50] sm:$0xff] %vm4548, 0.0
        %4561 = vst.msk [vmem:[#allocation6 + $0x58] sm:$0x3] %vm4551, 0.0
        %4562 = vst.msk [vmem:[#allocation6 + $0x60] sm:$0xff] %vm4548, 0.0
        %4563 = vst.msk [vmem:[#allocation6 + $0x68] sm:$0xff] %vm4548, 0.0
        %4564 = vst.msk [vmem:[#allocation6 + $0x70] sm:$0x3] %vm4551, 0.0
        %4565 = vst.msk [vmem:[#allocation6 + $0x78] sm:$0xff] %vm4548, 0.0
        %4566 = vst.msk [vmem:[#allocation6 + $0x80] sm:$0xff] %vm4548, 0.0
        %4567 = vst.msk [vmem:[#allocation6 + $0x88] sm:$0x3] %vm4551, 0.0
        %4568 = vst.msk [vmem:[#allocation6 + $0x90] sm:$0xff] %vm4548, 0.0
        %4569 = vst.msk [vmem:[#allocation6 + $0x98] sm:$0xff] %vm4548, 0.0
        %4570 = vst.msk [vmem:[#allocation6 + $0xa0] sm:$0x3] %vm4551, 0.0
        %4571 = vst.msk [vmem:[#allocation6 + $0xa8] sm:$0xff] %vm4548, 0.0
        %4572 = vst.msk [vmem:[#allocation6 + $0xb0] sm:$0xff] %vm4548, 0.0
        %4573 = vst.msk [vmem:[#allocation6 + $0xb8] sm:$0x3] %vm4551, 0.0
        %4574 = vst.msk [vmem:[#allocation6 + $0xc0] sm:$0xff] %vm4548, 0.0
        %4575 = vst.msk [vmem:[#allocation6 + $0xc8] sm:$0xff] %vm4548, 0.0
        %4576 = vst.msk [vmem:[#allocation6 + $0xd0] sm:$0x3] %vm4551, 0.0
        %4577 = vst.msk [vmem:[#allocation6 + $0xd8] sm:$0xff] %vm4548, 0.0
        %4578 = vst.msk [vmem:[#allocation6 + $0xe0] sm:$0xff] %vm4548, 0.0
        %4579 = vst.msk [vmem:[#allocation6 + $0xe8] sm:$0x3] %vm4551, 0.0
        %4580 = vst.msk [vmem:[#allocation6 + $0xf0] sm:$0xff] %vm4548, 0.0
        %4581 = vst.msk [vmem:[#allocation6 + $0xf8] sm:$0xff] %vm4548, 0.0
        %4582 = vst.msk [vmem:[#allocation6 + $0x100] sm:$0x3] %vm4551, 0.0
        %4583 = vst.msk [vmem:[#allocation6 + $0x108] sm:$0xff] %vm4548, 0.0
        %4584 = vst.msk [vmem:[#allocation6 + $0x110] sm:$0xff] %vm4548, 0.0
        %4585 = vst.msk [vmem:[#allocation6 + $0x118] sm:$0x3] %vm4551, 0.0
        %4586 = vst.msk [vmem:[#allocation6 + $0x120] sm:$0xff] %vm4548, 0.0
        %4587 = vst.msk [vmem:[#allocation6 + $0x128] sm:$0xff] %vm4548, 0.0
        %4588 = vst.msk [vmem:[#allocation6 + $0x130] sm:$0x3] %vm4551, 0.0
        %4589 = vst.msk [vmem:[#allocation6 + $0x138] sm:$0xff] %vm4548, 0.0
        %4590 = vst.msk [vmem:[#allocation6 + $0x140] sm:$0xff] %vm4548, 0.0
        %4591 = vst.msk [vmem:[#allocation6 + $0x148] sm:$0x3] %vm4551, 0.0
        %4592 = vst.msk [vmem:[#allocation6 + $0x150] sm:$0xff] %vm4548, 0.0
        %4593 = vst.msk [vmem:[#allocation6 + $0x158] sm:$0xff] %vm4548, 0.0
        %4594 = vst.msk [vmem:[#allocation6 + $0x160] sm:$0x3] %vm4551, 0.0
        %4595 = vst.msk [vmem:[#allocation6 + $0x168] sm:$0xff] %vm4548, 0.0
        %4596 = vst.msk [vmem:[#allocation6 + $0x170] sm:$0xff] %vm4548, 0.0
        %4597 = vst.msk [vmem:[#allocation6 + $0x178] sm:$0x3] %vm4551, 0.0
        %4598 = vst.msk [vmem:[#allocation6 + $0x180] sm:$0xff] %vm4548, 0.0
        %4599 = vst.msk [vmem:[#allocation6 + $0x188] sm:$0xff] %vm4548, 0.0
        %4600 = vst.msk [vmem:[#allocation6 + $0x190] sm:$0x3] %vm4551, 0.0
        %4601 = vst.msk [vmem:[#allocation6 + $0x198] sm:$0xff] %vm4548, 0.0
        %4602 = vst.msk [vmem:[#allocation6 + $0x1a0] sm:$0xff] %vm4548, 0.0
        %4603 = vst.msk [vmem:[#allocation6 + $0x1a8] sm:$0x3] %vm4551, 0.0
        %s4604 = scalar_lea.vmem [#allocation6], 24
        %4605 = vst.msk [vmem:[%s4604 + $0x1] sm:$0xff] %vm4548, %v4516
        %4606 = vst.msk [vmem:[%s4604 + $0x9] sm:$0xff] %vm4548, %v4517
        %4607 = vst.msk [vmem:[%s4604 + $0x19] sm:$0xff] %vm4548, %v4518
        %4608 = vst.msk [vmem:[%s4604 + $0x21] sm:$0xff] %vm4548, %v4519
        %4609 = vst.msk [vmem:[%s4604 + $0x31] sm:$0xff] %vm4548, %v4520
        %4610 = vst.msk [vmem:[%s4604 + $0x39] sm:$0xff] %vm4548, %v4521
        %4611 = vst.msk [vmem:[%s4604 + $0x49] sm:$0xff] %vm4548, %v4522
        %4612 = vst.msk [vmem:[%s4604 + $0x51] sm:$0xff] %vm4548, %v4523
        %4613 = vst.msk [vmem:[%s4604 + $0x61] sm:$0xff] %vm4548, %v4524
        %4614 = vst.msk [vmem:[%s4604 + $0x69] sm:$0xff] %vm4548, %v4525
        %4615 = vst.msk [vmem:[%s4604 + $0x79] sm:$0xff] %vm4548, %v4526
        %4616 = vst.msk [vmem:[%s4604 + $0x81] sm:$0xff] %vm4548, %v4527
        %4617 = vst.msk [vmem:[%s4604 + $0x91] sm:$0xff] %vm4548, %v4528
        %4618 = vst.msk [vmem:[%s4604 + $0x99] sm:$0xff] %vm4548, %v4529
        %4619 = vst.msk [vmem:[%s4604 + $0xa9] sm:$0xff] %vm4548, %v4530
        %4620 = vst.msk [vmem:[%s4604 + $0xb1] sm:$0xff] %vm4548, %v4531
        %4621 = vst.msk [vmem:[%s4604 + $0xc1] sm:$0xff] %vm4548, %v4532
        %4622 = vst.msk [vmem:[%s4604 + $0xc9] sm:$0xff] %vm4548, %v4533
        %4623 = vst.msk [vmem:[%s4604 + $0xd9] sm:$0xff] %vm4548, %v4534
        %4624 = vst.msk [vmem:[%s4604 + $0xe1] sm:$0xff] %vm4548, %v4535
        %4625 = vst.msk [vmem:[%s4604 + $0xf1] sm:$0xff] %vm4548, %v4536
        %4626 = vst.msk [vmem:[%s4604 + $0xf9] sm:$0xff] %vm4548, %v4537
        %4627 = vst.msk [vmem:[%s4604 + $0x109] sm:$0xff] %vm4548, %v4538
        %4628 = vst.msk [vmem:[%s4604 + $0x111] sm:$0xff] %vm4548, %v4539
        %4629 = vst.msk [vmem:[%s4604 + $0x121] sm:$0xff] %vm4548, %v4540
        %4630 = vst.msk [vmem:[%s4604 + $0x129] sm:$0xff] %vm4548, %v4541
        %4631 = vst.msk [vmem:[%s4604 + $0x139] sm:$0xff] %vm4548, %v4542
        %4632 = vst.msk [vmem:[%s4604 + $0x141] sm:$0xff] %vm4548, %v4543
        %4633 = vst.msk [vmem:[%s4604 + $0x151] sm:$0xff] %vm4548, %v4544
        %4634 = vst.msk [vmem:[%s4604 + $0x159] sm:$0xff] %vm4548, %v4545
        %4635 = vst.msk [vmem:[%s4604 + $0x169] sm:$0xff] %vm4548, %v4546
        %4636 = vst.msk [vmem:[%s4604 + $0x171] sm:$0xff] %vm4548, %v4547
        %v4637 = vld [vmem:[#allocation6] sm:$0xff]
        %v4638 = vld [vmem:[#allocation6 + $0x8] sm:$0xff]
        %v4639 = vld [vmem:[#allocation6 + $0x18] sm:$0xff]
        %v4640 = vld [vmem:[#allocation6 + $0x20] sm:$0xff]
        %v4641 = vld [vmem:[#allocation6 + $0x30] sm:$0xff]
        %v4642 = vld [vmem:[#allocation6 + $0x38] sm:$0xff]
        %v4643 = vld [vmem:[#allocation6 + $0x48] sm:$0xff]
        %v4644 = vld [vmem:[#allocation6 + $0x50] sm:$0xff]
        %v4645 = vld [vmem:[#allocation6 + $0x60] sm:$0xff]
        %v4646 = vld [vmem:[#allocation6 + $0x68] sm:$0xff]
        %v4647 = vld [vmem:[#allocation6 + $0x78] sm:$0xff]
        %v4648 = vld [vmem:[#allocation6 + $0x80] sm:$0xff]
        %v4649 = vld [vmem:[#allocation6 + $0x90] sm:$0xff]
        %v4650 = vld [vmem:[#allocation6 + $0x98] sm:$0xff]
        %v4651 = vld [vmem:[#allocation6 + $0xa8] sm:$0xff]
        %v4652 = vld [vmem:[#allocation6 + $0xb0] sm:$0xff]
        %v4653 = vld [vmem:[#allocation6 + $0xc0] sm:$0xff]
        %v4654 = vld [vmem:[#allocation6 + $0xc8] sm:$0xff]
        %v4655 = vld [vmem:[#allocation6 + $0xd8] sm:$0xff]
        %v4656 = vld [vmem:[#allocation6 + $0xe0] sm:$0xff]
        %v4657 = vld [vmem:[#allocation6 + $0xf0] sm:$0xff]
        %v4658 = vld [vmem:[#allocation6 + $0xf8] sm:$0xff]
        %v4659 = vld [vmem:[#allocation6 + $0x108] sm:$0xff]
        %v4660 = vld [vmem:[#allocation6 + $0x110] sm:$0xff]
        %v4661 = vld [vmem:[#allocation6 + $0x120] sm:$0xff]
        %v4662 = vld [vmem:[#allocation6 + $0x128] sm:$0xff]
        %v4663 = vld [vmem:[#allocation6 + $0x138] sm:$0xff]
        %v4664 = vld [vmem:[#allocation6 + $0x140] sm:$0xff]
        %v4665 = vld [vmem:[#allocation6 + $0x150] sm:$0xff]
        %v4666 = vld [vmem:[#allocation6 + $0x158] sm:$0xff]
        %v4667 = vld [vmem:[#allocation6 + $0x168] sm:$0xff]
        %v4668 = vld [vmem:[#allocation6 + $0x170] sm:$0xff]
        %4669 = vst.msk [vmem:[#allocation7] sm:$0xff] %vm4548, %v4637
        %4670 = vst.msk [vmem:[#allocation7 + $0x10] sm:$0xff] %vm4548, %v4638
        %4671 = vst.msk [vmem:[#allocation7 + $0x20] sm:$0xff] %vm4548, %v4639
        %4672 = vst.msk [vmem:[#allocation7 + $0x30] sm:$0xff] %vm4548, %v4640
        %4673 = vst.msk [vmem:[#allocation7 + $0x40] sm:$0xff] %vm4548, %v4641
        %4674 = vst.msk [vmem:[#allocation7 + $0x50] sm:$0xff] %vm4548, %v4642
        %4675 = vst.msk [vmem:[#allocation7 + $0x60] sm:$0xff] %vm4548, %v4643
        %4676 = vst.msk [vmem:[#allocation7 + $0x70] sm:$0xff] %vm4548, %v4644
        %4677 = vst.msk [vmem:[#allocation7 + $0x80] sm:$0xff] %vm4548, %v4645
        %4678 = vst.msk [vmem:[#allocation7 + $0x90] sm:$0xff] %vm4548, %v4646
        %4679 = vst.msk [vmem:[#allocation7 + $0xa0] sm:$0xff] %vm4548, %v4647
        %4680 = vst.msk [vmem:[#allocation7 + $0xb0] sm:$0xff] %vm4548, %v4648
        %4681 = vst.msk [vmem:[#allocation7 + $0xc0] sm:$0xff] %vm4548, %v4649
        %4682 = vst.msk [vmem:[#allocation7 + $0xd0] sm:$0xff] %vm4548, %v4650
        %4683 = vst.msk [vmem:[#allocation7 + $0xe0] sm:$0xff] %vm4548, %v4651
        %4684 = vst.msk [vmem:[#allocation7 + $0xf0] sm:$0xff] %vm4548, %v4652
        %4685 = vst.msk [vmem:[#allocation7 + $0x100] sm:$0xff] %vm4548, %v4653
        %4686 = vst.msk [vmem:[#allocation7 + $0x110] sm:$0xff] %vm4548, %v4654
        %4687 = vst.msk [vmem:[#allocation7 + $0x120] sm:$0xff] %vm4548, %v4655
        %4688 = vst.msk [vmem:[#allocation7 + $0x130] sm:$0xff] %vm4548, %v4656
        %4689 = vst.msk [vmem:[#allocation7 + $0x140] sm:$0xff] %vm4548, %v4657
        %4690 = vst.msk [vmem:[#allocation7 + $0x150] sm:$0xff] %vm4548, %v4658
        %4691 = vst.msk [vmem:[#allocation7 + $0x160] sm:$0xff] %vm4548, %v4659
        %4692 = vst.msk [vmem:[#allocation7 + $0x170] sm:$0xff] %vm4548, %v4660
        %4693 = vst.msk [vmem:[#allocation7 + $0x180] sm:$0xff] %vm4548, %v4661
        %4694 = vst.msk [vmem:[#allocation7 + $0x190] sm:$0xff] %vm4548, %v4662
        %4695 = vst.msk [vmem:[#allocation7 + $0x1a0] sm:$0xff] %vm4548, %v4663
        %4696 = vst.msk [vmem:[#allocation7 + $0x1b0] sm:$0xff] %vm4548, %v4664
        %4697 = vst.msk [vmem:[#allocation7 + $0x1c0] sm:$0xff] %vm4548, %v4665
        %4698 = vst.msk [vmem:[#allocation7 + $0x1d0] sm:$0xff] %vm4548, %v4666
        %4699 = vst.msk [vmem:[#allocation7 + $0x1e0] sm:$0xff] %vm4548, %v4667
        %4700 = vst.msk [vmem:[#allocation7 + $0x1f0] sm:$0xff] %vm4548, %v4668
        %v4701 = vld [vmem:[#allocation6 + $0x1] sm:$0xff]
        %v4702 = vld [vmem:[#allocation6 + $0x9] sm:$0xff]
        %v4703 = vld [vmem:[#allocation6 + $0x19] sm:$0xff]
        %v4704 = vld [vmem:[#allocation6 + $0x21] sm:$0xff]
        %v4705 = vld [vmem:[#allocation6 + $0x31] sm:$0xff]
        %v4706 = vld [vmem:[#allocation6 + $0x39] sm:$0xff]
        %v4707 = vld [vmem:[#allocation6 + $0x49] sm:$0xff]
        %v4708 = vld [vmem:[#allocation6 + $0x51] sm:$0xff]
        %v4709 = vld [vmem:[#allocation6 + $0x61] sm:$0xff]
        %v4710 = vld [vmem:[#allocation6 + $0x69] sm:$0xff]
        %v4711 = vld [vmem:[#allocation6 + $0x79] sm:$0xff]
        %v4712 = vld [vmem:[#allocation6 + $0x81] sm:$0xff]
        %v4713 = vld [vmem:[#allocation6 + $0x91] sm:$0xff]
        %v4714 = vld [vmem:[#allocation6 + $0x99] sm:$0xff]
        %v4715 = vld [vmem:[#allocation6 + $0xa9] sm:$0xff]
        %v4716 = vld [vmem:[#allocation6 + $0xb1] sm:$0xff]
        %v4717 = vld [vmem:[#allocation6 + $0xc1] sm:$0xff]
        %v4718 = vld [vmem:[#allocation6 + $0xc9] sm:$0xff]
        %v4719 = vld [vmem:[#allocation6 + $0xd9] sm:$0xff]
        %v4720 = vld [vmem:[#allocation6 + $0xe1] sm:$0xff]
        %v4721 = vld [vmem:[#allocation6 + $0xf1] sm:$0xff]
        %v4722 = vld [vmem:[#allocation6 + $0xf9] sm:$0xff]
        %v4723 = vld [vmem:[#allocation6 + $0x109] sm:$0xff]
        %v4724 = vld [vmem:[#allocation6 + $0x111] sm:$0xff]
        %v4725 = vld [vmem:[#allocation6 + $0x121] sm:$0xff]
        %v4726 = vld [vmem:[#allocation6 + $0x129] sm:$0xff]
        %v4727 = vld [vmem:[#allocation6 + $0x139] sm:$0xff]
        %v4728 = vld [vmem:[#allocation6 + $0x141] sm:$0xff]
        %v4729 = vld [vmem:[#allocation6 + $0x151] sm:$0xff]
        %v4730 = vld [vmem:[#allocation6 + $0x159] sm:$0xff]
        %v4731 = vld [vmem:[#allocation6 + $0x169] sm:$0xff]
        %v4732 = vld [vmem:[#allocation6 + $0x171] sm:$0xff]
        %4765 = vrot.lane.b32.xlu0 %v4701, 16
        %v4766 = vpop.permute.xlu0 %4765
        %4767 = vrot.lane.b32.xlu0 %v4702, 16
        %v4768 = vpop.permute.xlu0 %4767
        %4769 = vrot.lane.b32.xlu0 %v4703, 16
        %v4770 = vpop.permute.xlu0 %4769
        %4771 = vrot.lane.b32.xlu0 %v4704, 16
        %v4772 = vpop.permute.xlu0 %4771
        %4773 = vrot.lane.b32.xlu0 %v4705, 16
        %v4774 = vpop.permute.xlu0 %4773
        %4775 = vrot.lane.b32.xlu0 %v4706, 16
        %v4776 = vpop.permute.xlu0 %4775
        %4777 = vrot.lane.b32.xlu0 %v4707, 16
        %v4778 = vpop.permute.xlu0 %4777
        %4779 = vrot.lane.b32.xlu0 %v4708, 16
        %v4780 = vpop.permute.xlu0 %4779
        %4781 = vrot.lane.b32.xlu0 %v4709, 16
        %v4782 = vpop.permute.xlu0 %4781
        %4783 = vrot.lane.b32.xlu0 %v4710, 16
        %v4784 = vpop.permute.xlu0 %4783
        %4785 = vrot.lane.b32.xlu0 %v4711, 16
        %v4786 = vpop.permute.xlu0 %4785
        %4787 = vrot.lane.b32.xlu0 %v4712, 16
        %v4788 = vpop.permute.xlu0 %4787
        %4789 = vrot.lane.b32.xlu0 %v4713, 16
        %v4790 = vpop.permute.xlu0 %4789
        %4791 = vrot.lane.b32.xlu0 %v4714, 16
        %v4792 = vpop.permute.xlu0 %4791
        %4793 = vrot.lane.b32.xlu0 %v4715, 16
        %v4794 = vpop.permute.xlu0 %4793
        %4795 = vrot.lane.b32.xlu0 %v4716, 16
        %v4796 = vpop.permute.xlu0 %4795
        %4797 = vrot.lane.b32.xlu0 %v4717, 16
        %v4798 = vpop.permute.xlu0 %4797
        %4799 = vrot.lane.b32.xlu0 %v4718, 16
        %v4800 = vpop.permute.xlu0 %4799
        %4801 = vrot.lane.b32.xlu0 %v4719, 16
        %v4802 = vpop.permute.xlu0 %4801
        %4803 = vrot.lane.b32.xlu0 %v4720, 16
        %v4804 = vpop.permute.xlu0 %4803
        %4805 = vrot.lane.b32.xlu0 %v4721, 16
        %v4806 = vpop.permute.xlu0 %4805
        %4807 = vrot.lane.b32.xlu0 %v4722, 16
        %v4808 = vpop.permute.xlu0 %4807
        %4809 = vrot.lane.b32.xlu0 %v4723, 16
        %v4810 = vpop.permute.xlu0 %4809
        %4811 = vrot.lane.b32.xlu0 %v4724, 16
        %v4812 = vpop.permute.xlu0 %4811
        %4813 = vrot.lane.b32.xlu0 %v4725, 16
        %v4814 = vpop.permute.xlu0 %4813
        %4815 = vrot.lane.b32.xlu0 %v4726, 16
        %v4816 = vpop.permute.xlu0 %4815
        %4817 = vrot.lane.b32.xlu0 %v4727, 16
        %v4818 = vpop.permute.xlu0 %4817
        %4819 = vrot.lane.b32.xlu0 %v4728, 16
        %v4820 = vpop.permute.xlu0 %4819
        %4821 = vrot.lane.b32.xlu0 %v4729, 16
        %v4822 = vpop.permute.xlu0 %4821
        %4823 = vrot.lane.b32.xlu0 %v4730, 16
        %v4824 = vpop.permute.xlu0 %4823
        %4825 = vrot.lane.b32.xlu0 %v4731, 16
        %v4826 = vpop.permute.xlu0 %4825
        %4827 = vrot.lane.b32.xlu0 %v4732, 16
        %v4828 = vpop.permute.xlu0 %4827
        %vm4861 = vcmask 261248
        %4862 = vst.msk [vmem:[#allocation7] sm:$0xff] %vm4861, %v4766
        %4863 = vst.msk [vmem:[#allocation7 + $0x10] sm:$0xff] %vm4861, %v4768
        %4864 = vst.msk [vmem:[#allocation7 + $0x20] sm:$0xff] %vm4861, %v4770
        %4865 = vst.msk [vmem:[#allocation7 + $0x30] sm:$0xff] %vm4861, %v4772
        %4866 = vst.msk [vmem:[#allocation7 + $0x40] sm:$0xff] %vm4861, %v4774
        %4867 = vst.msk [vmem:[#allocation7 + $0x50] sm:$0xff] %vm4861, %v4776
        %4868 = vst.msk [vmem:[#allocation7 + $0x60] sm:$0xff] %vm4861, %v4778
        %4869 = vst.msk [vmem:[#allocation7 + $0x70] sm:$0xff] %vm4861, %v4780
        %4870 = vst.msk [vmem:[#allocation7 + $0x80] sm:$0xff] %vm4861, %v4782
        %4871 = vst.msk [vmem:[#allocation7 + $0x90] sm:$0xff] %vm4861, %v4784
        %4872 = vst.msk [vmem:[#allocation7 + $0xa0] sm:$0xff] %vm4861, %v4786
        %4873 = vst.msk [vmem:[#allocation7 + $0xb0] sm:$0xff] %vm4861, %v4788
        %4874 = vst.msk [vmem:[#allocation7 + $0xc0] sm:$0xff] %vm4861, %v4790
        %4875 = vst.msk [vmem:[#allocation7 + $0xd0] sm:$0xff] %vm4861, %v4792
        %4876 = vst.msk [vmem:[#allocation7 + $0xe0] sm:$0xff] %vm4861, %v4794
        %4877 = vst.msk [vmem:[#allocation7 + $0xf0] sm:$0xff] %vm4861, %v4796
        %4878 = vst.msk [vmem:[#allocation7 + $0x100] sm:$0xff] %vm4861, %v4798
        %4879 = vst.msk [vmem:[#allocation7 + $0x110] sm:$0xff] %vm4861, %v4800
        %4880 = vst.msk [vmem:[#allocation7 + $0x120] sm:$0xff] %vm4861, %v4802
        %4881 = vst.msk [vmem:[#allocation7 + $0x130] sm:$0xff] %vm4861, %v4804
        %4882 = vst.msk [vmem:[#allocation7 + $0x140] sm:$0xff] %vm4861, %v4806
        %4883 = vst.msk [vmem:[#allocation7 + $0x150] sm:$0xff] %vm4861, %v4808
        %4884 = vst.msk [vmem:[#allocation7 + $0x160] sm:$0xff] %vm4861, %v4810
        %4885 = vst.msk [vmem:[#allocation7 + $0x170] sm:$0xff] %vm4861, %v4812
        %4886 = vst.msk [vmem:[#allocation7 + $0x180] sm:$0xff] %vm4861, %v4814
        %4887 = vst.msk [vmem:[#allocation7 + $0x190] sm:$0xff] %vm4861, %v4816
        %4888 = vst.msk [vmem:[#allocation7 + $0x1a0] sm:$0xff] %vm4861, %v4818
        %4889 = vst.msk [vmem:[#allocation7 + $0x1b0] sm:$0xff] %vm4861, %v4820
        %4890 = vst.msk [vmem:[#allocation7 + $0x1c0] sm:$0xff] %vm4861, %v4822
        %4891 = vst.msk [vmem:[#allocation7 + $0x1d0] sm:$0xff] %vm4861, %v4824
        %4892 = vst.msk [vmem:[#allocation7 + $0x1e0] sm:$0xff] %vm4861, %v4826
        %4893 = vst.msk [vmem:[#allocation7 + $0x1f0] sm:$0xff] %vm4861, %v4828
        %v4894 = vld [vmem:[#allocation6 + $0x2] sm:$0xff]
        %v4895 = vld [vmem:[#allocation6 + $0xa] sm:$0xff]
        %v4896 = vld [vmem:[#allocation6 + $0x1a] sm:$0xff]
        %v4897 = vld [vmem:[#allocation6 + $0x22] sm:$0xff]
        %v4898 = vld [vmem:[#allocation6 + $0x32] sm:$0xff]
        %v4899 = vld [vmem:[#allocation6 + $0x3a] sm:$0xff]
        %v4900 = vld [vmem:[#allocation6 + $0x4a] sm:$0xff]
        %v4901 = vld [vmem:[#allocation6 + $0x52] sm:$0xff]
        %v4902 = vld [vmem:[#allocation6 + $0x62] sm:$0xff]
        %v4903 = vld [vmem:[#allocation6 + $0x6a] sm:$0xff]
        %v4904 = vld [vmem:[#allocation6 + $0x7a] sm:$0xff]
        %v4905 = vld [vmem:[#allocation6 + $0x82] sm:$0xff]
        %v4906 = vld [vmem:[#allocation6 + $0x92] sm:$0xff]
        %v4907 = vld [vmem:[#allocation6 + $0x9a] sm:$0xff]
        %v4908 = vld [vmem:[#allocation6 + $0xaa] sm:$0xff]
        %v4909 = vld [vmem:[#allocation6 + $0xb2] sm:$0xff]
        %v4910 = vld [vmem:[#allocation6 + $0xc2] sm:$0xff]
        %v4911 = vld [vmem:[#allocation6 + $0xca] sm:$0xff]
        %v4912 = vld [vmem:[#allocation6 + $0xda] sm:$0xff]
        %v4913 = vld [vmem:[#allocation6 + $0xe2] sm:$0xff]
        %v4914 = vld [vmem:[#allocation6 + $0xf2] sm:$0xff]
        %v4915 = vld [vmem:[#allocation6 + $0xfa] sm:$0xff]
        %v4916 = vld [vmem:[#allocation6 + $0x10a] sm:$0xff]
        %v4917 = vld [vmem:[#allocation6 + $0x112] sm:$0xff]
        %v4918 = vld [vmem:[#allocation6 + $0x122] sm:$0xff]
        %v4919 = vld [vmem:[#allocation6 + $0x12a] sm:$0xff]
        %v4920 = vld [vmem:[#allocation6 + $0x13a] sm:$0xff]
        %v4921 = vld [vmem:[#allocation6 + $0x142] sm:$0xff]
        %v4922 = vld [vmem:[#allocation6 + $0x152] sm:$0xff]
        %v4923 = vld [vmem:[#allocation6 + $0x15a] sm:$0xff]
        %v4924 = vld [vmem:[#allocation6 + $0x16a] sm:$0xff]
        %v4925 = vld [vmem:[#allocation6 + $0x172] sm:$0xff]
        %4958 = vrot.lane.b32.xlu0 %v4894, 32
        %v4959 = vpop.permute.xlu0 %4958
        %4960 = vrot.lane.b32.xlu0 %v4895, 32
        %v4961 = vpop.permute.xlu0 %4960
        %4962 = vrot.lane.b32.xlu0 %v4896, 32
        %v4963 = vpop.permute.xlu0 %4962
        %4964 = vrot.lane.b32.xlu0 %v4897, 32
        %v4965 = vpop.permute.xlu0 %4964
        %4966 = vrot.lane.b32.xlu0 %v4898, 32
        %v4967 = vpop.permute.xlu0 %4966
        %4968 = vrot.lane.b32.xlu0 %v4899, 32
        %v4969 = vpop.permute.xlu0 %4968
        %4970 = vrot.lane.b32.xlu0 %v4900, 32
        %v4971 = vpop.permute.xlu0 %4970
        %4972 = vrot.lane.b32.xlu0 %v4901, 32
        %v4973 = vpop.permute.xlu0 %4972
        %4974 = vrot.lane.b32.xlu0 %v4902, 32
        %v4975 = vpop.permute.xlu0 %4974
        %4976 = vrot.lane.b32.xlu0 %v4903, 32
        %v4977 = vpop.permute.xlu0 %4976
        %4978 = vrot.lane.b32.xlu0 %v4904, 32
        %v4979 = vpop.permute.xlu0 %4978
        %4980 = vrot.lane.b32.xlu0 %v4905, 32
        %v4981 = vpop.permute.xlu0 %4980
        %4982 = vrot.lane.b32.xlu0 %v4906, 32
        %v4983 = vpop.permute.xlu0 %4982
        %4984 = vrot.lane.b32.xlu0 %v4907, 32
        %v4985 = vpop.permute.xlu0 %4984
        %4986 = vrot.lane.b32.xlu0 %v4908, 32
        %v4987 = vpop.permute.xlu0 %4986
        %4988 = vrot.lane.b32.xlu0 %v4909, 32
        %v4989 = vpop.permute.xlu0 %4988
        %4990 = vrot.lane.b32.xlu0 %v4910, 32
        %v4991 = vpop.permute.xlu0 %4990
        %4992 = vrot.lane.b32.xlu0 %v4911, 32
        %v4993 = vpop.permute.xlu0 %4992
        %4994 = vrot.lane.b32.xlu0 %v4912, 32
        %v4995 = vpop.permute.xlu0 %4994
        %4996 = vrot.lane.b32.xlu0 %v4913, 32
        %v4997 = vpop.permute.xlu0 %4996
        %4998 = vrot.lane.b32.xlu0 %v4914, 32
        %v4999 = vpop.permute.xlu0 %4998
        %5000 = vrot.lane.b32.xlu0 %v4915, 32
        %v5001 = vpop.permute.xlu0 %5000
        %5002 = vrot.lane.b32.xlu0 %v4916, 32
        %v5003 = vpop.permute.xlu0 %5002
        %5004 = vrot.lane.b32.xlu0 %v4917, 32
        %v5005 = vpop.permute.xlu0 %5004
        %5006 = vrot.lane.b32.xlu0 %v4918, 32
        %v5007 = vpop.permute.xlu0 %5006
        %5008 = vrot.lane.b32.xlu0 %v4919, 32
        %v5009 = vpop.permute.xlu0 %5008
        %5010 = vrot.lane.b32.xlu0 %v4920, 32
        %v5011 = vpop.permute.xlu0 %5010
        %5012 = vrot.lane.b32.xlu0 %v4921, 32
        %v5013 = vpop.permute.xlu0 %5012
        %5014 = vrot.lane.b32.xlu0 %v4922, 32
        %v5015 = vpop.permute.xlu0 %5014
        %5016 = vrot.lane.b32.xlu0 %v4923, 32
        %v5017 = vpop.permute.xlu0 %5016
        %5018 = vrot.lane.b32.xlu0 %v4924, 32
        %v5019 = vpop.permute.xlu0 %5018
        %5020 = vrot.lane.b32.xlu0 %v4925, 32
        %v5021 = vpop.permute.xlu0 %5020
        %vm5054 = vcmask 392448
        %5055 = vst.msk [vmem:[#allocation7] sm:$0xff] %vm5054, %v4959
        %5056 = vst.msk [vmem:[#allocation7 + $0x10] sm:$0xff] %vm5054, %v4961
        %5057 = vst.msk [vmem:[#allocation7 + $0x20] sm:$0xff] %vm5054, %v4963
        %5058 = vst.msk [vmem:[#allocation7 + $0x30] sm:$0xff] %vm5054, %v4965
        %5059 = vst.msk [vmem:[#allocation7 + $0x40] sm:$0xff] %vm5054, %v4967
        %5060 = vst.msk [vmem:[#allocation7 + $0x50] sm:$0xff] %vm5054, %v4969
        %5061 = vst.msk [vmem:[#allocation7 + $0x60] sm:$0xff] %vm5054, %v4971
        %5062 = vst.msk [vmem:[#allocation7 + $0x70] sm:$0xff] %vm5054, %v4973
        %5063 = vst.msk [vmem:[#allocation7 + $0x80] sm:$0xff] %vm5054, %v4975
        %5064 = vst.msk [vmem:[#allocation7 + $0x90] sm:$0xff] %vm5054, %v4977
        %5065 = vst.msk [vmem:[#allocation7 + $0xa0] sm:$0xff] %vm5054, %v4979
        %5066 = vst.msk [vmem:[#allocation7 + $0xb0] sm:$0xff] %vm5054, %v4981
        %5067 = vst.msk [vmem:[#allocation7 + $0xc0] sm:$0xff] %vm5054, %v4983
        %5068 = vst.msk [vmem:[#allocation7 + $0xd0] sm:$0xff] %vm5054, %v4985
        %5069 = vst.msk [vmem:[#allocation7 + $0xe0] sm:$0xff] %vm5054, %v4987
        %5070 = vst.msk [vmem:[#allocation7 + $0xf0] sm:$0xff] %vm5054, %v4989
        %5071 = vst.msk [vmem:[#allocation7 + $0x100] sm:$0xff] %vm5054, %v4991
        %5072 = vst.msk [vmem:[#allocation7 + $0x110] sm:$0xff] %vm5054, %v4993
        %5073 = vst.msk [vmem:[#allocation7 + $0x120] sm:$0xff] %vm5054, %v4995
        %5074 = vst.msk [vmem:[#allocation7 + $0x130] sm:$0xff] %vm5054, %v4997
        %5075 = vst.msk [vmem:[#allocation7 + $0x140] sm:$0xff] %vm5054, %v4999
        %5076 = vst.msk [vmem:[#allocation7 + $0x150] sm:$0xff] %vm5054, %v5001
        %5077 = vst.msk [vmem:[#allocation7 + $0x160] sm:$0xff] %vm5054, %v5003
        %5078 = vst.msk [vmem:[#allocation7 + $0x170] sm:$0xff] %vm5054, %v5005
        %5079 = vst.msk [vmem:[#allocation7 + $0x180] sm:$0xff] %vm5054, %v5007
        %5080 = vst.msk [vmem:[#allocation7 + $0x190] sm:$0xff] %vm5054, %v5009
        %5081 = vst.msk [vmem:[#allocation7 + $0x1a0] sm:$0xff] %vm5054, %v5011
        %5082 = vst.msk [vmem:[#allocation7 + $0x1b0] sm:$0xff] %vm5054, %v5013
        %5083 = vst.msk [vmem:[#allocation7 + $0x1c0] sm:$0xff] %vm5054, %v5015
        %5084 = vst.msk [vmem:[#allocation7 + $0x1d0] sm:$0xff] %vm5054, %v5017
        %5085 = vst.msk [vmem:[#allocation7 + $0x1e0] sm:$0xff] %vm5054, %v5019
        %5086 = vst.msk [vmem:[#allocation7 + $0x1f0] sm:$0xff] %vm5054, %v5021
        %v5087 = vld [vmem:[%s4604] sm:$0xff]
        %v5088 = vld [vmem:[%s4604 + $0x8] sm:$0xff]
        %v5089 = vld [vmem:[%s4604 + $0x18] sm:$0xff]
        %v5090 = vld [vmem:[%s4604 + $0x20] sm:$0xff]
        %v5091 = vld [vmem:[%s4604 + $0x30] sm:$0xff]
        %v5092 = vld [vmem:[%s4604 + $0x38] sm:$0xff]
        %v5093 = vld [vmem:[%s4604 + $0x48] sm:$0xff]
        %v5094 = vld [vmem:[%s4604 + $0x50] sm:$0xff]
        %v5095 = vld [vmem:[%s4604 + $0x60] sm:$0xff]
        %v5096 = vld [vmem:[%s4604 + $0x68] sm:$0xff]
        %v5097 = vld [vmem:[%s4604 + $0x78] sm:$0xff]
        %v5098 = vld [vmem:[%s4604 + $0x80] sm:$0xff]
        %v5099 = vld [vmem:[%s4604 + $0x90] sm:$0xff]
        %v5100 = vld [vmem:[%s4604 + $0x98] sm:$0xff]
        %v5101 = vld [vmem:[%s4604 + $0xa8] sm:$0xff]
        %v5102 = vld [vmem:[%s4604 + $0xb0] sm:$0xff]
        %v5103 = vld [vmem:[%s4604 + $0xc0] sm:$0xff]
        %v5104 = vld [vmem:[%s4604 + $0xc8] sm:$0xff]
        %v5105 = vld [vmem:[%s4604 + $0xd8] sm:$0xff]
        %v5106 = vld [vmem:[%s4604 + $0xe0] sm:$0xff]
        %v5107 = vld [vmem:[%s4604 + $0xf0] sm:$0xff]
        %v5108 = vld [vmem:[%s4604 + $0xf8] sm:$0xff]
        %v5109 = vld [vmem:[%s4604 + $0x108] sm:$0xff]
        %v5110 = vld [vmem:[%s4604 + $0x110] sm:$0xff]
        %v5111 = vld [vmem:[%s4604 + $0x120] sm:$0xff]
        %v5112 = vld [vmem:[%s4604 + $0x128] sm:$0xff]
        %v5113 = vld [vmem:[%s4604 + $0x138] sm:$0xff]
        %v5114 = vld [vmem:[%s4604 + $0x140] sm:$0xff]
        %v5115 = vld [vmem:[%s4604 + $0x150] sm:$0xff]
        %v5116 = vld [vmem:[%s4604 + $0x158] sm:$0xff]
        %v5117 = vld [vmem:[%s4604 + $0x168] sm:$0xff]
        %v5118 = vld [vmem:[%s4604 + $0x170] sm:$0xff]
        %5151 = vrot.lane.b32.xlu0 %v5087, 48
        %v5152 = vpop.permute.xlu0 %5151
        %5153 = vrot.lane.b32.xlu0 %v5088, 48
        %v5154 = vpop.permute.xlu0 %5153
        %5155 = vrot.lane.b32.xlu0 %v5089, 48
        %v5156 = vpop.permute.xlu0 %5155
        %5157 = vrot.lane.b32.xlu0 %v5090, 48
        %v5158 = vpop.permute.xlu0 %5157
        %5159 = vrot.lane.b32.xlu0 %v5091, 48
        %v5160 = vpop.permute.xlu0 %5159
        %5161 = vrot.lane.b32.xlu0 %v5092, 48
        %v5162 = vpop.permute.xlu0 %5161
        %5163 = vrot.lane.b32.xlu0 %v5093, 48
        %v5164 = vpop.permute.xlu0 %5163
        %5165 = vrot.lane.b32.xlu0 %v5094, 48
        %v5166 = vpop.permute.xlu0 %5165
        %5167 = vrot.lane.b32.xlu0 %v5095, 48
        %v5168 = vpop.permute.xlu0 %5167
        %5169 = vrot.lane.b32.xlu0 %v5096, 48
        %v5170 = vpop.permute.xlu0 %5169
        %5171 = vrot.lane.b32.xlu0 %v5097, 48
        %v5172 = vpop.permute.xlu0 %5171
        %5173 = vrot.lane.b32.xlu0 %v5098, 48
        %v5174 = vpop.permute.xlu0 %5173
        %5175 = vrot.lane.b32.xlu0 %v5099, 48
        %v5176 = vpop.permute.xlu0 %5175
        %5177 = vrot.lane.b32.xlu0 %v5100, 48
        %v5178 = vpop.permute.xlu0 %5177
        %5179 = vrot.lane.b32.xlu0 %v5101, 48
        %v5180 = vpop.permute.xlu0 %5179
        %5181 = vrot.lane.b32.xlu0 %v5102, 48
        %v5182 = vpop.permute.xlu0 %5181
        %5183 = vrot.lane.b32.xlu0 %v5103, 48
        %v5184 = vpop.permute.xlu0 %5183
        %5185 = vrot.lane.b32.xlu0 %v5104, 48
        %v5186 = vpop.permute.xlu0 %5185
        %5187 = vrot.lane.b32.xlu0 %v5105, 48
        %v5188 = vpop.permute.xlu0 %5187
        %5189 = vrot.lane.b32.xlu0 %v5106, 48
        %v5190 = vpop.permute.xlu0 %5189
        %5191 = vrot.lane.b32.xlu0 %v5107, 48
        %v5192 = vpop.permute.xlu0 %5191
        %5193 = vrot.lane.b32.xlu0 %v5108, 48
        %v5194 = vpop.permute.xlu0 %5193
        %5195 = vrot.lane.b32.xlu0 %v5109, 48
        %v5196 = vpop.permute.xlu0 %5195
        %5197 = vrot.lane.b32.xlu0 %v5110, 48
        %v5198 = vpop.permute.xlu0 %5197
        %5199 = vrot.lane.b32.xlu0 %v5111, 48
        %v5200 = vpop.permute.xlu0 %5199
        %5201 = vrot.lane.b32.xlu0 %v5112, 48
        %v5202 = vpop.permute.xlu0 %5201
        %5203 = vrot.lane.b32.xlu0 %v5113, 48
        %v5204 = vpop.permute.xlu0 %5203
        %5205 = vrot.lane.b32.xlu0 %v5114, 48
        %v5206 = vpop.permute.xlu0 %5205
        %5207 = vrot.lane.b32.xlu0 %v5115, 48
        %v5208 = vpop.permute.xlu0 %5207
        %5209 = vrot.lane.b32.xlu0 %v5116, 48
        %v5210 = vpop.permute.xlu0 %5209
        %5211 = vrot.lane.b32.xlu0 %v5117, 48
        %v5212 = vpop.permute.xlu0 %5211
        %5213 = vrot.lane.b32.xlu0 %v5118, 48
        %v5214 = vpop.permute.xlu0 %5213
        %vm5247 = vcmask 523648
        %5248 = vst.msk [vmem:[#allocation7] sm:$0xff] %vm5247, %v5152
        %5249 = vst.msk [vmem:[#allocation7 + $0x10] sm:$0xff] %vm5247, %v5154
        %5250 = vst.msk [vmem:[#allocation7 + $0x20] sm:$0xff] %vm5247, %v5156
        %5251 = vst.msk [vmem:[#allocation7 + $0x30] sm:$0xff] %vm5247, %v5158
        %5252 = vst.msk [vmem:[#allocation7 + $0x40] sm:$0xff] %vm5247, %v5160
        %5253 = vst.msk [vmem:[#allocation7 + $0x50] sm:$0xff] %vm5247, %v5162
        %5254 = vst.msk [vmem:[#allocation7 + $0x60] sm:$0xff] %vm5247, %v5164
        %5255 = vst.msk [vmem:[#allocation7 + $0x70] sm:$0xff] %vm5247, %v5166
        %5256 = vst.msk [vmem:[#allocation7 + $0x80] sm:$0xff] %vm5247, %v5168
        %5257 = vst.msk [vmem:[#allocation7 + $0x90] sm:$0xff] %vm5247, %v5170
        %5258 = vst.msk [vmem:[#allocation7 + $0xa0] sm:$0xff] %vm5247, %v5172
        %5259 = vst.msk [vmem:[#allocation7 + $0xb0] sm:$0xff] %vm5247, %v5174
        %5260 = vst.msk [vmem:[#allocation7 + $0xc0] sm:$0xff] %vm5247, %v5176
        %5261 = vst.msk [vmem:[#allocation7 + $0xd0] sm:$0xff] %vm5247, %v5178
        %5262 = vst.msk [vmem:[#allocation7 + $0xe0] sm:$0xff] %vm5247, %v5180
        %5263 = vst.msk [vmem:[#allocation7 + $0xf0] sm:$0xff] %vm5247, %v5182
        %5264 = vst.msk [vmem:[#allocation7 + $0x100] sm:$0xff] %vm5247, %v5184
        %5265 = vst.msk [vmem:[#allocation7 + $0x110] sm:$0xff] %vm5247, %v5186
        %5266 = vst.msk [vmem:[#allocation7 + $0x120] sm:$0xff] %vm5247, %v5188
        %5267 = vst.msk [vmem:[#allocation7 + $0x130] sm:$0xff] %vm5247, %v5190
        %5268 = vst.msk [vmem:[#allocation7 + $0x140] sm:$0xff] %vm5247, %v5192
        %5269 = vst.msk [vmem:[#allocation7 + $0x150] sm:$0xff] %vm5247, %v5194
        %5270 = vst.msk [vmem:[#allocation7 + $0x160] sm:$0xff] %vm5247, %v5196
        %5271 = vst.msk [vmem:[#allocation7 + $0x170] sm:$0xff] %vm5247, %v5198
        %5272 = vst.msk [vmem:[#allocation7 + $0x180] sm:$0xff] %vm5247, %v5200
        %5273 = vst.msk [vmem:[#allocation7 + $0x190] sm:$0xff] %vm5247, %v5202
        %5274 = vst.msk [vmem:[#allocation7 + $0x1a0] sm:$0xff] %vm5247, %v5204
        %5275 = vst.msk [vmem:[#allocation7 + $0x1b0] sm:$0xff] %vm5247, %v5206
        %5276 = vst.msk [vmem:[#allocation7 + $0x1c0] sm:$0xff] %vm5247, %v5208
        %5277 = vst.msk [vmem:[#allocation7 + $0x1d0] sm:$0xff] %vm5247, %v5210
        %5278 = vst.msk [vmem:[#allocation7 + $0x1e0] sm:$0xff] %vm5247, %v5212
        %5279 = vst.msk [vmem:[#allocation7 + $0x1f0] sm:$0xff] %vm5247, %v5214
        %v5280 = vld [vmem:[%s4604 + $0x1] sm:$0xff]
        %v5281 = vld [vmem:[%s4604 + $0x9] sm:$0xff]
        %v5282 = vld [vmem:[%s4604 + $0x19] sm:$0xff]
        %v5283 = vld [vmem:[%s4604 + $0x21] sm:$0xff]
        %v5284 = vld [vmem:[%s4604 + $0x31] sm:$0xff]
        %v5285 = vld [vmem:[%s4604 + $0x39] sm:$0xff]
        %v5286 = vld [vmem:[%s4604 + $0x49] sm:$0xff]
        %v5287 = vld [vmem:[%s4604 + $0x51] sm:$0xff]
        %v5288 = vld [vmem:[%s4604 + $0x61] sm:$0xff]
        %v5289 = vld [vmem:[%s4604 + $0x69] sm:$0xff]
        %v5290 = vld [vmem:[%s4604 + $0x79] sm:$0xff]
        %v5291 = vld [vmem:[%s4604 + $0x81] sm:$0xff]
        %v5292 = vld [vmem:[%s4604 + $0x91] sm:$0xff]
        %v5293 = vld [vmem:[%s4604 + $0x99] sm:$0xff]
        %v5294 = vld [vmem:[%s4604 + $0xa9] sm:$0xff]
        %v5295 = vld [vmem:[%s4604 + $0xb1] sm:$0xff]
        %v5296 = vld [vmem:[%s4604 + $0xc1] sm:$0xff]
        %v5297 = vld [vmem:[%s4604 + $0xc9] sm:$0xff]
        %v5298 = vld [vmem:[%s4604 + $0xd9] sm:$0xff]
        %v5299 = vld [vmem:[%s4604 + $0xe1] sm:$0xff]
        %v5300 = vld [vmem:[%s4604 + $0xf1] sm:$0xff]
        %v5301 = vld [vmem:[%s4604 + $0xf9] sm:$0xff]
        %v5302 = vld [vmem:[%s4604 + $0x109] sm:$0xff]
        %v5303 = vld [vmem:[%s4604 + $0x111] sm:$0xff]
        %v5304 = vld [vmem:[%s4604 + $0x121] sm:$0xff]
        %v5305 = vld [vmem:[%s4604 + $0x129] sm:$0xff]
        %v5306 = vld [vmem:[%s4604 + $0x139] sm:$0xff]
        %v5307 = vld [vmem:[%s4604 + $0x141] sm:$0xff]
        %v5308 = vld [vmem:[%s4604 + $0x151] sm:$0xff]
        %v5309 = vld [vmem:[%s4604 + $0x159] sm:$0xff]
        %v5310 = vld [vmem:[%s4604 + $0x169] sm:$0xff]
        %v5311 = vld [vmem:[%s4604 + $0x171] sm:$0xff]
        %5344 = vrot.lane.b32.xlu0 %v5280, 64
        %v5345 = vpop.permute.xlu0 %5344
        %5346 = vrot.lane.b32.xlu0 %v5281, 64
        %v5347 = vpop.permute.xlu0 %5346
        %5348 = vrot.lane.b32.xlu0 %v5282, 64
        %v5349 = vpop.permute.xlu0 %5348
        %5350 = vrot.lane.b32.xlu0 %v5283, 64
        %v5351 = vpop.permute.xlu0 %5350
        %5352 = vrot.lane.b32.xlu0 %v5284, 64
        %v5353 = vpop.permute.xlu0 %5352
        %5354 = vrot.lane.b32.xlu0 %v5285, 64
        %v5355 = vpop.permute.xlu0 %5354
        %5356 = vrot.lane.b32.xlu0 %v5286, 64
        %v5357 = vpop.permute.xlu0 %5356
        %5358 = vrot.lane.b32.xlu0 %v5287, 64
        %v5359 = vpop.permute.xlu0 %5358
        %5360 = vrot.lane.b32.xlu0 %v5288, 64
        %v5361 = vpop.permute.xlu0 %5360
        %5362 = vrot.lane.b32.xlu0 %v5289, 64
        %v5363 = vpop.permute.xlu0 %5362
        %5364 = vrot.lane.b32.xlu0 %v5290, 64
        %v5365 = vpop.permute.xlu0 %5364
        %5366 = vrot.lane.b32.xlu0 %v5291, 64
        %v5367 = vpop.permute.xlu0 %5366
        %5368 = vrot.lane.b32.xlu0 %v5292, 64
        %v5369 = vpop.permute.xlu0 %5368
        %5370 = vrot.lane.b32.xlu0 %v5293, 64
        %v5371 = vpop.permute.xlu0 %5370
        %5372 = vrot.lane.b32.xlu0 %v5294, 64
        %v5373 = vpop.permute.xlu0 %5372
        %5374 = vrot.lane.b32.xlu0 %v5295, 64
        %v5375 = vpop.permute.xlu0 %5374
        %5376 = vrot.lane.b32.xlu0 %v5296, 64
        %v5377 = vpop.permute.xlu0 %5376
        %5378 = vrot.lane.b32.xlu0 %v5297, 64
        %v5379 = vpop.permute.xlu0 %5378
        %5380 = vrot.lane.b32.xlu0 %v5298, 64
        %v5381 = vpop.permute.xlu0 %5380
        %5382 = vrot.lane.b32.xlu0 %v5299, 64
        %v5383 = vpop.permute.xlu0 %5382
        %5384 = vrot.lane.b32.xlu0 %v5300, 64
        %v5385 = vpop.permute.xlu0 %5384
        %5386 = vrot.lane.b32.xlu0 %v5301, 64
        %v5387 = vpop.permute.xlu0 %5386
        %5388 = vrot.lane.b32.xlu0 %v5302, 64
        %v5389 = vpop.permute.xlu0 %5388
        %5390 = vrot.lane.b32.xlu0 %v5303, 64
        %v5391 = vpop.permute.xlu0 %5390
        %5392 = vrot.lane.b32.xlu0 %v5304, 64
        %v5393 = vpop.permute.xlu0 %5392
        %5394 = vrot.lane.b32.xlu0 %v5305, 64
        %v5395 = vpop.permute.xlu0 %5394
        %5396 = vrot.lane.b32.xlu0 %v5306, 64
        %v5397 = vpop.permute.xlu0 %5396
        %5398 = vrot.lane.b32.xlu0 %v5307, 64
        %v5399 = vpop.permute.xlu0 %5398
        %5400 = vrot.lane.b32.xlu0 %v5308, 64
        %v5401 = vpop.permute.xlu0 %5400
        %5402 = vrot.lane.b32.xlu0 %v5309, 64
        %v5403 = vpop.permute.xlu0 %5402
        %5404 = vrot.lane.b32.xlu0 %v5310, 64
        %v5405 = vpop.permute.xlu0 %5404
        %5406 = vrot.lane.b32.xlu0 %v5311, 64
        %v5407 = vpop.permute.xlu0 %5406
        %vm5440 = vcmask 654848
        %5441 = vst.msk [vmem:[#allocation7] sm:$0xff] %vm5440, %v5345
        %5442 = vst.msk [vmem:[#allocation7 + $0x10] sm:$0xff] %vm5440, %v5347
        %5443 = vst.msk [vmem:[#allocation7 + $0x20] sm:$0xff] %vm5440, %v5349
        %5444 = vst.msk [vmem:[#allocation7 + $0x30] sm:$0xff] %vm5440, %v5351
        %5445 = vst.msk [vmem:[#allocation7 + $0x40] sm:$0xff] %vm5440, %v5353
        %5446 = vst.msk [vmem:[#allocation7 + $0x50] sm:$0xff] %vm5440, %v5355
        %5447 = vst.msk [vmem:[#allocation7 + $0x60] sm:$0xff] %vm5440, %v5357
        %5448 = vst.msk [vmem:[#allocation7 + $0x70] sm:$0xff] %vm5440, %v5359
        %5449 = vst.msk [vmem:[#allocation7 + $0x80] sm:$0xff] %vm5440, %v5361
        %5450 = vst.msk [vmem:[#allocation7 + $0x90] sm:$0xff] %vm5440, %v5363
        %5451 = vst.msk [vmem:[#allocation7 + $0xa0] sm:$0xff] %vm5440, %v5365
        %5452 = vst.msk [vmem:[#allocation7 + $0xb0] sm:$0xff] %vm5440, %v5367
        %5453 = vst.msk [vmem:[#allocation7 + $0xc0] sm:$0xff] %vm5440, %v5369
        %5454 = vst.msk [vmem:[#allocation7 + $0xd0] sm:$0xff] %vm5440, %v5371
        %5455 = vst.msk [vmem:[#allocation7 + $0xe0] sm:$0xff] %vm5440, %v5373
        %5456 = vst.msk [vmem:[#allocation7 + $0xf0] sm:$0xff] %vm5440, %v5375
        %5457 = vst.msk [vmem:[#allocation7 + $0x100] sm:$0xff] %vm5440, %v5377
        %5458 = vst.msk [vmem:[#allocation7 + $0x110] sm:$0xff] %vm5440, %v5379
        %5459 = vst.msk [vmem:[#allocation7 + $0x120] sm:$0xff] %vm5440, %v5381
        %5460 = vst.msk [vmem:[#allocation7 + $0x130] sm:$0xff] %vm5440, %v5383
        %5461 = vst.msk [vmem:[#allocation7 + $0x140] sm:$0xff] %vm5440, %v5385
        %5462 = vst.msk [vmem:[#allocation7 + $0x150] sm:$0xff] %vm5440, %v5387
        %5463 = vst.msk [vmem:[#allocation7 + $0x160] sm:$0xff] %vm5440, %v5389
        %5464 = vst.msk [vmem:[#allocation7 + $0x170] sm:$0xff] %vm5440, %v5391
        %5465 = vst.msk [vmem:[#allocation7 + $0x180] sm:$0xff] %vm5440, %v5393
        %5466 = vst.msk [vmem:[#allocation7 + $0x190] sm:$0xff] %vm5440, %v5395
        %5467 = vst.msk [vmem:[#allocation7 + $0x1a0] sm:$0xff] %vm5440, %v5397
        %5468 = vst.msk [vmem:[#allocation7 + $0x1b0] sm:$0xff] %vm5440, %v5399
        %5469 = vst.msk [vmem:[#allocation7 + $0x1c0] sm:$0xff] %vm5440, %v5401
        %5470 = vst.msk [vmem:[#allocation7 + $0x1d0] sm:$0xff] %vm5440, %v5403
        %5471 = vst.msk [vmem:[#allocation7 + $0x1e0] sm:$0xff] %vm5440, %v5405
        %5472 = vst.msk [vmem:[#allocation7 + $0x1f0] sm:$0xff] %vm5440, %v5407
        %v5473 = vld [vmem:[%s4604 + $0x2] sm:$0xff]
        %v5474 = vld [vmem:[%s4604 + $0xa] sm:$0xff]
        %v5475 = vld [vmem:[%s4604 + $0x1a] sm:$0xff]
        %v5476 = vld [vmem:[%s4604 + $0x22] sm:$0xff]
        %v5477 = vld [vmem:[%s4604 + $0x32] sm:$0xff]
        %v5478 = vld [vmem:[%s4604 + $0x3a] sm:$0xff]
        %v5479 = vld [vmem:[%s4604 + $0x4a] sm:$0xff]
        %v5480 = vld [vmem:[%s4604 + $0x52] sm:$0xff]
        %v5481 = vld [vmem:[%s4604 + $0x62] sm:$0xff]
        %v5482 = vld [vmem:[%s4604 + $0x6a] sm:$0xff]
        %v5483 = vld [vmem:[%s4604 + $0x7a] sm:$0xff]
        %v5484 = vld [vmem:[%s4604 + $0x82] sm:$0xff]
        %v5485 = vld [vmem:[%s4604 + $0x92] sm:$0xff]
        %v5486 = vld [vmem:[%s4604 + $0x9a] sm:$0xff]
        %v5487 = vld [vmem:[%s4604 + $0xaa] sm:$0xff]
        %v5488 = vld [vmem:[%s4604 + $0xb2] sm:$0xff]
        %v5489 = vld [vmem:[%s4604 + $0xc2] sm:$0xff]
        %v5490 = vld [vmem:[%s4604 + $0xca] sm:$0xff]
        %v5491 = vld [vmem:[%s4604 + $0xda] sm:$0xff]
        %v5492 = vld [vmem:[%s4604 + $0xe2] sm:$0xff]
        %v5493 = vld [vmem:[%s4604 + $0xf2] sm:$0xff]
        %v5494 = vld [vmem:[%s4604 + $0xfa] sm:$0xff]
        %v5495 = vld [vmem:[%s4604 + $0x10a] sm:$0xff]
        %v5496 = vld [vmem:[%s4604 + $0x112] sm:$0xff]
        %v5497 = vld [vmem:[%s4604 + $0x122] sm:$0xff]
        %v5498 = vld [vmem:[%s4604 + $0x12a] sm:$0xff]
        %v5499 = vld [vmem:[%s4604 + $0x13a] sm:$0xff]
        %v5500 = vld [vmem:[%s4604 + $0x142] sm:$0xff]
        %v5501 = vld [vmem:[%s4604 + $0x152] sm:$0xff]
        %v5502 = vld [vmem:[%s4604 + $0x15a] sm:$0xff]
        %v5503 = vld [vmem:[%s4604 + $0x16a] sm:$0xff]
        %v5504 = vld [vmem:[%s4604 + $0x172] sm:$0xff]
        %5537 = vrot.lane.b32.xlu0 %v5473, 80
        %v5538 = vpop.permute.xlu0 %5537
        %5539 = vrot.lane.b32.xlu0 %v5474, 80
        %v5540 = vpop.permute.xlu0 %5539
        %5541 = vrot.lane.b32.xlu0 %v5475, 80
        %v5542 = vpop.permute.xlu0 %5541
        %5543 = vrot.lane.b32.xlu0 %v5476, 80
        %v5544 = vpop.permute.xlu0 %5543
        %5545 = vrot.lane.b32.xlu0 %v5477, 80
        %v5546 = vpop.permute.xlu0 %5545
        %5547 = vrot.lane.b32.xlu0 %v5478, 80
        %v5548 = vpop.permute.xlu0 %5547
        %5549 = vrot.lane.b32.xlu0 %v5479, 80
        %v5550 = vpop.permute.xlu0 %5549
        %5551 = vrot.lane.b32.xlu0 %v5480, 80
        %v5552 = vpop.permute.xlu0 %5551
        %5553 = vrot.lane.b32.xlu0 %v5481, 80
        %v5554 = vpop.permute.xlu0 %5553
        %5555 = vrot.lane.b32.xlu0 %v5482, 80
        %v5556 = vpop.permute.xlu0 %5555
        %5557 = vrot.lane.b32.xlu0 %v5483, 80
        %v5558 = vpop.permute.xlu0 %5557
        %5559 = vrot.lane.b32.xlu0 %v5484, 80
        %v5560 = vpop.permute.xlu0 %5559
        %5561 = vrot.lane.b32.xlu0 %v5485, 80
        %v5562 = vpop.permute.xlu0 %5561
        %5563 = vrot.lane.b32.xlu0 %v5486, 80
        %v5564 = vpop.permute.xlu0 %5563
        %5565 = vrot.lane.b32.xlu0 %v5487, 80
        %v5566 = vpop.permute.xlu0 %5565
        %5567 = vrot.lane.b32.xlu0 %v5488, 80
        %v5568 = vpop.permute.xlu0 %5567
        %5569 = vrot.lane.b32.xlu0 %v5489, 80
        %v5570 = vpop.permute.xlu0 %5569
        %5571 = vrot.lane.b32.xlu0 %v5490, 80
        %v5572 = vpop.permute.xlu0 %5571
        %5573 = vrot.lane.b32.xlu0 %v5491, 80
        %v5574 = vpop.permute.xlu0 %5573
        %5575 = vrot.lane.b32.xlu0 %v5492, 80
        %v5576 = vpop.permute.xlu0 %5575
        %5577 = vrot.lane.b32.xlu0 %v5493, 80
        %v5578 = vpop.permute.xlu0 %5577
        %5579 = vrot.lane.b32.xlu0 %v5494, 80
        %v5580 = vpop.permute.xlu0 %5579
        %5581 = vrot.lane.b32.xlu0 %v5495, 80
        %v5582 = vpop.permute.xlu0 %5581
        %5583 = vrot.lane.b32.xlu0 %v5496, 80
        %v5584 = vpop.permute.xlu0 %5583
        %5585 = vrot.lane.b32.xlu0 %v5497, 80
        %v5586 = vpop.permute.xlu0 %5585
        %5587 = vrot.lane.b32.xlu0 %v5498, 80
        %v5588 = vpop.permute.xlu0 %5587
        %5589 = vrot.lane.b32.xlu0 %v5499, 80
        %v5590 = vpop.permute.xlu0 %5589
        %5591 = vrot.lane.b32.xlu0 %v5500, 80
        %v5592 = vpop.permute.xlu0 %5591
        %5593 = vrot.lane.b32.xlu0 %v5501, 80
        %v5594 = vpop.permute.xlu0 %5593
        %5595 = vrot.lane.b32.xlu0 %v5502, 80
        %v5596 = vpop.permute.xlu0 %5595
        %5597 = vrot.lane.b32.xlu0 %v5503, 80
        %v5598 = vpop.permute.xlu0 %5597
        %5599 = vrot.lane.b32.xlu0 %v5504, 80
        %v5600 = vpop.permute.xlu0 %5599
        %vm5633 = vcmask 786048
        %5634 = vst.msk [vmem:[#allocation7] sm:$0xff] %vm5633, %v5538
        %5635 = vst.msk [vmem:[#allocation7 + $0x10] sm:$0xff] %vm5633, %v5540
        %5636 = vst.msk [vmem:[#allocation7 + $0x20] sm:$0xff] %vm5633, %v5542
        %5637 = vst.msk [vmem:[#allocation7 + $0x30] sm:$0xff] %vm5633, %v5544
        %5638 = vst.msk [vmem:[#allocation7 + $0x40] sm:$0xff] %vm5633, %v5546
        %5639 = vst.msk [vmem:[#allocation7 + $0x50] sm:$0xff] %vm5633, %v5548
        %5640 = vst.msk [vmem:[#allocation7 + $0x60] sm:$0xff] %vm5633, %v5550
        %5641 = vst.msk [vmem:[#allocation7 + $0x70] sm:$0xff] %vm5633, %v5552
        %5642 = vst.msk [vmem:[#allocation7 + $0x80] sm:$0xff] %vm5633, %v5554
        %5643 = vst.msk [vmem:[#allocation7 + $0x90] sm:$0xff] %vm5633, %v5556
        %5644 = vst.msk [vmem:[#allocation7 + $0xa0] sm:$0xff] %vm5633, %v5558
        %5645 = vst.msk [vmem:[#allocation7 + $0xb0] sm:$0xff] %vm5633, %v5560
        %5646 = vst.msk [vmem:[#allocation7 + $0xc0] sm:$0xff] %vm5633, %v5562
        %5647 = vst.msk [vmem:[#allocation7 + $0xd0] sm:$0xff] %vm5633, %v5564
        %5648 = vst.msk [vmem:[#allocation7 + $0xe0] sm:$0xff] %vm5633, %v5566
        %5649 = vst.msk [vmem:[#allocation7 + $0xf0] sm:$0xff] %vm5633, %v5568
        %5650 = vst.msk [vmem:[#allocation7 + $0x100] sm:$0xff] %vm5633, %v5570
        %5651 = vst.msk [vmem:[#allocation7 + $0x110] sm:$0xff] %vm5633, %v5572
        %5652 = vst.msk [vmem:[#allocation7 + $0x120] sm:$0xff] %vm5633, %v5574
        %5653 = vst.msk [vmem:[#allocation7 + $0x130] sm:$0xff] %vm5633, %v5576
        %5654 = vst.msk [vmem:[#allocation7 + $0x140] sm:$0xff] %vm5633, %v5578
        %5655 = vst.msk [vmem:[#allocation7 + $0x150] sm:$0xff] %vm5633, %v5580
        %5656 = vst.msk [vmem:[#allocation7 + $0x160] sm:$0xff] %vm5633, %v5582
        %5657 = vst.msk [vmem:[#allocation7 + $0x170] sm:$0xff] %vm5633, %v5584
        %5658 = vst.msk [vmem:[#allocation7 + $0x180] sm:$0xff] %vm5633, %v5586
        %5659 = vst.msk [vmem:[#allocation7 + $0x190] sm:$0xff] %vm5633, %v5588
        %5660 = vst.msk [vmem:[#allocation7 + $0x1a0] sm:$0xff] %vm5633, %v5590
        %5661 = vst.msk [vmem:[#allocation7 + $0x1b0] sm:$0xff] %vm5633, %v5592
        %5662 = vst.msk [vmem:[#allocation7 + $0x1c0] sm:$0xff] %vm5633, %v5594
        %5663 = vst.msk [vmem:[#allocation7 + $0x1d0] sm:$0xff] %vm5633, %v5596
        %5664 = vst.msk [vmem:[#allocation7 + $0x1e0] sm:$0xff] %vm5633, %v5598
        %5665 = vst.msk [vmem:[#allocation7 + $0x1f0] sm:$0xff] %vm5633, %v5600
        %s5666 = scalar_lea.vmem [#allocation6], 48
        %v5667 = vld [vmem:[%s5666] sm:$0xff]
        %v5668 = vld [vmem:[%s5666 + $0x8] sm:$0xff]
        %v5669 = vld [vmem:[%s5666 + $0x18] sm:$0xff]
        %v5670 = vld [vmem:[%s5666 + $0x20] sm:$0xff]
        %v5671 = vld [vmem:[%s5666 + $0x30] sm:$0xff]
        %v5672 = vld [vmem:[%s5666 + $0x38] sm:$0xff]
        %v5673 = vld [vmem:[%s5666 + $0x48] sm:$0xff]
        %v5674 = vld [vmem:[%s5666 + $0x50] sm:$0xff]
        %v5675 = vld [vmem:[%s5666 + $0x60] sm:$0xff]
        %v5676 = vld [vmem:[%s5666 + $0x68] sm:$0xff]
        %v5677 = vld [vmem:[%s5666 + $0x78] sm:$0xff]
        %v5678 = vld [vmem:[%s5666 + $0x80] sm:$0xff]
        %v5679 = vld [vmem:[%s5666 + $0x90] sm:$0xff]
        %v5680 = vld [vmem:[%s5666 + $0x98] sm:$0xff]
        %v5681 = vld [vmem:[%s5666 + $0xa8] sm:$0xff]
        %v5682 = vld [vmem:[%s5666 + $0xb0] sm:$0xff]
        %v5683 = vld [vmem:[%s5666 + $0xc0] sm:$0xff]
        %v5684 = vld [vmem:[%s5666 + $0xc8] sm:$0xff]
        %v5685 = vld [vmem:[%s5666 + $0xd8] sm:$0xff]
        %v5686 = vld [vmem:[%s5666 + $0xe0] sm:$0xff]
        %v5687 = vld [vmem:[%s5666 + $0xf0] sm:$0xff]
        %v5688 = vld [vmem:[%s5666 + $0xf8] sm:$0xff]
        %v5689 = vld [vmem:[%s5666 + $0x108] sm:$0xff]
        %v5690 = vld [vmem:[%s5666 + $0x110] sm:$0xff]
        %v5691 = vld [vmem:[%s5666 + $0x120] sm:$0xff]
        %v5692 = vld [vmem:[%s5666 + $0x128] sm:$0xff]
        %v5693 = vld [vmem:[%s5666 + $0x138] sm:$0xff]
        %v5694 = vld [vmem:[%s5666 + $0x140] sm:$0xff]
        %v5695 = vld [vmem:[%s5666 + $0x150] sm:$0xff]
        %v5696 = vld [vmem:[%s5666 + $0x158] sm:$0xff]
        %v5697 = vld [vmem:[%s5666 + $0x168] sm:$0xff]
        %v5698 = vld [vmem:[%s5666 + $0x170] sm:$0xff]
        %5731 = vrot.lane.b32.xlu0 %v5667, 96
        %v5732 = vpop.permute.xlu0 %5731
        %5733 = vrot.lane.b32.xlu0 %v5668, 96
        %v5734 = vpop.permute.xlu0 %5733
        %5735 = vrot.lane.b32.xlu0 %v5669, 96
        %v5736 = vpop.permute.xlu0 %5735
        %5737 = vrot.lane.b32.xlu0 %v5670, 96
        %v5738 = vpop.permute.xlu0 %5737
        %5739 = vrot.lane.b32.xlu0 %v5671, 96
        %v5740 = vpop.permute.xlu0 %5739
        %5741 = vrot.lane.b32.xlu0 %v5672, 96
        %v5742 = vpop.permute.xlu0 %5741
        %5743 = vrot.lane.b32.xlu0 %v5673, 96
        %v5744 = vpop.permute.xlu0 %5743
        %5745 = vrot.lane.b32.xlu0 %v5674, 96
        %v5746 = vpop.permute.xlu0 %5745
        %5747 = vrot.lane.b32.xlu0 %v5675, 96
        %v5748 = vpop.permute.xlu0 %5747
        %5749 = vrot.lane.b32.xlu0 %v5676, 96
        %v5750 = vpop.permute.xlu0 %5749
        %5751 = vrot.lane.b32.xlu0 %v5677, 96
        %v5752 = vpop.permute.xlu0 %5751
        %5753 = vrot.lane.b32.xlu0 %v5678, 96
        %v5754 = vpop.permute.xlu0 %5753
        %5755 = vrot.lane.b32.xlu0 %v5679, 96
        %v5756 = vpop.permute.xlu0 %5755
        %5757 = vrot.lane.b32.xlu0 %v5680, 96
        %v5758 = vpop.permute.xlu0 %5757
        %5759 = vrot.lane.b32.xlu0 %v5681, 96
        %v5760 = vpop.permute.xlu0 %5759
        %5761 = vrot.lane.b32.xlu0 %v5682, 96
        %v5762 = vpop.permute.xlu0 %5761
        %5763 = vrot.lane.b32.xlu0 %v5683, 96
        %v5764 = vpop.permute.xlu0 %5763
        %5765 = vrot.lane.b32.xlu0 %v5684, 96
        %v5766 = vpop.permute.xlu0 %5765
        %5767 = vrot.lane.b32.xlu0 %v5685, 96
        %v5768 = vpop.permute.xlu0 %5767
        %5769 = vrot.lane.b32.xlu0 %v5686, 96
        %v5770 = vpop.permute.xlu0 %5769
        %5771 = vrot.lane.b32.xlu0 %v5687, 96
        %v5772 = vpop.permute.xlu0 %5771
        %5773 = vrot.lane.b32.xlu0 %v5688, 96
        %v5774 = vpop.permute.xlu0 %5773
        %5775 = vrot.lane.b32.xlu0 %v5689, 96
        %v5776 = vpop.permute.xlu0 %5775
        %5777 = vrot.lane.b32.xlu0 %v5690, 96
        %v5778 = vpop.permute.xlu0 %5777
        %5779 = vrot.lane.b32.xlu0 %v5691, 96
        %v5780 = vpop.permute.xlu0 %5779
        %5781 = vrot.lane.b32.xlu0 %v5692, 96
        %v5782 = vpop.permute.xlu0 %5781
        %5783 = vrot.lane.b32.xlu0 %v5693, 96
        %v5784 = vpop.permute.xlu0 %5783
        %5785 = vrot.lane.b32.xlu0 %v5694, 96
        %v5786 = vpop.permute.xlu0 %5785
        %5787 = vrot.lane.b32.xlu0 %v5695, 96
        %v5788 = vpop.permute.xlu0 %5787
        %5789 = vrot.lane.b32.xlu0 %v5696, 96
        %v5790 = vpop.permute.xlu0 %5789
        %5791 = vrot.lane.b32.xlu0 %v5697, 96
        %v5792 = vpop.permute.xlu0 %5791
        %5793 = vrot.lane.b32.xlu0 %v5698, 96
        %v5794 = vpop.permute.xlu0 %5793
        %vm5827 = vcmask 917248
        %5828 = vst.msk [vmem:[#allocation7] sm:$0xff] %vm5827, %v5732
        %5829 = vst.msk [vmem:[#allocation7 + $0x10] sm:$0xff] %vm5827, %v5734
        %5830 = vst.msk [vmem:[#allocation7 + $0x20] sm:$0xff] %vm5827, %v5736
        %5831 = vst.msk [vmem:[#allocation7 + $0x30] sm:$0xff] %vm5827, %v5738
        %5832 = vst.msk [vmem:[#allocation7 + $0x40] sm:$0xff] %vm5827, %v5740
        %5833 = vst.msk [vmem:[#allocation7 + $0x50] sm:$0xff] %vm5827, %v5742
        %5834 = vst.msk [vmem:[#allocation7 + $0x60] sm:$0xff] %vm5827, %v5744
        %5835 = vst.msk [vmem:[#allocation7 + $0x70] sm:$0xff] %vm5827, %v5746
        %5836 = vst.msk [vmem:[#allocation7 + $0x80] sm:$0xff] %vm5827, %v5748
        %5837 = vst.msk [vmem:[#allocation7 + $0x90] sm:$0xff] %vm5827, %v5750
        %5838 = vst.msk [vmem:[#allocation7 + $0xa0] sm:$0xff] %vm5827, %v5752
        %5839 = vst.msk [vmem:[#allocation7 + $0xb0] sm:$0xff] %vm5827, %v5754
        %5840 = vst.msk [vmem:[#allocation7 + $0xc0] sm:$0xff] %vm5827, %v5756
        %5841 = vst.msk [vmem:[#allocation7 + $0xd0] sm:$0xff] %vm5827, %v5758
        %5842 = vst.msk [vmem:[#allocation7 + $0xe0] sm:$0xff] %vm5827, %v5760
        %5843 = vst.msk [vmem:[#allocation7 + $0xf0] sm:$0xff] %vm5827, %v5762
        %5844 = vst.msk [vmem:[#allocation7 + $0x100] sm:$0xff] %vm5827, %v5764
        %5845 = vst.msk [vmem:[#allocation7 + $0x110] sm:$0xff] %vm5827, %v5766
        %5846 = vst.msk [vmem:[#allocation7 + $0x120] sm:$0xff] %vm5827, %v5768
        %5847 = vst.msk [vmem:[#allocation7 + $0x130] sm:$0xff] %vm5827, %v5770
        %5848 = vst.msk [vmem:[#allocation7 + $0x140] sm:$0xff] %vm5827, %v5772
        %5849 = vst.msk [vmem:[#allocation7 + $0x150] sm:$0xff] %vm5827, %v5774
        %5850 = vst.msk [vmem:[#allocation7 + $0x160] sm:$0xff] %vm5827, %v5776
        %5851 = vst.msk [vmem:[#allocation7 + $0x170] sm:$0xff] %vm5827, %v5778
        %5852 = vst.msk [vmem:[#allocation7 + $0x180] sm:$0xff] %vm5827, %v5780
        %5853 = vst.msk [vmem:[#allocation7 + $0x190] sm:$0xff] %vm5827, %v5782
        %5854 = vst.msk [vmem:[#allocation7 + $0x1a0] sm:$0xff] %vm5827, %v5784
        %5855 = vst.msk [vmem:[#allocation7 + $0x1b0] sm:$0xff] %vm5827, %v5786
        %5856 = vst.msk [vmem:[#allocation7 + $0x1c0] sm:$0xff] %vm5827, %v5788
        %5857 = vst.msk [vmem:[#allocation7 + $0x1d0] sm:$0xff] %vm5827, %v5790
        %5858 = vst.msk [vmem:[#allocation7 + $0x1e0] sm:$0xff] %vm5827, %v5792
        %5859 = vst.msk [vmem:[#allocation7 + $0x1f0] sm:$0xff] %vm5827, %v5794
        %v5860 = vld [vmem:[%s5666 + $0x1] sm:$0xff]
        %v5861 = vld [vmem:[%s5666 + $0x9] sm:$0xff]
        %v5862 = vld [vmem:[%s5666 + $0x19] sm:$0xff]
        %v5863 = vld [vmem:[%s5666 + $0x21] sm:$0xff]
        %v5864 = vld [vmem:[%s5666 + $0x31] sm:$0xff]
        %v5865 = vld [vmem:[%s5666 + $0x39] sm:$0xff]
        %v5866 = vld [vmem:[%s5666 + $0x49] sm:$0xff]
        %v5867 = vld [vmem:[%s5666 + $0x51] sm:$0xff]
        %v5868 = vld [vmem:[%s5666 + $0x61] sm:$0xff]
        %v5869 = vld [vmem:[%s5666 + $0x69] sm:$0xff]
        %v5870 = vld [vmem:[%s5666 + $0x79] sm:$0xff]
        %v5871 = vld [vmem:[%s5666 + $0x81] sm:$0xff]
        %v5872 = vld [vmem:[%s5666 + $0x91] sm:$0xff]
        %v5873 = vld [vmem:[%s5666 + $0x99] sm:$0xff]
        %v5874 = vld [vmem:[%s5666 + $0xa9] sm:$0xff]
        %v5875 = vld [vmem:[%s5666 + $0xb1] sm:$0xff]
        %v5876 = vld [vmem:[%s5666 + $0xc1] sm:$0xff]
        %v5877 = vld [vmem:[%s5666 + $0xc9] sm:$0xff]
        %v5878 = vld [vmem:[%s5666 + $0xd9] sm:$0xff]
        %v5879 = vld [vmem:[%s5666 + $0xe1] sm:$0xff]
        %v5880 = vld [vmem:[%s5666 + $0xf1] sm:$0xff]
        %v5881 = vld [vmem:[%s5666 + $0xf9] sm:$0xff]
        %v5882 = vld [vmem:[%s5666 + $0x109] sm:$0xff]
        %v5883 = vld [vmem:[%s5666 + $0x111] sm:$0xff]
        %v5884 = vld [vmem:[%s5666 + $0x121] sm:$0xff]
        %v5885 = vld [vmem:[%s5666 + $0x129] sm:$0xff]
        %v5886 = vld [vmem:[%s5666 + $0x139] sm:$0xff]
        %v5887 = vld [vmem:[%s5666 + $0x141] sm:$0xff]
        %v5888 = vld [vmem:[%s5666 + $0x151] sm:$0xff]
        %v5889 = vld [vmem:[%s5666 + $0x159] sm:$0xff]
        %v5890 = vld [vmem:[%s5666 + $0x169] sm:$0xff]
        %v5891 = vld [vmem:[%s5666 + $0x171] sm:$0xff]
        %5924 = vrot.lane.b32.xlu0 %v5860, 112
        %v5925 = vpop.permute.xlu0 %5924
        %5926 = vrot.lane.b32.xlu0 %v5861, 112
        %v5927 = vpop.permute.xlu0 %5926
        %5928 = vrot.lane.b32.xlu0 %v5862, 112
        %v5929 = vpop.permute.xlu0 %5928
        %5930 = vrot.lane.b32.xlu0 %v5863, 112
        %v5931 = vpop.permute.xlu0 %5930
        %5932 = vrot.lane.b32.xlu0 %v5864, 112
        %v5933 = vpop.permute.xlu0 %5932
        %5934 = vrot.lane.b32.xlu0 %v5865, 112
        %v5935 = vpop.permute.xlu0 %5934
        %5936 = vrot.lane.b32.xlu0 %v5866, 112
        %v5937 = vpop.permute.xlu0 %5936
        %5938 = vrot.lane.b32.xlu0 %v5867, 112
        %v5939 = vpop.permute.xlu0 %5938
        %5940 = vrot.lane.b32.xlu0 %v5868, 112
        %v5941 = vpop.permute.xlu0 %5940
        %5942 = vrot.lane.b32.xlu0 %v5869, 112
        %v5943 = vpop.permute.xlu0 %5942
        %5944 = vrot.lane.b32.xlu0 %v5870, 112
        %v5945 = vpop.permute.xlu0 %5944
        %5946 = vrot.lane.b32.xlu0 %v5871, 112
        %v5947 = vpop.permute.xlu0 %5946
        %5948 = vrot.lane.b32.xlu0 %v5872, 112
        %v5949 = vpop.permute.xlu0 %5948
        %5950 = vrot.lane.b32.xlu0 %v5873, 112
        %v5951 = vpop.permute.xlu0 %5950
        %5952 = vrot.lane.b32.xlu0 %v5874, 112
        %v5953 = vpop.permute.xlu0 %5952
        %5954 = vrot.lane.b32.xlu0 %v5875, 112
        %v5955 = vpop.permute.xlu0 %5954
        %5956 = vrot.lane.b32.xlu0 %v5876, 112
        %v5957 = vpop.permute.xlu0 %5956
        %5958 = vrot.lane.b32.xlu0 %v5877, 112
        %v5959 = vpop.permute.xlu0 %5958
        %5960 = vrot.lane.b32.xlu0 %v5878, 112
        %v5961 = vpop.permute.xlu0 %5960
        %5962 = vrot.lane.b32.xlu0 %v5879, 112
        %v5963 = vpop.permute.xlu0 %5962
        %5964 = vrot.lane.b32.xlu0 %v5880, 112
        %v5965 = vpop.permute.xlu0 %5964
        %5966 = vrot.lane.b32.xlu0 %v5881, 112
        %v5967 = vpop.permute.xlu0 %5966
        %5968 = vrot.lane.b32.xlu0 %v5882, 112
        %v5969 = vpop.permute.xlu0 %5968
        %5970 = vrot.lane.b32.xlu0 %v5883, 112
        %v5971 = vpop.permute.xlu0 %5970
        %5972 = vrot.lane.b32.xlu0 %v5884, 112
        %v5973 = vpop.permute.xlu0 %5972
        %5974 = vrot.lane.b32.xlu0 %v5885, 112
        %v5975 = vpop.permute.xlu0 %5974
        %5976 = vrot.lane.b32.xlu0 %v5886, 112
        %v5977 = vpop.permute.xlu0 %5976
        %5978 = vrot.lane.b32.xlu0 %v5887, 112
        %v5979 = vpop.permute.xlu0 %5978
        %5980 = vrot.lane.b32.xlu0 %v5888, 112
        %v5981 = vpop.permute.xlu0 %5980
        %5982 = vrot.lane.b32.xlu0 %v5889, 112
        %v5983 = vpop.permute.xlu0 %5982
        %5984 = vrot.lane.b32.xlu0 %v5890, 112
        %v5985 = vpop.permute.xlu0 %5984
        %5986 = vrot.lane.b32.xlu0 %v5891, 112
        %v5987 = vpop.permute.xlu0 %5986
        %vm6020 = vcmask 1048448
        %6021 = vst.msk [vmem:[#allocation7] sm:$0xff] %vm6020, %v5925
        %6022 = vst.msk [vmem:[#allocation7 + $0x10] sm:$0xff] %vm6020, %v5927
        %6023 = vst.msk [vmem:[#allocation7 + $0x20] sm:$0xff] %vm6020, %v5929
        %6024 = vst.msk [vmem:[#allocation7 + $0x30] sm:$0xff] %vm6020, %v5931
        %6025 = vst.msk [vmem:[#allocation7 + $0x40] sm:$0xff] %vm6020, %v5933
        %6026 = vst.msk [vmem:[#allocation7 + $0x50] sm:$0xff] %vm6020, %v5935
        %6027 = vst.msk [vmem:[#allocation7 + $0x60] sm:$0xff] %vm6020, %v5937
        %6028 = vst.msk [vmem:[#allocation7 + $0x70] sm:$0xff] %vm6020, %v5939
        %6029 = vst.msk [vmem:[#allocation7 + $0x80] sm:$0xff] %vm6020, %v5941
        %6030 = vst.msk [vmem:[#allocation7 + $0x90] sm:$0xff] %vm6020, %v5943
        %6031 = vst.msk [vmem:[#allocation7 + $0xa0] sm:$0xff] %vm6020, %v5945
        %6032 = vst.msk [vmem:[#allocation7 + $0xb0] sm:$0xff] %vm6020, %v5947
        %6033 = vst.msk [vmem:[#allocation7 + $0xc0] sm:$0xff] %vm6020, %v5949
        %6034 = vst.msk [vmem:[#allocation7 + $0xd0] sm:$0xff] %vm6020, %v5951
        %6035 = vst.msk [vmem:[#allocation7 + $0xe0] sm:$0xff] %vm6020, %v5953
        %6036 = vst.msk [vmem:[#allocation7 + $0xf0] sm:$0xff] %vm6020, %v5955
        %6037 = vst.msk [vmem:[#allocation7 + $0x100] sm:$0xff] %vm6020, %v5957
        %6038 = vst.msk [vmem:[#allocation7 + $0x110] sm:$0xff] %vm6020, %v5959
        %6039 = vst.msk [vmem:[#allocation7 + $0x120] sm:$0xff] %vm6020, %v5961
        %6040 = vst.msk [vmem:[#allocation7 + $0x130] sm:$0xff] %vm6020, %v5963
        %6041 = vst.msk [vmem:[#allocation7 + $0x140] sm:$0xff] %vm6020, %v5965
        %6042 = vst.msk [vmem:[#allocation7 + $0x150] sm:$0xff] %vm6020, %v5967
        %6043 = vst.msk [vmem:[#allocation7 + $0x160] sm:$0xff] %vm6020, %v5969
        %6044 = vst.msk [vmem:[#allocation7 + $0x170] sm:$0xff] %vm6020, %v5971
        %6045 = vst.msk [vmem:[#allocation7 + $0x180] sm:$0xff] %vm6020, %v5973
        %6046 = vst.msk [vmem:[#allocation7 + $0x190] sm:$0xff] %vm6020, %v5975
        %6047 = vst.msk [vmem:[#allocation7 + $0x1a0] sm:$0xff] %vm6020, %v5977
        %6048 = vst.msk [vmem:[#allocation7 + $0x1b0] sm:$0xff] %vm6020, %v5979
        %6049 = vst.msk [vmem:[#allocation7 + $0x1c0] sm:$0xff] %vm6020, %v5981
        %6050 = vst.msk [vmem:[#allocation7 + $0x1d0] sm:$0xff] %vm6020, %v5983
        %6051 = vst.msk [vmem:[#allocation7 + $0x1e0] sm:$0xff] %vm6020, %v5985
        %6052 = vst.msk [vmem:[#allocation7 + $0x1f0] sm:$0xff] %vm6020, %v5987
        %v6053 = vld [vmem:[%s5666 + $0x2] sm:$0xff]
        %v6054 = vld [vmem:[%s5666 + $0xa] sm:$0xff]
        %v6055 = vld [vmem:[%s5666 + $0x1a] sm:$0xff]
        %v6056 = vld [vmem:[%s5666 + $0x22] sm:$0xff]
        %v6057 = vld [vmem:[%s5666 + $0x32] sm:$0xff]
        %v6058 = vld [vmem:[%s5666 + $0x3a] sm:$0xff]
        %v6059 = vld [vmem:[%s5666 + $0x4a] sm:$0xff]
        %v6060 = vld [vmem:[%s5666 + $0x52] sm:$0xff]
        %v6061 = vld [vmem:[%s5666 + $0x62] sm:$0xff]
        %v6062 = vld [vmem:[%s5666 + $0x6a] sm:$0xff]
        %v6063 = vld [vmem:[%s5666 + $0x7a] sm:$0xff]
        %v6064 = vld [vmem:[%s5666 + $0x82] sm:$0xff]
        %v6065 = vld [vmem:[%s5666 + $0x92] sm:$0xff]
        %v6066 = vld [vmem:[%s5666 + $0x9a] sm:$0xff]
        %v6067 = vld [vmem:[%s5666 + $0xaa] sm:$0xff]
        %v6068 = vld [vmem:[%s5666 + $0xb2] sm:$0xff]
        %v6069 = vld [vmem:[%s5666 + $0xc2] sm:$0xff]
        %v6070 = vld [vmem:[%s5666 + $0xca] sm:$0xff]
        %v6071 = vld [vmem:[%s5666 + $0xda] sm:$0xff]
        %v6072 = vld [vmem:[%s5666 + $0xe2] sm:$0xff]
        %v6073 = vld [vmem:[%s5666 + $0xf2] sm:$0xff]
        %v6074 = vld [vmem:[%s5666 + $0xfa] sm:$0xff]
        %v6075 = vld [vmem:[%s5666 + $0x10a] sm:$0xff]
        %v6076 = vld [vmem:[%s5666 + $0x112] sm:$0xff]
        %v6077 = vld [vmem:[%s5666 + $0x122] sm:$0xff]
        %v6078 = vld [vmem:[%s5666 + $0x12a] sm:$0xff]
        %v6079 = vld [vmem:[%s5666 + $0x13a] sm:$0xff]
        %v6080 = vld [vmem:[%s5666 + $0x142] sm:$0xff]
        %v6081 = vld [vmem:[%s5666 + $0x152] sm:$0xff]
        %v6082 = vld [vmem:[%s5666 + $0x15a] sm:$0xff]
        %v6083 = vld [vmem:[%s5666 + $0x16a] sm:$0xff]
        %v6084 = vld [vmem:[%s5666 + $0x172] sm:$0xff]
        %6085 = vst.msk [vmem:[#allocation7 + $0x8] sm:$0xff] %vm4548, %v6053
        %6086 = vst.msk [vmem:[#allocation7 + $0x18] sm:$0xff] %vm4548, %v6054
        %6087 = vst.msk [vmem:[#allocation7 + $0x28] sm:$0xff] %vm4548, %v6055
        %6088 = vst.msk [vmem:[#allocation7 + $0x38] sm:$0xff] %vm4548, %v6056
        %6089 = vst.msk [vmem:[#allocation7 + $0x48] sm:$0xff] %vm4548, %v6057
        %6090 = vst.msk [vmem:[#allocation7 + $0x58] sm:$0xff] %vm4548, %v6058
        %6091 = vst.msk [vmem:[#allocation7 + $0x68] sm:$0xff] %vm4548, %v6059
        %6092 = vst.msk [vmem:[#allocation7 + $0x78] sm:$0xff] %vm4548, %v6060
        %6093 = vst.msk [vmem:[#allocation7 + $0x88] sm:$0xff] %vm4548, %v6061
        %6094 = vst.msk [vmem:[#allocation7 + $0x98] sm:$0xff] %vm4548, %v6062
        %6095 = vst.msk [vmem:[#allocation7 + $0xa8] sm:$0xff] %vm4548, %v6063
        %6096 = vst.msk [vmem:[#allocation7 + $0xb8] sm:$0xff] %vm4548, %v6064
        %6097 = vst.msk [vmem:[#allocation7 + $0xc8] sm:$0xff] %vm4548, %v6065
        %6098 = vst.msk [vmem:[#allocation7 + $0xd8] sm:$0xff] %vm4548, %v6066
        %6099 = vst.msk [vmem:[#allocation7 + $0xe8] sm:$0xff] %vm4548, %v6067
        %6100 = vst.msk [vmem:[#allocation7 + $0xf8] sm:$0xff] %vm4548, %v6068
        %6101 = vst.msk [vmem:[#allocation7 + $0x108] sm:$0xff] %vm4548, %v6069
        %6102 = vst.msk [vmem:[#allocation7 + $0x118] sm:$0xff] %vm4548, %v6070
        %6103 = vst.msk [vmem:[#allocation7 + $0x128] sm:$0xff] %vm4548, %v6071
        %6104 = vst.msk [vmem:[#allocation7 + $0x138] sm:$0xff] %vm4548, %v6072
        %6105 = vst.msk [vmem:[#allocation7 + $0x148] sm:$0xff] %vm4548, %v6073
        %6106 = vst.msk [vmem:[#allocation7 + $0x158] sm:$0xff] %vm4548, %v6074
        %6107 = vst.msk [vmem:[#allocation7 + $0x168] sm:$0xff] %vm4548, %v6075
        %6108 = vst.msk [vmem:[#allocation7 + $0x178] sm:$0xff] %vm4548, %v6076
        %6109 = vst.msk [vmem:[#allocation7 + $0x188] sm:$0xff] %vm4548, %v6077
        %6110 = vst.msk [vmem:[#allocation7 + $0x198] sm:$0xff] %vm4548, %v6078
        %6111 = vst.msk [vmem:[#allocation7 + $0x1a8] sm:$0xff] %vm4548, %v6079
        %6112 = vst.msk [vmem:[#allocation7 + $0x1b8] sm:$0xff] %vm4548, %v6080
        %6113 = vst.msk [vmem:[#allocation7 + $0x1c8] sm:$0xff] %vm4548, %v6081
        %6114 = vst.msk [vmem:[#allocation7 + $0x1d8] sm:$0xff] %vm4548, %v6082
        %6115 = vst.msk [vmem:[#allocation7 + $0x1e8] sm:$0xff] %vm4548, %v6083
        %6116 = vst.msk [vmem:[#allocation7 + $0x1f8] sm:$0xff] %vm4548, %v6084
        %v6117 = vld [vmem:[#allocation7] sm:$0xff]
        %v6118 = vld [vmem:[#allocation7 + $0x8] sm:$0xff]
        %v6119 = vld [vmem:[#allocation7 + $0x10] sm:$0xff]
        %v6120 = vld [vmem:[#allocation7 + $0x18] sm:$0xff]
        %v6121 = vld [vmem:[#allocation7 + $0x20] sm:$0xff]
        %v6122 = vld [vmem:[#allocation7 + $0x28] sm:$0xff]
        %v6123 = vld [vmem:[#allocation7 + $0x30] sm:$0xff]
        %v6124 = vld [vmem:[#allocation7 + $0x38] sm:$0xff]
        %v6125 = vld [vmem:[#allocation7 + $0x40] sm:$0xff]
        %v6126 = vld [vmem:[#allocation7 + $0x48] sm:$0xff]
        %v6127 = vld [vmem:[#allocation7 + $0x50] sm:$0xff]
        %v6128 = vld [vmem:[#allocation7 + $0x58] sm:$0xff]
        %v6129 = vld [vmem:[#allocation7 + $0x60] sm:$0xff]
        %v6130 = vld [vmem:[#allocation7 + $0x68] sm:$0xff]
        %v6131 = vld [vmem:[#allocation7 + $0x70] sm:$0xff]
        %v6132 = vld [vmem:[#allocation7 + $0x78] sm:$0xff]
        %v6133 = vld [vmem:[#allocation7 + $0x80] sm:$0xff]
        %v6134 = vld [vmem:[#allocation7 + $0x88] sm:$0xff]
        %v6135 = vld [vmem:[#allocation7 + $0x90] sm:$0xff]
        %v6136 = vld [vmem:[#allocation7 + $0x98] sm:$0xff]
        %v6137 = vld [vmem:[#allocation7 + $0xa0] sm:$0xff]
        %v6138 = vld [vmem:[#allocation7 + $0xa8] sm:$0xff]
        %v6139 = vld [vmem:[#allocation7 + $0xb0] sm:$0xff]
        %v6140 = vld [vmem:[#allocation7 + $0xb8] sm:$0xff]
        %v6141 = vld [vmem:[#allocation7 + $0xc0] sm:$0xff]
        %v6142 = vld [vmem:[#allocation7 + $0xc8] sm:$0xff]
        %v6143 = vld [vmem:[#allocation7 + $0xd0] sm:$0xff]
        %v6144 = vld [vmem:[#allocation7 + $0xd8] sm:$0xff]
        %v6145 = vld [vmem:[#allocation7 + $0xe0] sm:$0xff]
        %v6146 = vld [vmem:[#allocation7 + $0xe8] sm:$0xff]
        %v6147 = vld [vmem:[#allocation7 + $0xf0] sm:$0xff]
        %v6148 = vld [vmem:[#allocation7 + $0xf8] sm:$0xff]
        %v6149 = vld [vmem:[#allocation7 + $0x100] sm:$0xff]
        %v6150 = vld [vmem:[#allocation7 + $0x108] sm:$0xff]
        %v6151 = vld [vmem:[#allocation7 + $0x110] sm:$0xff]
        %v6152 = vld [vmem:[#allocation7 + $0x118] sm:$0xff]
        %v6153 = vld [vmem:[#allocation7 + $0x120] sm:$0xff]
        %v6154 = vld [vmem:[#allocation7 + $0x128] sm:$0xff]
        %v6155 = vld [vmem:[#allocation7 + $0x130] sm:$0xff]
        %v6156 = vld [vmem:[#allocation7 + $0x138] sm:$0xff]
        %v6157 = vld [vmem:[#allocation7 + $0x140] sm:$0xff]
        %v6158 = vld [vmem:[#allocation7 + $0x148] sm:$0xff]
        %v6159 = vld [vmem:[#allocation7 + $0x150] sm:$0xff]
        %v6160 = vld [vmem:[#allocation7 + $0x158] sm:$0xff]
        %v6161 = vld [vmem:[#allocation7 + $0x160] sm:$0xff]
        %v6162 = vld [vmem:[#allocation7 + $0x168] sm:$0xff]
        %v6163 = vld [vmem:[#allocation7 + $0x170] sm:$0xff]
        %v6164 = vld [vmem:[#allocation7 + $0x178] sm:$0xff]
        %v6165 = vld [vmem:[#allocation7 + $0x180] sm:$0xff]
        %v6166 = vld [vmem:[#allocation7 + $0x188] sm:$0xff]
        %v6167 = vld [vmem:[#allocation7 + $0x190] sm:$0xff]
        %v6168 = vld [vmem:[#allocation7 + $0x198] sm:$0xff]
        %v6169 = vld [vmem:[#allocation7 + $0x1a0] sm:$0xff]
        %v6170 = vld [vmem:[#allocation7 + $0x1a8] sm:$0xff]
        %v6171 = vld [vmem:[#allocation7 + $0x1b0] sm:$0xff]
        %v6172 = vld [vmem:[#allocation7 + $0x1b8] sm:$0xff]
        %v6173 = vld [vmem:[#allocation7 + $0x1c0] sm:$0xff]
        %v6174 = vld [vmem:[#allocation7 + $0x1c8] sm:$0xff]
        %v6175 = vld [vmem:[#allocation7 + $0x1d0] sm:$0xff]
        %v6176 = vld [vmem:[#allocation7 + $0x1d8] sm:$0xff]
        %v6177 = vld [vmem:[#allocation7 + $0x1e0] sm:$0xff]
        %v6178 = vld [vmem:[#allocation7 + $0x1e8] sm:$0xff]
        %v6179 = vld [vmem:[#allocation7 + $0x1f0] sm:$0xff]
        %v6180 = vld [vmem:[#allocation7 + $0x1f8] sm:$0xff]
        %v6181 = vld [vmem:[%s5] sm:$0xff]
        %v6182 = vld [vmem:[%s5 + $0x8] sm:$0xff]
        %v6183 = vld [vmem:[%s5 + $0x10] sm:$0xff]
        %v6184 = vld [vmem:[%s5 + $0x18] sm:$0xff]
        %v6185 = vld [vmem:[%s5 + $0x20] sm:$0xff]
        %v6186 = vld [vmem:[%s5 + $0x28] sm:$0xff]
        %v6187 = vld [vmem:[%s5 + $0x30] sm:$0xff]
        %v6188 = vld [vmem:[%s5 + $0x38] sm:$0xff]
        %v6189 = vld [vmem:[%s5 + $0x40] sm:$0xff]
        %v6190 = vld [vmem:[%s5 + $0x48] sm:$0xff]
        %v6191 = vld [vmem:[%s5 + $0x50] sm:$0xff]
        %v6192 = vld [vmem:[%s5 + $0x58] sm:$0xff]
        %v6193 = vld [vmem:[%s5 + $0x60] sm:$0xff]
        %v6194 = vld [vmem:[%s5 + $0x68] sm:$0xff]
        %v6195 = vld [vmem:[%s5 + $0x70] sm:$0xff]
        %v6196 = vld [vmem:[%s5 + $0x78] sm:$0xff]
        %v6197 = vld [vmem:[%s5 + $0x80] sm:$0xff]
        %v6198 = vld [vmem:[%s5 + $0x88] sm:$0xff]
        %v6199 = vld [vmem:[#allocation12] sm:$0x1]
        %v6201 = vlaneseq
        %v6202 = vshrl.u32 %v6201, 7
        %v6203 = vsub.s32 0, %v6202
        %v6204 = vrot.slane %v6199, %v6203
        %v6207 = vsel %vm4548, %v6118, 0
        %v6210 = vsel %vm4548, %v6120, 0
        %v6213 = vsel %vm4548, %v6122, 0
        %v6216 = vsel %vm4548, %v6124, 0
        %v6219 = vsel %vm4548, %v6126, 0
        %v6222 = vsel %vm4548, %v6128, 0
        %v6225 = vsel %vm4548, %v6130, 0
        %v6228 = vsel %vm4548, %v6132, 0
        %v6231 = vsel %vm4548, %v6134, 0
        %v6234 = vsel %vm4548, %v6136, 0
        %v6237 = vsel %vm4548, %v6138, 0
        %v6240 = vsel %vm4548, %v6140, 0
        %v6243 = vsel %vm4548, %v6142, 0
        %v6246 = vsel %vm4548, %v6144, 0
        %v6249 = vsel %vm4548, %v6146, 0
        %v6252 = vsel %vm4548, %v6148, 0
        %v6255 = vsel %vm4548, %v6150, 0
        %v6258 = vsel %vm4548, %v6152, 0
        %v6261 = vsel %vm4548, %v6154, 0
        %v6264 = vsel %vm4548, %v6156, 0
        %v6267 = vsel %vm4548, %v6158, 0
        %v6270 = vsel %vm4548, %v6160, 0
        %v6273 = vsel %vm4548, %v6162, 0
        %v6276 = vsel %vm4548, %v6164, 0
        %v6279 = vsel %vm4548, %v6166, 0
        %v6282 = vsel %vm4548, %v6168, 0
        %v6285 = vsel %vm4548, %v6170, 0
        %v6288 = vsel %vm4548, %v6172, 0
        %v6291 = vsel %vm4548, %v6174, 0
        %v6294 = vsel %vm4548, %v6176, 0
        %v6297 = vsel %vm4548, %v6178, 0
        %v6300 = vsel %vm4548, %v6180, 0
        %6302 = vmatprep.subr.mxu0 0.0
        %6303 = vmatpush1.msra.mxu0 %v6181
        %6304 = vmatprep.subr.mxu0 0.0
        %6305 = vmatpush1.msra.mxu0 %v6182
        %6306 = vmatprep.subr.mxu0 0.0
        %6307 = vmatpush1.msra.mxu0 %v6183
        %6308 = vmatprep.subr.mxu0 0.0
        %6309 = vmatpush1.msra.mxu0 %v6184
        %6310 = vmatprep.subr.mxu0 0.0
        %6311 = vmatpush1.msra.mxu0 %v6185
        %6312 = vmatprep.subr.mxu0 0.0
        %6313 = vmatpush1.msra.mxu0 %v6186
        %6314 = vmatprep.subr.mxu0 0.0
        %6315 = vmatpush1.msra.mxu0 %v6187
        %6316 = vmatprep.subr.mxu0 0.0
        %6317 = vmatpush1.msra.mxu0 %v6188
        %6318 = vmatprep.subr.mxu0 0.0
        %6319 = vmatpush1.msra.mxu0 %v6189
        %6320 = vmatprep.subr.mxu0 0.0
        %6321 = vmatpush1.msra.mxu0 %v6190
        %6322 = vmatprep.subr.mxu0 0.0
        %6323 = vmatpush1.msra.mxu0 %v6191
        %6324 = vmatprep.subr.mxu0 0.0
        %6325 = vmatpush1.msra.mxu0 %v6192
        %6326 = vmatprep.subr.mxu0 0.0
        %6327 = vmatpush1.msra.mxu0 %v6193
        %6328 = vmatprep.subr.mxu0 0.0
        %6329 = vmatpush1.msra.mxu0 %v6194
        %6330 = vmatprep.subr.mxu0 0.0
        %6331 = vmatpush1.msra.mxu0 %v6195
        %6332 = vmatprep.subr.mxu0 0.0
        %6333 = vmatpush1.msra.mxu0 %v6196
        %6334 = vmatprep.subr.mxu0 0.0
        %6335 = vmatpush1.msra.mxu0 %v6197
        %6336 = vmatprep.subr.mxu0 0.0
        %6337 = vmatpush1.msra.mxu0 %v6198
        %6338 = vmatprep.subr.mxu0 0.0
        %6339 = vmatpush1.msra.mxu0 0.0
        %6340 = vmatprep.subr.mxu0 0.0
        %6341 = vmatpush1.msra.mxu0 0.0
        %6342 = vmatprep.subr.mxu0 0.0
        %6343 = vmatpush1.msra.mxu0 0.0
        %6344 = vmatprep.subr.mxu0 0.0
        %6345 = vmatpush1.msra.mxu0 0.0
        %6346 = vmatprep.subr.mxu0 0.0
        %6347 = vmatpush1.msra.mxu0 0.0
        %6348 = vmatprep.subr.mxu0 0.0
        %6349 = vmatpush1.msra.mxu0 0.0
        %6350 = vmatprep.subr.mxu0 0.0
        %6351 = vmatpush1.msra.mxu0 0.0
        %6352 = vmatprep.subr.mxu0 0.0
        %6353 = vmatpush1.msra.mxu0 0.0
        %6354 = vmatprep.subr.mxu0 0.0
        %6355 = vmatpush1.msra.mxu0 0.0
        %6356 = vmatprep.subr.mxu0 0.0
        %6357 = vmatpush1.msra.mxu0 0.0
        %6358 = vmatprep.subr.mxu0 0.0
        %6359 = vmatpush1.msra.mxu0 0.0
        %6360 = vmatprep.subr.mxu0 0.0
        %6361 = vmatpush1.msra.mxu0 0.0
        %6362 = vmatprep.subr.mxu0 0.0
        %6363 = vmatpush1.msra.mxu0 0.0
        %6364 = vmatprep.subr.mxu0 0.0
        %6365 = vmatpush1.msra.mxu0 0.0
        %6366 = vmatprep.mubr.f32.mxu0 %v6207
        %6367 = vmatmul.mubr.f32.gmra.mrb[0].mxu0 %v6117
        %v6368 = vpop.f32.mrb[0].mxu0
        %v6369 = vadd.f32 %v6204, %v6368
        %v6370 = vpop.f32.mrb[0].mxu0
        %6371 = vmatprep.mubr.f32.mxu0 %v6210
        %6372 = vmatmul.mubr.f32.gmra.mrb[0].mxu0 %v6119
        %v6373 = vpop.f32.mrb[0].mxu0
        %v6374 = vadd.f32 %v6204, %v6373
        %v6375 = vpop.f32.mrb[0].mxu0
        %6376 = vmatprep.mubr.f32.mxu0 %v6213
        %6377 = vmatmul.mubr.f32.gmra.mrb[0].mxu0 %v6121
        %v6378 = vpop.f32.mrb[0].mxu0
        %v6379 = vadd.f32 %v6204, %v6378
        %v6380 = vpop.f32.mrb[0].mxu0
        %6381 = vmatprep.mubr.f32.mxu0 %v6216
        %6382 = vmatmul.mubr.f32.gmra.mrb[0].mxu0 %v6123
        %v6383 = vpop.f32.mrb[0].mxu0
        %v6384 = vadd.f32 %v6204, %v6383
        %v6385 = vpop.f32.mrb[0].mxu0
        %6386 = vmatprep.mubr.f32.mxu0 %v6219
        %6387 = vmatmul.mubr.f32.gmra.mrb[0].mxu0 %v6125
        %v6388 = vpop.f32.mrb[0].mxu0
        %v6389 = vadd.f32 %v6204, %v6388
        %v6390 = vpop.f32.mrb[0].mxu0
        %6391 = vmatprep.mubr.f32.mxu0 %v6222
        %6392 = vmatmul.mubr.f32.gmra.mrb[0].mxu0 %v6127
        %v6393 = vpop.f32.mrb[0].mxu0
        %v6394 = vadd.f32 %v6204, %v6393
        %v6395 = vpop.f32.mrb[0].mxu0
        %6396 = vmatprep.mubr.f32.mxu0 %v6225
        %6397 = vmatmul.mubr.f32.gmra.mrb[0].mxu0 %v6129
        %v6398 = vpop.f32.mrb[0].mxu0
        %v6399 = vadd.f32 %v6204, %v6398
        %v6400 = vpop.f32.mrb[0].mxu0
        %6401 = vmatprep.mubr.f32.mxu0 %v6228
        %6402 = vmatmul.mubr.f32.gmra.mrb[0].mxu0 %v6131
        %v6403 = vpop.f32.mrb[0].mxu0
        %v6404 = vadd.f32 %v6204, %v6403
        %v6405 = vpop.f32.mrb[0].mxu0
        %6406 = vmatprep.mubr.f32.mxu0 %v6231
        %6407 = vmatmul.mubr.f32.gmra.mrb[0].mxu0 %v6133
        %v6408 = vpop.f32.mrb[0].mxu0
        %v6409 = vadd.f32 %v6204, %v6408
        %v6410 = vpop.f32.mrb[0].mxu0
        %6411 = vmatprep.mubr.f32.mxu0 %v6234
        %6412 = vmatmul.mubr.f32.gmra.mrb[0].mxu0 %v6135
        %v6413 = vpop.f32.mrb[0].mxu0
        %v6414 = vadd.f32 %v6204, %v6413
        %v6415 = vpop.f32.mrb[0].mxu0
        %6416 = vmatprep.mubr.f32.mxu0 %v6237
        %6417 = vmatmul.mubr.f32.gmra.mrb[0].mxu0 %v6137
        %v6418 = vpop.f32.mrb[0].mxu0
        %v6419 = vadd.f32 %v6204, %v6418
        %v6420 = vpop.f32.mrb[0].mxu0
        %6421 = vmatprep.mubr.f32.mxu0 %v6240
        %6422 = vmatmul.mubr.f32.gmra.mrb[0].mxu0 %v6139
        %v6423 = vpop.f32.mrb[0].mxu0
        %v6424 = vadd.f32 %v6204, %v6423
        %v6425 = vpop.f32.mrb[0].mxu0
        %6426 = vmatprep.mubr.f32.mxu0 %v6243
        %6427 = vmatmul.mubr.f32.gmra.mrb[0].mxu0 %v6141
        %v6428 = vpop.f32.mrb[0].mxu0
        %v6429 = vadd.f32 %v6204, %v6428
        %v6430 = vpop.f32.mrb[0].mxu0
        %6431 = vmatprep.mubr.f32.mxu0 %v6246
        %6432 = vmatmul.mubr.f32.gmra.mrb[0].mxu0 %v6143
        %v6433 = vpop.f32.mrb[0].mxu0
        %v6434 = vadd.f32 %v6204, %v6433
        %v6435 = vpop.f32.mrb[0].mxu0
        %6436 = vmatprep.mubr.f32.mxu0 %v6249
        %6437 = vmatmul.mubr.f32.gmra.mrb[0].mxu0 %v6145
        %v6438 = vpop.f32.mrb[0].mxu0
        %v6439 = vadd.f32 %v6204, %v6438
        %v6440 = vpop.f32.mrb[0].mxu0
        %6441 = vmatprep.mubr.f32.mxu0 %v6252
        %6442 = vmatmul.mubr.f32.gmra.mrb[0].mxu0 %v6147
        %v6443 = vpop.f32.mrb[0].mxu0
        %v6444 = vadd.f32 %v6204, %v6443
        %v6445 = vpop.f32.mrb[0].mxu0
        %6446 = vmatprep.mubr.f32.mxu0 %v6255
        %6447 = vmatmul.mubr.f32.gmra.mrb[0].mxu0 %v6149
        %v6448 = vpop.f32.mrb[0].mxu0
        %v6449 = vadd.f32 %v6204, %v6448
        %v6450 = vpop.f32.mrb[0].mxu0
        %6451 = vmatprep.mubr.f32.mxu0 %v6258
        %6452 = vmatmul.mubr.f32.gmra.mrb[0].mxu0 %v6151
        %v6453 = vpop.f32.mrb[0].mxu0
        %v6454 = vadd.f32 %v6204, %v6453
        %v6455 = vpop.f32.mrb[0].mxu0
        %6456 = vmatprep.mubr.f32.mxu0 %v6261
        %6457 = vmatmul.mubr.f32.gmra.mrb[0].mxu0 %v6153
        %v6458 = vpop.f32.mrb[0].mxu0
        %v6459 = vadd.f32 %v6204, %v6458
        %v6460 = vpop.f32.mrb[0].mxu0
        %6461 = vmatprep.mubr.f32.mxu0 %v6264
        %6462 = vmatmul.mubr.f32.gmra.mrb[0].mxu0 %v6155
        %v6463 = vpop.f32.mrb[0].mxu0
        %v6464 = vadd.f32 %v6204, %v6463
        %v6465 = vpop.f32.mrb[0].mxu0
        %6466 = vmatprep.mubr.f32.mxu0 %v6267
        %6467 = vmatmul.mubr.f32.gmra.mrb[0].mxu0 %v6157
        %v6468 = vpop.f32.mrb[0].mxu0
        %v6469 = vadd.f32 %v6204, %v6468
        %v6470 = vpop.f32.mrb[0].mxu0
        %6471 = vmatprep.mubr.f32.mxu0 %v6270
        %6472 = vmatmul.mubr.f32.gmra.mrb[0].mxu0 %v6159
        %v6473 = vpop.f32.mrb[0].mxu0
        %v6474 = vadd.f32 %v6204, %v6473
        %v6475 = vpop.f32.mrb[0].mxu0
        %6476 = vmatprep.mubr.f32.mxu0 %v6273
        %6477 = vmatmul.mubr.f32.gmra.mrb[0].mxu0 %v6161
        %v6478 = vpop.f32.mrb[0].mxu0
        %v6479 = vadd.f32 %v6204, %v6478
        %v6480 = vpop.f32.mrb[0].mxu0
        %6481 = vmatprep.mubr.f32.mxu0 %v6276
        %6482 = vmatmul.mubr.f32.gmra.mrb[0].mxu0 %v6163
        %v6483 = vpop.f32.mrb[0].mxu0
        %v6484 = vadd.f32 %v6204, %v6483
        %v6485 = vpop.f32.mrb[0].mxu0
        %6486 = vmatprep.mubr.f32.mxu0 %v6279
        %6487 = vmatmul.mubr.f32.gmra.mrb[0].mxu0 %v6165
        %v6488 = vpop.f32.mrb[0].mxu0
        %v6489 = vadd.f32 %v6204, %v6488
        %v6490 = vpop.f32.mrb[0].mxu0
        %6491 = vmatprep.mubr.f32.mxu0 %v6282
        %6492 = vmatmul.mubr.f32.gmra.mrb[0].mxu0 %v6167
        %v6493 = vpop.f32.mrb[0].mxu0
        %v6494 = vadd.f32 %v6204, %v6493
        %v6495 = vpop.f32.mrb[0].mxu0
        %6496 = vmatprep.mubr.f32.mxu0 %v6285
        %6497 = vmatmul.mubr.f32.gmra.mrb[0].mxu0 %v6169
        %v6498 = vpop.f32.mrb[0].mxu0
        %v6499 = vadd.f32 %v6204, %v6498
        %v6500 = vpop.f32.mrb[0].mxu0
        %6501 = vmatprep.mubr.f32.mxu0 %v6288
        %6502 = vmatmul.mubr.f32.gmra.mrb[0].mxu0 %v6171
        %v6503 = vpop.f32.mrb[0].mxu0
        %v6504 = vadd.f32 %v6204, %v6503
        %v6505 = vpop.f32.mrb[0].mxu0
        %6506 = vmatprep.mubr.f32.mxu0 %v6291
        %6507 = vmatmul.mubr.f32.gmra.mrb[0].mxu0 %v6173
        %v6508 = vpop.f32.mrb[0].mxu0
        %v6509 = vadd.f32 %v6204, %v6508
        %v6510 = vpop.f32.mrb[0].mxu0
        %6511 = vmatprep.mubr.f32.mxu0 %v6294
        %6512 = vmatmul.mubr.f32.gmra.mrb[0].mxu0 %v6175
        %v6513 = vpop.f32.mrb[0].mxu0
        %v6514 = vadd.f32 %v6204, %v6513
        %v6515 = vpop.f32.mrb[0].mxu0
        %6516 = vmatprep.mubr.f32.mxu0 %v6297
        %6517 = vmatmul.mubr.f32.gmra.mrb[0].mxu0 %v6177
        %v6518 = vpop.f32.mrb[0].mxu0
        %v6519 = vadd.f32 %v6204, %v6518
        %v6520 = vpop.f32.mrb[0].mxu0
        %6521 = vmatprep.mubr.f32.mxu0 %v6300
        %6522 = vmatmul.mubr.f32.gmra.mrb[0].mxu0 %v6179
        %v6523 = vpop.f32.mrb[0].mxu0
        %v6524 = vadd.f32 %v6204, %v6523
        %v6525 = vpop.f32.mrb[0].mxu0
        %6526 = vdwg.mxu0
        %v6527 = vmax.f32 %v6369, 0.0
        %v6528 = vmax.f32 %v6374, 0.0
        %v6529 = vmax.f32 %v6379, 0.0
        %v6530 = vmax.f32 %v6384, 0.0
        %v6531 = vmax.f32 %v6389, 0.0
        %v6532 = vmax.f32 %v6394, 0.0
        %v6533 = vmax.f32 %v6399, 0.0
        %v6534 = vmax.f32 %v6404, 0.0
        %v6535 = vmax.f32 %v6409, 0.0
        %v6536 = vmax.f32 %v6414, 0.0
        %v6537 = vmax.f32 %v6419, 0.0
        %v6538 = vmax.f32 %v6424, 0.0
        %v6539 = vmax.f32 %v6429, 0.0
        %v6540 = vmax.f32 %v6434, 0.0
        %v6541 = vmax.f32 %v6439, 0.0
        %v6542 = vmax.f32 %v6444, 0.0
        %v6543 = vmax.f32 %v6449, 0.0
        %v6544 = vmax.f32 %v6454, 0.0
        %v6545 = vmax.f32 %v6459, 0.0
        %v6546 = vmax.f32 %v6464, 0.0
        %v6547 = vmax.f32 %v6469, 0.0
        %v6548 = vmax.f32 %v6474, 0.0
        %v6549 = vmax.f32 %v6479, 0.0
        %v6550 = vmax.f32 %v6484, 0.0
        %v6551 = vmax.f32 %v6489, 0.0
        %v6552 = vmax.f32 %v6494, 0.0
        %v6553 = vmax.f32 %v6499, 0.0
        %v6554 = vmax.f32 %v6504, 0.0
        %v6555 = vmax.f32 %v6509, 0.0
        %v6556 = vmax.f32 %v6514, 0.0
        %v6557 = vmax.f32 %v6519, 0.0
        %v6558 = vmax.f32 %v6524, 0.0
        %vm6559 = vcmask 261120
        %6560 = vst.msk [vmem:[%s316] sm:$0xff] %vm6559, %v6527
        %6561 = vst.msk [vmem:[%s316 + $0x8] sm:$0xff] %vm6559, %v6528
        %6562 = vst.msk [vmem:[%s316 + $0x10] sm:$0xff] %vm6559, %v6529
        %6563 = vst.msk [vmem:[%s316 + $0x18] sm:$0xff] %vm6559, %v6530
        %6564 = vst.msk [vmem:[%s316 + $0x20] sm:$0xff] %vm6559, %v6531
        %6565 = vst.msk [vmem:[%s316 + $0x28] sm:$0xff] %vm6559, %v6532
        %6566 = vst.msk [vmem:[%s316 + $0x30] sm:$0xff] %vm6559, %v6533
        %6567 = vst.msk [vmem:[%s316 + $0x38] sm:$0xff] %vm6559, %v6534
        %6568 = vst.msk [vmem:[%s316 + $0x40] sm:$0xff] %vm6559, %v6535
        %6569 = vst.msk [vmem:[%s316 + $0x48] sm:$0xff] %vm6559, %v6536
        %6570 = vst.msk [vmem:[%s316 + $0x50] sm:$0xff] %vm6559, %v6537
        %6571 = vst.msk [vmem:[%s316 + $0x58] sm:$0xff] %vm6559, %v6538
        %6572 = vst.msk [vmem:[%s316 + $0x60] sm:$0xff] %vm6559, %v6539
        %6573 = vst.msk [vmem:[%s316 + $0x68] sm:$0xff] %vm6559, %v6540
        %6574 = vst.msk [vmem:[%s316 + $0x70] sm:$0xff] %vm6559, %v6541
        %6575 = vst.msk [vmem:[%s316 + $0x78] sm:$0xff] %vm6559, %v6542
        %6576 = vst.msk [vmem:[%s316 + $0x80] sm:$0xff] %vm6559, %v6543
        %6577 = vst.msk [vmem:[%s316 + $0x88] sm:$0xff] %vm6559, %v6544
        %6578 = vst.msk [vmem:[%s316 + $0x90] sm:$0xff] %vm6559, %v6545
        %6579 = vst.msk [vmem:[%s316 + $0x98] sm:$0xff] %vm6559, %v6546
        %6580 = vst.msk [vmem:[%s316 + $0xa0] sm:$0xff] %vm6559, %v6547
        %6581 = vst.msk [vmem:[%s316 + $0xa8] sm:$0xff] %vm6559, %v6548
        %6582 = vst.msk [vmem:[%s316 + $0xb0] sm:$0xff] %vm6559, %v6549
        %6583 = vst.msk [vmem:[%s316 + $0xb8] sm:$0xff] %vm6559, %v6550
        %6584 = vst.msk [vmem:[%s316 + $0xc0] sm:$0xff] %vm6559, %v6551
        %6585 = vst.msk [vmem:[%s316 + $0xc8] sm:$0xff] %vm6559, %v6552
        %6586 = vst.msk [vmem:[%s316 + $0xd0] sm:$0xff] %vm6559, %v6553
        %6587 = vst.msk [vmem:[%s316 + $0xd8] sm:$0xff] %vm6559, %v6554
        %6588 = vst.msk [vmem:[%s316 + $0xe0] sm:$0xff] %vm6559, %v6555
        %6589 = vst.msk [vmem:[%s316 + $0xe8] sm:$0xff] %vm6559, %v6556
        %6590 = vst.msk [vmem:[%s316 + $0xf0] sm:$0xff] %vm6559, %v6557
        %6591 = vst.msk [vmem:[%s316 + $0xf8] sm:$0xff] %vm6559, %v6558
        %p6592 = scmp.lt.s32.totalorder %s20, 1
        %s6593 = scalar_select %p6592, %s20, 1
        %s6594 = smul.addr %s6593, 32
        %s6595 = smul.addr %s6594, 8
        %s6596 = scalar_lea.vmem %s7, %s6595
        // Predicated region
        $region61: #{qnetwork_forward.2} parent=47 // pred_check
          %p6597 = pneg %p190
        $region62: #{qnetwork_forward.2} parent=47 // pred_check_branch
          %6599 = sbr.rel (%p6597) target = $region64
        $region63: #{qnetwork_forward.2} parent=47 // pred_region
          _
        $region64: #{qnetwork_forward.2} parent=47 // pred_fallthru
          _
      $region48: #{qnetwork_forward.2} parent=5 // pred_fallthru
        _
      %p6600 = scmp.le.s32.totalorder 2, %s15
      // Predicated region
      $region65: #{qnetwork_forward.2} parent=5 // pred_check
        %p6601 = pneg %p6600
      $region66: #{qnetwork_forward.2} parent=5 // pred_check_branch
        %6603 = sbr.rel (%p6601) target = $region68
      $region67: #{qnetwork_forward.2} parent=5 // pred_region
        %s6604 = ssub.s32 %s15, 2
        // Predicated region
        $region69: #{qnetwork_forward.2} parent=67 // pred_check
          %p6605 = pneg %p196
        $region70: #{qnetwork_forward.2} parent=67 // pred_check_branch
          %6607 = sbr.rel (%p6605) target = $region72
        $region71: #{qnetwork_forward.2} parent=67 // pred_region
          %p6608 = scmp.lt.s32.totalorder %s21, 1
          %s6609 = scalar_select %p6608, %s21, 1
          %s6610 = smul.addr %s6609, 32
          %s6611 = smul.addr %s6610, 8
          %s6612 = scalar_lea.vmem %s7, %s6611
        $region72: #{qnetwork_forward.2} parent=67 // pred_fallthru
          _
      $region68: #{qnetwork_forward.2} parent=5 // pred_fallthru
        _
    $region6: #{qnetwork_forward.2} parent=1 // loop_footer
      %s19 = sadd.s32 1, %s15
    $region7: #{qnetwork_forward.2} parent=1 // loop_footer_branch
      %14 = sbr.rel target = $region3
    $region8: #{qnetwork_forward.2} parent=1 // loop_exit
      _
    %6613 = vsyncpa [#allocation9], 1
    %s6614 = scalar_lea.sflag [#allocation9], 1
    %6615 = vsyncpa %s6614, 1
    %6616 = vsyncpa [#allocation11], 1

</llo_original>
